<compile_context>
chip_gen: v7x
topology: tpu7x:2x2x1
jax: 0.10.0
libtpu: 0.0.40
codegen_flags: <defaults>
</compile_context>

<pallas_src>
import functools
import math

import jax
import jax.numpy as jnp
from jax.experimental import pallas as pl
from jax.experimental.pallas import tpu as pltpu

_INV_SQRT2 = 1.0 / math.sqrt(2.0)


def _gelu_exact(h):
    """Exact (erf-based) GELU in f32 -- matches torch.nn.GELU() default."""
    return 0.5 * h * (1.0 + jax.lax.erf(h * _INV_SQRT2))


def _mlp_kernel_fused(x_ref, w1_ref, b1_ref, w2_ref, b2_ref, o_ref, *, matmul_dtype):
    """Single pass (tile_h == H): both weights VMEM-resident, no accumulator scratch."""
    h = jnp.dot(x_ref[...], w1_ref[...], preferred_element_type=jnp.float32) + b1_ref[...]
    g = _gelu_exact(h)                                     # (Dropout: identity in eval mode.)
    out = jnp.dot(g.astype(matmul_dtype), w2_ref[...], preferred_element_type=jnp.float32)
    o_ref[...] = (out + b2_ref[...]).astype(o_ref.dtype)   # (Dropout: identity in eval mode.)


def _mlp_kernel_tiled(x_ref, w1_ref, b1_ref, w2_ref, b2_ref, o_ref, acc_ref, *, matmul_dtype):
    """Fallback for very large H: accumulate the second matmul over H tiles (grid axis 1, last)."""
    h_idx = pl.program_id(1)

    @pl.when(h_idx == 0)
    def _():
        acc_ref[...] = jnp.zeros_like(acc_ref)

    h = jnp.dot(x_ref[...], w1_ref[...], preferred_element_type=jnp.float32) + b1_ref[...]
    g = _gelu_exact(h)
    acc_ref[...] += jnp.dot(g.astype(matmul_dtype), w2_ref[...],
                            preferred_element_type=jnp.float32)

    @pl.when(h_idx == pl.num_programs(1) - 1)
    def _():
        # b2 added exactly once, at the final H step.
        o_ref[...] = (acc_ref[...] + b2_ref[...]).astype(o_ref.dtype)


def _vmem_capacity_bytes():
    try:
        return int(pltpu.get_tpu_info().vmem_capacity_bytes)
    except Exception:
        return 64 * 1024 * 1024   # conservative: v7x has 64 MiB per TensorCore


def _row_tile(N, tile_n_max):
    """Largest multiple-of-8 divisor of N <= tile_n_max, capped so grid axis 0 keeps >= 2
    steps (v7x megacore).  Falls back to padding only when no such divisor exists."""
    cap = min(tile_n_max, N)
    if N >= 16:
        cap = min(cap, N // 2)
    best, d = 0, 8
    while d <= cap:
        if N % d == 0:
            best = d
        d += 8
    if best:
        return best, N
    tile_n = max(8, (min(tile_n_max, ((N + 7) // 8) * 8) // 8) * 8)
    n_pad = -(-N // tile_n) * tile_n
    return tile_n, n_pad


def _choose_plan(N, E, H, x_bytes, out_bytes, w_bytes, tile_n_max, vmem_budget):
    """Returns (tile_n, n_pad, tile_h, vmem_need_bytes)."""

    def fused_need(tn):
        return (2 * tn * E * (x_bytes + out_bytes)   # x + out, double-buffered
                + 2 * 2 * E * H * w_bytes            # W1 + W2 (2 buffers each, conservative)
                + 2 * (H + E) * 4                    # biases (f32)
                + tn * H * (4 + w_bytes))            # h (f32) + g (matmul dtype) intermediates

    def tiled_need(tn, th):
        return (2 * tn * E * (x_bytes + out_bytes)
                + 2 * 2 * E * th * w_bytes           # W1 / W2 tiles, double-buffered
                + 2 * (th + E) * 4
                + tn * E * 4                         # f32 accumulator scratch
                + tn * th * (4 + w_bytes))           # intermediates

    tile_n, n_pad = _row_tile(N, tile_n_max)

    # Preferred plan: weights fully resident (tile_h = H).  Shrink the row tile if needed --
    # with resident weights a smaller row tile costs only per-step overhead, not re-DMA.
    tn = tile_n
    while tn > 8 and fused_need(tn) > vmem_budget:
        nxt = max(8, ((tn // 2) // 8) * 8)
        while nxt > 8 and n_pad % nxt != 0:
            nxt -= 8
        if nxt >= tn:
            break
        tn = nxt
    if fused_need(tn) <= vmem_budget:
        return tn, n_pad, H, fused_need(tn)

    # Fallback: tile the hidden dimension; keep the big row tile so weight re-streaming
    # (once per row tile in this path) stays amortized.
    th = (H // 128) * 128 if H >= 128 else H
    while th > 128 and (H % th != 0 or tiled_need(tile_n, th) > vmem_budget):
        th -= 128
    if th <= 0 or H % th != 0:
        th = H
    return tile_n, n_pad, th, tiled_need(tile_n, th)


def mlp_forward(x, w1, b1, w2, b2, *, matmul_dtype=jnp.bfloat16, tile_n_max=2048):
    """x: (B, S, E).  w1: (E, H), b1: (H,), w2: (H, E), b2: (E,).  Returns (B, S, E)."""
    B, S, E = x.shape
    E_in, H = w1.shape
    assert E_in == E and w2.shape == (H, E) and b1.shape == (H,) and b2.shape == (E,)
    N = B * S
    out_dtype = x.dtype

    x_bytes = jnp.dtype(matmul_dtype).itemsize
    w_bytes = jnp.dtype(matmul_dtype).itemsize
    out_bytes = jnp.dtype(out_dtype).itemsize

    capacity = _vmem_capacity_bytes()
    budget = int(0.7 * capacity)
    tile_n, n_pad, tile_h, vmem_need = _choose_plan(
        N, E, H, x_bytes, out_bytes, w_bytes, tile_n_max, budget)

    # Cast x once in the wrapper (halves DMA/VMEM for bf16, removes the in-kernel re-cast).
    x2d = x.reshape(N, E).astype(matmul_dtype)
    if n_pad != N:  # only when N has no usable multiple-of-8 divisor
        x2d = jnp.pad(x2d, ((0, n_pad - N), (0, 0)))

    w1c = w1.astype(matmul_dtype)
    w2c = w2.astype(matmul_dtype)
    b1_2d = b1.reshape(1, H).astype(jnp.float32)
    b2_2d = b2.reshape(1, E).astype(jnp.float32)

    n_row_steps = n_pad // tile_n
    fused = (tile_h == H)

    vmem_limit = int(min(max(2 * vmem_need, 32 * 1024 * 1024), (capacity * 9) // 10))

    flops = 4 * n_pad * E * H                       # two matmuls, 2*N*E*H each
    weight_streams = 1 if fused else n_row_steps    # weights re-stream per row tile if tiled
    bytes_accessed = (n_pad * E * (x_bytes + out_bytes)
                      + weight_streams * 2 * E * H * w_bytes
                      + (H + E) * 4)
    cost = pl.CostEstimate(flops=flops, transcendentals=n_pad * H,
                           bytes_accessed=bytes_accessed)

    if fused:
        kernel = functools.partial(_mlp_kernel_fused, matmul_dtype=matmul_dtype)
        grid = (n_row_steps,)
        in_specs = [
            pl.BlockSpec((tile_n, E), lambda i: (i, 0)),   # x rows
            pl.BlockSpec((E, H), lambda i: (0, 0)),        # W1 (resident, DMA'd once)
            pl.BlockSpec((1, H), lambda i: (0, 0)),        # b1 (resident)
            pl.BlockSpec((H, E), lambda i: (0, 0)),        # W2 (resident, DMA'd once)
            pl.BlockSpec((1, E), lambda i: (0, 0)),        # b2 (resident)
        ]
        out_specs = pl.BlockSpec((tile_n, E), lambda i: (i, 0))
        scratch_shapes = []
        dim_sem = ("parallel",)
    else:
        kernel = functools.partial(_mlp_kernel_tiled, matmul_dtype=matmul_dtype)
        grid = (n_row_steps, H // tile_h)
        in_specs = [
            pl.BlockSpec((tile_n, E), lambda i, h: (i, 0)),   # x rows (resident across h)
            pl.BlockSpec((E, tile_h), lambda i, h: (0, h)),   # W1 column tile
            pl.BlockSpec((1, tile_h), lambda i, h: (0, h)),   # b1 tile
            pl.BlockSpec((tile_h, E), lambda i, h: (h, 0)),   # W2 row tile
            pl.BlockSpec((1, E), lambda i, h: (0, 0)),        # b2 (resident)
        ]
        out_specs = pl.BlockSpec((tile_n, E), lambda i, h: (i, 0))
        scratch_shapes = [pltpu.VMEM((tile_n, E), jnp.float32)]
        dim_sem = ("parallel", "arbitrary")   # reduction (H) axis last + sequential

    out2d = pl.pallas_call(
        kernel,
        out_shape=jax.ShapeDtypeStruct((n_pad, E), out_dtype),
        grid=grid,
        in_specs=in_specs,
        out_specs=out_specs,
        scratch_shapes=scratch_shapes,
        compiler_params=pltpu.CompilerParams(
            dimension_semantics=dim_sem,
            vmem_limit_bytes=vmem_limit,
        ),
        cost_estimate=cost,
    )(x2d, w1c, b1_2d, w2c, b2_2d)

    if n_pad != N:
        out2d = out2d[:N]
    return out2d.reshape(B, S, E)


def _reference(x2d, w1, b1, w2, b2):
    h = x2d @ w1 + b1
    g = 0.5 * h * (1.0 + jax.lax.erf(h * _INV_SQRT2))
    return g @ w2 + b2


if __name__ == "__main__":
    # Small but lane-aligned shapes (E, H multiples of 128) so stores are full-width vst and
    # the row axis gets 2 parallel steps (shardable across v7x's two TensorCores).
    embed_dim = 128   # E
    ll_dim = 1024     # H (hidden width)
    batch, seq = 4, 256

    key = jax.random.PRNGKey(0)
    kx, kw1, kb1, kw2, kb2 = jax.random.split(key, 5)

    x = jax.random.normal(kx, (batch, seq, embed_dim), dtype=jnp.float32)

    # Deterministic parameter init (PyTorch nn.Linear-style uniform bounds),
    # stored pre-transposed as (in_features, out_features).
    bound1 = 1.0 / math.sqrt(embed_dim)
    w1 = jax.random.uniform(kw1, (embed_dim, ll_dim), jnp.float32, -bound1, bound1)
    b1 = jax.random.uniform(kb1, (ll_dim,), jnp.float32, -bound1, bound1)

    bound2 = 1.0 / math.sqrt(ll_dim)
    w2 = jax.random.uniform(kw2, (ll_dim, embed_dim), jnp.float32, -bound2, bound2)
    b2 = jax.random.uniform(kb2, (embed_dim,), jnp.float32, -bound2, bound2)

    ref = _reference(x.reshape(-1, embed_dim), w1, b1, w2, b2).reshape(batch, seq, embed_dim)

    # Full-precision path: tight check against the f32 reference.
    out_f32 = jax.block_until_ready(
        mlp_forward(x, w1, b1, w2, b2, matmul_dtype=jnp.float32))
    assert out_f32.shape == (batch, seq, embed_dim)
    assert jnp.allclose(out_f32, ref, atol=2e-4, rtol=2e-4), "f32 path mismatch vs reference"

    # Default bf16-input / f32-accumulate path: MXU-optimal, looser tolerance.
    out_bf16 = jax.block_until_ready(mlp_forward(x, w1, b1, w2, b2))
    assert out_bf16.shape == (batch, seq, embed_dim)
    assert jnp.allclose(out_bf16, ref, atol=5e-2, rtol=5e-2), "bf16 path mismatch vs reference"

    print("KERNEL_OK")
</pallas_src>

<mosaic_0001>
module attributes {stable_mosaic.version = 11 : i64} {
  func.func @_mlp_kernel_fused(%arg0: i32, %arg1: memref<512x128xf32, #tpu.memory_space<vmem>>, %arg2: memref<128x1024xf32, #tpu.memory_space<vmem>>, %arg3: memref<1x1024xf32, #tpu.memory_space<vmem>>, %arg4: memref<1024x128xf32, #tpu.memory_space<vmem>>, %arg5: memref<1x128xf32, #tpu.memory_space<vmem>>, %arg6: memref<512x128xf32, #tpu.memory_space<vmem>>) attributes {dimension_semantics = [#tpu.dimension_semantics<parallel>], iteration_bounds = array<i64: 2>, scalar_prefetch = 0 : i64, scratch_operands = 0 : i64, tpu.core_type = #tpu.core_type<tc>, window_params = [{transform_indices = @transform_0, window_bounds = array<i64: 512, 128>}, {pipeline_mode = #tpu.pipeline_mode<synchronous>, transform_indices = @transform_1, window_bounds = array<i64: 128, 1024>}, {pipeline_mode = #tpu.pipeline_mode<synchronous>, transform_indices = @transform_2, window_bounds = array<i64: 1, 1024>}, {pipeline_mode = #tpu.pipeline_mode<synchronous>, transform_indices = @transform_3, window_bounds = array<i64: 1024, 128>}, {pipeline_mode = #tpu.pipeline_mode<synchronous>, transform_indices = @transform_4, window_bounds = array<i64: 1, 128>}, {transform_indices = @transform_5, window_bounds = array<i64: 512, 128>}]} {
    %c0 = arith.constant 0 : index
    %c0_0 = arith.constant 0 : index
    %0 = vector.load %arg1[%c0, %c0_0] : memref<512x128xf32, #tpu.memory_space<vmem>>, vector<512x128xf32>
    %c0_1 = arith.constant 0 : index
    %c0_2 = arith.constant 0 : index
    %1 = vector.load %arg2[%c0_1, %c0_2] : memref<128x1024xf32, #tpu.memory_space<vmem>>, vector<128x1024xf32>
    %cst = arith.constant dense<0.000000e+00> : vector<512x1024xf32>
    %2 = tpu.matmul %0, %1, %cst {dimension_numbers = #tpu.dot_dimension_numbers<[1], [0], [0], [1], [0, 0, 1, 1], [], []>} : vector<512x128xf32>, vector<128x1024xf32>, vector<512x1024xf32> -> vector<512x1024xf32>
    %c0_3 = arith.constant 0 : index
    %c0_4 = arith.constant 0 : index
    %3 = vector.load %arg3[%c0_3, %c0_4] : memref<1x1024xf32, #tpu.memory_space<vmem>>, vector<1x1024xf32>
    %4 = vector.broadcast %3 : vector<1x1024xf32> to vector<512x1024xf32>
    %5 = arith.addf %2, %4 : vector<512x1024xf32>
    %cst_5 = arith.constant 5.000000e-01 : f32
    %6 = vector.broadcast %cst_5 : f32 to vector<512x1024xf32>
    %7 = arith.mulf %6, %5 : vector<512x1024xf32>
    %cst_6 = arith.constant 0.707106769 : f32
    %8 = vector.broadcast %cst_6 : f32 to vector<512x1024xf32>
    %9 = arith.mulf %5, %8 : vector<512x1024xf32>
    %10 = math.erf %9 : vector<512x1024xf32>
    %cst_7 = arith.constant 1.000000e+00 : f32
    %11 = vector.broadcast %cst_7 : f32 to vector<512x1024xf32>
    %12 = arith.addf %11, %10 : vector<512x1024xf32>
    %13 = arith.mulf %7, %12 : vector<512x1024xf32>
    %c0_8 = arith.constant 0 : index
    %c0_9 = arith.constant 0 : index
    %14 = vector.load %arg4[%c0_8, %c0_9] : memref<1024x128xf32, #tpu.memory_space<vmem>>, vector<1024x128xf32>
    %cst_10 = arith.constant dense<0.000000e+00> : vector<512x128xf32>
    %15 = tpu.matmul %13, %14, %cst_10 {dimension_numbers = #tpu.dot_dimension_numbers<[1], [0], [0], [1], [0, 0, 1, 1], [], []>} : vector<512x1024xf32>, vector<1024x128xf32>, vector<512x128xf32> -> vector<512x128xf32>
    %c0_11 = arith.constant 0 : index
    %c0_12 = arith.constant 0 : index
    %16 = vector.load %arg5[%c0_11, %c0_12] : memref<1x128xf32, #tpu.memory_space<vmem>>, vector<1x128xf32>
    %17 = vector.broadcast %16 : vector<1x128xf32> to vector<512x128xf32>
    %18 = arith.addf %15, %17 : vector<512x128xf32>
    %c0_13 = arith.constant 0 : index
    %c0_14 = arith.constant 0 : index
    %19 = vector.load %arg6[%c0_13, %c0_14] : memref<512x128xf32, #tpu.memory_space<vmem>>, vector<512x128xf32>
    tpu.vector_store %arg6[%c0_13, %c0_14], %18 {strides = array<i32>} : memref<512x128xf32, #tpu.memory_space<vmem>>, vector<512x128xf32>,
    return
  }
  func.func @transform_0(%arg0: i32) -> (i32, i32) {
    %c0_i32 = arith.constant 0 : i32
    %c0_i32_0 = arith.constant 0 : i32
    return %arg0, %c0_i32 : i32, i32
  }
  func.func @transform_1(%arg0: i32) -> (i32, i32) {
    %c0_i32 = arith.constant 0 : i32
    %c0_i32_0 = arith.constant 0 : i32
    %c0_i32_1 = arith.constant 0 : i32
    return %c0_i32, %c0_i32_0 : i32, i32
  }
  func.func @transform_2(%arg0: i32) -> (i32, i32) {
    %c0_i32 = arith.constant 0 : i32
    %c0_i32_0 = arith.constant 0 : i32
    %c0_i32_1 = arith.constant 0 : i32
    return %c0_i32, %c0_i32_0 : i32, i32
  }
  func.func @transform_3(%arg0: i32) -> (i32, i32) {
    %c0_i32 = arith.constant 0 : i32
    %c0_i32_0 = arith.constant 0 : i32
    %c0_i32_1 = arith.constant 0 : i32
    return %c0_i32, %c0_i32_0 : i32, i32
  }
  func.func @transform_4(%arg0: i32) -> (i32, i32) {
    %c0_i32 = arith.constant 0 : i32
    %c0_i32_0 = arith.constant 0 : i32
    %c0_i32_1 = arith.constant 0 : i32
    return %c0_i32, %c0_i32_0 : i32, i32
  }
  func.func @transform_5(%arg0: i32) -> (i32, i32) {
    %c0_i32 = arith.constant 0 : i32
    %c0_i32_0 = arith.constant 0 : i32
    return %arg0, %c0_i32 : i32, i32
  }
}

</mosaic_0001>

<llo_original>
// kernel: tpu_custom_call.1
$region0: #{tpu_custom_call.1}
  #allocation0 [shape = 'u32[]', space=smem, size = 0x4, offset = 0x4, fixed_abs, tag = 'smem constant byte address 0x4 - core index']
  #allocation1 [shape = 'u32[144,128]{1,0:T(1,128)}', space=vmem, size = 0x12000, scoped, tag = 'internal scratch']
  %s0 = inlined_call_operand.hbm [shape: f32[1024,128], index: 0, kind: input, shape index: {}]
  %s1 = inlined_call_operand.hbm [shape: f32[128,1024], index: 1, kind: input, shape index: {}]
  %s2 = inlined_call_operand.hbm [shape: f32[1,1024], index: 2, kind: input, shape index: {}]
  %s3 = inlined_call_operand.hbm [shape: f32[1024,128], index: 3, kind: input, shape index: {}]
  %s4 = inlined_call_operand.vmem [shape: f32[1,128], index: 4, kind: input, shape index: {}]
  %s5 = inlined_call_operand.hbm [shape: f32[1024,128], index: 5, kind: output, shape index: {}]
  %s6 = sld [smem:[#allocation0]]
  $region69: #{tpu_custom_call.1} parent=0
    _
  %s8 = ssub.s32 1, %s6
  %s9 = scalar_select 0, %s8, %s6
  $region1: #{tpu_custom_call.1} parent=0
    #allocation2 [shape = 'u8[524288]{0}', space=vmem, size = 0x80000, scoped, tag = 'input window, operand 0']
    #allocation3 [shape = 's32[2]{0}', space=sflag, size = 0x8, scoped, tag = 'scoped memory for tpu_custom_call.1']
    #allocation4 [shape = 's32[2]{0}', space=sflag, size = 0x8, scoped, tag = 'scoped memory for tpu_custom_call.1']
    #allocation5 [shape = 'u8[524288]{0}', space=vmem, size = 0x80000, scoped, tag = 'input window, operand 1, single buffered']
    #allocation6 [shape = 's32[1]{0}', space=sflag, size = 0x4, scoped, tag = 'scoped memory for tpu_custom_call.1']
    #allocation7 [shape = 'u8[4096]{0}', space=vmem, size = 0x1000, scoped, tag = 'input window, operand 2, single buffered']
    #allocation8 [shape = 'u8[524288]{0}', space=vmem, size = 0x80000, scoped, tag = 'input window, operand 3, single buffered']
    #allocation9 [shape = 's32[1]{0}', space=sflag, size = 0x4, scoped, tag = 'scoped memory for tpu_custom_call.1']
    #allocation10 [shape = 'u8[524288]{0}', space=vmem, size = 0x80000, scoped, tag = 'output window, operand 0']
    %10 = vsyncpa [#allocation3], 0
    %s11 = scalar_lea.sflag [#allocation3], 1
    %12 = vsyncpa %s11, 0
    %13 = vsyncpa [#allocation6], 0
    %14 = vsyncpa [#allocation9], 0
    %15 = vsyncpa [#allocation4], 0
    %s16 = scalar_lea.sflag [#allocation4], 1
    %17 = vsyncpa %s16, 0
    loop: start=0, step=1, limit=4
    $region2: #{tpu_custom_call.1} parent=1 // loop_pre_header
      _
    $region3: #{tpu_custom_call.1} parent=1 // loop_header
      %s19 = sphi 0, %s23
      %p20 = scmp.ge.s32.totalorder %s19, 4
      %s29 = sphi 0, %s31
      %s32 = sphi 0, %s29
      %s33 = sphi 0, %s32
      %s49 = sphi 0, %s33
      %s53 = sphi 0, %s53
      %s55 = sphi 0, %s53
      %s56 = sphi 0, %s55
      %s70 = sphi 0, %s56
      %s74 = sphi 0, %s74
      %s76 = sphi 0, %s74
      %s77 = sphi 0, %s76
      %s91 = sphi 0, %s77
      %s95 = sphi 0, %s95
      %s97 = sphi 0, %s95
      %s98 = sphi 0, %s97
      %s112 = sphi 0, %s98
      %s116 = sphi 0, %s116
      %s118 = sphi 0, %s116
      %s119 = sphi 0, %s118
      %s133 = sphi 0, %s119
      %s139 = sphi 0, %s141
      %s142 = sphi 0, %s139
      %s143 = sphi 0, %s142
      %s159 = sphi 0, %s143
    $region4: #{tpu_custom_call.1} parent=1 // loop_header_branch
      %22 = sbr.rel (%p20) target = $region8
    $region5: #{tpu_custom_call.1} parent=1 // loop_body
      %s24 = ssub.s32 %s19, 1
      %s25 = ssub.s32 %s19, 2
      %s26 = sadd.s32 %s19, 1
      %s27 = ssub.s32 %s19, %s26
      %p28 = scmp.eq.s32.totalorder %s27, 0
      %s30 = sadd.s32 %s29, 1
      %s31 = scalar_select %p28, %s29, %s30
      %p34 = pneg %p28
      %p35 = scmp.eq.s32.totalorder %s19, 1
      %p36 = por %p34, %p35
      %p37 = scmp.ne.s32.totalorder %s29, %s32
      %p38 = scmp.eq.s32.totalorder %s19, 0
      %p39 = por %p37, %p38
      %p40 = scmp.ne.s32.totalorder %s29, %s32
      %p41 = scmp.eq.s32.totalorder %s24, 1
      %p42 = por %p40, %p41
      %p43 = scmp.ne.s32.totalorder %s32, %s33
      %p44 = scmp.eq.s32.totalorder %s24, 0
      %p45 = por %p43, %p44
      %p46 = scmp.ne.s32.totalorder %s32, %s33
      %p47 = scmp.eq.s32.totalorder %s25, 1
      %p48 = por %p46, %p47
      %p50 = scmp.ne.s32.totalorder %s33, %s49
      %p51 = scmp.eq.s32.totalorder %s25, 0
      %p52 = por %p50, %p51
      %s54 = sadd.s32 %s53, 1
      %p57 = scmp.eq.s32.totalorder %s19, 1
      %p58 = scmp.ne.s32.totalorder %s53, %s55
      %p59 = scmp.eq.s32.totalorder %s19, 0
      %p60 = por %p58, %p59
      %p61 = scmp.ne.s32.totalorder %s53, %s55
      %p62 = scmp.eq.s32.totalorder %s24, 1
      %p63 = por %p61, %p62
      %p64 = scmp.ne.s32.totalorder %s55, %s56
      %p65 = scmp.eq.s32.totalorder %s24, 0
      %p66 = por %p64, %p65
      %p67 = scmp.ne.s32.totalorder %s55, %s56
      %p68 = scmp.eq.s32.totalorder %s25, 1
      %p69 = por %p67, %p68
      %p71 = scmp.ne.s32.totalorder %s56, %s70
      %p72 = scmp.eq.s32.totalorder %s25, 0
      %p73 = por %p71, %p72
      %s75 = sadd.s32 %s74, 1
      %p78 = scmp.eq.s32.totalorder %s19, 1
      %p79 = scmp.ne.s32.totalorder %s74, %s76
      %p80 = scmp.eq.s32.totalorder %s19, 0
      %p81 = por %p79, %p80
      %p82 = scmp.ne.s32.totalorder %s74, %s76
      %p83 = scmp.eq.s32.totalorder %s24, 1
      %p84 = por %p82, %p83
      %p85 = scmp.ne.s32.totalorder %s76, %s77
      %p86 = scmp.eq.s32.totalorder %s24, 0
      %p87 = por %p85, %p86
      %p88 = scmp.ne.s32.totalorder %s76, %s77
      %p89 = scmp.eq.s32.totalorder %s25, 1
      %p90 = por %p88, %p89
      %p92 = scmp.ne.s32.totalorder %s77, %s91
      %p93 = scmp.eq.s32.totalorder %s25, 0
      %p94 = por %p92, %p93
      %s96 = sadd.s32 %s95, 1
      %p99 = scmp.eq.s32.totalorder %s19, 1
      %p100 = scmp.ne.s32.totalorder %s95, %s97
      %p101 = scmp.eq.s32.totalorder %s19, 0
      %p102 = por %p100, %p101
      %p103 = scmp.ne.s32.totalorder %s95, %s97
      %p104 = scmp.eq.s32.totalorder %s24, 1
      %p105 = por %p103, %p104
      %p106 = scmp.ne.s32.totalorder %s97, %s98
      %p107 = scmp.eq.s32.totalorder %s24, 0
      %p108 = por %p106, %p107
      %p109 = scmp.ne.s32.totalorder %s97, %s98
      %p110 = scmp.eq.s32.totalorder %s25, 1
      %p111 = por %p109, %p110
      %p113 = scmp.ne.s32.totalorder %s98, %s112
      %p114 = scmp.eq.s32.totalorder %s25, 0
      %p115 = por %p113, %p114
      %s117 = sadd.s32 %s116, 1
      %p120 = scmp.eq.s32.totalorder %s19, 1
      %p121 = scmp.ne.s32.totalorder %s116, %s118
      %p122 = scmp.eq.s32.totalorder %s19, 0
      %p123 = por %p121, %p122
      %p124 = scmp.ne.s32.totalorder %s116, %s118
      %p125 = scmp.eq.s32.totalorder %s24, 1
      %p126 = por %p124, %p125
      %p127 = scmp.ne.s32.totalorder %s118, %s119
      %p128 = scmp.eq.s32.totalorder %s24, 0
      %p129 = por %p127, %p128
      %p130 = scmp.ne.s32.totalorder %s118, %s119
      %p131 = scmp.eq.s32.totalorder %s25, 1
      %p132 = por %p130, %p131
      %p134 = scmp.ne.s32.totalorder %s119, %s133
      %p135 = scmp.eq.s32.totalorder %s25, 0
      %p136 = por %p134, %p135
      %s137 = ssub.s32 %s19, %s26
      %p138 = scmp.eq.s32.totalorder %s137, 0
      %s140 = sadd.s32 %s139, 1
      %s141 = scalar_select %p138, %s139, %s140
      %p144 = pneg %p138
      %p145 = scmp.eq.s32.totalorder %s19, 1
      %p146 = por %p144, %p145
      %p147 = scmp.ne.s32.totalorder %s139, %s142
      %p148 = scmp.eq.s32.totalorder %s19, 0
      %p149 = por %p147, %p148
      %p150 = scmp.ne.s32.totalorder %s139, %s142
      %p151 = scmp.eq.s32.totalorder %s24, 1
      %p152 = por %p150, %p151
      %p153 = scmp.ne.s32.totalorder %s142, %s143
      %p154 = scmp.eq.s32.totalorder %s24, 0
      %p155 = por %p153, %p154
      %p156 = scmp.ne.s32.totalorder %s142, %s143
      %p157 = scmp.eq.s32.totalorder %s25, 1
      %p158 = por %p156, %p157
      %p160 = scmp.ne.s32.totalorder %s143, %s159
      %p161 = scmp.eq.s32.totalorder %s25, 0
      %p162 = por %p160, %p161
      %p163 = scmp.le.s32.totalorder 1, %s19
      %p164 = scmp.lt.s32.totalorder %s19, 3
      %p165 = pnand %p163, %p164
      %p166 = pneg %p165
      // Predicated region
      $region9: #{tpu_custom_call.1} parent=5 // pred_check
        _
      $region10: #{tpu_custom_call.1} parent=5 // pred_check_branch
        %168 = sbr.rel (%p165) target = $region12
      $region11: #{tpu_custom_call.1} parent=5 // pred_region
        %s169 = ssub.s32 %s19, 1
        // Predicated region
        $region13: #{tpu_custom_call.1} parent=11 // pred_check
          %p170 = pneg %p66
        $region14: #{tpu_custom_call.1} parent=11 // pred_check_branch
          %172 = sbr.rel (%p170) target = $region16
        $region15: #{tpu_custom_call.1} parent=11 // pred_region
          %s174 = ssub.s32 16384, 16384
          %175 = vsyncadd [#allocation6], %s174
          %s176 = sshll.u32 [#allocation5], 4
          %s177 = int_to_ptr.vmem [resolvable:$true] %s176
          %182 = dma.hbm_to_vmem [thread:$0]  %s1, 16384, %s177, [#allocation6], 1024, 1024, 64
        $region16: #{tpu_custom_call.1} parent=11 // pred_fallthru
          _
        // Predicated region
        $region17: #{tpu_custom_call.1} parent=11 // pred_check
          %p183 = pneg %p87
        $region18: #{tpu_custom_call.1} parent=11 // pred_check_branch
          %185 = sbr.rel (%p183) target = $region20
        $region19: #{tpu_custom_call.1} parent=11 // pred_region
          %s187 = ssub.s32 128, 128
          %188 = vsyncadd [#allocation6], %s187
          %s190 = sshll.u32 [#allocation7], 4
          %s191 = int_to_ptr.vmem [resolvable:$true] %s190
          %193 = dma.hbm_to_vmem [thread:$0]  %s2, 128, %s191, [#allocation6]
        $region20: #{tpu_custom_call.1} parent=11 // pred_fallthru
          _
        // Predicated region
        $region21: #{tpu_custom_call.1} parent=11 // pred_check
          %p194 = pneg %p108
        $region22: #{tpu_custom_call.1} parent=11 // pred_check_branch
          %196 = sbr.rel (%p194) target = $region24
        $region23: #{tpu_custom_call.1} parent=11 // pred_region
          %s198 = ssub.s32 16384, 16384
          %199 = vsyncadd [#allocation9], %s198
          %s200 = sshll.u32 [#allocation8], 4
          %s201 = int_to_ptr.vmem [resolvable:$true] %s200
          %206 = dma.hbm_to_vmem [thread:$0]  %s3, 16384, %s201, [#allocation9], 128, 128, 8
        $region24: #{tpu_custom_call.1} parent=11 // pred_fallthru
          _
        // Predicated region
        $region25: #{tpu_custom_call.1} parent=11 // pred_check
          %p207 = pneg %p129
        $region26: #{tpu_custom_call.1} parent=11 // pred_check_branch
          %209 = sbr.rel (%p207) target = $region28
        $region27: #{tpu_custom_call.1} parent=11 // pred_region
          _
        $region28: #{tpu_custom_call.1} parent=11 // pred_fallthru
          _
      $region12: #{tpu_custom_call.1} parent=5 // pred_fallthru
        _
      %p210 = scmp.lt.s32.totalorder %s19, 2
      // Predicated region
      $region29: #{tpu_custom_call.1} parent=5 // pred_check
        %p211 = pneg %p210
      $region30: #{tpu_custom_call.1} parent=5 // pred_check_branch
        %213 = sbr.rel (%p211) target = $region32
      $region31: #{tpu_custom_call.1} parent=5 // pred_region
        // Predicated region
        $region33: #{tpu_custom_call.1} parent=31 // pred_check
          %p214 = pneg %p39
        $region34: #{tpu_custom_call.1} parent=31 // pred_check_branch
          %216 = sbr.rel (%p214) target = $region36
        $region35: #{tpu_custom_call.1} parent=31 // pred_region
          %s217 = sand.u32 %s29, 1
          %s218 = scalar_lea.sflag [#allocation3], %s217
          %s219 = sand.u32 %s29, 1
          %s220 = smul.addr %s219, 512
          %s221 = scalar_lea.vmem [#allocation2], %s220
          %s222 = smul.u32 64, %s19
          %s224 = ssub.s32 8192, 8192
          %225 = vsyncadd %s218, %s224
          %s226 = smul.addr %s222, 128
          %s227 = scalar_lea.hbm %s0, %s226
          %s228 = sshll.u32 %s221, 4
          %s229 = int_to_ptr.vmem [resolvable:$true] %s228
          %234 = dma.hbm_to_vmem [thread:$0]  %s227, 8192, %s229, %s218, 128, 128, 8
        $region36: #{tpu_custom_call.1} parent=31 // pred_fallthru
          _
      $region32: #{tpu_custom_call.1} parent=5 // pred_fallthru
        _
      %p235 = scmp.le.s32.totalorder 1, %s19
      %p236 = scmp.lt.s32.totalorder %s19, 3
      %p237 = pnand %p235, %p236
      %p238 = pneg %p237
      // Predicated region
      $region37: #{tpu_custom_call.1} parent=5 // pred_check
        _
      $region38: #{tpu_custom_call.1} parent=5 // pred_check_branch
        %240 = sbr.rel (%p237) target = $region40
      $region39: #{tpu_custom_call.1} parent=5 // pred_region
        %s241 = ssub.s32 %s19, 1
        %s242 = sand.u32 %s32, 1
        %s243 = scalar_lea.sflag [#allocation3], %s242
        %s244 = sand.u32 %s32, 1
        %s245 = smul.addr %s244, 512
        %s246 = scalar_lea.vmem [#allocation2], %s245
        // Predicated region
        $region41: #{tpu_custom_call.1} parent=39 // pred_check
          %p247 = pneg %p45
        $region42: #{tpu_custom_call.1} parent=39 // pred_check_branch
          %249 = sbr.rel (%p247) target = $region44
        $region43: #{tpu_custom_call.1} parent=39 // pred_region
          %250 = dma.done %s243, 8192
        $region44: #{tpu_custom_call.1} parent=39 // pred_fallthru
          _
        // Predicated region
        $region45: #{tpu_custom_call.1} parent=39 // pred_check
          %p251 = pneg %p66
        $region46: #{tpu_custom_call.1} parent=39 // pred_check_branch
          %253 = sbr.rel (%p251) target = $region48
        $region47: #{tpu_custom_call.1} parent=39 // pred_region
          %254 = dma.done [#allocation6], 16384
        $region48: #{tpu_custom_call.1} parent=39 // pred_fallthru
          _
        // Predicated region
        $region49: #{tpu_custom_call.1} parent=39 // pred_check
          %p255 = pneg %p87
        $region50: #{tpu_custom_call.1} parent=39 // pred_check_branch
          %257 = sbr.rel (%p255) target = $region52
        $region51: #{tpu_custom_call.1} parent=39 // pred_region
          %258 = dma.done [#allocation6], 128
        $region52: #{tpu_custom_call.1} parent=39 // pred_fallthru
          _
        // Predicated region
        $region53: #{tpu_custom_call.1} parent=39 // pred_check
          %p259 = pneg %p108
        $region54: #{tpu_custom_call.1} parent=39 // pred_check_branch
          %261 = sbr.rel (%p259) target = $region56
        $region55: #{tpu_custom_call.1} parent=39 // pred_region
          %262 = dma.done [#allocation9], 16384
        $region56: #{tpu_custom_call.1} parent=39 // pred_fallthru
          _
        %s263 = sand.u32 %s32, 1
        %s264 = scalar_lea.sflag [#allocation3], %s263
        %s265 = sand.u32 %s32, 1
        %s266 = smul.addr %s265, 512
        %s267 = scalar_lea.vmem [#allocation2], %s266
        %p268 = pneg %p45
        %p269 = pneg %p42
        %p270 = pneg %p66
        %p271 = pneg %p63
        %p272 = pneg %p87
        %p273 = pneg %p84
        %p274 = pneg %p108
        %p275 = pneg %p105
        %p276 = pneg %p129
        %p277 = pneg %p126
        %p278 = pneg %p155
        %p279 = pneg %p152
        %s280 = sand.u32 %s142, 1
        %s281 = scalar_lea.sflag [#allocation4], %s280
        %s282 = sand.u32 %s142, 1
        %s283 = smul.addr %s282, 512
        %s284 = scalar_lea.vmem [#allocation10], %s283
        %s285 = smul.u32 64, %s24
        %s286 = smul.u32 64, %s24
        %v287 = vld [vmem:[%s246] sm:$0xff]
        %v288 = vld [vmem:[%s246 + $0x8] sm:$0xff]
        %v289 = vld [vmem:[%s246 + $0x10] sm:$0xff]
        %v290 = vld [vmem:[%s246 + $0x18] sm:$0xff]
        %v291 = vld [vmem:[%s246 + $0x20] sm:$0xff]
        %v292 = vld [vmem:[%s246 + $0x28] sm:$0xff]
        %v293 = vld [vmem:[%s246 + $0x30] sm:$0xff]
        %v294 = vld [vmem:[%s246 + $0x38] sm:$0xff]
        %v295 = vld [vmem:[%s246 + $0x40] sm:$0xff]
        %v296 = vld [vmem:[%s246 + $0x48] sm:$0xff]
        %v297 = vld [vmem:[%s246 + $0x50] sm:$0xff]
        %v298 = vld [vmem:[%s246 + $0x58] sm:$0xff]
        %v299 = vld [vmem:[%s246 + $0x60] sm:$0xff]
        %v300 = vld [vmem:[%s246 + $0x68] sm:$0xff]
        %v301 = vld [vmem:[%s246 + $0x70] sm:$0xff]
        %v302 = vld [vmem:[%s246 + $0x78] sm:$0xff]
        %v303 = vld [vmem:[%s246 + $0x80] sm:$0xff]
        %v304 = vld [vmem:[%s246 + $0x88] sm:$0xff]
        %v305 = vld [vmem:[%s246 + $0x90] sm:$0xff]
        %v306 = vld [vmem:[%s246 + $0x98] sm:$0xff]
        %v307 = vld [vmem:[%s246 + $0xa0] sm:$0xff]
        %v308 = vld [vmem:[%s246 + $0xa8] sm:$0xff]
        %v309 = vld [vmem:[%s246 + $0xb0] sm:$0xff]
        %v310 = vld [vmem:[%s246 + $0xb8] sm:$0xff]
        %v311 = vld [vmem:[%s246 + $0xc0] sm:$0xff]
        %v312 = vld [vmem:[%s246 + $0xc8] sm:$0xff]
        %v313 = vld [vmem:[%s246 + $0xd0] sm:$0xff]
        %v314 = vld [vmem:[%s246 + $0xd8] sm:$0xff]
        %v315 = vld [vmem:[%s246 + $0xe0] sm:$0xff]
        %v316 = vld [vmem:[%s246 + $0xe8] sm:$0xff]
        %v317 = vld [vmem:[%s246 + $0xf0] sm:$0xff]
        %v318 = vld [vmem:[%s246 + $0xf8] sm:$0xff]
        %v319 = vld [vmem:[%s246 + $0x100] sm:$0xff]
        %v320 = vld [vmem:[%s246 + $0x108] sm:$0xff]
        %v321 = vld [vmem:[%s246 + $0x110] sm:$0xff]
        %v322 = vld [vmem:[%s246 + $0x118] sm:$0xff]
        %v323 = vld [vmem:[%s246 + $0x120] sm:$0xff]
        %v324 = vld [vmem:[%s246 + $0x128] sm:$0xff]
        %v325 = vld [vmem:[%s246 + $0x130] sm:$0xff]
        %v326 = vld [vmem:[%s246 + $0x138] sm:$0xff]
        %v327 = vld [vmem:[%s246 + $0x140] sm:$0xff]
        %v328 = vld [vmem:[%s246 + $0x148] sm:$0xff]
        %v329 = vld [vmem:[%s246 + $0x150] sm:$0xff]
        %v330 = vld [vmem:[%s246 + $0x158] sm:$0xff]
        %v331 = vld [vmem:[%s246 + $0x160] sm:$0xff]
        %v332 = vld [vmem:[%s246 + $0x168] sm:$0xff]
        %v333 = vld [vmem:[%s246 + $0x170] sm:$0xff]
        %v334 = vld [vmem:[%s246 + $0x178] sm:$0xff]
        %v335 = vld [vmem:[%s246 + $0x180] sm:$0xff]
        %v336 = vld [vmem:[%s246 + $0x188] sm:$0xff]
        %v337 = vld [vmem:[%s246 + $0x190] sm:$0xff]
        %v338 = vld [vmem:[%s246 + $0x198] sm:$0xff]
        %v339 = vld [vmem:[%s246 + $0x1a0] sm:$0xff]
        %v340 = vld [vmem:[%s246 + $0x1a8] sm:$0xff]
        %v341 = vld [vmem:[%s246 + $0x1b0] sm:$0xff]
        %v342 = vld [vmem:[%s246 + $0x1b8] sm:$0xff]
        %v343 = vld [vmem:[%s246 + $0x1c0] sm:$0xff]
        %v344 = vld [vmem:[%s246 + $0x1c8] sm:$0xff]
        %v345 = vld [vmem:[%s246 + $0x1d0] sm:$0xff]
        %v346 = vld [vmem:[%s246 + $0x1d8] sm:$0xff]
        %v347 = vld [vmem:[%s246 + $0x1e0] sm:$0xff]
        %v348 = vld [vmem:[%s246 + $0x1e8] sm:$0xff]
        %v349 = vld [vmem:[%s246 + $0x1f0] sm:$0xff]
        %v350 = vld [vmem:[%s246 + $0x1f8] sm:$0xff]
        %v351 = vld [vmem:[#allocation5] sm:$0xff]
        %v352 = vld [vmem:[#allocation5 + $0x8] sm:$0xff]
        %v353 = vld [vmem:[#allocation5 + $0x10] sm:$0xff]
        %v354 = vld [vmem:[#allocation5 + $0x18] sm:$0xff]
        %v355 = vld [vmem:[#allocation5 + $0x20] sm:$0xff]
        %v356 = vld [vmem:[#allocation5 + $0x28] sm:$0xff]
        %v357 = vld [vmem:[#allocation5 + $0x30] sm:$0xff]
        %v358 = vld [vmem:[#allocation5 + $0x38] sm:$0xff]
        %v359 = vld [vmem:[#allocation5 + $0x40] sm:$0xff]
        %v360 = vld [vmem:[#allocation5 + $0x48] sm:$0xff]
        %v361 = vld [vmem:[#allocation5 + $0x50] sm:$0xff]
        %v362 = vld [vmem:[#allocation5 + $0x58] sm:$0xff]
        %v363 = vld [vmem:[#allocation5 + $0x60] sm:$0xff]
        %v364 = vld [vmem:[#allocation5 + $0x68] sm:$0xff]
        %v365 = vld [vmem:[#allocation5 + $0x70] sm:$0xff]
        %v366 = vld [vmem:[#allocation5 + $0x78] sm:$0xff]
        %v367 = vld [vmem:[#allocation5 + $0x80] sm:$0xff]
        %v368 = vld [vmem:[#allocation5 + $0x88] sm:$0xff]
        %v369 = vld [vmem:[#allocation5 + $0x90] sm:$0xff]
        %v370 = vld [vmem:[#allocation5 + $0x98] sm:$0xff]
        %v371 = vld [vmem:[#allocation5 + $0xa0] sm:$0xff]
        %v372 = vld [vmem:[#allocation5 + $0xa8] sm:$0xff]
        %v373 = vld [vmem:[#allocation5 + $0xb0] sm:$0xff]
        %v374 = vld [vmem:[#allocation5 + $0xb8] sm:$0xff]
        %v375 = vld [vmem:[#allocation5 + $0xc0] sm:$0xff]
        %v376 = vld [vmem:[#allocation5 + $0xc8] sm:$0xff]
        %v377 = vld [vmem:[#allocation5 + $0xd0] sm:$0xff]
        %v378 = vld [vmem:[#allocation5 + $0xd8] sm:$0xff]
        %v379 = vld [vmem:[#allocation5 + $0xe0] sm:$0xff]
        %v380 = vld [vmem:[#allocation5 + $0xe8] sm:$0xff]
        %v381 = vld [vmem:[#allocation5 + $0xf0] sm:$0xff]
        %v382 = vld [vmem:[#allocation5 + $0xf8] sm:$0xff]
        %v383 = vld [vmem:[#allocation5 + $0x100] sm:$0xff]
        %v384 = vld [vmem:[#allocation5 + $0x108] sm:$0xff]
        %v385 = vld [vmem:[#allocation5 + $0x110] sm:$0xff]
        %v386 = vld [vmem:[#allocation5 + $0x118] sm:$0xff]
        %v387 = vld [vmem:[#allocation5 + $0x120] sm:$0xff]
        %v388 = vld [vmem:[#allocation5 + $0x128] sm:$0xff]
        %v389 = vld [vmem:[#allocation5 + $0x130] sm:$0xff]
        %v390 = vld [vmem:[#allocation5 + $0x138] sm:$0xff]
        %v391 = vld [vmem:[#allocation5 + $0x140] sm:$0xff]
        %v392 = vld [vmem:[#allocation5 + $0x148] sm:$0xff]
        %v393 = vld [vmem:[#allocation5 + $0x150] sm:$0xff]
        %v394 = vld [vmem:[#allocation5 + $0x158] sm:$0xff]
        %v395 = vld [vmem:[#allocation5 + $0x160] sm:$0xff]
        %v396 = vld [vmem:[#allocation5 + $0x168] sm:$0xff]
        %v397 = vld [vmem:[#allocation5 + $0x170] sm:$0xff]
        %v398 = vld [vmem:[#allocation5 + $0x178] sm:$0xff]
        %v399 = vld [vmem:[#allocation5 + $0x180] sm:$0xff]
        %v400 = vld [vmem:[#allocation5 + $0x188] sm:$0xff]
        %v401 = vld [vmem:[#allocation5 + $0x190] sm:$0xff]
        %v402 = vld [vmem:[#allocation5 + $0x198] sm:$0xff]
        %v403 = vld [vmem:[#allocation5 + $0x1a0] sm:$0xff]
        %v404 = vld [vmem:[#allocation5 + $0x1a8] sm:$0xff]
        %v405 = vld [vmem:[#allocation5 + $0x1b0] sm:$0xff]
        %v406 = vld [vmem:[#allocation5 + $0x1b8] sm:$0xff]
        %v407 = vld [vmem:[#allocation5 + $0x1c0] sm:$0xff]
        %v408 = vld [vmem:[#allocation5 + $0x1c8] sm:$0xff]
        %v409 = vld [vmem:[#allocation5 + $0x1d0] sm:$0xff]
        %v410 = vld [vmem:[#allocation5 + $0x1d8] sm:$0xff]
        %v411 = vld [vmem:[#allocation5 + $0x1e0] sm:$0xff]
        %v412 = vld [vmem:[#allocation5 + $0x1e8] sm:$0xff]
        %v413 = vld [vmem:[#allocation5 + $0x1f0] sm:$0xff]
        %v414 = vld [vmem:[#allocation5 + $0x1f8] sm:$0xff]
        %v415 = vld [vmem:[#allocation5 + $0x200] sm:$0xff]
        %v416 = vld [vmem:[#allocation5 + $0x208] sm:$0xff]
        %v417 = vld [vmem:[#allocation5 + $0x210] sm:$0xff]
        %v418 = vld [vmem:[#allocation5 + $0x218] sm:$0xff]
        %v419 = vld [vmem:[#allocation5 + $0x220] sm:$0xff]
        %v420 = vld [vmem:[#allocation5 + $0x228] sm:$0xff]
        %v421 = vld [vmem:[#allocation5 + $0x230] sm:$0xff]
        %v422 = vld [vmem:[#allocation5 + $0x238] sm:$0xff]
        %v423 = vld [vmem:[#allocation5 + $0x240] sm:$0xff]
        %v424 = vld [vmem:[#allocation5 + $0x248] sm:$0xff]
        %v425 = vld [vmem:[#allocation5 + $0x250] sm:$0xff]
        %v426 = vld [vmem:[#allocation5 + $0x258] sm:$0xff]
        %v427 = vld [vmem:[#allocation5 + $0x260] sm:$0xff]
        %v428 = vld [vmem:[#allocation5 + $0x268] sm:$0xff]
        %v429 = vld [vmem:[#allocation5 + $0x270] sm:$0xff]
        %v430 = vld [vmem:[#allocation5 + $0x278] sm:$0xff]
        %v431 = vld [vmem:[#allocation5 + $0x280] sm:$0xff]
        %v432 = vld [vmem:[#allocation5 + $0x288] sm:$0xff]
        %v433 = vld [vmem:[#allocation5 + $0x290] sm:$0xff]
        %v434 = vld [vmem:[#allocation5 + $0x298] sm:$0xff]
        %v435 = vld [vmem:[#allocation5 + $0x2a0] sm:$0xff]
        %v436 = vld [vmem:[#allocation5 + $0x2a8] sm:$0xff]
        %v437 = vld [vmem:[#allocation5 + $0x2b0] sm:$0xff]
        %v438 = vld [vmem:[#allocation5 + $0x2b8] sm:$0xff]
        %v439 = vld [vmem:[#allocation5 + $0x2c0] sm:$0xff]
        %v440 = vld [vmem:[#allocation5 + $0x2c8] sm:$0xff]
        %v441 = vld [vmem:[#allocation5 + $0x2d0] sm:$0xff]
        %v442 = vld [vmem:[#allocation5 + $0x2d8] sm:$0xff]
        %v443 = vld [vmem:[#allocation5 + $0x2e0] sm:$0xff]
        %v444 = vld [vmem:[#allocation5 + $0x2e8] sm:$0xff]
        %v445 = vld [vmem:[#allocation5 + $0x2f0] sm:$0xff]
        %v446 = vld [vmem:[#allocation5 + $0x2f8] sm:$0xff]
        %v447 = vld [vmem:[#allocation5 + $0x300] sm:$0xff]
        %v448 = vld [vmem:[#allocation5 + $0x308] sm:$0xff]
        %v449 = vld [vmem:[#allocation5 + $0x310] sm:$0xff]
        %v450 = vld [vmem:[#allocation5 + $0x318] sm:$0xff]
        %v451 = vld [vmem:[#allocation5 + $0x320] sm:$0xff]
        %v452 = vld [vmem:[#allocation5 + $0x328] sm:$0xff]
        %v453 = vld [vmem:[#allocation5 + $0x330] sm:$0xff]
        %v454 = vld [vmem:[#allocation5 + $0x338] sm:$0xff]
        %v455 = vld [vmem:[#allocation5 + $0x340] sm:$0xff]
        %v456 = vld [vmem:[#allocation5 + $0x348] sm:$0xff]
        %v457 = vld [vmem:[#allocation5 + $0x350] sm:$0xff]
        %v458 = vld [vmem:[#allocation5 + $0x358] sm:$0xff]
        %v459 = vld [vmem:[#allocation5 + $0x360] sm:$0xff]
        %v460 = vld [vmem:[#allocation5 + $0x368] sm:$0xff]
        %v461 = vld [vmem:[#allocation5 + $0x370] sm:$0xff]
        %v462 = vld [vmem:[#allocation5 + $0x378] sm:$0xff]
        %v463 = vld [vmem:[#allocation5 + $0x380] sm:$0xff]
        %v464 = vld [vmem:[#allocation5 + $0x388] sm:$0xff]
        %v465 = vld [vmem:[#allocation5 + $0x390] sm:$0xff]
        %v466 = vld [vmem:[#allocation5 + $0x398] sm:$0xff]
        %v467 = vld [vmem:[#allocation5 + $0x3a0] sm:$0xff]
        %v468 = vld [vmem:[#allocation5 + $0x3a8] sm:$0xff]
        %v469 = vld [vmem:[#allocation5 + $0x3b0] sm:$0xff]
        %v470 = vld [vmem:[#allocation5 + $0x3b8] sm:$0xff]
        %v471 = vld [vmem:[#allocation5 + $0x3c0] sm:$0xff]
        %v472 = vld [vmem:[#allocation5 + $0x3c8] sm:$0xff]
        %v473 = vld [vmem:[#allocation5 + $0x3d0] sm:$0xff]
        %v474 = vld [vmem:[#allocation5 + $0x3d8] sm:$0xff]
        %v475 = vld [vmem:[#allocation5 + $0x3e0] sm:$0xff]
        %v476 = vld [vmem:[#allocation5 + $0x3e8] sm:$0xff]
        %v477 = vld [vmem:[#allocation5 + $0x3f0] sm:$0xff]
        %v478 = vld [vmem:[#allocation5 + $0x3f8] sm:$0xff]
        %v479 = vld [vmem:[#allocation7] sm:$0xff]
        %v481 = vlaneseq
        %v482 = vshrl.u32 %v481, 7
        %v483 = vsub.s32 0, %v482
        %v484 = vrot.slane %v479, %v483
        %v485 = vlaneseq
        %v486 = vshrl.u32 %v485, 7
        %v487 = vsub.s32 1, %v486
        %v488 = vrot.slane %v479, %v487
        %v489 = vlaneseq
        %v490 = vshrl.u32 %v489, 7
        %v491 = vsub.s32 2, %v490
        %v492 = vrot.slane %v479, %v491
        %v493 = vlaneseq
        %v494 = vshrl.u32 %v493, 7
        %v495 = vsub.s32 3, %v494
        %v496 = vrot.slane %v479, %v495
        %v497 = vlaneseq
        %v498 = vshrl.u32 %v497, 7
        %v499 = vsub.s32 4, %v498
        %v500 = vrot.slane %v479, %v499
        %v501 = vlaneseq
        %v502 = vshrl.u32 %v501, 7
        %v503 = vsub.s32 5, %v502
        %v504 = vrot.slane %v479, %v503
        %v505 = vlaneseq
        %v506 = vshrl.u32 %v505, 7
        %v507 = vsub.s32 6, %v506
        %v508 = vrot.slane %v479, %v507
        %v509 = vlaneseq
        %v510 = vshrl.u32 %v509, 7
        %v511 = vsub.s32 7, %v510
        %v512 = vrot.slane %v479, %v511
        %521 = vmatprep.subr.mxu0 %v352
        %522 = vmatpush1.msra.mxu0 %v351
        %523 = vmatprep.subr.mxu0 %v360
        %524 = vmatpush1.msra.mxu0 %v359
        %525 = vmatprep.subr.mxu0 %v368
        %526 = vmatpush1.msra.mxu0 %v367
        %527 = vmatprep.subr.mxu0 %v376
        %528 = vmatpush1.msra.mxu0 %v375
        %529 = vmatprep.subr.mxu0 %v384
        %530 = vmatpush1.msra.mxu0 %v383
        %531 = vmatprep.subr.mxu0 %v392
        %532 = vmatpush1.msra.mxu0 %v391
        %533 = vmatprep.subr.mxu0 %v400
        %534 = vmatpush1.msra.mxu0 %v399
        %535 = vmatprep.subr.mxu0 %v408
        %536 = vmatpush1.msra.mxu0 %v407
        %537 = vmatprep.subr.mxu0 %v416
        %538 = vmatpush1.msra.mxu0 %v415
        %539 = vmatprep.subr.mxu0 %v424
        %540 = vmatpush1.msra.mxu0 %v423
        %541 = vmatprep.subr.mxu0 %v432
        %542 = vmatpush1.msra.mxu0 %v431
        %543 = vmatprep.subr.mxu0 %v440
        %544 = vmatpush1.msra.mxu0 %v439
        %545 = vmatprep.subr.mxu0 %v448
        %546 = vmatpush1.msra.mxu0 %v447
        %547 = vmatprep.subr.mxu0 %v456
        %548 = vmatpush1.msra.mxu0 %v455
        %549 = vmatprep.subr.mxu0 %v464
        %550 = vmatpush1.msra.mxu0 %v463
        %551 = vmatprep.subr.mxu0 %v472
        %552 = vmatpush1.msra.mxu0 %v471
        %553 = vmatprep.subr.mxu0 0.0
        %554 = vmatpush1.msra.mxu0 0.0
        %555 = vmatprep.subr.mxu0 0.0
        %556 = vmatpush1.msra.mxu0 0.0
        %557 = vmatprep.subr.mxu0 0.0
        %558 = vmatpush1.msra.mxu0 0.0
        %559 = vmatprep.subr.mxu0 0.0
        %560 = vmatpush1.msra.mxu0 0.0
        %561 = vmatprep.subr.mxu0 0.0
        %562 = vmatpush1.msra.mxu0 0.0
        %563 = vmatprep.subr.mxu0 0.0
        %564 = vmatpush1.msra.mxu0 0.0
        %565 = vmatprep.subr.mxu0 0.0
        %566 = vmatpush1.msra.mxu0 0.0
        %567 = vmatprep.subr.mxu0 0.0
        %568 = vmatpush1.msra.mxu0 0.0
        %569 = vmatprep.subr.mxu0 0.0
        %570 = vmatpush1.msra.mxu0 0.0
        %571 = vmatprep.subr.mxu0 0.0
        %572 = vmatpush1.msra.mxu0 0.0
        %573 = vmatprep.subr.mxu0 0.0
        %574 = vmatpush1.msra.mxu0 0.0
        %575 = vmatprep.subr.mxu0 0.0
        %576 = vmatpush1.msra.mxu0 0.0
        %577 = vmatprep.subr.mxu0 0.0
        %578 = vmatpush1.msra.mxu0 0.0
        %579 = vmatprep.subr.mxu0 0.0
        %580 = vmatpush1.msra.mxu0 0.0
        %581 = vmatprep.subr.mxu0 0.0
        %582 = vmatpush1.msra.mxu0 0.0
        %583 = vmatprep.subr.mxu0 0.0
        %584 = vmatpush1.msra.mxu0 0.0
        %585 = vmatprep.mubr.f32.mxu0 0.0
        %586 = vmatmul.mubr.f32.gmra.mrb[0].mxu0 %v287
        %v587 = vpop.f32.mrb[0].mxu0
        %v588 = vadd.f32 %v484, %v587
        %v589 = vpop.f32.mrb[0].mxu0
        %v590 = vadd.f32 %v488, %v589
        %591 = vmatprep.mubr.f32.mxu0 0.0
        %592 = vmatmul.mubr.f32.gmra.mrb[0].mxu0 %v288
        %v593 = vpop.f32.mrb[0].mxu0
        %v594 = vadd.f32 %v484, %v593
        %v595 = vpop.f32.mrb[0].mxu0
        %v596 = vadd.f32 %v488, %v595
        %597 = vmatprep.mubr.f32.mxu0 0.0
        %598 = vmatmul.mubr.f32.gmra.mrb[0].mxu0 %v289
        %v599 = vpop.f32.mrb[0].mxu0
        %v600 = vadd.f32 %v484, %v599
        %v601 = vpop.f32.mrb[0].mxu0
        %v602 = vadd.f32 %v488, %v601
        %603 = vmatprep.mubr.f32.mxu0 0.0
        %604 = vmatmul.mubr.f32.gmra.mrb[0].mxu0 %v290
        %v605 = vpop.f32.mrb[0].mxu0
        %v606 = vadd.f32 %v484, %v605
        %v607 = vpop.f32.mrb[0].mxu0
        %v608 = vadd.f32 %v488, %v607
        %609 = vmatprep.mubr.f32.mxu0 0.0
        %610 = vmatmul.mubr.f32.gmra.mrb[0].mxu0 %v291
        %v611 = vpop.f32.mrb[0].mxu0
        %v612 = vadd.f32 %v484, %v611
        %v613 = vpop.f32.mrb[0].mxu0
        %v614 = vadd.f32 %v488, %v613
        %615 = vmatprep.mubr.f32.mxu0 0.0
        %616 = vmatmul.mubr.f32.gmra.mrb[0].mxu0 %v292
        %v617 = vpop.f32.mrb[0].mxu0
        %v618 = vadd.f32 %v484, %v617
        %v619 = vpop.f32.mrb[0].mxu0
        %v620 = vadd.f32 %v488, %v619
        %621 = vmatprep.mubr.f32.mxu0 0.0
        %622 = vmatmul.mubr.f32.gmra.mrb[0].mxu0 %v293
        %v623 = vpop.f32.mrb[0].mxu0
        %v624 = vadd.f32 %v484, %v623
        %v625 = vpop.f32.mrb[0].mxu0
        %v626 = vadd.f32 %v488, %v625
        %627 = vmatprep.mubr.f32.mxu0 0.0
        %628 = vmatmul.mubr.f32.gmra.mrb[0].mxu0 %v294
        %v629 = vpop.f32.mrb[0].mxu0
        %v630 = vadd.f32 %v484, %v629
        %v631 = vpop.f32.mrb[0].mxu0
        %v632 = vadd.f32 %v488, %v631
        %633 = vmatprep.mubr.f32.mxu0 0.0
        %634 = vmatmul.mubr.f32.gmra.mrb[0].mxu0 %v295
        %v635 = vpop.f32.mrb[0].mxu0
        %v636 = vadd.f32 %v484, %v635
        %v637 = vpop.f32.mrb[0].mxu0
        %v638 = vadd.f32 %v488, %v637
        %639 = vmatprep.mubr.f32.mxu0 0.0
        %640 = vmatmul.mubr.f32.gmra.mrb[0].mxu0 %v296
        %v641 = vpop.f32.mrb[0].mxu0
        %v642 = vadd.f32 %v484, %v641
        %v643 = vpop.f32.mrb[0].mxu0
        %v644 = vadd.f32 %v488, %v643
        %645 = vmatprep.mubr.f32.mxu0 0.0
        %646 = vmatmul.mubr.f32.gmra.mrb[0].mxu0 %v297
        %v647 = vpop.f32.mrb[0].mxu0
        %v648 = vadd.f32 %v484, %v647
        %v649 = vpop.f32.mrb[0].mxu0
        %v650 = vadd.f32 %v488, %v649
        %651 = vmatprep.mubr.f32.mxu0 0.0
        %652 = vmatmul.mubr.f32.gmra.mrb[0].mxu0 %v298
        %v653 = vpop.f32.mrb[0].mxu0
        %v654 = vadd.f32 %v484, %v653
        %v655 = vpop.f32.mrb[0].mxu0
        %v656 = vadd.f32 %v488, %v655
        %657 = vmatprep.mubr.f32.mxu0 0.0
        %658 = vmatmul.mubr.f32.gmra.mrb[0].mxu0 %v299
        %v659 = vpop.f32.mrb[0].mxu0
        %v660 = vadd.f32 %v484, %v659
        %v661 = vpop.f32.mrb[0].mxu0
        %v662 = vadd.f32 %v488, %v661
        %663 = vmatprep.mubr.f32.mxu0 0.0
        %664 = vmatmul.mubr.f32.gmra.mrb[0].mxu0 %v300
        %v665 = vpop.f32.mrb[0].mxu0
        %v666 = vadd.f32 %v484, %v665
        %v667 = vpop.f32.mrb[0].mxu0
        %v668 = vadd.f32 %v488, %v667
        %669 = vmatprep.mubr.f32.mxu0 0.0
        %670 = vmatmul.mubr.f32.gmra.mrb[0].mxu0 %v301
        %v671 = vpop.f32.mrb[0].mxu0
        %v672 = vadd.f32 %v484, %v671
        %v673 = vpop.f32.mrb[0].mxu0
        %v674 = vadd.f32 %v488, %v673
        %675 = vmatprep.mubr.f32.mxu0 0.0
        %676 = vmatmul.mubr.f32.gmra.mrb[0].mxu0 %v302
        %v677 = vpop.f32.mrb[0].mxu0
        %v678 = vadd.f32 %v484, %v677
        %v679 = vpop.f32.mrb[0].mxu0
        %v680 = vadd.f32 %v488, %v679
        %681 = vmatprep.mubr.f32.mxu0 0.0
        %682 = vmatmul.mubr.f32.gmra.mrb[0].mxu0 %v303
        %v683 = vpop.f32.mrb[0].mxu0
        %v684 = vadd.f32 %v484, %v683
        %v685 = vpop.f32.mrb[0].mxu0
        %v686 = vadd.f32 %v488, %v685
        %687 = vmatprep.mubr.f32.mxu0 0.0
        %688 = vmatmul.mubr.f32.gmra.mrb[0].mxu0 %v304
        %v689 = vpop.f32.mrb[0].mxu0
        %v690 = vadd.f32 %v484, %v689
        %v691 = vpop.f32.mrb[0].mxu0
        %v692 = vadd.f32 %v488, %v691
        %693 = vmatprep.mubr.f32.mxu0 0.0
        %694 = vmatmul.mubr.f32.gmra.mrb[0].mxu0 %v305
        %v695 = vpop.f32.mrb[0].mxu0
        %v696 = vadd.f32 %v484, %v695
        %v697 = vpop.f32.mrb[0].mxu0
        %v698 = vadd.f32 %v488, %v697
        %699 = vmatprep.mubr.f32.mxu0 0.0
        %700 = vmatmul.mubr.f32.gmra.mrb[0].mxu0 %v306
        %v701 = vpop.f32.mrb[0].mxu0
        %v702 = vadd.f32 %v484, %v701
        %v703 = vpop.f32.mrb[0].mxu0
        %v704 = vadd.f32 %v488, %v703
        %705 = vmatprep.mubr.f32.mxu0 0.0
        %706 = vmatmul.mubr.f32.gmra.mrb[0].mxu0 %v307
        %v707 = vpop.f32.mrb[0].mxu0
        %v708 = vadd.f32 %v484, %v707
        %v709 = vpop.f32.mrb[0].mxu0
        %v710 = vadd.f32 %v488, %v709
        %711 = vmatprep.mubr.f32.mxu0 0.0
        %712 = vmatmul.mubr.f32.gmra.mrb[0].mxu0 %v308
        %v713 = vpop.f32.mrb[0].mxu0
        %v714 = vadd.f32 %v484, %v713
        %v715 = vpop.f32.mrb[0].mxu0
        %v716 = vadd.f32 %v488, %v715
        %717 = vmatprep.mubr.f32.mxu0 0.0
        %718 = vmatmul.mubr.f32.gmra.mrb[0].mxu0 %v309
        %v719 = vpop.f32.mrb[0].mxu0
        %v720 = vadd.f32 %v484, %v719
        %v721 = vpop.f32.mrb[0].mxu0
        %v722 = vadd.f32 %v488, %v721
        %723 = vmatprep.mubr.f32.mxu0 0.0
        %724 = vmatmul.mubr.f32.gmra.mrb[0].mxu0 %v310
        %v725 = vpop.f32.mrb[0].mxu0
        %v726 = vadd.f32 %v484, %v725
        %v727 = vpop.f32.mrb[0].mxu0
        %v728 = vadd.f32 %v488, %v727
        %729 = vmatprep.mubr.f32.mxu0 0.0
        %730 = vmatmul.mubr.f32.gmra.mrb[0].mxu0 %v311
        %v731 = vpop.f32.mrb[0].mxu0
        %v732 = vadd.f32 %v484, %v731
        %v733 = vpop.f32.mrb[0].mxu0
        %v734 = vadd.f32 %v488, %v733
        %735 = vmatprep.mubr.f32.mxu0 0.0
        %736 = vmatmul.mubr.f32.gmra.mrb[0].mxu0 %v312
        %v737 = vpop.f32.mrb[0].mxu0
        %v738 = vadd.f32 %v484, %v737
        %v739 = vpop.f32.mrb[0].mxu0
        %v740 = vadd.f32 %v488, %v739
        %741 = vmatprep.mubr.f32.mxu0 0.0
        %742 = vmatmul.mubr.f32.gmra.mrb[0].mxu0 %v313
        %v743 = vpop.f32.mrb[0].mxu0
        %v744 = vadd.f32 %v484, %v743
        %v745 = vpop.f32.mrb[0].mxu0
        %v746 = vadd.f32 %v488, %v745
        %747 = vmatprep.mubr.f32.mxu0 0.0
        %748 = vmatmul.mubr.f32.gmra.mrb[0].mxu0 %v314
        %v749 = vpop.f32.mrb[0].mxu0
        %v750 = vadd.f32 %v484, %v749
        %v751 = vpop.f32.mrb[0].mxu0
        %v752 = vadd.f32 %v488, %v751
        %753 = vmatprep.mubr.f32.mxu0 0.0
        %754 = vmatmul.mubr.f32.gmra.mrb[0].mxu0 %v315
        %v755 = vpop.f32.mrb[0].mxu0
        %v756 = vadd.f32 %v484, %v755
        %v757 = vpop.f32.mrb[0].mxu0
        %v758 = vadd.f32 %v488, %v757
        %759 = vmatprep.mubr.f32.mxu0 0.0
        %760 = vmatmul.mubr.f32.gmra.mrb[0].mxu0 %v316
        %v761 = vpop.f32.mrb[0].mxu0
        %v762 = vadd.f32 %v484, %v761
        %v763 = vpop.f32.mrb[0].mxu0
        %v764 = vadd.f32 %v488, %v763
        %765 = vmatprep.mubr.f32.mxu0 0.0
        %766 = vmatmul.mubr.f32.gmra.mrb[0].mxu0 %v317
        %v767 = vpop.f32.mrb[0].mxu0
        %v768 = vadd.f32 %v484, %v767
        %v769 = vpop.f32.mrb[0].mxu0
        %v770 = vadd.f32 %v488, %v769
        %771 = vmatprep.mubr.f32.mxu0 0.0
        %772 = vmatmul.mubr.f32.gmra.mrb[0].mxu0 %v318
        %v773 = vpop.f32.mrb[0].mxu0
        %v774 = vadd.f32 %v484, %v773
        %v775 = vpop.f32.mrb[0].mxu0
        %v776 = vadd.f32 %v488, %v775
        %777 = vmatprep.mubr.f32.mxu0 0.0
        %778 = vmatmul.mubr.f32.gmra.mrb[0].mxu0 %v319
        %v779 = vpop.f32.mrb[0].mxu0
        %v780 = vadd.f32 %v484, %v779
        %v781 = vpop.f32.mrb[0].mxu0
        %v782 = vadd.f32 %v488, %v781
        %783 = vmatprep.mubr.f32.mxu0 0.0
        %784 = vmatmul.mubr.f32.gmra.mrb[0].mxu0 %v320
        %v785 = vpop.f32.mrb[0].mxu0
        %v786 = vadd.f32 %v484, %v785
        %v787 = vpop.f32.mrb[0].mxu0
        %v788 = vadd.f32 %v488, %v787
        %789 = vmatprep.mubr.f32.mxu0 0.0
        %790 = vmatmul.mubr.f32.gmra.mrb[0].mxu0 %v321
        %v791 = vpop.f32.mrb[0].mxu0
        %v792 = vadd.f32 %v484, %v791
        %v793 = vpop.f32.mrb[0].mxu0
        %v794 = vadd.f32 %v488, %v793
        %795 = vmatprep.mubr.f32.mxu0 0.0
        %796 = vmatmul.mubr.f32.gmra.mrb[0].mxu0 %v322
        %v797 = vpop.f32.mrb[0].mxu0
        %v798 = vadd.f32 %v484, %v797
        %v799 = vpop.f32.mrb[0].mxu0
        %v800 = vadd.f32 %v488, %v799
        %801 = vmatprep.mubr.f32.mxu0 0.0
        %802 = vmatmul.mubr.f32.gmra.mrb[0].mxu0 %v323
        %v803 = vpop.f32.mrb[0].mxu0
        %v804 = vadd.f32 %v484, %v803
        %v805 = vpop.f32.mrb[0].mxu0
        %v806 = vadd.f32 %v488, %v805
        %807 = vmatprep.mubr.f32.mxu0 0.0
        %808 = vmatmul.mubr.f32.gmra.mrb[0].mxu0 %v324
        %v809 = vpop.f32.mrb[0].mxu0
        %v810 = vadd.f32 %v484, %v809
        %v811 = vpop.f32.mrb[0].mxu0
        %v812 = vadd.f32 %v488, %v811
        %813 = vmatprep.mubr.f32.mxu0 0.0
        %814 = vmatmul.mubr.f32.gmra.mrb[0].mxu0 %v325
        %v815 = vpop.f32.mrb[0].mxu0
        %v816 = vadd.f32 %v484, %v815
        %v817 = vpop.f32.mrb[0].mxu0
        %v818 = vadd.f32 %v488, %v817
        %819 = vmatprep.mubr.f32.mxu0 0.0
        %820 = vmatmul.mubr.f32.gmra.mrb[0].mxu0 %v326
        %v821 = vpop.f32.mrb[0].mxu0
        %v822 = vadd.f32 %v484, %v821
        %v823 = vpop.f32.mrb[0].mxu0
        %v824 = vadd.f32 %v488, %v823
        %825 = vmatprep.mubr.f32.mxu0 0.0
        %826 = vmatmul.mubr.f32.gmra.mrb[0].mxu0 %v327
        %v827 = vpop.f32.mrb[0].mxu0
        %v828 = vadd.f32 %v484, %v827
        %v829 = vpop.f32.mrb[0].mxu0
        %v830 = vadd.f32 %v488, %v829
        %831 = vmatprep.mubr.f32.mxu0 0.0
        %832 = vmatmul.mubr.f32.gmra.mrb[0].mxu0 %v328
        %v833 = vpop.f32.mrb[0].mxu0
        %v834 = vadd.f32 %v484, %v833
        %v835 = vpop.f32.mrb[0].mxu0
        %v836 = vadd.f32 %v488, %v835
        %837 = vmatprep.mubr.f32.mxu0 0.0
        %838 = vmatmul.mubr.f32.gmra.mrb[0].mxu0 %v329
        %v839 = vpop.f32.mrb[0].mxu0
        %v840 = vadd.f32 %v484, %v839
        %v841 = vpop.f32.mrb[0].mxu0
        %v842 = vadd.f32 %v488, %v841
        %843 = vmatprep.mubr.f32.mxu0 0.0
        %844 = vmatmul.mubr.f32.gmra.mrb[0].mxu0 %v330
        %v845 = vpop.f32.mrb[0].mxu0
        %v846 = vadd.f32 %v484, %v845
        %v847 = vpop.f32.mrb[0].mxu0
        %v848 = vadd.f32 %v488, %v847
        %849 = vmatprep.mubr.f32.mxu0 0.0
        %850 = vmatmul.mubr.f32.gmra.mrb[0].mxu0 %v331
        %v851 = vpop.f32.mrb[0].mxu0
        %v852 = vadd.f32 %v484, %v851
        %v853 = vpop.f32.mrb[0].mxu0
        %v854 = vadd.f32 %v488, %v853
        %855 = vmatprep.mubr.f32.mxu0 0.0
        %856 = vmatmul.mubr.f32.gmra.mrb[0].mxu0 %v332
        %v857 = vpop.f32.mrb[0].mxu0
        %v858 = vadd.f32 %v484, %v857
        %v859 = vpop.f32.mrb[0].mxu0
        %v860 = vadd.f32 %v488, %v859
        %861 = vmatprep.mubr.f32.mxu0 0.0
        %862 = vmatmul.mubr.f32.gmra.mrb[0].mxu0 %v333
        %v863 = vpop.f32.mrb[0].mxu0
        %v864 = vadd.f32 %v484, %v863
        %v865 = vpop.f32.mrb[0].mxu0
        %v866 = vadd.f32 %v488, %v865
        %867 = vmatprep.mubr.f32.mxu0 0.0
        %868 = vmatmul.mubr.f32.gmra.mrb[0].mxu0 %v334
        %v869 = vpop.f32.mrb[0].mxu0
        %v870 = vadd.f32 %v484, %v869
        %v871 = vpop.f32.mrb[0].mxu0
        %v872 = vadd.f32 %v488, %v871
        %873 = vmatprep.mubr.f32.mxu0 0.0
        %874 = vmatmul.mubr.f32.gmra.mrb[0].mxu0 %v335
        %v875 = vpop.f32.mrb[0].mxu0
        %v876 = vadd.f32 %v484, %v875
        %v877 = vpop.f32.mrb[0].mxu0
        %v878 = vadd.f32 %v488, %v877
        %879 = vmatprep.mubr.f32.mxu0 0.0
        %880 = vmatmul.mubr.f32.gmra.mrb[0].mxu0 %v336
        %v881 = vpop.f32.mrb[0].mxu0
        %v882 = vadd.f32 %v484, %v881
        %v883 = vpop.f32.mrb[0].mxu0
        %v884 = vadd.f32 %v488, %v883
        %885 = vmatprep.mubr.f32.mxu0 0.0
        %886 = vmatmul.mubr.f32.gmra.mrb[0].mxu0 %v337
        %v887 = vpop.f32.mrb[0].mxu0
        %v888 = vadd.f32 %v484, %v887
        %v889 = vpop.f32.mrb[0].mxu0
        %v890 = vadd.f32 %v488, %v889
        %891 = vmatprep.mubr.f32.mxu0 0.0
        %892 = vmatmul.mubr.f32.gmra.mrb[0].mxu0 %v338
        %v893 = vpop.f32.mrb[0].mxu0
        %v894 = vadd.f32 %v484, %v893
        %v895 = vpop.f32.mrb[0].mxu0
        %v896 = vadd.f32 %v488, %v895
        %897 = vmatprep.mubr.f32.mxu0 0.0
        %898 = vmatmul.mubr.f32.gmra.mrb[0].mxu0 %v339
        %v899 = vpop.f32.mrb[0].mxu0
        %v900 = vadd.f32 %v484, %v899
        %v901 = vpop.f32.mrb[0].mxu0
        %v902 = vadd.f32 %v488, %v901
        %903 = vmatprep.mubr.f32.mxu0 0.0
        %904 = vmatmul.mubr.f32.gmra.mrb[0].mxu0 %v340
        %v905 = vpop.f32.mrb[0].mxu0
        %v906 = vadd.f32 %v484, %v905
        %v907 = vpop.f32.mrb[0].mxu0
        %v908 = vadd.f32 %v488, %v907
        %909 = vmatprep.mubr.f32.mxu0 0.0
        %910 = vmatmul.mubr.f32.gmra.mrb[0].mxu0 %v341
        %v911 = vpop.f32.mrb[0].mxu0
        %v912 = vadd.f32 %v484, %v911
        %v913 = vpop.f32.mrb[0].mxu0
        %v914 = vadd.f32 %v488, %v913
        %915 = vmatprep.mubr.f32.mxu0 0.0
        %916 = vmatmul.mubr.f32.gmra.mrb[0].mxu0 %v342
        %v917 = vpop.f32.mrb[0].mxu0
        %v918 = vadd.f32 %v484, %v917
        %v919 = vpop.f32.mrb[0].mxu0
        %v920 = vadd.f32 %v488, %v919
        %921 = vmatprep.mubr.f32.mxu0 0.0
        %922 = vmatmul.mubr.f32.gmra.mrb[0].mxu0 %v343
        %v923 = vpop.f32.mrb[0].mxu0
        %v924 = vadd.f32 %v484, %v923
        %v925 = vpop.f32.mrb[0].mxu0
        %v926 = vadd.f32 %v488, %v925
        %927 = vmatprep.mubr.f32.mxu0 0.0
        %928 = vmatmul.mubr.f32.gmra.mrb[0].mxu0 %v344
        %v929 = vpop.f32.mrb[0].mxu0
        %v930 = vadd.f32 %v484, %v929
        %v931 = vpop.f32.mrb[0].mxu0
        %v932 = vadd.f32 %v488, %v931
        %933 = vmatprep.mubr.f32.mxu0 0.0
        %934 = vmatmul.mubr.f32.gmra.mrb[0].mxu0 %v345
        %v935 = vpop.f32.mrb[0].mxu0
        %v936 = vadd.f32 %v484, %v935
        %v937 = vpop.f32.mrb[0].mxu0
        %v938 = vadd.f32 %v488, %v937
        %939 = vmatprep.mubr.f32.mxu0 0.0
        %940 = vmatmul.mubr.f32.gmra.mrb[0].mxu0 %v346
        %v941 = vpop.f32.mrb[0].mxu0
        %v942 = vadd.f32 %v484, %v941
        %v943 = vpop.f32.mrb[0].mxu0
        %v944 = vadd.f32 %v488, %v943
        %945 = vmatprep.mubr.f32.mxu0 0.0
        %946 = vmatmul.mubr.f32.gmra.mrb[0].mxu0 %v347
        %v947 = vpop.f32.mrb[0].mxu0
        %v948 = vadd.f32 %v484, %v947
        %v949 = vpop.f32.mrb[0].mxu0
        %v950 = vadd.f32 %v488, %v949
        %951 = vmatprep.mubr.f32.mxu0 0.0
        %952 = vmatmul.mubr.f32.gmra.mrb[0].mxu0 %v348
        %v953 = vpop.f32.mrb[0].mxu0
        %v954 = vadd.f32 %v484, %v953
        %v955 = vpop.f32.mrb[0].mxu0
        %v956 = vadd.f32 %v488, %v955
        %957 = vmatprep.mubr.f32.mxu0 0.0
        %958 = vmatmul.mubr.f32.gmra.mrb[0].mxu0 %v349
        %v959 = vpop.f32.mrb[0].mxu0
        %v960 = vadd.f32 %v484, %v959
        %v961 = vpop.f32.mrb[0].mxu0
        %v962 = vadd.f32 %v488, %v961
        %963 = vmatprep.mubr.f32.mxu0 0.0
        %964 = vmatmul.mubr.f32.gmra.mrb[0].mxu0 %v350
        %v965 = vpop.f32.mrb[0].mxu0
        %v966 = vadd.f32 %v484, %v965
        %v967 = vpop.f32.mrb[0].mxu0
        %v968 = vadd.f32 %v488, %v967
        %969 = vdwg.mxu0
        %970 = vmatprep.subr.mxu0 %v354
        %971 = vmatpush1.msra.mxu0 %v353
        %972 = vmatprep.subr.mxu0 %v362
        %973 = vmatpush1.msra.mxu0 %v361
        %974 = vmatprep.subr.mxu0 %v370
        %975 = vmatpush1.msra.mxu0 %v369
        %976 = vmatprep.subr.mxu0 %v378
        %977 = vmatpush1.msra.mxu0 %v377
        %978 = vmatprep.subr.mxu0 %v386
        %979 = vmatpush1.msra.mxu0 %v385
        %980 = vmatprep.subr.mxu0 %v394
        %981 = vmatpush1.msra.mxu0 %v393
        %982 = vmatprep.subr.mxu0 %v402
        %983 = vmatpush1.msra.mxu0 %v401
        %984 = vmatprep.subr.mxu0 %v410
        %985 = vmatpush1.msra.mxu0 %v409
        %986 = vmatprep.subr.mxu0 %v418
        %987 = vmatpush1.msra.mxu0 %v417
        %988 = vmatprep.subr.mxu0 %v426
        %989 = vmatpush1.msra.mxu0 %v425
        %990 = vmatprep.subr.mxu0 %v434
        %991 = vmatpush1.msra.mxu0 %v433
        %992 = vmatprep.subr.mxu0 %v442
        %993 = vmatpush1.msra.mxu0 %v441
        %994 = vmatprep.subr.mxu0 %v450
        %995 = vmatpush1.msra.mxu0 %v449
        %996 = vmatprep.subr.mxu0 %v458
        %997 = vmatpush1.msra.mxu0 %v457
        %998 = vmatprep.subr.mxu0 %v466
        %999 = vmatpush1.msra.mxu0 %v465
        %1000 = vmatprep.subr.mxu0 %v474
        %1001 = vmatpush1.msra.mxu0 %v473
        %1002 = vmatprep.subr.mxu0 0.0
        %1003 = vmatpush1.msra.mxu0 0.0
        %1004 = vmatprep.subr.mxu0 0.0
        %1005 = vmatpush1.msra.mxu0 0.0
        %1006 = vmatprep.subr.mxu0 0.0
        %1007 = vmatpush1.msra.mxu0 0.0
        %1008 = vmatprep.subr.mxu0 0.0
        %1009 = vmatpush1.msra.mxu0 0.0
        %1010 = vmatprep.subr.mxu0 0.0
        %1011 = vmatpush1.msra.mxu0 0.0
        %1012 = vmatprep.subr.mxu0 0.0
        %1013 = vmatpush1.msra.mxu0 0.0
        %1014 = vmatprep.subr.mxu0 0.0
        %1015 = vmatpush1.msra.mxu0 0.0
        %1016 = vmatprep.subr.mxu0 0.0
        %1017 = vmatpush1.msra.mxu0 0.0
        %1018 = vmatprep.subr.mxu0 0.0
        %1019 = vmatpush1.msra.mxu0 0.0
        %1020 = vmatprep.subr.mxu0 0.0
        %1021 = vmatpush1.msra.mxu0 0.0
        %1022 = vmatprep.subr.mxu0 0.0
        %1023 = vmatpush1.msra.mxu0 0.0
        %1024 = vmatprep.subr.mxu0 0.0
        %1025 = vmatpush1.msra.mxu0 0.0
        %1026 = vmatprep.subr.mxu0 0.0
        %1027 = vmatpush1.msra.mxu0 0.0
        %1028 = vmatprep.subr.mxu0 0.0
        %1029 = vmatpush1.msra.mxu0 0.0
        %1030 = vmatprep.subr.mxu0 0.0
        %1031 = vmatpush1.msra.mxu0 0.0
        %1032 = vmatprep.subr.mxu0 0.0
        %1033 = vmatpush1.msra.mxu0 0.0
        %1034 = vmatprep.mubr.f32.mxu0 0.0
        %1035 = vmatmul.mubr.f32.gmra.mrb[0].mxu0 %v287
        %v1036 = vpop.f32.mrb[0].mxu0
        %v1037 = vadd.f32 %v492, %v1036
        %v1038 = vpop.f32.mrb[0].mxu0
        %v1039 = vadd.f32 %v496, %v1038
        %1040 = vmatprep.mubr.f32.mxu0 0.0
        %1041 = vmatmul.mubr.f32.gmra.mrb[0].mxu0 %v288
        %v1042 = vpop.f32.mrb[0].mxu0
        %v1043 = vadd.f32 %v492, %v1042
        %v1044 = vpop.f32.mrb[0].mxu0
        %v1045 = vadd.f32 %v496, %v1044
        %1046 = vmatprep.mubr.f32.mxu0 0.0
        %1047 = vmatmul.mubr.f32.gmra.mrb[0].mxu0 %v289
        %v1048 = vpop.f32.mrb[0].mxu0
        %v1049 = vadd.f32 %v492, %v1048
        %v1050 = vpop.f32.mrb[0].mxu0
        %v1051 = vadd.f32 %v496, %v1050
        %1052 = vmatprep.mubr.f32.mxu0 0.0
        %1053 = vmatmul.mubr.f32.gmra.mrb[0].mxu0 %v290
        %v1054 = vpop.f32.mrb[0].mxu0
        %v1055 = vadd.f32 %v492, %v1054
        %v1056 = vpop.f32.mrb[0].mxu0
        %v1057 = vadd.f32 %v496, %v1056
        %1058 = vmatprep.mubr.f32.mxu0 0.0
        %1059 = vmatmul.mubr.f32.gmra.mrb[0].mxu0 %v291
        %v1060 = vpop.f32.mrb[0].mxu0
        %v1061 = vadd.f32 %v492, %v1060
        %v1062 = vpop.f32.mrb[0].mxu0
        %v1063 = vadd.f32 %v496, %v1062
        %1064 = vmatprep.mubr.f32.mxu0 0.0
        %1065 = vmatmul.mubr.f32.gmra.mrb[0].mxu0 %v292
        %v1066 = vpop.f32.mrb[0].mxu0
        %v1067 = vadd.f32 %v492, %v1066
        %v1068 = vpop.f32.mrb[0].mxu0
        %v1069 = vadd.f32 %v496, %v1068
        %1070 = vmatprep.mubr.f32.mxu0 0.0
        %1071 = vmatmul.mubr.f32.gmra.mrb[0].mxu0 %v293
        %v1072 = vpop.f32.mrb[0].mxu0
        %v1073 = vadd.f32 %v492, %v1072
        %v1074 = vpop.f32.mrb[0].mxu0
        %v1075 = vadd.f32 %v496, %v1074
        %1076 = vmatprep.mubr.f32.mxu0 0.0
        %1077 = vmatmul.mubr.f32.gmra.mrb[0].mxu0 %v294
        %v1078 = vpop.f32.mrb[0].mxu0
        %v1079 = vadd.f32 %v492, %v1078
        %v1080 = vpop.f32.mrb[0].mxu0
        %v1081 = vadd.f32 %v496, %v1080
        %1082 = vmatprep.mubr.f32.mxu0 0.0
        %1083 = vmatmul.mubr.f32.gmra.mrb[0].mxu0 %v295
        %v1084 = vpop.f32.mrb[0].mxu0
        %v1085 = vadd.f32 %v492, %v1084
        %v1086 = vpop.f32.mrb[0].mxu0
        %v1087 = vadd.f32 %v496, %v1086
        %1088 = vmatprep.mubr.f32.mxu0 0.0
        %1089 = vmatmul.mubr.f32.gmra.mrb[0].mxu0 %v296
        %v1090 = vpop.f32.mrb[0].mxu0
        %v1091 = vadd.f32 %v492, %v1090
        %v1092 = vpop.f32.mrb[0].mxu0
        %v1093 = vadd.f32 %v496, %v1092
        %1094 = vmatprep.mubr.f32.mxu0 0.0
        %1095 = vmatmul.mubr.f32.gmra.mrb[0].mxu0 %v297
        %v1096 = vpop.f32.mrb[0].mxu0
        %v1097 = vadd.f32 %v492, %v1096
        %v1098 = vpop.f32.mrb[0].mxu0
        %v1099 = vadd.f32 %v496, %v1098
        %1100 = vmatprep.mubr.f32.mxu0 0.0
        %1101 = vmatmul.mubr.f32.gmra.mrb[0].mxu0 %v298
        %v1102 = vpop.f32.mrb[0].mxu0
        %v1103 = vadd.f32 %v492, %v1102
        %v1104 = vpop.f32.mrb[0].mxu0
        %v1105 = vadd.f32 %v496, %v1104
        %1106 = vmatprep.mubr.f32.mxu0 0.0
        %1107 = vmatmul.mubr.f32.gmra.mrb[0].mxu0 %v299
        %v1108 = vpop.f32.mrb[0].mxu0
        %v1109 = vadd.f32 %v492, %v1108
        %v1110 = vpop.f32.mrb[0].mxu0
        %v1111 = vadd.f32 %v496, %v1110
        %1112 = vmatprep.mubr.f32.mxu0 0.0
        %1113 = vmatmul.mubr.f32.gmra.mrb[0].mxu0 %v300
        %v1114 = vpop.f32.mrb[0].mxu0
        %v1115 = vadd.f32 %v492, %v1114
        %v1116 = vpop.f32.mrb[0].mxu0
        %v1117 = vadd.f32 %v496, %v1116
        %1118 = vmatprep.mubr.f32.mxu0 0.0
        %1119 = vmatmul.mubr.f32.gmra.mrb[0].mxu0 %v301
        %v1120 = vpop.f32.mrb[0].mxu0
        %v1121 = vadd.f32 %v492, %v1120
        %v1122 = vpop.f32.mrb[0].mxu0
        %v1123 = vadd.f32 %v496, %v1122
        %1124 = vmatprep.mubr.f32.mxu0 0.0
        %1125 = vmatmul.mubr.f32.gmra.mrb[0].mxu0 %v302
        %v1126 = vpop.f32.mrb[0].mxu0
        %v1127 = vadd.f32 %v492, %v1126
        %v1128 = vpop.f32.mrb[0].mxu0
        %v1129 = vadd.f32 %v496, %v1128
        %1130 = vmatprep.mubr.f32.mxu0 0.0
        %1131 = vmatmul.mubr.f32.gmra.mrb[0].mxu0 %v303
        %v1132 = vpop.f32.mrb[0].mxu0
        %v1133 = vadd.f32 %v492, %v1132
        %v1134 = vpop.f32.mrb[0].mxu0
        %v1135 = vadd.f32 %v496, %v1134
        %1136 = vmatprep.mubr.f32.mxu0 0.0
        %1137 = vmatmul.mubr.f32.gmra.mrb[0].mxu0 %v304
        %v1138 = vpop.f32.mrb[0].mxu0
        %v1139 = vadd.f32 %v492, %v1138
        %v1140 = vpop.f32.mrb[0].mxu0
        %v1141 = vadd.f32 %v496, %v1140
        %1142 = vmatprep.mubr.f32.mxu0 0.0
        %1143 = vmatmul.mubr.f32.gmra.mrb[0].mxu0 %v305
        %v1144 = vpop.f32.mrb[0].mxu0
        %v1145 = vadd.f32 %v492, %v1144
        %v1146 = vpop.f32.mrb[0].mxu0
        %v1147 = vadd.f32 %v496, %v1146
        %1148 = vmatprep.mubr.f32.mxu0 0.0
        %1149 = vmatmul.mubr.f32.gmra.mrb[0].mxu0 %v306
        %v1150 = vpop.f32.mrb[0].mxu0
        %v1151 = vadd.f32 %v492, %v1150
        %v1152 = vpop.f32.mrb[0].mxu0
        %v1153 = vadd.f32 %v496, %v1152
        %1154 = vmatprep.mubr.f32.mxu0 0.0
        %1155 = vmatmul.mubr.f32.gmra.mrb[0].mxu0 %v307
        %v1156 = vpop.f32.mrb[0].mxu0
        %v1157 = vadd.f32 %v492, %v1156
        %v1158 = vpop.f32.mrb[0].mxu0
        %v1159 = vadd.f32 %v496, %v1158
        %1160 = vmatprep.mubr.f32.mxu0 0.0
        %1161 = vmatmul.mubr.f32.gmra.mrb[0].mxu0 %v308
        %v1162 = vpop.f32.mrb[0].mxu0
        %v1163 = vadd.f32 %v492, %v1162
        %v1164 = vpop.f32.mrb[0].mxu0
        %v1165 = vadd.f32 %v496, %v1164
        %1166 = vmatprep.mubr.f32.mxu0 0.0
        %1167 = vmatmul.mubr.f32.gmra.mrb[0].mxu0 %v309
        %v1168 = vpop.f32.mrb[0].mxu0
        %v1169 = vadd.f32 %v492, %v1168
        %v1170 = vpop.f32.mrb[0].mxu0
        %v1171 = vadd.f32 %v496, %v1170
        %1172 = vmatprep.mubr.f32.mxu0 0.0
        %1173 = vmatmul.mubr.f32.gmra.mrb[0].mxu0 %v310
        %v1174 = vpop.f32.mrb[0].mxu0
        %v1175 = vadd.f32 %v492, %v1174
        %v1176 = vpop.f32.mrb[0].mxu0
        %v1177 = vadd.f32 %v496, %v1176
        %1178 = vmatprep.mubr.f32.mxu0 0.0
        %1179 = vmatmul.mubr.f32.gmra.mrb[0].mxu0 %v311
        %v1180 = vpop.f32.mrb[0].mxu0
        %v1181 = vadd.f32 %v492, %v1180
        %v1182 = vpop.f32.mrb[0].mxu0
        %v1183 = vadd.f32 %v496, %v1182
        %1184 = vmatprep.mubr.f32.mxu0 0.0
        %1185 = vmatmul.mubr.f32.gmra.mrb[0].mxu0 %v312
        %v1186 = vpop.f32.mrb[0].mxu0
        %v1187 = vadd.f32 %v492, %v1186
        %v1188 = vpop.f32.mrb[0].mxu0
        %v1189 = vadd.f32 %v496, %v1188
        %1190 = vmatprep.mubr.f32.mxu0 0.0
        %1191 = vmatmul.mubr.f32.gmra.mrb[0].mxu0 %v313
        %v1192 = vpop.f32.mrb[0].mxu0
        %v1193 = vadd.f32 %v492, %v1192
        %v1194 = vpop.f32.mrb[0].mxu0
        %v1195 = vadd.f32 %v496, %v1194
        %1196 = vmatprep.mubr.f32.mxu0 0.0
        %1197 = vmatmul.mubr.f32.gmra.mrb[0].mxu0 %v314
        %v1198 = vpop.f32.mrb[0].mxu0
        %v1199 = vadd.f32 %v492, %v1198
        %v1200 = vpop.f32.mrb[0].mxu0
        %v1201 = vadd.f32 %v496, %v1200
        %1202 = vmatprep.mubr.f32.mxu0 0.0
        %1203 = vmatmul.mubr.f32.gmra.mrb[0].mxu0 %v315
        %v1204 = vpop.f32.mrb[0].mxu0
        %v1205 = vadd.f32 %v492, %v1204
        %v1206 = vpop.f32.mrb[0].mxu0
        %v1207 = vadd.f32 %v496, %v1206
        %1208 = vmatprep.mubr.f32.mxu0 0.0
        %1209 = vmatmul.mubr.f32.gmra.mrb[0].mxu0 %v316
        %v1210 = vpop.f32.mrb[0].mxu0
        %v1211 = vadd.f32 %v492, %v1210
        %v1212 = vpop.f32.mrb[0].mxu0
        %v1213 = vadd.f32 %v496, %v1212
        %1214 = vmatprep.mubr.f32.mxu0 0.0
        %1215 = vmatmul.mubr.f32.gmra.mrb[0].mxu0 %v317
        %v1216 = vpop.f32.mrb[0].mxu0
        %v1217 = vadd.f32 %v492, %v1216
        %v1218 = vpop.f32.mrb[0].mxu0
        %v1219 = vadd.f32 %v496, %v1218
        %1220 = vmatprep.mubr.f32.mxu0 0.0
        %1221 = vmatmul.mubr.f32.gmra.mrb[0].mxu0 %v318
        %v1222 = vpop.f32.mrb[0].mxu0
        %v1223 = vadd.f32 %v492, %v1222
        %v1224 = vpop.f32.mrb[0].mxu0
        %v1225 = vadd.f32 %v496, %v1224
        %1226 = vmatprep.mubr.f32.mxu0 0.0
        %1227 = vmatmul.mubr.f32.gmra.mrb[0].mxu0 %v319
        %v1228 = vpop.f32.mrb[0].mxu0
        %v1229 = vadd.f32 %v492, %v1228
        %v1230 = vpop.f32.mrb[0].mxu0
        %v1231 = vadd.f32 %v496, %v1230
        %1232 = vmatprep.mubr.f32.mxu0 0.0
        %1233 = vmatmul.mubr.f32.gmra.mrb[0].mxu0 %v320
        %v1234 = vpop.f32.mrb[0].mxu0
        %v1235 = vadd.f32 %v492, %v1234
        %v1236 = vpop.f32.mrb[0].mxu0
        %v1237 = vadd.f32 %v496, %v1236
        %1238 = vmatprep.mubr.f32.mxu0 0.0
        %1239 = vmatmul.mubr.f32.gmra.mrb[0].mxu0 %v321
        %v1240 = vpop.f32.mrb[0].mxu0
        %v1241 = vadd.f32 %v492, %v1240
        %v1242 = vpop.f32.mrb[0].mxu0
        %v1243 = vadd.f32 %v496, %v1242
        %1244 = vmatprep.mubr.f32.mxu0 0.0
        %1245 = vmatmul.mubr.f32.gmra.mrb[0].mxu0 %v322
        %v1246 = vpop.f32.mrb[0].mxu0
        %v1247 = vadd.f32 %v492, %v1246
        %v1248 = vpop.f32.mrb[0].mxu0
        %v1249 = vadd.f32 %v496, %v1248
        %1250 = vmatprep.mubr.f32.mxu0 0.0
        %1251 = vmatmul.mubr.f32.gmra.mrb[0].mxu0 %v323
        %v1252 = vpop.f32.mrb[0].mxu0
        %v1253 = vadd.f32 %v492, %v1252
        %v1254 = vpop.f32.mrb[0].mxu0
        %v1255 = vadd.f32 %v496, %v1254
        %1256 = vmatprep.mubr.f32.mxu0 0.0
        %1257 = vmatmul.mubr.f32.gmra.mrb[0].mxu0 %v324
        %v1258 = vpop.f32.mrb[0].mxu0
        %v1259 = vadd.f32 %v492, %v1258
        %v1260 = vpop.f32.mrb[0].mxu0
        %v1261 = vadd.f32 %v496, %v1260
        %1262 = vmatprep.mubr.f32.mxu0 0.0
        %1263 = vmatmul.mubr.f32.gmra.mrb[0].mxu0 %v325
        %v1264 = vpop.f32.mrb[0].mxu0
        %v1265 = vadd.f32 %v492, %v1264
        %v1266 = vpop.f32.mrb[0].mxu0
        %v1267 = vadd.f32 %v496, %v1266
        %1268 = vmatprep.mubr.f32.mxu0 0.0
        %1269 = vmatmul.mubr.f32.gmra.mrb[0].mxu0 %v326
        %v1270 = vpop.f32.mrb[0].mxu0
        %v1271 = vadd.f32 %v492, %v1270
        %v1272 = vpop.f32.mrb[0].mxu0
        %v1273 = vadd.f32 %v496, %v1272
        %1274 = vmatprep.mubr.f32.mxu0 0.0
        %1275 = vmatmul.mubr.f32.gmra.mrb[0].mxu0 %v327
        %v1276 = vpop.f32.mrb[0].mxu0
        %v1277 = vadd.f32 %v492, %v1276
        %v1278 = vpop.f32.mrb[0].mxu0
        %v1279 = vadd.f32 %v496, %v1278
        %1280 = vmatprep.mubr.f32.mxu0 0.0
        %1281 = vmatmul.mubr.f32.gmra.mrb[0].mxu0 %v328
        %v1282 = vpop.f32.mrb[0].mxu0
        %v1283 = vadd.f32 %v492, %v1282
        %v1284 = vpop.f32.mrb[0].mxu0
        %v1285 = vadd.f32 %v496, %v1284
        %1286 = vmatprep.mubr.f32.mxu0 0.0
        %1287 = vmatmul.mubr.f32.gmra.mrb[0].mxu0 %v329
        %v1288 = vpop.f32.mrb[0].mxu0
        %v1289 = vadd.f32 %v492, %v1288
        %v1290 = vpop.f32.mrb[0].mxu0
        %v1291 = vadd.f32 %v496, %v1290
        %1292 = vmatprep.mubr.f32.mxu0 0.0
        %1293 = vmatmul.mubr.f32.gmra.mrb[0].mxu0 %v330
        %v1294 = vpop.f32.mrb[0].mxu0
        %v1295 = vadd.f32 %v492, %v1294
        %v1296 = vpop.f32.mrb[0].mxu0
        %v1297 = vadd.f32 %v496, %v1296
        %1298 = vmatprep.mubr.f32.mxu0 0.0
        %1299 = vmatmul.mubr.f32.gmra.mrb[0].mxu0 %v331
        %v1300 = vpop.f32.mrb[0].mxu0
        %v1301 = vadd.f32 %v492, %v1300
        %v1302 = vpop.f32.mrb[0].mxu0
        %v1303 = vadd.f32 %v496, %v1302
        %1304 = vmatprep.mubr.f32.mxu0 0.0
        %1305 = vmatmul.mubr.f32.gmra.mrb[0].mxu0 %v332
        %v1306 = vpop.f32.mrb[0].mxu0
        %v1307 = vadd.f32 %v492, %v1306
        %v1308 = vpop.f32.mrb[0].mxu0
        %v1309 = vadd.f32 %v496, %v1308
        %1310 = vmatprep.mubr.f32.mxu0 0.0
        %1311 = vmatmul.mubr.f32.gmra.mrb[0].mxu0 %v333
        %v1312 = vpop.f32.mrb[0].mxu0
        %v1313 = vadd.f32 %v492, %v1312
        %v1314 = vpop.f32.mrb[0].mxu0
        %v1315 = vadd.f32 %v496, %v1314
        %1316 = vmatprep.mubr.f32.mxu0 0.0
        %1317 = vmatmul.mubr.f32.gmra.mrb[0].mxu0 %v334
        %v1318 = vpop.f32.mrb[0].mxu0
        %v1319 = vadd.f32 %v492, %v1318
        %v1320 = vpop.f32.mrb[0].mxu0
        %v1321 = vadd.f32 %v496, %v1320
        %1322 = vmatprep.mubr.f32.mxu0 0.0
        %1323 = vmatmul.mubr.f32.gmra.mrb[0].mxu0 %v335
        %v1324 = vpop.f32.mrb[0].mxu0
        %v1325 = vadd.f32 %v492, %v1324
        %v1326 = vpop.f32.mrb[0].mxu0
        %v1327 = vadd.f32 %v496, %v1326
        %1328 = vmatprep.mubr.f32.mxu0 0.0
        %1329 = vmatmul.mubr.f32.gmra.mrb[0].mxu0 %v336
        %v1330 = vpop.f32.mrb[0].mxu0
        %v1331 = vadd.f32 %v492, %v1330
        %v1332 = vpop.f32.mrb[0].mxu0
        %v1333 = vadd.f32 %v496, %v1332
        %1334 = vmatprep.mubr.f32.mxu0 0.0
        %1335 = vmatmul.mubr.f32.gmra.mrb[0].mxu0 %v337
        %v1336 = vpop.f32.mrb[0].mxu0
        %v1337 = vadd.f32 %v492, %v1336
        %v1338 = vpop.f32.mrb[0].mxu0
        %v1339 = vadd.f32 %v496, %v1338
        %1340 = vmatprep.mubr.f32.mxu0 0.0
        %1341 = vmatmul.mubr.f32.gmra.mrb[0].mxu0 %v338
        %v1342 = vpop.f32.mrb[0].mxu0
        %v1343 = vadd.f32 %v492, %v1342
        %v1344 = vpop.f32.mrb[0].mxu0
        %v1345 = vadd.f32 %v496, %v1344
        %1346 = vmatprep.mubr.f32.mxu0 0.0
        %1347 = vmatmul.mubr.f32.gmra.mrb[0].mxu0 %v339
        %v1348 = vpop.f32.mrb[0].mxu0
        %v1349 = vadd.f32 %v492, %v1348
        %v1350 = vpop.f32.mrb[0].mxu0
        %v1351 = vadd.f32 %v496, %v1350
        %1352 = vmatprep.mubr.f32.mxu0 0.0
        %1353 = vmatmul.mubr.f32.gmra.mrb[0].mxu0 %v340
        %v1354 = vpop.f32.mrb[0].mxu0
        %v1355 = vadd.f32 %v492, %v1354
        %v1356 = vpop.f32.mrb[0].mxu0
        %v1357 = vadd.f32 %v496, %v1356
        %1358 = vmatprep.mubr.f32.mxu0 0.0
        %1359 = vmatmul.mubr.f32.gmra.mrb[0].mxu0 %v341
        %v1360 = vpop.f32.mrb[0].mxu0
        %v1361 = vadd.f32 %v492, %v1360
        %v1362 = vpop.f32.mrb[0].mxu0
        %v1363 = vadd.f32 %v496, %v1362
        %1364 = vmatprep.mubr.f32.mxu0 0.0
        %1365 = vmatmul.mubr.f32.gmra.mrb[0].mxu0 %v342
        %v1366 = vpop.f32.mrb[0].mxu0
        %v1367 = vadd.f32 %v492, %v1366
        %v1368 = vpop.f32.mrb[0].mxu0
        %v1369 = vadd.f32 %v496, %v1368
        %1370 = vmatprep.mubr.f32.mxu0 0.0
        %1371 = vmatmul.mubr.f32.gmra.mrb[0].mxu0 %v343
        %v1372 = vpop.f32.mrb[0].mxu0
        %v1373 = vadd.f32 %v492, %v1372
        %v1374 = vpop.f32.mrb[0].mxu0
        %v1375 = vadd.f32 %v496, %v1374
        %1376 = vmatprep.mubr.f32.mxu0 0.0
        %1377 = vmatmul.mubr.f32.gmra.mrb[0].mxu0 %v344
        %v1378 = vpop.f32.mrb[0].mxu0
        %v1379 = vadd.f32 %v492, %v1378
        %v1380 = vpop.f32.mrb[0].mxu0
        %v1381 = vadd.f32 %v496, %v1380
        %1382 = vmatprep.mubr.f32.mxu0 0.0
        %1383 = vmatmul.mubr.f32.gmra.mrb[0].mxu0 %v345
        %v1384 = vpop.f32.mrb[0].mxu0
        %v1385 = vadd.f32 %v492, %v1384
        %v1386 = vpop.f32.mrb[0].mxu0
        %v1387 = vadd.f32 %v496, %v1386
        %1388 = vmatprep.mubr.f32.mxu0 0.0
        %1389 = vmatmul.mubr.f32.gmra.mrb[0].mxu0 %v346
        %v1390 = vpop.f32.mrb[0].mxu0
        %v1391 = vadd.f32 %v492, %v1390
        %v1392 = vpop.f32.mrb[0].mxu0
        %v1393 = vadd.f32 %v496, %v1392
        %1394 = vmatprep.mubr.f32.mxu0 0.0
        %1395 = vmatmul.mubr.f32.gmra.mrb[0].mxu0 %v347
        %v1396 = vpop.f32.mrb[0].mxu0
        %v1397 = vadd.f32 %v492, %v1396
        %v1398 = vpop.f32.mrb[0].mxu0
        %v1399 = vadd.f32 %v496, %v1398
        %1400 = vmatprep.mubr.f32.mxu0 0.0
        %1401 = vmatmul.mubr.f32.gmra.mrb[0].mxu0 %v348
        %v1402 = vpop.f32.mrb[0].mxu0
        %v1403 = vadd.f32 %v492, %v1402
        %v1404 = vpop.f32.mrb[0].mxu0
        %v1405 = vadd.f32 %v496, %v1404
        %1406 = vmatprep.mubr.f32.mxu0 0.0
        %1407 = vmatmul.mubr.f32.gmra.mrb[0].mxu0 %v349
        %v1408 = vpop.f32.mrb[0].mxu0
        %v1409 = vadd.f32 %v492, %v1408
        %v1410 = vpop.f32.mrb[0].mxu0
        %v1411 = vadd.f32 %v496, %v1410
        %1412 = vmatprep.mubr.f32.mxu0 0.0
        %1413 = vmatmul.mubr.f32.gmra.mrb[0].mxu0 %v350
        %v1414 = vpop.f32.mrb[0].mxu0
        %v1415 = vadd.f32 %v492, %v1414
        %v1416 = vpop.f32.mrb[0].mxu0
        %v1417 = vadd.f32 %v496, %v1416
        %1418 = vdwg.mxu0
        %1419 = vmatprep.subr.mxu0 %v356
        %1420 = vmatpush1.msra.mxu0 %v355
        %1421 = vmatprep.subr.mxu0 %v364
        %1422 = vmatpush1.msra.mxu0 %v363
        %1423 = vmatprep.subr.mxu0 %v372
        %1424 = vmatpush1.msra.mxu0 %v371
        %1425 = vmatprep.subr.mxu0 %v380
        %1426 = vmatpush1.msra.mxu0 %v379
        %1427 = vmatprep.subr.mxu0 %v388
        %1428 = vmatpush1.msra.mxu0 %v387
        %1429 = vmatprep.subr.mxu0 %v396
        %1430 = vmatpush1.msra.mxu0 %v395
        %1431 = vmatprep.subr.mxu0 %v404
        %1432 = vmatpush1.msra.mxu0 %v403
        %1433 = vmatprep.subr.mxu0 %v412
        %1434 = vmatpush1.msra.mxu0 %v411
        %1435 = vmatprep.subr.mxu0 %v420
        %1436 = vmatpush1.msra.mxu0 %v419
        %1437 = vmatprep.subr.mxu0 %v428
        %1438 = vmatpush1.msra.mxu0 %v427
        %1439 = vmatprep.subr.mxu0 %v436
        %1440 = vmatpush1.msra.mxu0 %v435
        %1441 = vmatprep.subr.mxu0 %v444
        %1442 = vmatpush1.msra.mxu0 %v443
        %1443 = vmatprep.subr.mxu0 %v452
        %1444 = vmatpush1.msra.mxu0 %v451
        %1445 = vmatprep.subr.mxu0 %v460
        %1446 = vmatpush1.msra.mxu0 %v459
        %1447 = vmatprep.subr.mxu0 %v468
        %1448 = vmatpush1.msra.mxu0 %v467
        %1449 = vmatprep.subr.mxu0 %v476
        %1450 = vmatpush1.msra.mxu0 %v475
        %1451 = vmatprep.subr.mxu0 0.0
        %1452 = vmatpush1.msra.mxu0 0.0
        %1453 = vmatprep.subr.mxu0 0.0
        %1454 = vmatpush1.msra.mxu0 0.0
        %1455 = vmatprep.subr.mxu0 0.0
        %1456 = vmatpush1.msra.mxu0 0.0
        %1457 = vmatprep.subr.mxu0 0.0
        %1458 = vmatpush1.msra.mxu0 0.0
        %1459 = vmatprep.subr.mxu0 0.0
        %1460 = vmatpush1.msra.mxu0 0.0
        %1461 = vmatprep.subr.mxu0 0.0
        %1462 = vmatpush1.msra.mxu0 0.0
        %1463 = vmatprep.subr.mxu0 0.0
        %1464 = vmatpush1.msra.mxu0 0.0
        %1465 = vmatprep.subr.mxu0 0.0
        %1466 = vmatpush1.msra.mxu0 0.0
        %1467 = vmatprep.subr.mxu0 0.0
        %1468 = vmatpush1.msra.mxu0 0.0
        %1469 = vmatprep.subr.mxu0 0.0
        %1470 = vmatpush1.msra.mxu0 0.0
        %1471 = vmatprep.subr.mxu0 0.0
        %1472 = vmatpush1.msra.mxu0 0.0
        %1473 = vmatprep.subr.mxu0 0.0
        %1474 = vmatpush1.msra.mxu0 0.0
        %1475 = vmatprep.subr.mxu0 0.0
        %1476 = vmatpush1.msra.mxu0 0.0
        %1477 = vmatprep.subr.mxu0 0.0
        %1478 = vmatpush1.msra.mxu0 0.0
        %1479 = vmatprep.subr.mxu0 0.0
        %1480 = vmatpush1.msra.mxu0 0.0
        %1481 = vmatprep.subr.mxu0 0.0
        %1482 = vmatpush1.msra.mxu0 0.0
        %1483 = vmatprep.mubr.f32.mxu0 0.0
        %1484 = vmatmul.mubr.f32.gmra.mrb[0].mxu0 %v287
        %v1485 = vpop.f32.mrb[0].mxu0
        %v1486 = vadd.f32 %v500, %v1485
        %v1487 = vpop.f32.mrb[0].mxu0
        %v1488 = vadd.f32 %v504, %v1487
        %1489 = vmatprep.mubr.f32.mxu0 0.0
        %1490 = vmatmul.mubr.f32.gmra.mrb[0].mxu0 %v288
        %v1491 = vpop.f32.mrb[0].mxu0
        %v1492 = vadd.f32 %v500, %v1491
        %v1493 = vpop.f32.mrb[0].mxu0
        %v1494 = vadd.f32 %v504, %v1493
        %1495 = vmatprep.mubr.f32.mxu0 0.0
        %1496 = vmatmul.mubr.f32.gmra.mrb[0].mxu0 %v289
        %v1497 = vpop.f32.mrb[0].mxu0
        %v1498 = vadd.f32 %v500, %v1497
        %v1499 = vpop.f32.mrb[0].mxu0
        %v1500 = vadd.f32 %v504, %v1499
        %1501 = vmatprep.mubr.f32.mxu0 0.0
        %1502 = vmatmul.mubr.f32.gmra.mrb[0].mxu0 %v290
        %v1503 = vpop.f32.mrb[0].mxu0
        %v1504 = vadd.f32 %v500, %v1503
        %v1505 = vpop.f32.mrb[0].mxu0
        %v1506 = vadd.f32 %v504, %v1505
        %1507 = vmatprep.mubr.f32.mxu0 0.0
        %1508 = vmatmul.mubr.f32.gmra.mrb[0].mxu0 %v291
        %v1509 = vpop.f32.mrb[0].mxu0
        %v1510 = vadd.f32 %v500, %v1509
        %v1511 = vpop.f32.mrb[0].mxu0
        %v1512 = vadd.f32 %v504, %v1511
        %1513 = vmatprep.mubr.f32.mxu0 0.0
        %1514 = vmatmul.mubr.f32.gmra.mrb[0].mxu0 %v292
        %v1515 = vpop.f32.mrb[0].mxu0
        %v1516 = vadd.f32 %v500, %v1515
        %v1517 = vpop.f32.mrb[0].mxu0
        %v1518 = vadd.f32 %v504, %v1517
        %1519 = vmatprep.mubr.f32.mxu0 0.0
        %1520 = vmatmul.mubr.f32.gmra.mrb[0].mxu0 %v293
        %v1521 = vpop.f32.mrb[0].mxu0
        %v1522 = vadd.f32 %v500, %v1521
        %v1523 = vpop.f32.mrb[0].mxu0
        %v1524 = vadd.f32 %v504, %v1523
        %1525 = vmatprep.mubr.f32.mxu0 0.0
        %1526 = vmatmul.mubr.f32.gmra.mrb[0].mxu0 %v294
        %v1527 = vpop.f32.mrb[0].mxu0
        %v1528 = vadd.f32 %v500, %v1527
        %v1529 = vpop.f32.mrb[0].mxu0
        %v1530 = vadd.f32 %v504, %v1529
        %1531 = vmatprep.mubr.f32.mxu0 0.0
        %1532 = vmatmul.mubr.f32.gmra.mrb[0].mxu0 %v295
        %v1533 = vpop.f32.mrb[0].mxu0
        %v1534 = vadd.f32 %v500, %v1533
        %v1535 = vpop.f32.mrb[0].mxu0
        %v1536 = vadd.f32 %v504, %v1535
        %1537 = vmatprep.mubr.f32.mxu0 0.0
        %1538 = vmatmul.mubr.f32.gmra.mrb[0].mxu0 %v296
        %v1539 = vpop.f32.mrb[0].mxu0
        %v1540 = vadd.f32 %v500, %v1539
        %v1541 = vpop.f32.mrb[0].mxu0
        %v1542 = vadd.f32 %v504, %v1541
        %1543 = vmatprep.mubr.f32.mxu0 0.0
        %1544 = vmatmul.mubr.f32.gmra.mrb[0].mxu0 %v297
        %v1545 = vpop.f32.mrb[0].mxu0
        %v1546 = vadd.f32 %v500, %v1545
        %v1547 = vpop.f32.mrb[0].mxu0
        %v1548 = vadd.f32 %v504, %v1547
        %1549 = vmatprep.mubr.f32.mxu0 0.0
        %1550 = vmatmul.mubr.f32.gmra.mrb[0].mxu0 %v298
        %v1551 = vpop.f32.mrb[0].mxu0
        %v1552 = vadd.f32 %v500, %v1551
        %v1553 = vpop.f32.mrb[0].mxu0
        %v1554 = vadd.f32 %v504, %v1553
        %1555 = vmatprep.mubr.f32.mxu0 0.0
        %1556 = vmatmul.mubr.f32.gmra.mrb[0].mxu0 %v299
        %v1557 = vpop.f32.mrb[0].mxu0
        %v1558 = vadd.f32 %v500, %v1557
        %v1559 = vpop.f32.mrb[0].mxu0
        %v1560 = vadd.f32 %v504, %v1559
        %1561 = vmatprep.mubr.f32.mxu0 0.0
        %1562 = vmatmul.mubr.f32.gmra.mrb[0].mxu0 %v300
        %v1563 = vpop.f32.mrb[0].mxu0
        %v1564 = vadd.f32 %v500, %v1563
        %v1565 = vpop.f32.mrb[0].mxu0
        %v1566 = vadd.f32 %v504, %v1565
        %1567 = vmatprep.mubr.f32.mxu0 0.0
        %1568 = vmatmul.mubr.f32.gmra.mrb[0].mxu0 %v301
        %v1569 = vpop.f32.mrb[0].mxu0
        %v1570 = vadd.f32 %v500, %v1569
        %v1571 = vpop.f32.mrb[0].mxu0
        %v1572 = vadd.f32 %v504, %v1571
        %1573 = vmatprep.mubr.f32.mxu0 0.0
        %1574 = vmatmul.mubr.f32.gmra.mrb[0].mxu0 %v302
        %v1575 = vpop.f32.mrb[0].mxu0
        %v1576 = vadd.f32 %v500, %v1575
        %v1577 = vpop.f32.mrb[0].mxu0
        %v1578 = vadd.f32 %v504, %v1577
        %1579 = vmatprep.mubr.f32.mxu0 0.0
        %1580 = vmatmul.mubr.f32.gmra.mrb[0].mxu0 %v303
        %v1581 = vpop.f32.mrb[0].mxu0
        %v1582 = vadd.f32 %v500, %v1581
        %v1583 = vpop.f32.mrb[0].mxu0
        %v1584 = vadd.f32 %v504, %v1583
        %1585 = vmatprep.mubr.f32.mxu0 0.0
        %1586 = vmatmul.mubr.f32.gmra.mrb[0].mxu0 %v304
        %v1587 = vpop.f32.mrb[0].mxu0
        %v1588 = vadd.f32 %v500, %v1587
        %v1589 = vpop.f32.mrb[0].mxu0
        %v1590 = vadd.f32 %v504, %v1589
        %1591 = vmatprep.mubr.f32.mxu0 0.0
        %1592 = vmatmul.mubr.f32.gmra.mrb[0].mxu0 %v305
        %v1593 = vpop.f32.mrb[0].mxu0
        %v1594 = vadd.f32 %v500, %v1593
        %v1595 = vpop.f32.mrb[0].mxu0
        %v1596 = vadd.f32 %v504, %v1595
        %1597 = vmatprep.mubr.f32.mxu0 0.0
        %1598 = vmatmul.mubr.f32.gmra.mrb[0].mxu0 %v306
        %v1599 = vpop.f32.mrb[0].mxu0
        %v1600 = vadd.f32 %v500, %v1599
        %v1601 = vpop.f32.mrb[0].mxu0
        %v1602 = vadd.f32 %v504, %v1601
        %1603 = vmatprep.mubr.f32.mxu0 0.0
        %1604 = vmatmul.mubr.f32.gmra.mrb[0].mxu0 %v307
        %v1605 = vpop.f32.mrb[0].mxu0
        %v1606 = vadd.f32 %v500, %v1605
        %v1607 = vpop.f32.mrb[0].mxu0
        %v1608 = vadd.f32 %v504, %v1607
        %1609 = vmatprep.mubr.f32.mxu0 0.0
        %1610 = vmatmul.mubr.f32.gmra.mrb[0].mxu0 %v308
        %v1611 = vpop.f32.mrb[0].mxu0
        %v1612 = vadd.f32 %v500, %v1611
        %v1613 = vpop.f32.mrb[0].mxu0
        %v1614 = vadd.f32 %v504, %v1613
        %1615 = vmatprep.mubr.f32.mxu0 0.0
        %1616 = vmatmul.mubr.f32.gmra.mrb[0].mxu0 %v309
        %v1617 = vpop.f32.mrb[0].mxu0
        %v1618 = vadd.f32 %v500, %v1617
        %v1619 = vpop.f32.mrb[0].mxu0
        %v1620 = vadd.f32 %v504, %v1619
        %1621 = vmatprep.mubr.f32.mxu0 0.0
        %1622 = vmatmul.mubr.f32.gmra.mrb[0].mxu0 %v310
        %v1623 = vpop.f32.mrb[0].mxu0
        %v1624 = vadd.f32 %v500, %v1623
        %v1625 = vpop.f32.mrb[0].mxu0
        %v1626 = vadd.f32 %v504, %v1625
        %1627 = vmatprep.mubr.f32.mxu0 0.0
        %1628 = vmatmul.mubr.f32.gmra.mrb[0].mxu0 %v311
        %v1629 = vpop.f32.mrb[0].mxu0
        %v1630 = vadd.f32 %v500, %v1629
        %v1631 = vpop.f32.mrb[0].mxu0
        %v1632 = vadd.f32 %v504, %v1631
        %1633 = vmatprep.mubr.f32.mxu0 0.0
        %1634 = vmatmul.mubr.f32.gmra.mrb[0].mxu0 %v312
        %v1635 = vpop.f32.mrb[0].mxu0
        %v1636 = vadd.f32 %v500, %v1635
        %v1637 = vpop.f32.mrb[0].mxu0
        %v1638 = vadd.f32 %v504, %v1637
        %1639 = vmatprep.mubr.f32.mxu0 0.0
        %1640 = vmatmul.mubr.f32.gmra.mrb[0].mxu0 %v313
        %v1641 = vpop.f32.mrb[0].mxu0
        %v1642 = vadd.f32 %v500, %v1641
        %v1643 = vpop.f32.mrb[0].mxu0
        %v1644 = vadd.f32 %v504, %v1643
        %1645 = vmatprep.mubr.f32.mxu0 0.0
        %1646 = vmatmul.mubr.f32.gmra.mrb[0].mxu0 %v314
        %v1647 = vpop.f32.mrb[0].mxu0
        %v1648 = vadd.f32 %v500, %v1647
        %v1649 = vpop.f32.mrb[0].mxu0
        %v1650 = vadd.f32 %v504, %v1649
        %1651 = vmatprep.mubr.f32.mxu0 0.0
        %1652 = vmatmul.mubr.f32.gmra.mrb[0].mxu0 %v315
        %v1653 = vpop.f32.mrb[0].mxu0
        %v1654 = vadd.f32 %v500, %v1653
        %v1655 = vpop.f32.mrb[0].mxu0
        %v1656 = vadd.f32 %v504, %v1655
        %1657 = vmatprep.mubr.f32.mxu0 0.0
        %1658 = vmatmul.mubr.f32.gmra.mrb[0].mxu0 %v316
        %v1659 = vpop.f32.mrb[0].mxu0
        %v1660 = vadd.f32 %v500, %v1659
        %v1661 = vpop.f32.mrb[0].mxu0
        %v1662 = vadd.f32 %v504, %v1661
        %1663 = vmatprep.mubr.f32.mxu0 0.0
        %1664 = vmatmul.mubr.f32.gmra.mrb[0].mxu0 %v317
        %v1665 = vpop.f32.mrb[0].mxu0
        %v1666 = vadd.f32 %v500, %v1665
        %v1667 = vpop.f32.mrb[0].mxu0
        %v1668 = vadd.f32 %v504, %v1667
        %1669 = vmatprep.mubr.f32.mxu0 0.0
        %1670 = vmatmul.mubr.f32.gmra.mrb[0].mxu0 %v318
        %v1671 = vpop.f32.mrb[0].mxu0
        %v1672 = vadd.f32 %v500, %v1671
        %v1673 = vpop.f32.mrb[0].mxu0
        %v1674 = vadd.f32 %v504, %v1673
        %1675 = vmatprep.mubr.f32.mxu0 0.0
        %1676 = vmatmul.mubr.f32.gmra.mrb[0].mxu0 %v319
        %v1677 = vpop.f32.mrb[0].mxu0
        %v1678 = vadd.f32 %v500, %v1677
        %v1679 = vpop.f32.mrb[0].mxu0
        %v1680 = vadd.f32 %v504, %v1679
        %1681 = vmatprep.mubr.f32.mxu0 0.0
        %1682 = vmatmul.mubr.f32.gmra.mrb[0].mxu0 %v320
        %v1683 = vpop.f32.mrb[0].mxu0
        %v1684 = vadd.f32 %v500, %v1683
        %v1685 = vpop.f32.mrb[0].mxu0
        %v1686 = vadd.f32 %v504, %v1685
        %1687 = vmatprep.mubr.f32.mxu0 0.0
        %1688 = vmatmul.mubr.f32.gmra.mrb[0].mxu0 %v321
        %v1689 = vpop.f32.mrb[0].mxu0
        %v1690 = vadd.f32 %v500, %v1689
        %v1691 = vpop.f32.mrb[0].mxu0
        %v1692 = vadd.f32 %v504, %v1691
        %1693 = vmatprep.mubr.f32.mxu0 0.0
        %1694 = vmatmul.mubr.f32.gmra.mrb[0].mxu0 %v322
        %v1695 = vpop.f32.mrb[0].mxu0
        %v1696 = vadd.f32 %v500, %v1695
        %v1697 = vpop.f32.mrb[0].mxu0
        %v1698 = vadd.f32 %v504, %v1697
        %1699 = vmatprep.mubr.f32.mxu0 0.0
        %1700 = vmatmul.mubr.f32.gmra.mrb[0].mxu0 %v323
        %v1701 = vpop.f32.mrb[0].mxu0
        %v1702 = vadd.f32 %v500, %v1701
        %v1703 = vpop.f32.mrb[0].mxu0
        %v1704 = vadd.f32 %v504, %v1703
        %1705 = vmatprep.mubr.f32.mxu0 0.0
        %1706 = vmatmul.mubr.f32.gmra.mrb[0].mxu0 %v324
        %v1707 = vpop.f32.mrb[0].mxu0
        %v1708 = vadd.f32 %v500, %v1707
        %v1709 = vpop.f32.mrb[0].mxu0
        %v1710 = vadd.f32 %v504, %v1709
        %1711 = vmatprep.mubr.f32.mxu0 0.0
        %1712 = vmatmul.mubr.f32.gmra.mrb[0].mxu0 %v325
        %v1713 = vpop.f32.mrb[0].mxu0
        %v1714 = vadd.f32 %v500, %v1713
        %v1715 = vpop.f32.mrb[0].mxu0
        %v1716 = vadd.f32 %v504, %v1715
        %1717 = vmatprep.mubr.f32.mxu0 0.0
        %1718 = vmatmul.mubr.f32.gmra.mrb[0].mxu0 %v326
        %v1719 = vpop.f32.mrb[0].mxu0
        %v1720 = vadd.f32 %v500, %v1719
        %v1721 = vpop.f32.mrb[0].mxu0
        %v1722 = vadd.f32 %v504, %v1721
        %1723 = vmatprep.mubr.f32.mxu0 0.0
        %1724 = vmatmul.mubr.f32.gmra.mrb[0].mxu0 %v327
        %v1725 = vpop.f32.mrb[0].mxu0
        %v1726 = vadd.f32 %v500, %v1725
        %v1727 = vpop.f32.mrb[0].mxu0
        %v1728 = vadd.f32 %v504, %v1727
        %1729 = vmatprep.mubr.f32.mxu0 0.0
        %1730 = vmatmul.mubr.f32.gmra.mrb[0].mxu0 %v328
        %v1731 = vpop.f32.mrb[0].mxu0
        %v1732 = vadd.f32 %v500, %v1731
        %v1733 = vpop.f32.mrb[0].mxu0
        %v1734 = vadd.f32 %v504, %v1733
        %1735 = vmatprep.mubr.f32.mxu0 0.0
        %1736 = vmatmul.mubr.f32.gmra.mrb[0].mxu0 %v329
        %v1737 = vpop.f32.mrb[0].mxu0
        %v1738 = vadd.f32 %v500, %v1737
        %v1739 = vpop.f32.mrb[0].mxu0
        %v1740 = vadd.f32 %v504, %v1739
        %1741 = vmatprep.mubr.f32.mxu0 0.0
        %1742 = vmatmul.mubr.f32.gmra.mrb[0].mxu0 %v330
        %v1743 = vpop.f32.mrb[0].mxu0
        %v1744 = vadd.f32 %v500, %v1743
        %v1745 = vpop.f32.mrb[0].mxu0
        %v1746 = vadd.f32 %v504, %v1745
        %1747 = vmatprep.mubr.f32.mxu0 0.0
        %1748 = vmatmul.mubr.f32.gmra.mrb[0].mxu0 %v331
        %v1749 = vpop.f32.mrb[0].mxu0
        %v1750 = vadd.f32 %v500, %v1749
        %v1751 = vpop.f32.mrb[0].mxu0
        %v1752 = vadd.f32 %v504, %v1751
        %1753 = vmatprep.mubr.f32.mxu0 0.0
        %1754 = vmatmul.mubr.f32.gmra.mrb[0].mxu0 %v332
        %v1755 = vpop.f32.mrb[0].mxu0
        %v1756 = vadd.f32 %v500, %v1755
        %v1757 = vpop.f32.mrb[0].mxu0
        %v1758 = vadd.f32 %v504, %v1757
        %1759 = vmatprep.mubr.f32.mxu0 0.0
        %1760 = vmatmul.mubr.f32.gmra.mrb[0].mxu0 %v333
        %v1761 = vpop.f32.mrb[0].mxu0
        %v1762 = vadd.f32 %v500, %v1761
        %v1763 = vpop.f32.mrb[0].mxu0
        %v1764 = vadd.f32 %v504, %v1763
        %1765 = vmatprep.mubr.f32.mxu0 0.0
        %1766 = vmatmul.mubr.f32.gmra.mrb[0].mxu0 %v334
        %v1767 = vpop.f32.mrb[0].mxu0
        %v1768 = vadd.f32 %v500, %v1767
        %v1769 = vpop.f32.mrb[0].mxu0
        %v1770 = vadd.f32 %v504, %v1769
        %1771 = vmatprep.mubr.f32.mxu0 0.0
        %1772 = vmatmul.mubr.f32.gmra.mrb[0].mxu0 %v335
        %v1773 = vpop.f32.mrb[0].mxu0
        %v1774 = vadd.f32 %v500, %v1773
        %v1775 = vpop.f32.mrb[0].mxu0
        %v1776 = vadd.f32 %v504, %v1775
        %1777 = vmatprep.mubr.f32.mxu0 0.0
        %1778 = vmatmul.mubr.f32.gmra.mrb[0].mxu0 %v336
        %v1779 = vpop.f32.mrb[0].mxu0
        %v1780 = vadd.f32 %v500, %v1779
        %v1781 = vpop.f32.mrb[0].mxu0
        %v1782 = vadd.f32 %v504, %v1781
        %1783 = vmatprep.mubr.f32.mxu0 0.0
        %1784 = vmatmul.mubr.f32.gmra.mrb[0].mxu0 %v337
        %v1785 = vpop.f32.mrb[0].mxu0
        %v1786 = vadd.f32 %v500, %v1785
        %v1787 = vpop.f32.mrb[0].mxu0
        %v1788 = vadd.f32 %v504, %v1787
        %1789 = vmatprep.mubr.f32.mxu0 0.0
        %1790 = vmatmul.mubr.f32.gmra.mrb[0].mxu0 %v338
        %v1791 = vpop.f32.mrb[0].mxu0
        %v1792 = vadd.f32 %v500, %v1791
        %v1793 = vpop.f32.mrb[0].mxu0
        %v1794 = vadd.f32 %v504, %v1793
        %1795 = vmatprep.mubr.f32.mxu0 0.0
        %1796 = vmatmul.mubr.f32.gmra.mrb[0].mxu0 %v339
        %v1797 = vpop.f32.mrb[0].mxu0
        %v1798 = vadd.f32 %v500, %v1797
        %v1799 = vpop.f32.mrb[0].mxu0
        %v1800 = vadd.f32 %v504, %v1799
        %1801 = vmatprep.mubr.f32.mxu0 0.0
        %1802 = vmatmul.mubr.f32.gmra.mrb[0].mxu0 %v340
        %v1803 = vpop.f32.mrb[0].mxu0
        %v1804 = vadd.f32 %v500, %v1803
        %v1805 = vpop.f32.mrb[0].mxu0
        %v1806 = vadd.f32 %v504, %v1805
        %1807 = vmatprep.mubr.f32.mxu0 0.0
        %1808 = vmatmul.mubr.f32.gmra.mrb[0].mxu0 %v341
        %v1809 = vpop.f32.mrb[0].mxu0
        %v1810 = vadd.f32 %v500, %v1809
        %v1811 = vpop.f32.mrb[0].mxu0
        %v1812 = vadd.f32 %v504, %v1811
        %1813 = vmatprep.mubr.f32.mxu0 0.0
        %1814 = vmatmul.mubr.f32.gmra.mrb[0].mxu0 %v342
        %v1815 = vpop.f32.mrb[0].mxu0
        %v1816 = vadd.f32 %v500, %v1815
        %v1817 = vpop.f32.mrb[0].mxu0
        %v1818 = vadd.f32 %v504, %v1817
        %1819 = vmatprep.mubr.f32.mxu0 0.0
        %1820 = vmatmul.mubr.f32.gmra.mrb[0].mxu0 %v343
        %v1821 = vpop.f32.mrb[0].mxu0
        %v1822 = vadd.f32 %v500, %v1821
        %v1823 = vpop.f32.mrb[0].mxu0
        %v1824 = vadd.f32 %v504, %v1823
        %1825 = vmatprep.mubr.f32.mxu0 0.0
        %1826 = vmatmul.mubr.f32.gmra.mrb[0].mxu0 %v344
        %v1827 = vpop.f32.mrb[0].mxu0
        %v1828 = vadd.f32 %v500, %v1827
        %v1829 = vpop.f32.mrb[0].mxu0
        %v1830 = vadd.f32 %v504, %v1829
        %1831 = vmatprep.mubr.f32.mxu0 0.0
        %1832 = vmatmul.mubr.f32.gmra.mrb[0].mxu0 %v345
        %v1833 = vpop.f32.mrb[0].mxu0
        %v1834 = vadd.f32 %v500, %v1833
        %v1835 = vpop.f32.mrb[0].mxu0
        %v1836 = vadd.f32 %v504, %v1835
        %1837 = vmatprep.mubr.f32.mxu0 0.0
        %1838 = vmatmul.mubr.f32.gmra.mrb[0].mxu0 %v346
        %v1839 = vpop.f32.mrb[0].mxu0
        %v1840 = vadd.f32 %v500, %v1839
        %v1841 = vpop.f32.mrb[0].mxu0
        %v1842 = vadd.f32 %v504, %v1841
        %1843 = vmatprep.mubr.f32.mxu0 0.0
        %1844 = vmatmul.mubr.f32.gmra.mrb[0].mxu0 %v347
        %v1845 = vpop.f32.mrb[0].mxu0
        %v1846 = vadd.f32 %v500, %v1845
        %v1847 = vpop.f32.mrb[0].mxu0
        %v1848 = vadd.f32 %v504, %v1847
        %1849 = vmatprep.mubr.f32.mxu0 0.0
        %1850 = vmatmul.mubr.f32.gmra.mrb[0].mxu0 %v348
        %v1851 = vpop.f32.mrb[0].mxu0
        %v1852 = vadd.f32 %v500, %v1851
        %v1853 = vpop.f32.mrb[0].mxu0
        %v1854 = vadd.f32 %v504, %v1853
        %1855 = vmatprep.mubr.f32.mxu0 0.0
        %1856 = vmatmul.mubr.f32.gmra.mrb[0].mxu0 %v349
        %v1857 = vpop.f32.mrb[0].mxu0
        %v1858 = vadd.f32 %v500, %v1857
        %v1859 = vpop.f32.mrb[0].mxu0
        %v1860 = vadd.f32 %v504, %v1859
        %1861 = vmatprep.mubr.f32.mxu0 0.0
        %1862 = vmatmul.mubr.f32.gmra.mrb[0].mxu0 %v350
        %v1863 = vpop.f32.mrb[0].mxu0
        %v1864 = vadd.f32 %v500, %v1863
        %v1865 = vpop.f32.mrb[0].mxu0
        %v1866 = vadd.f32 %v504, %v1865
        %1867 = vdwg.mxu0
        %1868 = vmatprep.subr.mxu0 %v358
        %1869 = vmatpush1.msra.mxu0 %v357
        %1870 = vmatprep.subr.mxu0 %v366
        %1871 = vmatpush1.msra.mxu0 %v365
        %1872 = vmatprep.subr.mxu0 %v374
        %1873 = vmatpush1.msra.mxu0 %v373
        %1874 = vmatprep.subr.mxu0 %v382
        %1875 = vmatpush1.msra.mxu0 %v381
        %1876 = vmatprep.subr.mxu0 %v390
        %1877 = vmatpush1.msra.mxu0 %v389
        %1878 = vmatprep.subr.mxu0 %v398
        %1879 = vmatpush1.msra.mxu0 %v397
        %1880 = vmatprep.subr.mxu0 %v406
        %1881 = vmatpush1.msra.mxu0 %v405
        %1882 = vmatprep.subr.mxu0 %v414
        %1883 = vmatpush1.msra.mxu0 %v413
        %1884 = vmatprep.subr.mxu0 %v422
        %1885 = vmatpush1.msra.mxu0 %v421
        %1886 = vmatprep.subr.mxu0 %v430
        %1887 = vmatpush1.msra.mxu0 %v429
        %1888 = vmatprep.subr.mxu0 %v438
        %1889 = vmatpush1.msra.mxu0 %v437
        %1890 = vmatprep.subr.mxu0 %v446
        %1891 = vmatpush1.msra.mxu0 %v445
        %1892 = vmatprep.subr.mxu0 %v454
        %1893 = vmatpush1.msra.mxu0 %v453
        %1894 = vmatprep.subr.mxu0 %v462
        %1895 = vmatpush1.msra.mxu0 %v461
        %1896 = vmatprep.subr.mxu0 %v470
        %1897 = vmatpush1.msra.mxu0 %v469
        %1898 = vmatprep.subr.mxu0 %v478
        %1899 = vmatpush1.msra.mxu0 %v477
        %1900 = vmatprep.subr.mxu0 0.0
        %1901 = vmatpush1.msra.mxu0 0.0
        %1902 = vmatprep.subr.mxu0 0.0
        %1903 = vmatpush1.msra.mxu0 0.0
        %1904 = vmatprep.subr.mxu0 0.0
        %1905 = vmatpush1.msra.mxu0 0.0
        %1906 = vmatprep.subr.mxu0 0.0
        %1907 = vmatpush1.msra.mxu0 0.0
        %1908 = vmatprep.subr.mxu0 0.0
        %1909 = vmatpush1.msra.mxu0 0.0
        %1910 = vmatprep.subr.mxu0 0.0
        %1911 = vmatpush1.msra.mxu0 0.0
        %1912 = vmatprep.subr.mxu0 0.0
        %1913 = vmatpush1.msra.mxu0 0.0
        %1914 = vmatprep.subr.mxu0 0.0
        %1915 = vmatpush1.msra.mxu0 0.0
        %1916 = vmatprep.subr.mxu0 0.0
        %1917 = vmatpush1.msra.mxu0 0.0
        %1918 = vmatprep.subr.mxu0 0.0
        %1919 = vmatpush1.msra.mxu0 0.0
        %1920 = vmatprep.subr.mxu0 0.0
        %1921 = vmatpush1.msra.mxu0 0.0
        %1922 = vmatprep.subr.mxu0 0.0
        %1923 = vmatpush1.msra.mxu0 0.0
        %1924 = vmatprep.subr.mxu0 0.0
        %1925 = vmatpush1.msra.mxu0 0.0
        %1926 = vmatprep.subr.mxu0 0.0
        %1927 = vmatpush1.msra.mxu0 0.0
        %1928 = vmatprep.subr.mxu0 0.0
        %1929 = vmatpush1.msra.mxu0 0.0
        %1930 = vmatprep.subr.mxu0 0.0
        %1931 = vmatpush1.msra.mxu0 0.0
        %1932 = vmatprep.mubr.f32.mxu0 0.0
        %1933 = vmatmul.mubr.f32.gmra.mrb[0].mxu0 %v287
        %v1934 = vpop.f32.mrb[0].mxu0
        %v1935 = vadd.f32 %v508, %v1934
        %v1936 = vpop.f32.mrb[0].mxu0
        %v1937 = vadd.f32 %v512, %v1936
        %1938 = vmatprep.mubr.f32.mxu0 0.0
        %1939 = vmatmul.mubr.f32.gmra.mrb[0].mxu0 %v288
        %v1940 = vpop.f32.mrb[0].mxu0
        %v1941 = vadd.f32 %v508, %v1940
        %v1942 = vpop.f32.mrb[0].mxu0
        %v1943 = vadd.f32 %v512, %v1942
        %1944 = vmatprep.mubr.f32.mxu0 0.0
        %1945 = vmatmul.mubr.f32.gmra.mrb[0].mxu0 %v289
        %v1946 = vpop.f32.mrb[0].mxu0
        %v1947 = vadd.f32 %v508, %v1946
        %v1948 = vpop.f32.mrb[0].mxu0
        %v1949 = vadd.f32 %v512, %v1948
        %1950 = vmatprep.mubr.f32.mxu0 0.0
        %1951 = vmatmul.mubr.f32.gmra.mrb[0].mxu0 %v290
        %v1952 = vpop.f32.mrb[0].mxu0
        %v1953 = vadd.f32 %v508, %v1952
        %v1954 = vpop.f32.mrb[0].mxu0
        %v1955 = vadd.f32 %v512, %v1954
        %1956 = vmatprep.mubr.f32.mxu0 0.0
        %1957 = vmatmul.mubr.f32.gmra.mrb[0].mxu0 %v291
        %v1958 = vpop.f32.mrb[0].mxu0
        %v1959 = vadd.f32 %v508, %v1958
        %v1960 = vpop.f32.mrb[0].mxu0
        %v1961 = vadd.f32 %v512, %v1960
        %1962 = vmatprep.mubr.f32.mxu0 0.0
        %1963 = vmatmul.mubr.f32.gmra.mrb[0].mxu0 %v292
        %v1964 = vpop.f32.mrb[0].mxu0
        %v1965 = vadd.f32 %v508, %v1964
        %v1966 = vpop.f32.mrb[0].mxu0
        %v1967 = vadd.f32 %v512, %v1966
        %1968 = vmatprep.mubr.f32.mxu0 0.0
        %1969 = vmatmul.mubr.f32.gmra.mrb[0].mxu0 %v293
        %v1970 = vpop.f32.mrb[0].mxu0
        %v1971 = vadd.f32 %v508, %v1970
        %v1972 = vpop.f32.mrb[0].mxu0
        %v1973 = vadd.f32 %v512, %v1972
        %1974 = vmatprep.mubr.f32.mxu0 0.0
        %1975 = vmatmul.mubr.f32.gmra.mrb[0].mxu0 %v294
        %v1976 = vpop.f32.mrb[0].mxu0
        %v1977 = vadd.f32 %v508, %v1976
        %v1978 = vpop.f32.mrb[0].mxu0
        %v1979 = vadd.f32 %v512, %v1978
        %1980 = vmatprep.mubr.f32.mxu0 0.0
        %1981 = vmatmul.mubr.f32.gmra.mrb[0].mxu0 %v295
        %v1982 = vpop.f32.mrb[0].mxu0
        %v1983 = vadd.f32 %v508, %v1982
        %v1984 = vpop.f32.mrb[0].mxu0
        %v1985 = vadd.f32 %v512, %v1984
        %1986 = vmatprep.mubr.f32.mxu0 0.0
        %1987 = vmatmul.mubr.f32.gmra.mrb[0].mxu0 %v296
        %v1988 = vpop.f32.mrb[0].mxu0
        %v1989 = vadd.f32 %v508, %v1988
        %v1990 = vpop.f32.mrb[0].mxu0
        %v1991 = vadd.f32 %v512, %v1990
        %1992 = vmatprep.mubr.f32.mxu0 0.0
        %1993 = vmatmul.mubr.f32.gmra.mrb[0].mxu0 %v297
        %v1994 = vpop.f32.mrb[0].mxu0
        %v1995 = vadd.f32 %v508, %v1994
        %v1996 = vpop.f32.mrb[0].mxu0
        %v1997 = vadd.f32 %v512, %v1996
        %1998 = vmatprep.mubr.f32.mxu0 0.0
        %1999 = vmatmul.mubr.f32.gmra.mrb[0].mxu0 %v298
        %v2000 = vpop.f32.mrb[0].mxu0
        %v2001 = vadd.f32 %v508, %v2000
        %v2002 = vpop.f32.mrb[0].mxu0
        %v2003 = vadd.f32 %v512, %v2002
        %2004 = vmatprep.mubr.f32.mxu0 0.0
        %2005 = vmatmul.mubr.f32.gmra.mrb[0].mxu0 %v299
        %v2006 = vpop.f32.mrb[0].mxu0
        %v2007 = vadd.f32 %v508, %v2006
        %v2008 = vpop.f32.mrb[0].mxu0
        %v2009 = vadd.f32 %v512, %v2008
        %2010 = vmatprep.mubr.f32.mxu0 0.0
        %2011 = vmatmul.mubr.f32.gmra.mrb[0].mxu0 %v300
        %v2012 = vpop.f32.mrb[0].mxu0
        %v2013 = vadd.f32 %v508, %v2012
        %v2014 = vpop.f32.mrb[0].mxu0
        %v2015 = vadd.f32 %v512, %v2014
        %2016 = vmatprep.mubr.f32.mxu0 0.0
        %2017 = vmatmul.mubr.f32.gmra.mrb[0].mxu0 %v301
        %v2018 = vpop.f32.mrb[0].mxu0
        %v2019 = vadd.f32 %v508, %v2018
        %v2020 = vpop.f32.mrb[0].mxu0
        %v2021 = vadd.f32 %v512, %v2020
        %2022 = vmatprep.mubr.f32.mxu0 0.0
        %2023 = vmatmul.mubr.f32.gmra.mrb[0].mxu0 %v302
        %v2024 = vpop.f32.mrb[0].mxu0
        %v2025 = vadd.f32 %v508, %v2024
        %v2026 = vpop.f32.mrb[0].mxu0
        %v2027 = vadd.f32 %v512, %v2026
        %2028 = vmatprep.mubr.f32.mxu0 0.0
        %2029 = vmatmul.mubr.f32.gmra.mrb[0].mxu0 %v303
        %v2030 = vpop.f32.mrb[0].mxu0
        %v2031 = vadd.f32 %v508, %v2030
        %v2032 = vpop.f32.mrb[0].mxu0
        %v2033 = vadd.f32 %v512, %v2032
        %2034 = vmatprep.mubr.f32.mxu0 0.0
        %2035 = vmatmul.mubr.f32.gmra.mrb[0].mxu0 %v304
        %v2036 = vpop.f32.mrb[0].mxu0
        %v2037 = vadd.f32 %v508, %v2036
        %v2038 = vpop.f32.mrb[0].mxu0
        %v2039 = vadd.f32 %v512, %v2038
        %2040 = vmatprep.mubr.f32.mxu0 0.0
        %2041 = vmatmul.mubr.f32.gmra.mrb[0].mxu0 %v305
        %v2042 = vpop.f32.mrb[0].mxu0
        %v2043 = vadd.f32 %v508, %v2042
        %v2044 = vpop.f32.mrb[0].mxu0
        %v2045 = vadd.f32 %v512, %v2044
        %2046 = vmatprep.mubr.f32.mxu0 0.0
        %2047 = vmatmul.mubr.f32.gmra.mrb[0].mxu0 %v306
        %v2048 = vpop.f32.mrb[0].mxu0
        %v2049 = vadd.f32 %v508, %v2048
        %v2050 = vpop.f32.mrb[0].mxu0
        %v2051 = vadd.f32 %v512, %v2050
        %2052 = vmatprep.mubr.f32.mxu0 0.0
        %2053 = vmatmul.mubr.f32.gmra.mrb[0].mxu0 %v307
        %v2054 = vpop.f32.mrb[0].mxu0
        %v2055 = vadd.f32 %v508, %v2054
        %v2056 = vpop.f32.mrb[0].mxu0
        %v2057 = vadd.f32 %v512, %v2056
        %2058 = vmatprep.mubr.f32.mxu0 0.0
        %2059 = vmatmul.mubr.f32.gmra.mrb[0].mxu0 %v308
        %v2060 = vpop.f32.mrb[0].mxu0
        %v2061 = vadd.f32 %v508, %v2060
        %v2062 = vpop.f32.mrb[0].mxu0
        %v2063 = vadd.f32 %v512, %v2062
        %2064 = vmatprep.mubr.f32.mxu0 0.0
        %2065 = vmatmul.mubr.f32.gmra.mrb[0].mxu0 %v309
        %v2066 = vpop.f32.mrb[0].mxu0
        %v2067 = vadd.f32 %v508, %v2066
        %v2068 = vpop.f32.mrb[0].mxu0
        %v2069 = vadd.f32 %v512, %v2068
        %2070 = vmatprep.mubr.f32.mxu0 0.0
        %2071 = vmatmul.mubr.f32.gmra.mrb[0].mxu0 %v310
        %v2072 = vpop.f32.mrb[0].mxu0
        %v2073 = vadd.f32 %v508, %v2072
        %v2074 = vpop.f32.mrb[0].mxu0
        %v2075 = vadd.f32 %v512, %v2074
        %2076 = vmatprep.mubr.f32.mxu0 0.0
        %2077 = vmatmul.mubr.f32.gmra.mrb[0].mxu0 %v311
        %v2078 = vpop.f32.mrb[0].mxu0
        %v2079 = vadd.f32 %v508, %v2078
        %v2080 = vpop.f32.mrb[0].mxu0
        %v2081 = vadd.f32 %v512, %v2080
        %2082 = vmatprep.mubr.f32.mxu0 0.0
        %2083 = vmatmul.mubr.f32.gmra.mrb[0].mxu0 %v312
        %v2084 = vpop.f32.mrb[0].mxu0
        %v2085 = vadd.f32 %v508, %v2084
        %v2086 = vpop.f32.mrb[0].mxu0
        %v2087 = vadd.f32 %v512, %v2086
        %2088 = vmatprep.mubr.f32.mxu0 0.0
        %2089 = vmatmul.mubr.f32.gmra.mrb[0].mxu0 %v313
        %v2090 = vpop.f32.mrb[0].mxu0
        %v2091 = vadd.f32 %v508, %v2090
        %v2092 = vpop.f32.mrb[0].mxu0
        %v2093 = vadd.f32 %v512, %v2092
        %2094 = vmatprep.mubr.f32.mxu0 0.0
        %2095 = vmatmul.mubr.f32.gmra.mrb[0].mxu0 %v314
        %v2096 = vpop.f32.mrb[0].mxu0
        %v2097 = vadd.f32 %v508, %v2096
        %v2098 = vpop.f32.mrb[0].mxu0
        %v2099 = vadd.f32 %v512, %v2098
        %2100 = vmatprep.mubr.f32.mxu0 0.0
        %2101 = vmatmul.mubr.f32.gmra.mrb[0].mxu0 %v315
        %v2102 = vpop.f32.mrb[0].mxu0
        %v2103 = vadd.f32 %v508, %v2102
        %v2104 = vpop.f32.mrb[0].mxu0
        %v2105 = vadd.f32 %v512, %v2104
        %2106 = vmatprep.mubr.f32.mxu0 0.0
        %2107 = vmatmul.mubr.f32.gmra.mrb[0].mxu0 %v316
        %v2108 = vpop.f32.mrb[0].mxu0
        %v2109 = vadd.f32 %v508, %v2108
        %v2110 = vpop.f32.mrb[0].mxu0
        %v2111 = vadd.f32 %v512, %v2110
        %2112 = vmatprep.mubr.f32.mxu0 0.0
        %2113 = vmatmul.mubr.f32.gmra.mrb[0].mxu0 %v317
        %v2114 = vpop.f32.mrb[0].mxu0
        %v2115 = vadd.f32 %v508, %v2114
        %v2116 = vpop.f32.mrb[0].mxu0
        %v2117 = vadd.f32 %v512, %v2116
        %2118 = vmatprep.mubr.f32.mxu0 0.0
        %2119 = vmatmul.mubr.f32.gmra.mrb[0].mxu0 %v318
        %v2120 = vpop.f32.mrb[0].mxu0
        %v2121 = vadd.f32 %v508, %v2120
        %v2122 = vpop.f32.mrb[0].mxu0
        %v2123 = vadd.f32 %v512, %v2122
        %2124 = vmatprep.mubr.f32.mxu0 0.0
        %2125 = vmatmul.mubr.f32.gmra.mrb[0].mxu0 %v319
        %v2126 = vpop.f32.mrb[0].mxu0
        %v2127 = vadd.f32 %v508, %v2126
        %v2128 = vpop.f32.mrb[0].mxu0
        %v2129 = vadd.f32 %v512, %v2128
        %2130 = vmatprep.mubr.f32.mxu0 0.0
        %2131 = vmatmul.mubr.f32.gmra.mrb[0].mxu0 %v320
        %v2132 = vpop.f32.mrb[0].mxu0
        %v2133 = vadd.f32 %v508, %v2132
        %v2134 = vpop.f32.mrb[0].mxu0
        %v2135 = vadd.f32 %v512, %v2134
        %2136 = vmatprep.mubr.f32.mxu0 0.0
        %2137 = vmatmul.mubr.f32.gmra.mrb[0].mxu0 %v321
        %v2138 = vpop.f32.mrb[0].mxu0
        %v2139 = vadd.f32 %v508, %v2138
        %v2140 = vpop.f32.mrb[0].mxu0
        %v2141 = vadd.f32 %v512, %v2140
        %2142 = vmatprep.mubr.f32.mxu0 0.0
        %2143 = vmatmul.mubr.f32.gmra.mrb[0].mxu0 %v322
        %v2144 = vpop.f32.mrb[0].mxu0
        %v2145 = vadd.f32 %v508, %v2144
        %v2146 = vpop.f32.mrb[0].mxu0
        %v2147 = vadd.f32 %v512, %v2146
        %2148 = vmatprep.mubr.f32.mxu0 0.0
        %2149 = vmatmul.mubr.f32.gmra.mrb[0].mxu0 %v323
        %v2150 = vpop.f32.mrb[0].mxu0
        %v2151 = vadd.f32 %v508, %v2150
        %v2152 = vpop.f32.mrb[0].mxu0
        %v2153 = vadd.f32 %v512, %v2152
        %2154 = vmatprep.mubr.f32.mxu0 0.0
        %2155 = vmatmul.mubr.f32.gmra.mrb[0].mxu0 %v324
        %v2156 = vpop.f32.mrb[0].mxu0
        %v2157 = vadd.f32 %v508, %v2156
        %v2158 = vpop.f32.mrb[0].mxu0
        %v2159 = vadd.f32 %v512, %v2158
        %2160 = vmatprep.mubr.f32.mxu0 0.0
        %2161 = vmatmul.mubr.f32.gmra.mrb[0].mxu0 %v325
        %v2162 = vpop.f32.mrb[0].mxu0
        %v2163 = vadd.f32 %v508, %v2162
        %v2164 = vpop.f32.mrb[0].mxu0
        %v2165 = vadd.f32 %v512, %v2164
        %2166 = vmatprep.mubr.f32.mxu0 0.0
        %2167 = vmatmul.mubr.f32.gmra.mrb[0].mxu0 %v326
        %v2168 = vpop.f32.mrb[0].mxu0
        %v2169 = vadd.f32 %v508, %v2168
        %v2170 = vpop.f32.mrb[0].mxu0
        %v2171 = vadd.f32 %v512, %v2170
        %2172 = vmatprep.mubr.f32.mxu0 0.0
        %2173 = vmatmul.mubr.f32.gmra.mrb[0].mxu0 %v327
        %v2174 = vpop.f32.mrb[0].mxu0
        %v2175 = vadd.f32 %v508, %v2174
        %v2176 = vpop.f32.mrb[0].mxu0
        %v2177 = vadd.f32 %v512, %v2176
        %2178 = vmatprep.mubr.f32.mxu0 0.0
        %2179 = vmatmul.mubr.f32.gmra.mrb[0].mxu0 %v328
        %v2180 = vpop.f32.mrb[0].mxu0
        %v2181 = vadd.f32 %v508, %v2180
        %v2182 = vpop.f32.mrb[0].mxu0
        %v2183 = vadd.f32 %v512, %v2182
        %2184 = vmatprep.mubr.f32.mxu0 0.0
        %2185 = vmatmul.mubr.f32.gmra.mrb[0].mxu0 %v329
        %v2186 = vpop.f32.mrb[0].mxu0
        %v2187 = vadd.f32 %v508, %v2186
        %v2188 = vpop.f32.mrb[0].mxu0
        %v2189 = vadd.f32 %v512, %v2188
        %2190 = vmatprep.mubr.f32.mxu0 0.0
        %2191 = vmatmul.mubr.f32.gmra.mrb[0].mxu0 %v330
        %v2192 = vpop.f32.mrb[0].mxu0
        %v2193 = vadd.f32 %v508, %v2192
        %v2194 = vpop.f32.mrb[0].mxu0
        %v2195 = vadd.f32 %v512, %v2194
        %2196 = vmatprep.mubr.f32.mxu0 0.0
        %2197 = vmatmul.mubr.f32.gmra.mrb[0].mxu0 %v331
        %v2198 = vpop.f32.mrb[0].mxu0
        %v2199 = vadd.f32 %v508, %v2198
        %v2200 = vpop.f32.mrb[0].mxu0
        %v2201 = vadd.f32 %v512, %v2200
        %2202 = vmatprep.mubr.f32.mxu0 0.0
        %2203 = vmatmul.mubr.f32.gmra.mrb[0].mxu0 %v332
        %v2204 = vpop.f32.mrb[0].mxu0
        %v2205 = vadd.f32 %v508, %v2204
        %v2206 = vpop.f32.mrb[0].mxu0
        %v2207 = vadd.f32 %v512, %v2206
        %2208 = vmatprep.mubr.f32.mxu0 0.0
        %2209 = vmatmul.mubr.f32.gmra.mrb[0].mxu0 %v333
        %v2210 = vpop.f32.mrb[0].mxu0
        %v2211 = vadd.f32 %v508, %v2210
        %v2212 = vpop.f32.mrb[0].mxu0
        %v2213 = vadd.f32 %v512, %v2212
        %2214 = vmatprep.mubr.f32.mxu0 0.0
        %2215 = vmatmul.mubr.f32.gmra.mrb[0].mxu0 %v334
        %v2216 = vpop.f32.mrb[0].mxu0
        %v2217 = vadd.f32 %v508, %v2216
        %v2218 = vpop.f32.mrb[0].mxu0
        %v2219 = vadd.f32 %v512, %v2218
        %2220 = vmatprep.mubr.f32.mxu0 0.0
        %2221 = vmatmul.mubr.f32.gmra.mrb[0].mxu0 %v335
        %v2222 = vpop.f32.mrb[0].mxu0
        %v2223 = vadd.f32 %v508, %v2222
        %v2224 = vpop.f32.mrb[0].mxu0
        %v2225 = vadd.f32 %v512, %v2224
        %2226 = vmatprep.mubr.f32.mxu0 0.0
        %2227 = vmatmul.mubr.f32.gmra.mrb[0].mxu0 %v336
        %v2228 = vpop.f32.mrb[0].mxu0
        %v2229 = vadd.f32 %v508, %v2228
        %v2230 = vpop.f32.mrb[0].mxu0
        %v2231 = vadd.f32 %v512, %v2230
        %2232 = vmatprep.mubr.f32.mxu0 0.0
        %2233 = vmatmul.mubr.f32.gmra.mrb[0].mxu0 %v337
        %v2234 = vpop.f32.mrb[0].mxu0
        %v2235 = vadd.f32 %v508, %v2234
        %v2236 = vpop.f32.mrb[0].mxu0
        %v2237 = vadd.f32 %v512, %v2236
        %2238 = vmatprep.mubr.f32.mxu0 0.0
        %2239 = vmatmul.mubr.f32.gmra.mrb[0].mxu0 %v338
        %v2240 = vpop.f32.mrb[0].mxu0
        %v2241 = vadd.f32 %v508, %v2240
        %v2242 = vpop.f32.mrb[0].mxu0
        %v2243 = vadd.f32 %v512, %v2242
        %2244 = vmatprep.mubr.f32.mxu0 0.0
        %2245 = vmatmul.mubr.f32.gmra.mrb[0].mxu0 %v339
        %v2246 = vpop.f32.mrb[0].mxu0
        %v2247 = vadd.f32 %v508, %v2246
        %v2248 = vpop.f32.mrb[0].mxu0
        %v2249 = vadd.f32 %v512, %v2248
        %2250 = vmatprep.mubr.f32.mxu0 0.0
        %2251 = vmatmul.mubr.f32.gmra.mrb[0].mxu0 %v340
        %v2252 = vpop.f32.mrb[0].mxu0
        %v2253 = vadd.f32 %v508, %v2252
        %v2254 = vpop.f32.mrb[0].mxu0
        %v2255 = vadd.f32 %v512, %v2254
        %2256 = vmatprep.mubr.f32.mxu0 0.0
        %2257 = vmatmul.mubr.f32.gmra.mrb[0].mxu0 %v341
        %v2258 = vpop.f32.mrb[0].mxu0
        %v2259 = vadd.f32 %v508, %v2258
        %v2260 = vpop.f32.mrb[0].mxu0
        %v2261 = vadd.f32 %v512, %v2260
        %2262 = vmatprep.mubr.f32.mxu0 0.0
        %2263 = vmatmul.mubr.f32.gmra.mrb[0].mxu0 %v342
        %v2264 = vpop.f32.mrb[0].mxu0
        %v2265 = vadd.f32 %v508, %v2264
        %v2266 = vpop.f32.mrb[0].mxu0
        %v2267 = vadd.f32 %v512, %v2266
        %2268 = vmatprep.mubr.f32.mxu0 0.0
        %2269 = vmatmul.mubr.f32.gmra.mrb[0].mxu0 %v343
        %v2270 = vpop.f32.mrb[0].mxu0
        %v2271 = vadd.f32 %v508, %v2270
        %v2272 = vpop.f32.mrb[0].mxu0
        %v2273 = vadd.f32 %v512, %v2272
        %2274 = vmatprep.mubr.f32.mxu0 0.0
        %2275 = vmatmul.mubr.f32.gmra.mrb[0].mxu0 %v344
        %v2276 = vpop.f32.mrb[0].mxu0
        %v2277 = vadd.f32 %v508, %v2276
        %v2278 = vpop.f32.mrb[0].mxu0
        %v2279 = vadd.f32 %v512, %v2278
        %2280 = vmatprep.mubr.f32.mxu0 0.0
        %2281 = vmatmul.mubr.f32.gmra.mrb[0].mxu0 %v345
        %v2282 = vpop.f32.mrb[0].mxu0
        %v2283 = vadd.f32 %v508, %v2282
        %v2284 = vpop.f32.mrb[0].mxu0
        %v2285 = vadd.f32 %v512, %v2284
        %2286 = vmatprep.mubr.f32.mxu0 0.0
        %2287 = vmatmul.mubr.f32.gmra.mrb[0].mxu0 %v346
        %v2288 = vpop.f32.mrb[0].mxu0
        %v2289 = vadd.f32 %v508, %v2288
        %v2290 = vpop.f32.mrb[0].mxu0
        %v2291 = vadd.f32 %v512, %v2290
        %2292 = vmatprep.mubr.f32.mxu0 0.0
        %2293 = vmatmul.mubr.f32.gmra.mrb[0].mxu0 %v347
        %v2294 = vpop.f32.mrb[0].mxu0
        %v2295 = vadd.f32 %v508, %v2294
        %v2296 = vpop.f32.mrb[0].mxu0
        %v2297 = vadd.f32 %v512, %v2296
        %2298 = vmatprep.mubr.f32.mxu0 0.0
        %2299 = vmatmul.mubr.f32.gmra.mrb[0].mxu0 %v348
        %v2300 = vpop.f32.mrb[0].mxu0
        %v2301 = vadd.f32 %v508, %v2300
        %v2302 = vpop.f32.mrb[0].mxu0
        %v2303 = vadd.f32 %v512, %v2302
        %2304 = vmatprep.mubr.f32.mxu0 0.0
        %2305 = vmatmul.mubr.f32.gmra.mrb[0].mxu0 %v349
        %v2306 = vpop.f32.mrb[0].mxu0
        %v2307 = vadd.f32 %v508, %v2306
        %v2308 = vpop.f32.mrb[0].mxu0
        %v2309 = vadd.f32 %v512, %v2308
        %2310 = vmatprep.mubr.f32.mxu0 0.0
        %2311 = vmatmul.mubr.f32.gmra.mrb[0].mxu0 %v350
        %v2312 = vpop.f32.mrb[0].mxu0
        %v2313 = vadd.f32 %v508, %v2312
        %v2314 = vpop.f32.mrb[0].mxu0
        %v2315 = vadd.f32 %v512, %v2314
        %2316 = vdwg.mxu0
        %v2317 = vmul.f32 %v588, 0.5
        %v2318 = vmul.f32 %v590, 0.5
        %v2319 = vmul.f32 %v1037, 0.5
        %v2320 = vmul.f32 %v1039, 0.5
        %v2321 = vmul.f32 %v1486, 0.5
        %v2322 = vmul.f32 %v1488, 0.5
        %v2323 = vmul.f32 %v1935, 0.5
        %v2324 = vmul.f32 %v1937, 0.5
        %v2325 = vmul.f32 %v594, 0.5
        %v2326 = vmul.f32 %v596, 0.5
        %v2327 = vmul.f32 %v1043, 0.5
        %v2328 = vmul.f32 %v1045, 0.5
        %v2329 = vmul.f32 %v1492, 0.5
        %v2330 = vmul.f32 %v1494, 0.5
        %v2331 = vmul.f32 %v1941, 0.5
        %v2332 = vmul.f32 %v1943, 0.5
        %v2333 = vmul.f32 %v600, 0.5
        %v2334 = vmul.f32 %v602, 0.5
        %v2335 = vmul.f32 %v1049, 0.5
        %v2336 = vmul.f32 %v1051, 0.5
        %v2337 = vmul.f32 %v1498, 0.5
        %v2338 = vmul.f32 %v1500, 0.5
        %v2339 = vmul.f32 %v1947, 0.5
        %v2340 = vmul.f32 %v1949, 0.5
        %v2341 = vmul.f32 %v606, 0.5
        %v2342 = vmul.f32 %v608, 0.5
        %v2343 = vmul.f32 %v1055, 0.5
        %v2344 = vmul.f32 %v1057, 0.5
        %v2345 = vmul.f32 %v1504, 0.5
        %v2346 = vmul.f32 %v1506, 0.5
        %v2347 = vmul.f32 %v1953, 0.5
        %v2348 = vmul.f32 %v1955, 0.5
        %v2349 = vmul.f32 %v612, 0.5
        %v2350 = vmul.f32 %v614, 0.5
        %v2351 = vmul.f32 %v1061, 0.5
        %v2352 = vmul.f32 %v1063, 0.5
        %v2353 = vmul.f32 %v1510, 0.5
        %v2354 = vmul.f32 %v1512, 0.5
        %v2355 = vmul.f32 %v1959, 0.5
        %v2356 = vmul.f32 %v1961, 0.5
        %v2357 = vmul.f32 %v618, 0.5
        %v2358 = vmul.f32 %v620, 0.5
        %v2359 = vmul.f32 %v1067, 0.5
        %v2360 = vmul.f32 %v1069, 0.5
        %v2361 = vmul.f32 %v1516, 0.5
        %v2362 = vmul.f32 %v1518, 0.5
        %v2363 = vmul.f32 %v1965, 0.5
        %v2364 = vmul.f32 %v1967, 0.5
        %v2365 = vmul.f32 %v624, 0.5
        %v2366 = vmul.f32 %v626, 0.5
        %v2367 = vmul.f32 %v1073, 0.5
        %v2368 = vmul.f32 %v1075, 0.5
        %v2369 = vmul.f32 %v1522, 0.5
        %v2370 = vmul.f32 %v1524, 0.5
        %v2371 = vmul.f32 %v1971, 0.5
        %v2372 = vmul.f32 %v1973, 0.5
        %v2373 = vmul.f32 %v630, 0.5
        %v2374 = vmul.f32 %v632, 0.5
        %v2375 = vmul.f32 %v1079, 0.5
        %v2376 = vmul.f32 %v1081, 0.5
        %v2377 = vmul.f32 %v1528, 0.5
        %v2378 = vmul.f32 %v1530, 0.5
        %v2379 = vmul.f32 %v1977, 0.5
        %v2380 = vmul.f32 %v1979, 0.5
        %v2381 = vmul.f32 %v636, 0.5
        %v2382 = vmul.f32 %v638, 0.5
        %v2383 = vmul.f32 %v1085, 0.5
        %v2384 = vmul.f32 %v1087, 0.5
        %v2385 = vmul.f32 %v1534, 0.5
        %v2386 = vmul.f32 %v1536, 0.5
        %v2387 = vmul.f32 %v1983, 0.5
        %v2388 = vmul.f32 %v1985, 0.5
        %v2389 = vmul.f32 %v642, 0.5
        %v2390 = vmul.f32 %v644, 0.5
        %v2391 = vmul.f32 %v1091, 0.5
        %v2392 = vmul.f32 %v1093, 0.5
        %v2393 = vmul.f32 %v1540, 0.5
        %v2394 = vmul.f32 %v1542, 0.5
        %v2395 = vmul.f32 %v1989, 0.5
        %v2396 = vmul.f32 %v1991, 0.5
        %v2397 = vmul.f32 %v648, 0.5
        %v2398 = vmul.f32 %v650, 0.5
        %v2399 = vmul.f32 %v1097, 0.5
        %v2400 = vmul.f32 %v1099, 0.5
        %v2401 = vmul.f32 %v1546, 0.5
        %v2402 = vmul.f32 %v1548, 0.5
        %v2403 = vmul.f32 %v1995, 0.5
        %v2404 = vmul.f32 %v1997, 0.5
        %v2405 = vmul.f32 %v654, 0.5
        %v2406 = vmul.f32 %v656, 0.5
        %v2407 = vmul.f32 %v1103, 0.5
        %v2408 = vmul.f32 %v1105, 0.5
        %v2409 = vmul.f32 %v1552, 0.5
        %v2410 = vmul.f32 %v1554, 0.5
        %v2411 = vmul.f32 %v2001, 0.5
        %v2412 = vmul.f32 %v2003, 0.5
        %v2413 = vmul.f32 %v660, 0.5
        %v2414 = vmul.f32 %v662, 0.5
        %v2415 = vmul.f32 %v1109, 0.5
        %v2416 = vmul.f32 %v1111, 0.5
        %v2417 = vmul.f32 %v1558, 0.5
        %v2418 = vmul.f32 %v1560, 0.5
        %v2419 = vmul.f32 %v2007, 0.5
        %v2420 = vmul.f32 %v2009, 0.5
        %v2421 = vmul.f32 %v666, 0.5
        %v2422 = vmul.f32 %v668, 0.5
        %v2423 = vmul.f32 %v1115, 0.5
        %v2424 = vmul.f32 %v1117, 0.5
        %v2425 = vmul.f32 %v1564, 0.5
        %v2426 = vmul.f32 %v1566, 0.5
        %v2427 = vmul.f32 %v2013, 0.5
        %v2428 = vmul.f32 %v2015, 0.5
        %v2429 = vmul.f32 %v672, 0.5
        %v2430 = vmul.f32 %v674, 0.5
        %v2431 = vmul.f32 %v1121, 0.5
        %v2432 = vmul.f32 %v1123, 0.5
        %v2433 = vmul.f32 %v1570, 0.5
        %v2434 = vmul.f32 %v1572, 0.5
        %v2435 = vmul.f32 %v2019, 0.5
        %v2436 = vmul.f32 %v2021, 0.5
        %v2437 = vmul.f32 %v678, 0.5
        %v2438 = vmul.f32 %v680, 0.5
        %v2439 = vmul.f32 %v1127, 0.5
        %v2440 = vmul.f32 %v1129, 0.5
        %v2441 = vmul.f32 %v1576, 0.5
        %v2442 = vmul.f32 %v1578, 0.5
        %v2443 = vmul.f32 %v2025, 0.5
        %v2444 = vmul.f32 %v2027, 0.5
        %v2445 = vmul.f32 %v684, 0.5
        %v2446 = vmul.f32 %v686, 0.5
        %v2447 = vmul.f32 %v1133, 0.5
        %v2448 = vmul.f32 %v1135, 0.5
        %v2449 = vmul.f32 %v1582, 0.5
        %v2450 = vmul.f32 %v1584, 0.5
        %v2451 = vmul.f32 %v2031, 0.5
        %v2452 = vmul.f32 %v2033, 0.5
        %v2453 = vmul.f32 %v690, 0.5
        %v2454 = vmul.f32 %v692, 0.5
        %v2455 = vmul.f32 %v1139, 0.5
        %v2456 = vmul.f32 %v1141, 0.5
        %v2457 = vmul.f32 %v1588, 0.5
        %v2458 = vmul.f32 %v1590, 0.5
        %v2459 = vmul.f32 %v2037, 0.5
        %v2460 = vmul.f32 %v2039, 0.5
        %v2461 = vmul.f32 %v696, 0.5
        %v2462 = vmul.f32 %v698, 0.5
        %v2463 = vmul.f32 %v1145, 0.5
        %v2464 = vmul.f32 %v1147, 0.5
        %v2465 = vmul.f32 %v1594, 0.5
        %v2466 = vmul.f32 %v1596, 0.5
        %v2467 = vmul.f32 %v2043, 0.5
        %v2468 = vmul.f32 %v2045, 0.5
        %v2469 = vmul.f32 %v702, 0.5
        %v2470 = vmul.f32 %v704, 0.5
        %v2471 = vmul.f32 %v1151, 0.5
        %v2472 = vmul.f32 %v1153, 0.5
        %v2473 = vmul.f32 %v1600, 0.5
        %v2474 = vmul.f32 %v1602, 0.5
        %v2475 = vmul.f32 %v2049, 0.5
        %v2476 = vmul.f32 %v2051, 0.5
        %v2477 = vmul.f32 %v708, 0.5
        %v2478 = vmul.f32 %v710, 0.5
        %v2479 = vmul.f32 %v1157, 0.5
        %v2480 = vmul.f32 %v1159, 0.5
        %v2481 = vmul.f32 %v1606, 0.5
        %v2482 = vmul.f32 %v1608, 0.5
        %v2483 = vmul.f32 %v2055, 0.5
        %v2484 = vmul.f32 %v2057, 0.5
        %v2485 = vmul.f32 %v714, 0.5
        %v2486 = vmul.f32 %v716, 0.5
        %v2487 = vmul.f32 %v1163, 0.5
        %v2488 = vmul.f32 %v1165, 0.5
        %v2489 = vmul.f32 %v1612, 0.5
        %v2490 = vmul.f32 %v1614, 0.5
        %v2491 = vmul.f32 %v2061, 0.5
        %v2492 = vmul.f32 %v2063, 0.5
        %v2493 = vmul.f32 %v720, 0.5
        %v2494 = vmul.f32 %v722, 0.5
        %v2495 = vmul.f32 %v1169, 0.5
        %v2496 = vmul.f32 %v1171, 0.5
        %v2497 = vmul.f32 %v1618, 0.5
        %v2498 = vmul.f32 %v1620, 0.5
        %v2499 = vmul.f32 %v2067, 0.5
        %v2500 = vmul.f32 %v2069, 0.5
        %v2501 = vmul.f32 %v726, 0.5
        %v2502 = vmul.f32 %v728, 0.5
        %v2503 = vmul.f32 %v1175, 0.5
        %v2504 = vmul.f32 %v1177, 0.5
        %v2505 = vmul.f32 %v1624, 0.5
        %v2506 = vmul.f32 %v1626, 0.5
        %v2507 = vmul.f32 %v2073, 0.5
        %v2508 = vmul.f32 %v2075, 0.5
        %v2509 = vmul.f32 %v732, 0.5
        %v2510 = vmul.f32 %v734, 0.5
        %v2511 = vmul.f32 %v1181, 0.5
        %v2512 = vmul.f32 %v1183, 0.5
        %v2513 = vmul.f32 %v1630, 0.5
        %v2514 = vmul.f32 %v1632, 0.5
        %v2515 = vmul.f32 %v2079, 0.5
        %v2516 = vmul.f32 %v2081, 0.5
        %v2517 = vmul.f32 %v738, 0.5
        %v2518 = vmul.f32 %v740, 0.5
        %v2519 = vmul.f32 %v1187, 0.5
        %v2520 = vmul.f32 %v1189, 0.5
        %v2521 = vmul.f32 %v1636, 0.5
        %v2522 = vmul.f32 %v1638, 0.5
        %v2523 = vmul.f32 %v2085, 0.5
        %v2524 = vmul.f32 %v2087, 0.5
        %v2525 = vmul.f32 %v744, 0.5
        %v2526 = vmul.f32 %v746, 0.5
        %v2527 = vmul.f32 %v1193, 0.5
        %v2528 = vmul.f32 %v1195, 0.5
        %v2529 = vmul.f32 %v1642, 0.5
        %v2530 = vmul.f32 %v1644, 0.5
        %v2531 = vmul.f32 %v2091, 0.5
        %v2532 = vmul.f32 %v2093, 0.5
        %v2533 = vmul.f32 %v750, 0.5
        %v2534 = vmul.f32 %v752, 0.5
        %v2535 = vmul.f32 %v1199, 0.5
        %v2536 = vmul.f32 %v1201, 0.5
        %v2537 = vmul.f32 %v1648, 0.5
        %v2538 = vmul.f32 %v1650, 0.5
        %v2539 = vmul.f32 %v2097, 0.5
        %v2540 = vmul.f32 %v2099, 0.5
        %v2541 = vmul.f32 %v756, 0.5
        %v2542 = vmul.f32 %v758, 0.5
        %v2543 = vmul.f32 %v1205, 0.5
        %v2544 = vmul.f32 %v1207, 0.5
        %v2545 = vmul.f32 %v1654, 0.5
        %v2546 = vmul.f32 %v1656, 0.5
        %v2547 = vmul.f32 %v2103, 0.5
        %v2548 = vmul.f32 %v2105, 0.5
        %v2549 = vmul.f32 %v762, 0.5
        %v2550 = vmul.f32 %v764, 0.5
        %v2551 = vmul.f32 %v1211, 0.5
        %v2552 = vmul.f32 %v1213, 0.5
        %v2553 = vmul.f32 %v1660, 0.5
        %v2554 = vmul.f32 %v1662, 0.5
        %v2555 = vmul.f32 %v2109, 0.5
        %v2556 = vmul.f32 %v2111, 0.5
        %v2557 = vmul.f32 %v768, 0.5
        %v2558 = vmul.f32 %v770, 0.5
        %v2559 = vmul.f32 %v1217, 0.5
        %v2560 = vmul.f32 %v1219, 0.5
        %v2561 = vmul.f32 %v1666, 0.5
        %v2562 = vmul.f32 %v1668, 0.5
        %v2563 = vmul.f32 %v2115, 0.5
        %v2564 = vmul.f32 %v2117, 0.5
        %v2565 = vmul.f32 %v774, 0.5
        %v2566 = vmul.f32 %v776, 0.5
        %v2567 = vmul.f32 %v1223, 0.5
        %v2568 = vmul.f32 %v1225, 0.5
        %v2569 = vmul.f32 %v1672, 0.5
        %v2570 = vmul.f32 %v1674, 0.5
        %v2571 = vmul.f32 %v2121, 0.5
        %v2572 = vmul.f32 %v2123, 0.5
        %v2573 = vmul.f32 %v780, 0.5
        %v2574 = vmul.f32 %v782, 0.5
        %v2575 = vmul.f32 %v1229, 0.5
        %v2576 = vmul.f32 %v1231, 0.5
        %v2577 = vmul.f32 %v1678, 0.5
        %v2578 = vmul.f32 %v1680, 0.5
        %v2579 = vmul.f32 %v2127, 0.5
        %v2580 = vmul.f32 %v2129, 0.5
        %v2581 = vmul.f32 %v786, 0.5
        %v2582 = vmul.f32 %v788, 0.5
        %v2583 = vmul.f32 %v1235, 0.5
        %v2584 = vmul.f32 %v1237, 0.5
        %v2585 = vmul.f32 %v1684, 0.5
        %v2586 = vmul.f32 %v1686, 0.5
        %v2587 = vmul.f32 %v2133, 0.5
        %v2588 = vmul.f32 %v2135, 0.5
        %v2589 = vmul.f32 %v792, 0.5
        %v2590 = vmul.f32 %v794, 0.5
        %v2591 = vmul.f32 %v1241, 0.5
        %v2592 = vmul.f32 %v1243, 0.5
        %v2593 = vmul.f32 %v1690, 0.5
        %v2594 = vmul.f32 %v1692, 0.5
        %v2595 = vmul.f32 %v2139, 0.5
        %v2596 = vmul.f32 %v2141, 0.5
        %v2597 = vmul.f32 %v798, 0.5
        %v2598 = vmul.f32 %v800, 0.5
        %v2599 = vmul.f32 %v1247, 0.5
        %v2600 = vmul.f32 %v1249, 0.5
        %v2601 = vmul.f32 %v1696, 0.5
        %v2602 = vmul.f32 %v1698, 0.5
        %v2603 = vmul.f32 %v2145, 0.5
        %v2604 = vmul.f32 %v2147, 0.5
        %v2605 = vmul.f32 %v804, 0.5
        %v2606 = vmul.f32 %v806, 0.5
        %v2607 = vmul.f32 %v1253, 0.5
        %v2608 = vmul.f32 %v1255, 0.5
        %v2609 = vmul.f32 %v1702, 0.5
        %v2610 = vmul.f32 %v1704, 0.5
        %v2611 = vmul.f32 %v2151, 0.5
        %v2612 = vmul.f32 %v2153, 0.5
        %v2613 = vmul.f32 %v810, 0.5
        %v2614 = vmul.f32 %v812, 0.5
        %v2615 = vmul.f32 %v1259, 0.5
        %v2616 = vmul.f32 %v1261, 0.5
        %v2617 = vmul.f32 %v1708, 0.5
        %v2618 = vmul.f32 %v1710, 0.5
        %v2619 = vmul.f32 %v2157, 0.5
        %v2620 = vmul.f32 %v2159, 0.5
        %v2621 = vmul.f32 %v816, 0.5
        %v2622 = vmul.f32 %v818, 0.5
        %v2623 = vmul.f32 %v1265, 0.5
        %v2624 = vmul.f32 %v1267, 0.5
        %v2625 = vmul.f32 %v1714, 0.5
        %v2626 = vmul.f32 %v1716, 0.5
        %v2627 = vmul.f32 %v2163, 0.5
        %v2628 = vmul.f32 %v2165, 0.5
        %v2629 = vmul.f32 %v822, 0.5
        %v2630 = vmul.f32 %v824, 0.5
        %v2631 = vmul.f32 %v1271, 0.5
        %v2632 = vmul.f32 %v1273, 0.5
        %v2633 = vmul.f32 %v1720, 0.5
        %v2634 = vmul.f32 %v1722, 0.5
        %v2635 = vmul.f32 %v2169, 0.5
        %v2636 = vmul.f32 %v2171, 0.5
        %v2637 = vmul.f32 %v828, 0.5
        %v2638 = vmul.f32 %v830, 0.5
        %v2639 = vmul.f32 %v1277, 0.5
        %v2640 = vmul.f32 %v1279, 0.5
        %v2641 = vmul.f32 %v1726, 0.5
        %v2642 = vmul.f32 %v1728, 0.5
        %v2643 = vmul.f32 %v2175, 0.5
        %v2644 = vmul.f32 %v2177, 0.5
        %v2645 = vmul.f32 %v834, 0.5
        %v2646 = vmul.f32 %v836, 0.5
        %v2647 = vmul.f32 %v1283, 0.5
        %v2648 = vmul.f32 %v1285, 0.5
        %v2649 = vmul.f32 %v1732, 0.5
        %v2650 = vmul.f32 %v1734, 0.5
        %v2651 = vmul.f32 %v2181, 0.5
        %v2652 = vmul.f32 %v2183, 0.5
        %v2653 = vmul.f32 %v840, 0.5
        %v2654 = vmul.f32 %v842, 0.5
        %v2655 = vmul.f32 %v1289, 0.5
        %v2656 = vmul.f32 %v1291, 0.5
        %v2657 = vmul.f32 %v1738, 0.5
        %v2658 = vmul.f32 %v1740, 0.5
        %v2659 = vmul.f32 %v2187, 0.5
        %v2660 = vmul.f32 %v2189, 0.5
        %v2661 = vmul.f32 %v846, 0.5
        %v2662 = vmul.f32 %v848, 0.5
        %v2663 = vmul.f32 %v1295, 0.5
        %v2664 = vmul.f32 %v1297, 0.5
        %v2665 = vmul.f32 %v1744, 0.5
        %v2666 = vmul.f32 %v1746, 0.5
        %v2667 = vmul.f32 %v2193, 0.5
        %v2668 = vmul.f32 %v2195, 0.5
        %v2669 = vmul.f32 %v852, 0.5
        %v2670 = vmul.f32 %v854, 0.5
        %v2671 = vmul.f32 %v1301, 0.5
        %v2672 = vmul.f32 %v1303, 0.5
        %v2673 = vmul.f32 %v1750, 0.5
        %v2674 = vmul.f32 %v1752, 0.5
        %v2675 = vmul.f32 %v2199, 0.5
        %v2676 = vmul.f32 %v2201, 0.5
        %v2677 = vmul.f32 %v858, 0.5
        %v2678 = vmul.f32 %v860, 0.5
        %v2679 = vmul.f32 %v1307, 0.5
        %v2680 = vmul.f32 %v1309, 0.5
        %v2681 = vmul.f32 %v1756, 0.5
        %v2682 = vmul.f32 %v1758, 0.5
        %v2683 = vmul.f32 %v2205, 0.5
        %v2684 = vmul.f32 %v2207, 0.5
        %v2685 = vmul.f32 %v864, 0.5
        %v2686 = vmul.f32 %v866, 0.5
        %v2687 = vmul.f32 %v1313, 0.5
        %v2688 = vmul.f32 %v1315, 0.5
        %v2689 = vmul.f32 %v1762, 0.5
        %v2690 = vmul.f32 %v1764, 0.5
        %v2691 = vmul.f32 %v2211, 0.5
        %v2692 = vmul.f32 %v2213, 0.5
        %v2693 = vmul.f32 %v870, 0.5
        %v2694 = vmul.f32 %v872, 0.5
        %v2695 = vmul.f32 %v1319, 0.5
        %v2696 = vmul.f32 %v1321, 0.5
        %v2697 = vmul.f32 %v1768, 0.5
        %v2698 = vmul.f32 %v1770, 0.5
        %v2699 = vmul.f32 %v2217, 0.5
        %v2700 = vmul.f32 %v2219, 0.5
        %v2701 = vmul.f32 %v876, 0.5
        %v2702 = vmul.f32 %v878, 0.5
        %v2703 = vmul.f32 %v1325, 0.5
        %v2704 = vmul.f32 %v1327, 0.5
        %v2705 = vmul.f32 %v1774, 0.5
        %v2706 = vmul.f32 %v1776, 0.5
        %v2707 = vmul.f32 %v2223, 0.5
        %v2708 = vmul.f32 %v2225, 0.5
        %v2709 = vmul.f32 %v882, 0.5
        %v2710 = vmul.f32 %v884, 0.5
        %v2711 = vmul.f32 %v1331, 0.5
        %v2712 = vmul.f32 %v1333, 0.5
        %v2713 = vmul.f32 %v1780, 0.5
        %v2714 = vmul.f32 %v1782, 0.5
        %v2715 = vmul.f32 %v2229, 0.5
        %v2716 = vmul.f32 %v2231, 0.5
        %v2717 = vmul.f32 %v888, 0.5
        %v2718 = vmul.f32 %v890, 0.5
        %v2719 = vmul.f32 %v1337, 0.5
        %v2720 = vmul.f32 %v1339, 0.5
        %v2721 = vmul.f32 %v1786, 0.5
        %v2722 = vmul.f32 %v1788, 0.5
        %v2723 = vmul.f32 %v2235, 0.5
        %v2724 = vmul.f32 %v2237, 0.5
        %v2725 = vmul.f32 %v894, 0.5
        %v2726 = vmul.f32 %v896, 0.5
        %v2727 = vmul.f32 %v1343, 0.5
        %v2728 = vmul.f32 %v1345, 0.5
        %v2729 = vmul.f32 %v1792, 0.5
        %v2730 = vmul.f32 %v1794, 0.5
        %v2731 = vmul.f32 %v2241, 0.5
        %v2732 = vmul.f32 %v2243, 0.5
        %v2733 = vmul.f32 %v900, 0.5
        %v2734 = vmul.f32 %v902, 0.5
        %v2735 = vmul.f32 %v1349, 0.5
        %v2736 = vmul.f32 %v1351, 0.5
        %v2737 = vmul.f32 %v1798, 0.5
        %v2738 = vmul.f32 %v1800, 0.5
        %v2739 = vmul.f32 %v2247, 0.5
        %v2740 = vmul.f32 %v2249, 0.5
        %v2741 = vmul.f32 %v906, 0.5
        %v2742 = vmul.f32 %v908, 0.5
        %v2743 = vmul.f32 %v1355, 0.5
        %v2744 = vmul.f32 %v1357, 0.5
        %v2745 = vmul.f32 %v1804, 0.5
        %v2746 = vmul.f32 %v1806, 0.5
        %v2747 = vmul.f32 %v2253, 0.5
        %v2748 = vmul.f32 %v2255, 0.5
        %v2749 = vmul.f32 %v912, 0.5
        %v2750 = vmul.f32 %v914, 0.5
        %v2751 = vmul.f32 %v1361, 0.5
        %v2752 = vmul.f32 %v1363, 0.5
        %v2753 = vmul.f32 %v1810, 0.5
        %v2754 = vmul.f32 %v1812, 0.5
        %v2755 = vmul.f32 %v2259, 0.5
        %v2756 = vmul.f32 %v2261, 0.5
        %v2757 = vmul.f32 %v918, 0.5
        %v2758 = vmul.f32 %v920, 0.5
        %v2759 = vmul.f32 %v1367, 0.5
        %v2760 = vmul.f32 %v1369, 0.5
        %v2761 = vmul.f32 %v1816, 0.5
        %v2762 = vmul.f32 %v1818, 0.5
        %v2763 = vmul.f32 %v2265, 0.5
        %v2764 = vmul.f32 %v2267, 0.5
        %v2765 = vmul.f32 %v924, 0.5
        %v2766 = vmul.f32 %v926, 0.5
        %v2767 = vmul.f32 %v1373, 0.5
        %v2768 = vmul.f32 %v1375, 0.5
        %v2769 = vmul.f32 %v1822, 0.5
        %v2770 = vmul.f32 %v1824, 0.5
        %v2771 = vmul.f32 %v2271, 0.5
        %v2772 = vmul.f32 %v2273, 0.5
        %v2773 = vmul.f32 %v930, 0.5
        %v2774 = vmul.f32 %v932, 0.5
        %v2775 = vmul.f32 %v1379, 0.5
        %v2776 = vmul.f32 %v1381, 0.5
        %v2777 = vmul.f32 %v1828, 0.5
        %v2778 = vmul.f32 %v1830, 0.5
        %v2779 = vmul.f32 %v2277, 0.5
        %v2780 = vmul.f32 %v2279, 0.5
        %v2781 = vmul.f32 %v936, 0.5
        %v2782 = vmul.f32 %v938, 0.5
        %v2783 = vmul.f32 %v1385, 0.5
        %v2784 = vmul.f32 %v1387, 0.5
        %v2785 = vmul.f32 %v1834, 0.5
        %v2786 = vmul.f32 %v1836, 0.5
        %v2787 = vmul.f32 %v2283, 0.5
        %v2788 = vmul.f32 %v2285, 0.5
        %v2789 = vmul.f32 %v942, 0.5
        %v2790 = vmul.f32 %v944, 0.5
        %v2791 = vmul.f32 %v1391, 0.5
        %v2792 = vmul.f32 %v1393, 0.5
        %v2793 = vmul.f32 %v1840, 0.5
        %v2794 = vmul.f32 %v1842, 0.5
        %v2795 = vmul.f32 %v2289, 0.5
        %v2796 = vmul.f32 %v2291, 0.5
        %v2797 = vmul.f32 %v948, 0.5
        %v2798 = vmul.f32 %v950, 0.5
        %v2799 = vmul.f32 %v1397, 0.5
        %v2800 = vmul.f32 %v1399, 0.5
        %v2801 = vmul.f32 %v1846, 0.5
        %v2802 = vmul.f32 %v1848, 0.5
        %v2803 = vmul.f32 %v2295, 0.5
        %v2804 = vmul.f32 %v2297, 0.5
        %v2805 = vmul.f32 %v954, 0.5
        %v2806 = vmul.f32 %v956, 0.5
        %v2807 = vmul.f32 %v1403, 0.5
        %v2808 = vmul.f32 %v1405, 0.5
        %v2809 = vmul.f32 %v1852, 0.5
        %v2810 = vmul.f32 %v1854, 0.5
        %v2811 = vmul.f32 %v2301, 0.5
        %v2812 = vmul.f32 %v2303, 0.5
        %v2813 = vmul.f32 %v960, 0.5
        %v2814 = vmul.f32 %v962, 0.5
        %v2815 = vmul.f32 %v1409, 0.5
        %v2816 = vmul.f32 %v1411, 0.5
        %v2817 = vmul.f32 %v1858, 0.5
        %v2818 = vmul.f32 %v1860, 0.5
        %v2819 = vmul.f32 %v2307, 0.5
        %v2820 = vmul.f32 %v2309, 0.5
        %v2821 = vmul.f32 %v966, 0.5
        %v2822 = vmul.f32 %v968, 0.5
        %v2823 = vmul.f32 %v1415, 0.5
        %v2824 = vmul.f32 %v1417, 0.5
        %v2825 = vmul.f32 %v1864, 0.5
        %v2826 = vmul.f32 %v1866, 0.5
        %v2827 = vmul.f32 %v2313, 0.5
        %v2828 = vmul.f32 %v2315, 0.5
        %v2829 = vmul.f32 %v588, 0.70710677
        %v2830 = vmul.f32 %v590, 0.70710677
        %v2831 = vmul.f32 %v1037, 0.70710677
        %v2832 = vmul.f32 %v1039, 0.70710677
        %v2833 = vmul.f32 %v1486, 0.70710677
        %v2834 = vmul.f32 %v1488, 0.70710677
        %v2835 = vmul.f32 %v1935, 0.70710677
        %v2836 = vmul.f32 %v1937, 0.70710677
        %v2837 = vmul.f32 %v594, 0.70710677
        %v2838 = vmul.f32 %v596, 0.70710677
        %v2839 = vmul.f32 %v1043, 0.70710677
        %v2840 = vmul.f32 %v1045, 0.70710677
        %v2841 = vmul.f32 %v1492, 0.70710677
        %v2842 = vmul.f32 %v1494, 0.70710677
        %v2843 = vmul.f32 %v1941, 0.70710677
        %v2844 = vmul.f32 %v1943, 0.70710677
        %v2845 = vmul.f32 %v600, 0.70710677
        %v2846 = vmul.f32 %v602, 0.70710677
        %v2847 = vmul.f32 %v1049, 0.70710677
        %v2848 = vmul.f32 %v1051, 0.70710677
        %v2849 = vmul.f32 %v1498, 0.70710677
        %v2850 = vmul.f32 %v1500, 0.70710677
        %v2851 = vmul.f32 %v1947, 0.70710677
        %v2852 = vmul.f32 %v1949, 0.70710677
        %v2853 = vmul.f32 %v606, 0.70710677
        %v2854 = vmul.f32 %v608, 0.70710677
        %v2855 = vmul.f32 %v1055, 0.70710677
        %v2856 = vmul.f32 %v1057, 0.70710677
        %v2857 = vmul.f32 %v1504, 0.70710677
        %v2858 = vmul.f32 %v1506, 0.70710677
        %v2859 = vmul.f32 %v1953, 0.70710677
        %v2860 = vmul.f32 %v1955, 0.70710677
        %v2861 = vmul.f32 %v612, 0.70710677
        %v2862 = vmul.f32 %v614, 0.70710677
        %v2863 = vmul.f32 %v1061, 0.70710677
        %v2864 = vmul.f32 %v1063, 0.70710677
        %v2865 = vmul.f32 %v1510, 0.70710677
        %v2866 = vmul.f32 %v1512, 0.70710677
        %v2867 = vmul.f32 %v1959, 0.70710677
        %v2868 = vmul.f32 %v1961, 0.70710677
        %v2869 = vmul.f32 %v618, 0.70710677
        %v2870 = vmul.f32 %v620, 0.70710677
        %v2871 = vmul.f32 %v1067, 0.70710677
        %v2872 = vmul.f32 %v1069, 0.70710677
        %v2873 = vmul.f32 %v1516, 0.70710677
        %v2874 = vmul.f32 %v1518, 0.70710677
        %v2875 = vmul.f32 %v1965, 0.70710677
        %v2876 = vmul.f32 %v1967, 0.70710677
        %v2877 = vmul.f32 %v624, 0.70710677
        %v2878 = vmul.f32 %v626, 0.70710677
        %v2879 = vmul.f32 %v1073, 0.70710677
        %v2880 = vmul.f32 %v1075, 0.70710677
        %v2881 = vmul.f32 %v1522, 0.70710677
        %v2882 = vmul.f32 %v1524, 0.70710677
        %v2883 = vmul.f32 %v1971, 0.70710677
        %v2884 = vmul.f32 %v1973, 0.70710677
        %v2885 = vmul.f32 %v630, 0.70710677
        %v2886 = vmul.f32 %v632, 0.70710677
        %v2887 = vmul.f32 %v1079, 0.70710677
        %v2888 = vmul.f32 %v1081, 0.70710677
        %v2889 = vmul.f32 %v1528, 0.70710677
        %v2890 = vmul.f32 %v1530, 0.70710677
        %v2891 = vmul.f32 %v1977, 0.70710677
        %v2892 = vmul.f32 %v1979, 0.70710677
        %v2893 = vmul.f32 %v636, 0.70710677
        %v2894 = vmul.f32 %v638, 0.70710677
        %v2895 = vmul.f32 %v1085, 0.70710677
        %v2896 = vmul.f32 %v1087, 0.70710677
        %v2897 = vmul.f32 %v1534, 0.70710677
        %v2898 = vmul.f32 %v1536, 0.70710677
        %v2899 = vmul.f32 %v1983, 0.70710677
        %v2900 = vmul.f32 %v1985, 0.70710677
        %v2901 = vmul.f32 %v642, 0.70710677
        %v2902 = vmul.f32 %v644, 0.70710677
        %v2903 = vmul.f32 %v1091, 0.70710677
        %v2904 = vmul.f32 %v1093, 0.70710677
        %v2905 = vmul.f32 %v1540, 0.70710677
        %v2906 = vmul.f32 %v1542, 0.70710677
        %v2907 = vmul.f32 %v1989, 0.70710677
        %v2908 = vmul.f32 %v1991, 0.70710677
        %v2909 = vmul.f32 %v648, 0.70710677
        %v2910 = vmul.f32 %v650, 0.70710677
        %v2911 = vmul.f32 %v1097, 0.70710677
        %v2912 = vmul.f32 %v1099, 0.70710677
        %v2913 = vmul.f32 %v1546, 0.70710677
        %v2914 = vmul.f32 %v1548, 0.70710677
        %v2915 = vmul.f32 %v1995, 0.70710677
        %v2916 = vmul.f32 %v1997, 0.70710677
        %v2917 = vmul.f32 %v654, 0.70710677
        %v2918 = vmul.f32 %v656, 0.70710677
        %v2919 = vmul.f32 %v1103, 0.70710677
        %v2920 = vmul.f32 %v1105, 0.70710677
        %v2921 = vmul.f32 %v1552, 0.70710677
        %v2922 = vmul.f32 %v1554, 0.70710677
        %v2923 = vmul.f32 %v2001, 0.70710677
        %v2924 = vmul.f32 %v2003, 0.70710677
        %v2925 = vmul.f32 %v660, 0.70710677
        %v2926 = vmul.f32 %v662, 0.70710677
        %v2927 = vmul.f32 %v1109, 0.70710677
        %v2928 = vmul.f32 %v1111, 0.70710677
        %v2929 = vmul.f32 %v1558, 0.70710677
        %v2930 = vmul.f32 %v1560, 0.70710677
        %v2931 = vmul.f32 %v2007, 0.70710677
        %v2932 = vmul.f32 %v2009, 0.70710677
        %v2933 = vmul.f32 %v666, 0.70710677
        %v2934 = vmul.f32 %v668, 0.70710677
        %v2935 = vmul.f32 %v1115, 0.70710677
        %v2936 = vmul.f32 %v1117, 0.70710677
        %v2937 = vmul.f32 %v1564, 0.70710677
        %v2938 = vmul.f32 %v1566, 0.70710677
        %v2939 = vmul.f32 %v2013, 0.70710677
        %v2940 = vmul.f32 %v2015, 0.70710677
        %v2941 = vmul.f32 %v672, 0.70710677
        %v2942 = vmul.f32 %v674, 0.70710677
        %v2943 = vmul.f32 %v1121, 0.70710677
        %v2944 = vmul.f32 %v1123, 0.70710677
        %v2945 = vmul.f32 %v1570, 0.70710677
        %v2946 = vmul.f32 %v1572, 0.70710677
        %v2947 = vmul.f32 %v2019, 0.70710677
        %v2948 = vmul.f32 %v2021, 0.70710677
        %v2949 = vmul.f32 %v678, 0.70710677
        %v2950 = vmul.f32 %v680, 0.70710677
        %v2951 = vmul.f32 %v1127, 0.70710677
        %v2952 = vmul.f32 %v1129, 0.70710677
        %v2953 = vmul.f32 %v1576, 0.70710677
        %v2954 = vmul.f32 %v1578, 0.70710677
        %v2955 = vmul.f32 %v2025, 0.70710677
        %v2956 = vmul.f32 %v2027, 0.70710677
        %v2957 = vmul.f32 %v684, 0.70710677
        %v2958 = vmul.f32 %v686, 0.70710677
        %v2959 = vmul.f32 %v1133, 0.70710677
        %v2960 = vmul.f32 %v1135, 0.70710677
        %v2961 = vmul.f32 %v1582, 0.70710677
        %v2962 = vmul.f32 %v1584, 0.70710677
        %v2963 = vmul.f32 %v2031, 0.70710677
        %v2964 = vmul.f32 %v2033, 0.70710677
        %v2965 = vmul.f32 %v690, 0.70710677
        %v2966 = vmul.f32 %v692, 0.70710677
        %v2967 = vmul.f32 %v1139, 0.70710677
        %v2968 = vmul.f32 %v1141, 0.70710677
        %v2969 = vmul.f32 %v1588, 0.70710677
        %v2970 = vmul.f32 %v1590, 0.70710677
        %v2971 = vmul.f32 %v2037, 0.70710677
        %v2972 = vmul.f32 %v2039, 0.70710677
        %v2973 = vmul.f32 %v696, 0.70710677
        %v2974 = vmul.f32 %v698, 0.70710677
        %v2975 = vmul.f32 %v1145, 0.70710677
        %v2976 = vmul.f32 %v1147, 0.70710677
        %v2977 = vmul.f32 %v1594, 0.70710677
        %v2978 = vmul.f32 %v1596, 0.70710677
        %v2979 = vmul.f32 %v2043, 0.70710677
        %v2980 = vmul.f32 %v2045, 0.70710677
        %v2981 = vmul.f32 %v702, 0.70710677
        %v2982 = vmul.f32 %v704, 0.70710677
        %v2983 = vmul.f32 %v1151, 0.70710677
        %v2984 = vmul.f32 %v1153, 0.70710677
        %v2985 = vmul.f32 %v1600, 0.70710677
        %v2986 = vmul.f32 %v1602, 0.70710677
        %v2987 = vmul.f32 %v2049, 0.70710677
        %v2988 = vmul.f32 %v2051, 0.70710677
        %v2989 = vmul.f32 %v708, 0.70710677
        %v2990 = vmul.f32 %v710, 0.70710677
        %v2991 = vmul.f32 %v1157, 0.70710677
        %v2992 = vmul.f32 %v1159, 0.70710677
        %v2993 = vmul.f32 %v1606, 0.70710677
        %v2994 = vmul.f32 %v1608, 0.70710677
        %v2995 = vmul.f32 %v2055, 0.70710677
        %v2996 = vmul.f32 %v2057, 0.70710677
        %v2997 = vmul.f32 %v714, 0.70710677
        %v2998 = vmul.f32 %v716, 0.70710677
        %v2999 = vmul.f32 %v1163, 0.70710677
        %v3000 = vmul.f32 %v1165, 0.70710677
        %v3001 = vmul.f32 %v1612, 0.70710677
        %v3002 = vmul.f32 %v1614, 0.70710677
        %v3003 = vmul.f32 %v2061, 0.70710677
        %v3004 = vmul.f32 %v2063, 0.70710677
        %v3005 = vmul.f32 %v720, 0.70710677
        %v3006 = vmul.f32 %v722, 0.70710677
        %v3007 = vmul.f32 %v1169, 0.70710677
        %v3008 = vmul.f32 %v1171, 0.70710677
        %v3009 = vmul.f32 %v1618, 0.70710677
        %v3010 = vmul.f32 %v1620, 0.70710677
        %v3011 = vmul.f32 %v2067, 0.70710677
        %v3012 = vmul.f32 %v2069, 0.70710677
        %v3013 = vmul.f32 %v726, 0.70710677
        %v3014 = vmul.f32 %v728, 0.70710677
        %v3015 = vmul.f32 %v1175, 0.70710677
        %v3016 = vmul.f32 %v1177, 0.70710677
        %v3017 = vmul.f32 %v1624, 0.70710677
        %v3018 = vmul.f32 %v1626, 0.70710677
        %v3019 = vmul.f32 %v2073, 0.70710677
        %v3020 = vmul.f32 %v2075, 0.70710677
        %v3021 = vmul.f32 %v732, 0.70710677
        %v3022 = vmul.f32 %v734, 0.70710677
        %v3023 = vmul.f32 %v1181, 0.70710677
        %v3024 = vmul.f32 %v1183, 0.70710677
        %v3025 = vmul.f32 %v1630, 0.70710677
        %v3026 = vmul.f32 %v1632, 0.70710677
        %v3027 = vmul.f32 %v2079, 0.70710677
        %v3028 = vmul.f32 %v2081, 0.70710677
        %v3029 = vmul.f32 %v738, 0.70710677
        %v3030 = vmul.f32 %v740, 0.70710677
        %v3031 = vmul.f32 %v1187, 0.70710677
        %v3032 = vmul.f32 %v1189, 0.70710677
        %v3033 = vmul.f32 %v1636, 0.70710677
        %v3034 = vmul.f32 %v1638, 0.70710677
        %v3035 = vmul.f32 %v2085, 0.70710677
        %v3036 = vmul.f32 %v2087, 0.70710677
        %v3037 = vmul.f32 %v744, 0.70710677
        %v3038 = vmul.f32 %v746, 0.70710677
        %v3039 = vmul.f32 %v1193, 0.70710677
        %v3040 = vmul.f32 %v1195, 0.70710677
        %v3041 = vmul.f32 %v1642, 0.70710677
        %v3042 = vmul.f32 %v1644, 0.70710677
        %v3043 = vmul.f32 %v2091, 0.70710677
        %v3044 = vmul.f32 %v2093, 0.70710677
        %v3045 = vmul.f32 %v750, 0.70710677
        %v3046 = vmul.f32 %v752, 0.70710677
        %v3047 = vmul.f32 %v1199, 0.70710677
        %v3048 = vmul.f32 %v1201, 0.70710677
        %v3049 = vmul.f32 %v1648, 0.70710677
        %v3050 = vmul.f32 %v1650, 0.70710677
        %v3051 = vmul.f32 %v2097, 0.70710677
        %v3052 = vmul.f32 %v2099, 0.70710677
        %v3053 = vmul.f32 %v756, 0.70710677
        %v3054 = vmul.f32 %v758, 0.70710677
        %v3055 = vmul.f32 %v1205, 0.70710677
        %v3056 = vmul.f32 %v1207, 0.70710677
        %v3057 = vmul.f32 %v1654, 0.70710677
        %v3058 = vmul.f32 %v1656, 0.70710677
        %v3059 = vmul.f32 %v2103, 0.70710677
        %v3060 = vmul.f32 %v2105, 0.70710677
        %v3061 = vmul.f32 %v762, 0.70710677
        %v3062 = vmul.f32 %v764, 0.70710677
        %v3063 = vmul.f32 %v1211, 0.70710677
        %v3064 = vmul.f32 %v1213, 0.70710677
        %v3065 = vmul.f32 %v1660, 0.70710677
        %v3066 = vmul.f32 %v1662, 0.70710677
        %v3067 = vmul.f32 %v2109, 0.70710677
        %v3068 = vmul.f32 %v2111, 0.70710677
        %v3069 = vmul.f32 %v768, 0.70710677
        %v3070 = vmul.f32 %v770, 0.70710677
        %v3071 = vmul.f32 %v1217, 0.70710677
        %v3072 = vmul.f32 %v1219, 0.70710677
        %v3073 = vmul.f32 %v1666, 0.70710677
        %v3074 = vmul.f32 %v1668, 0.70710677
        %v3075 = vmul.f32 %v2115, 0.70710677
        %v3076 = vmul.f32 %v2117, 0.70710677
        %v3077 = vmul.f32 %v774, 0.70710677
        %v3078 = vmul.f32 %v776, 0.70710677
        %v3079 = vmul.f32 %v1223, 0.70710677
        %v3080 = vmul.f32 %v1225, 0.70710677
        %v3081 = vmul.f32 %v1672, 0.70710677
        %v3082 = vmul.f32 %v1674, 0.70710677
        %v3083 = vmul.f32 %v2121, 0.70710677
        %v3084 = vmul.f32 %v2123, 0.70710677
        %v3085 = vmul.f32 %v780, 0.70710677
        %v3086 = vmul.f32 %v782, 0.70710677
        %v3087 = vmul.f32 %v1229, 0.70710677
        %v3088 = vmul.f32 %v1231, 0.70710677
        %v3089 = vmul.f32 %v1678, 0.70710677
        %v3090 = vmul.f32 %v1680, 0.70710677
        %v3091 = vmul.f32 %v2127, 0.70710677
        %v3092 = vmul.f32 %v2129, 0.70710677
        %v3093 = vmul.f32 %v786, 0.70710677
        %v3094 = vmul.f32 %v788, 0.70710677
        %v3095 = vmul.f32 %v1235, 0.70710677
        %v3096 = vmul.f32 %v1237, 0.70710677
        %v3097 = vmul.f32 %v1684, 0.70710677
        %v3098 = vmul.f32 %v1686, 0.70710677
        %v3099 = vmul.f32 %v2133, 0.70710677
        %v3100 = vmul.f32 %v2135, 0.70710677
        %v3101 = vmul.f32 %v792, 0.70710677
        %v3102 = vmul.f32 %v794, 0.70710677
        %v3103 = vmul.f32 %v1241, 0.70710677
        %v3104 = vmul.f32 %v1243, 0.70710677
        %v3105 = vmul.f32 %v1690, 0.70710677
        %v3106 = vmul.f32 %v1692, 0.70710677
        %v3107 = vmul.f32 %v2139, 0.70710677
        %v3108 = vmul.f32 %v2141, 0.70710677
        %v3109 = vmul.f32 %v798, 0.70710677
        %v3110 = vmul.f32 %v800, 0.70710677
        %v3111 = vmul.f32 %v1247, 0.70710677
        %v3112 = vmul.f32 %v1249, 0.70710677
        %v3113 = vmul.f32 %v1696, 0.70710677
        %v3114 = vmul.f32 %v1698, 0.70710677
        %v3115 = vmul.f32 %v2145, 0.70710677
        %v3116 = vmul.f32 %v2147, 0.70710677
        %v3117 = vmul.f32 %v804, 0.70710677
        %v3118 = vmul.f32 %v806, 0.70710677
        %v3119 = vmul.f32 %v1253, 0.70710677
        %v3120 = vmul.f32 %v1255, 0.70710677
        %v3121 = vmul.f32 %v1702, 0.70710677
        %v3122 = vmul.f32 %v1704, 0.70710677
        %v3123 = vmul.f32 %v2151, 0.70710677
        %v3124 = vmul.f32 %v2153, 0.70710677
        %v3125 = vmul.f32 %v810, 0.70710677
        %v3126 = vmul.f32 %v812, 0.70710677
        %v3127 = vmul.f32 %v1259, 0.70710677
        %v3128 = vmul.f32 %v1261, 0.70710677
        %v3129 = vmul.f32 %v1708, 0.70710677
        %v3130 = vmul.f32 %v1710, 0.70710677
        %v3131 = vmul.f32 %v2157, 0.70710677
        %v3132 = vmul.f32 %v2159, 0.70710677
        %v3133 = vmul.f32 %v816, 0.70710677
        %v3134 = vmul.f32 %v818, 0.70710677
        %v3135 = vmul.f32 %v1265, 0.70710677
        %v3136 = vmul.f32 %v1267, 0.70710677
        %v3137 = vmul.f32 %v1714, 0.70710677
        %v3138 = vmul.f32 %v1716, 0.70710677
        %v3139 = vmul.f32 %v2163, 0.70710677
        %v3140 = vmul.f32 %v2165, 0.70710677
        %v3141 = vmul.f32 %v822, 0.70710677
        %v3142 = vmul.f32 %v824, 0.70710677
        %v3143 = vmul.f32 %v1271, 0.70710677
        %v3144 = vmul.f32 %v1273, 0.70710677
        %v3145 = vmul.f32 %v1720, 0.70710677
        %v3146 = vmul.f32 %v1722, 0.70710677
        %v3147 = vmul.f32 %v2169, 0.70710677
        %v3148 = vmul.f32 %v2171, 0.70710677
        %v3149 = vmul.f32 %v828, 0.70710677
        %v3150 = vmul.f32 %v830, 0.70710677
        %v3151 = vmul.f32 %v1277, 0.70710677
        %v3152 = vmul.f32 %v1279, 0.70710677
        %v3153 = vmul.f32 %v1726, 0.70710677
        %v3154 = vmul.f32 %v1728, 0.70710677
        %v3155 = vmul.f32 %v2175, 0.70710677
        %v3156 = vmul.f32 %v2177, 0.70710677
        %v3157 = vmul.f32 %v834, 0.70710677
        %v3158 = vmul.f32 %v836, 0.70710677
        %v3159 = vmul.f32 %v1283, 0.70710677
        %v3160 = vmul.f32 %v1285, 0.70710677
        %v3161 = vmul.f32 %v1732, 0.70710677
        %v3162 = vmul.f32 %v1734, 0.70710677
        %v3163 = vmul.f32 %v2181, 0.70710677
        %v3164 = vmul.f32 %v2183, 0.70710677
        %v3165 = vmul.f32 %v840, 0.70710677
        %v3166 = vmul.f32 %v842, 0.70710677
        %v3167 = vmul.f32 %v1289, 0.70710677
        %v3168 = vmul.f32 %v1291, 0.70710677
        %v3169 = vmul.f32 %v1738, 0.70710677
        %v3170 = vmul.f32 %v1740, 0.70710677
        %v3171 = vmul.f32 %v2187, 0.70710677
        %v3172 = vmul.f32 %v2189, 0.70710677
        %v3173 = vmul.f32 %v846, 0.70710677
        %v3174 = vmul.f32 %v848, 0.70710677
        %v3175 = vmul.f32 %v1295, 0.70710677
        %v3176 = vmul.f32 %v1297, 0.70710677
        %v3177 = vmul.f32 %v1744, 0.70710677
        %v3178 = vmul.f32 %v1746, 0.70710677
        %v3179 = vmul.f32 %v2193, 0.70710677
        %v3180 = vmul.f32 %v2195, 0.70710677
        %v3181 = vmul.f32 %v852, 0.70710677
        %v3182 = vmul.f32 %v854, 0.70710677
        %v3183 = vmul.f32 %v1301, 0.70710677
        %v3184 = vmul.f32 %v1303, 0.70710677
        %v3185 = vmul.f32 %v1750, 0.70710677
        %v3186 = vmul.f32 %v1752, 0.70710677
        %v3187 = vmul.f32 %v2199, 0.70710677
        %v3188 = vmul.f32 %v2201, 0.70710677
        %v3189 = vmul.f32 %v858, 0.70710677
        %v3190 = vmul.f32 %v860, 0.70710677
        %v3191 = vmul.f32 %v1307, 0.70710677
        %v3192 = vmul.f32 %v1309, 0.70710677
        %v3193 = vmul.f32 %v1756, 0.70710677
        %v3194 = vmul.f32 %v1758, 0.70710677
        %v3195 = vmul.f32 %v2205, 0.70710677
        %v3196 = vmul.f32 %v2207, 0.70710677
        %v3197 = vmul.f32 %v864, 0.70710677
        %v3198 = vmul.f32 %v866, 0.70710677
        %v3199 = vmul.f32 %v1313, 0.70710677
        %v3200 = vmul.f32 %v1315, 0.70710677
        %v3201 = vmul.f32 %v1762, 0.70710677
        %v3202 = vmul.f32 %v1764, 0.70710677
        %v3203 = vmul.f32 %v2211, 0.70710677
        %v3204 = vmul.f32 %v2213, 0.70710677
        %v3205 = vmul.f32 %v870, 0.70710677
        %v3206 = vmul.f32 %v872, 0.70710677
        %v3207 = vmul.f32 %v1319, 0.70710677
        %v3208 = vmul.f32 %v1321, 0.70710677
        %v3209 = vmul.f32 %v1768, 0.70710677
        %v3210 = vmul.f32 %v1770, 0.70710677
        %v3211 = vmul.f32 %v2217, 0.70710677
        %v3212 = vmul.f32 %v2219, 0.70710677
        %v3213 = vmul.f32 %v876, 0.70710677
        %v3214 = vmul.f32 %v878, 0.70710677
        %v3215 = vmul.f32 %v1325, 0.70710677
        %v3216 = vmul.f32 %v1327, 0.70710677
        %v3217 = vmul.f32 %v1774, 0.70710677
        %v3218 = vmul.f32 %v1776, 0.70710677
        %v3219 = vmul.f32 %v2223, 0.70710677
        %v3220 = vmul.f32 %v2225, 0.70710677
        %v3221 = vmul.f32 %v882, 0.70710677
        %v3222 = vmul.f32 %v884, 0.70710677
        %v3223 = vmul.f32 %v1331, 0.70710677
        %v3224 = vmul.f32 %v1333, 0.70710677
        %v3225 = vmul.f32 %v1780, 0.70710677
        %v3226 = vmul.f32 %v1782, 0.70710677
        %v3227 = vmul.f32 %v2229, 0.70710677
        %v3228 = vmul.f32 %v2231, 0.70710677
        %v3229 = vmul.f32 %v888, 0.70710677
        %v3230 = vmul.f32 %v890, 0.70710677
        %v3231 = vmul.f32 %v1337, 0.70710677
        %v3232 = vmul.f32 %v1339, 0.70710677
        %v3233 = vmul.f32 %v1786, 0.70710677
        %v3234 = vmul.f32 %v1788, 0.70710677
        %v3235 = vmul.f32 %v2235, 0.70710677
        %v3236 = vmul.f32 %v2237, 0.70710677
        %v3237 = vmul.f32 %v894, 0.70710677
        %v3238 = vmul.f32 %v896, 0.70710677
        %v3239 = vmul.f32 %v1343, 0.70710677
        %v3240 = vmul.f32 %v1345, 0.70710677
        %v3241 = vmul.f32 %v1792, 0.70710677
        %v3242 = vmul.f32 %v1794, 0.70710677
        %v3243 = vmul.f32 %v2241, 0.70710677
        %v3244 = vmul.f32 %v2243, 0.70710677
        %v3245 = vmul.f32 %v900, 0.70710677
        %v3246 = vmul.f32 %v902, 0.70710677
        %v3247 = vmul.f32 %v1349, 0.70710677
        %v3248 = vmul.f32 %v1351, 0.70710677
        %v3249 = vmul.f32 %v1798, 0.70710677
        %v3250 = vmul.f32 %v1800, 0.70710677
        %v3251 = vmul.f32 %v2247, 0.70710677
        %v3252 = vmul.f32 %v2249, 0.70710677
        %v3253 = vmul.f32 %v906, 0.70710677
        %v3254 = vmul.f32 %v908, 0.70710677
        %v3255 = vmul.f32 %v1355, 0.70710677
        %v3256 = vmul.f32 %v1357, 0.70710677
        %v3257 = vmul.f32 %v1804, 0.70710677
        %v3258 = vmul.f32 %v1806, 0.70710677
        %v3259 = vmul.f32 %v2253, 0.70710677
        %v3260 = vmul.f32 %v2255, 0.70710677
        %v3261 = vmul.f32 %v912, 0.70710677
        %v3262 = vmul.f32 %v914, 0.70710677
        %v3263 = vmul.f32 %v1361, 0.70710677
        %v3264 = vmul.f32 %v1363, 0.70710677
        %v3265 = vmul.f32 %v1810, 0.70710677
        %v3266 = vmul.f32 %v1812, 0.70710677
        %v3267 = vmul.f32 %v2259, 0.70710677
        %v3268 = vmul.f32 %v2261, 0.70710677
        %v3269 = vmul.f32 %v918, 0.70710677
        %v3270 = vmul.f32 %v920, 0.70710677
        %v3271 = vmul.f32 %v1367, 0.70710677
        %v3272 = vmul.f32 %v1369, 0.70710677
        %v3273 = vmul.f32 %v1816, 0.70710677
        %v3274 = vmul.f32 %v1818, 0.70710677
        %v3275 = vmul.f32 %v2265, 0.70710677
        %v3276 = vmul.f32 %v2267, 0.70710677
        %v3277 = vmul.f32 %v924, 0.70710677
        %v3278 = vmul.f32 %v926, 0.70710677
        %v3279 = vmul.f32 %v1373, 0.70710677
        %v3280 = vmul.f32 %v1375, 0.70710677
        %v3281 = vmul.f32 %v1822, 0.70710677
        %v3282 = vmul.f32 %v1824, 0.70710677
        %v3283 = vmul.f32 %v2271, 0.70710677
        %v3284 = vmul.f32 %v2273, 0.70710677
        %v3285 = vmul.f32 %v930, 0.70710677
        %v3286 = vmul.f32 %v932, 0.70710677
        %v3287 = vmul.f32 %v1379, 0.70710677
        %v3288 = vmul.f32 %v1381, 0.70710677
        %v3289 = vmul.f32 %v1828, 0.70710677
        %v3290 = vmul.f32 %v1830, 0.70710677
        %v3291 = vmul.f32 %v2277, 0.70710677
        %v3292 = vmul.f32 %v2279, 0.70710677
        %v3293 = vmul.f32 %v936, 0.70710677
        %v3294 = vmul.f32 %v938, 0.70710677
        %v3295 = vmul.f32 %v1385, 0.70710677
        %v3296 = vmul.f32 %v1387, 0.70710677
        %v3297 = vmul.f32 %v1834, 0.70710677
        %v3298 = vmul.f32 %v1836, 0.70710677
        %v3299 = vmul.f32 %v2283, 0.70710677
        %v3300 = vmul.f32 %v2285, 0.70710677
        %v3301 = vmul.f32 %v942, 0.70710677
        %v3302 = vmul.f32 %v944, 0.70710677
        %v3303 = vmul.f32 %v1391, 0.70710677
        %v3304 = vmul.f32 %v1393, 0.70710677
        %v3305 = vmul.f32 %v1840, 0.70710677
        %v3306 = vmul.f32 %v1842, 0.70710677
        %v3307 = vmul.f32 %v2289, 0.70710677
        %v3308 = vmul.f32 %v2291, 0.70710677
        %v3309 = vmul.f32 %v948, 0.70710677
        %v3310 = vmul.f32 %v950, 0.70710677
        %v3311 = vmul.f32 %v1397, 0.70710677
        %v3312 = vmul.f32 %v1399, 0.70710677
        %v3313 = vmul.f32 %v1846, 0.70710677
        %v3314 = vmul.f32 %v1848, 0.70710677
        %v3315 = vmul.f32 %v2295, 0.70710677
        %v3316 = vmul.f32 %v2297, 0.70710677
        %v3317 = vmul.f32 %v954, 0.70710677
        %v3318 = vmul.f32 %v956, 0.70710677
        %v3319 = vmul.f32 %v1403, 0.70710677
        %v3320 = vmul.f32 %v1405, 0.70710677
        %v3321 = vmul.f32 %v1852, 0.70710677
        %v3322 = vmul.f32 %v1854, 0.70710677
        %v3323 = vmul.f32 %v2301, 0.70710677
        %v3324 = vmul.f32 %v2303, 0.70710677
        %v3325 = vmul.f32 %v960, 0.70710677
        %v3326 = vmul.f32 %v962, 0.70710677
        %v3327 = vmul.f32 %v1409, 0.70710677
        %v3328 = vmul.f32 %v1411, 0.70710677
        %v3329 = vmul.f32 %v1858, 0.70710677
        %v3330 = vmul.f32 %v1860, 0.70710677
        %v3331 = vmul.f32 %v2307, 0.70710677
        %v3332 = vmul.f32 %v2309, 0.70710677
        %v3333 = vmul.f32 %v966, 0.70710677
        %v3334 = vmul.f32 %v968, 0.70710677
        %v3335 = vmul.f32 %v1415, 0.70710677
        %v3336 = vmul.f32 %v1417, 0.70710677
        %v3337 = vmul.f32 %v1864, 0.70710677
        %v3338 = vmul.f32 %v1866, 0.70710677
        %v3339 = vmul.f32 %v2313, 0.70710677
        %v3340 = vmul.f32 %v2315, 0.70710677
        %v3341 = verf.f32.pop %v2829
        %v3342 = verf.f32.pop %v2830
        %v3343 = verf.f32.pop %v2831
        %v3344 = verf.f32.pop %v2832
        %v3345 = verf.f32.pop %v2833
        %v3346 = verf.f32.pop %v2834
        %v3347 = verf.f32.pop %v2835
        %v3348 = verf.f32.pop %v2836
        %v3349 = verf.f32.pop %v2837
        %v3350 = verf.f32.pop %v2838
        %v3351 = verf.f32.pop %v2839
        %v3352 = verf.f32.pop %v2840
        %v3353 = verf.f32.pop %v2841
        %v3354 = verf.f32.pop %v2842
        %v3355 = verf.f32.pop %v2843
        %v3356 = verf.f32.pop %v2844
        %v3357 = verf.f32.pop %v2845
        %v3358 = verf.f32.pop %v2846
        %v3359 = verf.f32.pop %v2847
        %v3360 = verf.f32.pop %v2848
        %v3361 = verf.f32.pop %v2849
        %v3362 = verf.f32.pop %v2850
        %v3363 = verf.f32.pop %v2851
        %v3364 = verf.f32.pop %v2852
        %v3365 = verf.f32.pop %v2853
        %v3366 = verf.f32.pop %v2854
        %v3367 = verf.f32.pop %v2855
        %v3368 = verf.f32.pop %v2856
        %v3369 = verf.f32.pop %v2857
        %v3370 = verf.f32.pop %v2858
        %v3371 = verf.f32.pop %v2859
        %v3372 = verf.f32.pop %v2860
        %v3373 = verf.f32.pop %v2861
        %v3374 = verf.f32.pop %v2862
        %v3375 = verf.f32.pop %v2863
        %v3376 = verf.f32.pop %v2864
        %v3377 = verf.f32.pop %v2865
        %v3378 = verf.f32.pop %v2866
        %v3379 = verf.f32.pop %v2867
        %v3380 = verf.f32.pop %v2868
        %v3381 = verf.f32.pop %v2869
        %v3382 = verf.f32.pop %v2870
        %v3383 = verf.f32.pop %v2871
        %v3384 = verf.f32.pop %v2872
        %v3385 = verf.f32.pop %v2873
        %v3386 = verf.f32.pop %v2874
        %v3387 = verf.f32.pop %v2875
        %v3388 = verf.f32.pop %v2876
        %v3389 = verf.f32.pop %v2877
        %v3390 = verf.f32.pop %v2878
        %v3391 = verf.f32.pop %v2879
        %v3392 = verf.f32.pop %v2880
        %v3393 = verf.f32.pop %v2881
        %v3394 = verf.f32.pop %v2882
        %v3395 = verf.f32.pop %v2883
        %v3396 = verf.f32.pop %v2884
        %v3397 = verf.f32.pop %v2885
        %v3398 = verf.f32.pop %v2886
        %v3399 = verf.f32.pop %v2887
        %v3400 = verf.f32.pop %v2888
        %v3401 = verf.f32.pop %v2889
        %v3402 = verf.f32.pop %v2890
        %v3403 = verf.f32.pop %v2891
        %v3404 = verf.f32.pop %v2892
        %v3405 = verf.f32.pop %v2893
        %v3406 = verf.f32.pop %v2894
        %v3407 = verf.f32.pop %v2895
        %v3408 = verf.f32.pop %v2896
        %v3409 = verf.f32.pop %v2897
        %v3410 = verf.f32.pop %v2898
        %v3411 = verf.f32.pop %v2899
        %v3412 = verf.f32.pop %v2900
        %v3413 = verf.f32.pop %v2901
        %v3414 = verf.f32.pop %v2902
        %v3415 = verf.f32.pop %v2903
        %v3416 = verf.f32.pop %v2904
        %v3417 = verf.f32.pop %v2905
        %v3418 = verf.f32.pop %v2906
        %v3419 = verf.f32.pop %v2907
        %v3420 = verf.f32.pop %v2908
        %v3421 = verf.f32.pop %v2909
        %v3422 = verf.f32.pop %v2910
        %v3423 = verf.f32.pop %v2911
        %v3424 = verf.f32.pop %v2912
        %v3425 = verf.f32.pop %v2913
        %v3426 = verf.f32.pop %v2914
        %v3427 = verf.f32.pop %v2915
        %v3428 = verf.f32.pop %v2916
        %v3429 = verf.f32.pop %v2917
        %v3430 = verf.f32.pop %v2918
        %v3431 = verf.f32.pop %v2919
        %v3432 = verf.f32.pop %v2920
        %v3433 = verf.f32.pop %v2921
        %v3434 = verf.f32.pop %v2922
        %v3435 = verf.f32.pop %v2923
        %v3436 = verf.f32.pop %v2924
        %v3437 = verf.f32.pop %v2925
        %v3438 = verf.f32.pop %v2926
        %v3439 = verf.f32.pop %v2927
        %v3440 = verf.f32.pop %v2928
        %v3441 = verf.f32.pop %v2929
        %v3442 = verf.f32.pop %v2930
        %v3443 = verf.f32.pop %v2931
        %v3444 = verf.f32.pop %v2932
        %v3445 = verf.f32.pop %v2933
        %v3446 = verf.f32.pop %v2934
        %v3447 = verf.f32.pop %v2935
        %v3448 = verf.f32.pop %v2936
        %v3449 = verf.f32.pop %v2937
        %v3450 = verf.f32.pop %v2938
        %v3451 = verf.f32.pop %v2939
        %v3452 = verf.f32.pop %v2940
        %v3453 = verf.f32.pop %v2941
        %v3454 = verf.f32.pop %v2942
        %v3455 = verf.f32.pop %v2943
        %v3456 = verf.f32.pop %v2944
        %v3457 = verf.f32.pop %v2945
        %v3458 = verf.f32.pop %v2946
        %v3459 = verf.f32.pop %v2947
        %v3460 = verf.f32.pop %v2948
        %v3461 = verf.f32.pop %v2949
        %v3462 = verf.f32.pop %v2950
        %v3463 = verf.f32.pop %v2951
        %v3464 = verf.f32.pop %v2952
        %v3465 = verf.f32.pop %v2953
        %v3466 = verf.f32.pop %v2954
        %v3467 = verf.f32.pop %v2955
        %v3468 = verf.f32.pop %v2956
        %v3469 = verf.f32.pop %v2957
        %v3470 = verf.f32.pop %v2958
        %v3471 = verf.f32.pop %v2959
        %v3472 = verf.f32.pop %v2960
        %v3473 = verf.f32.pop %v2961
        %v3474 = verf.f32.pop %v2962
        %v3475 = verf.f32.pop %v2963
        %v3476 = verf.f32.pop %v2964
        %v3477 = verf.f32.pop %v2965
        %v3478 = verf.f32.pop %v2966
        %v3479 = verf.f32.pop %v2967
        %v3480 = verf.f32.pop %v2968
        %v3481 = verf.f32.pop %v2969
        %v3482 = verf.f32.pop %v2970
        %v3483 = verf.f32.pop %v2971
        %v3484 = verf.f32.pop %v2972
        %v3485 = verf.f32.pop %v2973
        %v3486 = verf.f32.pop %v2974
        %v3487 = verf.f32.pop %v2975
        %v3488 = verf.f32.pop %v2976
        %v3489 = verf.f32.pop %v2977
        %v3490 = verf.f32.pop %v2978
        %v3491 = verf.f32.pop %v2979
        %v3492 = verf.f32.pop %v2980
        %v3493 = verf.f32.pop %v2981
        %v3494 = verf.f32.pop %v2982
        %v3495 = verf.f32.pop %v2983
        %v3496 = verf.f32.pop %v2984
        %v3497 = verf.f32.pop %v2985
        %v3498 = verf.f32.pop %v2986
        %v3499 = verf.f32.pop %v2987
        %v3500 = verf.f32.pop %v2988
        %v3501 = verf.f32.pop %v2989
        %v3502 = verf.f32.pop %v2990
        %v3503 = verf.f32.pop %v2991
        %v3504 = verf.f32.pop %v2992
        %v3505 = verf.f32.pop %v2993
        %v3506 = verf.f32.pop %v2994
        %v3507 = verf.f32.pop %v2995
        %v3508 = verf.f32.pop %v2996
        %v3509 = verf.f32.pop %v2997
        %v3510 = verf.f32.pop %v2998
        %v3511 = verf.f32.pop %v2999
        %v3512 = verf.f32.pop %v3000
        %v3513 = verf.f32.pop %v3001
        %v3514 = verf.f32.pop %v3002
        %v3515 = verf.f32.pop %v3003
        %v3516 = verf.f32.pop %v3004
        %v3517 = verf.f32.pop %v3005
        %v3518 = verf.f32.pop %v3006
        %v3519 = verf.f32.pop %v3007
        %v3520 = verf.f32.pop %v3008
        %v3521 = verf.f32.pop %v3009
        %v3522 = verf.f32.pop %v3010
        %v3523 = verf.f32.pop %v3011
        %v3524 = verf.f32.pop %v3012
        %v3525 = verf.f32.pop %v3013
        %v3526 = verf.f32.pop %v3014
        %v3527 = verf.f32.pop %v3015
        %v3528 = verf.f32.pop %v3016
        %v3529 = verf.f32.pop %v3017
        %v3530 = verf.f32.pop %v3018
        %v3531 = verf.f32.pop %v3019
        %v3532 = verf.f32.pop %v3020
        %v3533 = verf.f32.pop %v3021
        %v3534 = verf.f32.pop %v3022
        %v3535 = verf.f32.pop %v3023
        %v3536 = verf.f32.pop %v3024
        %v3537 = verf.f32.pop %v3025
        %v3538 = verf.f32.pop %v3026
        %v3539 = verf.f32.pop %v3027
        %v3540 = verf.f32.pop %v3028
        %v3541 = verf.f32.pop %v3029
        %v3542 = verf.f32.pop %v3030
        %v3543 = verf.f32.pop %v3031
        %v3544 = verf.f32.pop %v3032
        %v3545 = verf.f32.pop %v3033
        %v3546 = verf.f32.pop %v3034
        %v3547 = verf.f32.pop %v3035
        %v3548 = verf.f32.pop %v3036
        %v3549 = verf.f32.pop %v3037
        %v3550 = verf.f32.pop %v3038
        %v3551 = verf.f32.pop %v3039
        %v3552 = verf.f32.pop %v3040
        %v3553 = verf.f32.pop %v3041
        %v3554 = verf.f32.pop %v3042
        %v3555 = verf.f32.pop %v3043
        %v3556 = verf.f32.pop %v3044
        %v3557 = verf.f32.pop %v3045
        %v3558 = verf.f32.pop %v3046
        %v3559 = verf.f32.pop %v3047
        %v3560 = verf.f32.pop %v3048
        %v3561 = verf.f32.pop %v3049
        %v3562 = verf.f32.pop %v3050
        %v3563 = verf.f32.pop %v3051
        %v3564 = verf.f32.pop %v3052
        %v3565 = verf.f32.pop %v3053
        %v3566 = verf.f32.pop %v3054
        %v3567 = verf.f32.pop %v3055
        %v3568 = verf.f32.pop %v3056
        %v3569 = verf.f32.pop %v3057
        %v3570 = verf.f32.pop %v3058
        %v3571 = verf.f32.pop %v3059
        %v3572 = verf.f32.pop %v3060
        %v3573 = verf.f32.pop %v3061
        %v3574 = verf.f32.pop %v3062
        %v3575 = verf.f32.pop %v3063
        %v3576 = verf.f32.pop %v3064
        %v3577 = verf.f32.pop %v3065
        %v3578 = verf.f32.pop %v3066
        %v3579 = verf.f32.pop %v3067
        %v3580 = verf.f32.pop %v3068
        %v3581 = verf.f32.pop %v3069
        %v3582 = verf.f32.pop %v3070
        %v3583 = verf.f32.pop %v3071
        %v3584 = verf.f32.pop %v3072
        %v3585 = verf.f32.pop %v3073
        %v3586 = verf.f32.pop %v3074
        %v3587 = verf.f32.pop %v3075
        %v3588 = verf.f32.pop %v3076
        %v3589 = verf.f32.pop %v3077
        %v3590 = verf.f32.pop %v3078
        %v3591 = verf.f32.pop %v3079
        %v3592 = verf.f32.pop %v3080
        %v3593 = verf.f32.pop %v3081
        %v3594 = verf.f32.pop %v3082
        %v3595 = verf.f32.pop %v3083
        %v3596 = verf.f32.pop %v3084
        %v3597 = verf.f32.pop %v3085
        %v3598 = verf.f32.pop %v3086
        %v3599 = verf.f32.pop %v3087
        %v3600 = verf.f32.pop %v3088
        %v3601 = verf.f32.pop %v3089
        %v3602 = verf.f32.pop %v3090
        %v3603 = verf.f32.pop %v3091
        %v3604 = verf.f32.pop %v3092
        %v3605 = verf.f32.pop %v3093
        %v3606 = verf.f32.pop %v3094
        %v3607 = verf.f32.pop %v3095
        %v3608 = verf.f32.pop %v3096
        %v3609 = verf.f32.pop %v3097
        %v3610 = verf.f32.pop %v3098
        %v3611 = verf.f32.pop %v3099
        %v3612 = verf.f32.pop %v3100
        %v3613 = verf.f32.pop %v3101
        %v3614 = verf.f32.pop %v3102
        %v3615 = verf.f32.pop %v3103
        %v3616 = verf.f32.pop %v3104
        %v3617 = verf.f32.pop %v3105
        %v3618 = verf.f32.pop %v3106
        %v3619 = verf.f32.pop %v3107
        %v3620 = verf.f32.pop %v3108
        %v3621 = verf.f32.pop %v3109
        %v3622 = verf.f32.pop %v3110
        %v3623 = verf.f32.pop %v3111
        %v3624 = verf.f32.pop %v3112
        %v3625 = verf.f32.pop %v3113
        %v3626 = verf.f32.pop %v3114
        %v3627 = verf.f32.pop %v3115
        %v3628 = verf.f32.pop %v3116
        %v3629 = verf.f32.pop %v3117
        %v3630 = verf.f32.pop %v3118
        %v3631 = verf.f32.pop %v3119
        %v3632 = verf.f32.pop %v3120
        %v3633 = verf.f32.pop %v3121
        %v3634 = verf.f32.pop %v3122
        %v3635 = verf.f32.pop %v3123
        %v3636 = verf.f32.pop %v3124
        %v3637 = verf.f32.pop %v3125
        %v3638 = verf.f32.pop %v3126
        %v3639 = verf.f32.pop %v3127
        %v3640 = verf.f32.pop %v3128
        %v3641 = verf.f32.pop %v3129
        %v3642 = verf.f32.pop %v3130
        %v3643 = verf.f32.pop %v3131
        %v3644 = verf.f32.pop %v3132
        %v3645 = verf.f32.pop %v3133
        %v3646 = verf.f32.pop %v3134
        %v3647 = verf.f32.pop %v3135
        %v3648 = verf.f32.pop %v3136
        %v3649 = verf.f32.pop %v3137
        %v3650 = verf.f32.pop %v3138
        %v3651 = verf.f32.pop %v3139
        %v3652 = verf.f32.pop %v3140
        %v3653 = verf.f32.pop %v3141
        %v3654 = verf.f32.pop %v3142
        %v3655 = verf.f32.pop %v3143
        %v3656 = verf.f32.pop %v3144
        %v3657 = verf.f32.pop %v3145
        %v3658 = verf.f32.pop %v3146
        %v3659 = verf.f32.pop %v3147
        %v3660 = verf.f32.pop %v3148
        %v3661 = verf.f32.pop %v3149
        %v3662 = verf.f32.pop %v3150
        %v3663 = verf.f32.pop %v3151
        %v3664 = verf.f32.pop %v3152
        %v3665 = verf.f32.pop %v3153
        %v3666 = verf.f32.pop %v3154
        %v3667 = verf.f32.pop %v3155
        %v3668 = verf.f32.pop %v3156
        %v3669 = verf.f32.pop %v3157
        %v3670 = verf.f32.pop %v3158
        %v3671 = verf.f32.pop %v3159
        %v3672 = verf.f32.pop %v3160
        %v3673 = verf.f32.pop %v3161
        %v3674 = verf.f32.pop %v3162
        %v3675 = verf.f32.pop %v3163
        %v3676 = verf.f32.pop %v3164
        %v3677 = verf.f32.pop %v3165
        %v3678 = verf.f32.pop %v3166
        %v3679 = verf.f32.pop %v3167
        %v3680 = verf.f32.pop %v3168
        %v3681 = verf.f32.pop %v3169
        %v3682 = verf.f32.pop %v3170
        %v3683 = verf.f32.pop %v3171
        %v3684 = verf.f32.pop %v3172
        %v3685 = verf.f32.pop %v3173
        %v3686 = verf.f32.pop %v3174
        %v3687 = verf.f32.pop %v3175
        %v3688 = verf.f32.pop %v3176
        %v3689 = verf.f32.pop %v3177
        %v3690 = verf.f32.pop %v3178
        %v3691 = verf.f32.pop %v3179
        %v3692 = verf.f32.pop %v3180
        %v3693 = verf.f32.pop %v3181
        %v3694 = verf.f32.pop %v3182
        %v3695 = verf.f32.pop %v3183
        %v3696 = verf.f32.pop %v3184
        %v3697 = verf.f32.pop %v3185
        %v3698 = verf.f32.pop %v3186
        %v3699 = verf.f32.pop %v3187
        %v3700 = verf.f32.pop %v3188
        %v3701 = verf.f32.pop %v3189
        %v3702 = verf.f32.pop %v3190
        %v3703 = verf.f32.pop %v3191
        %v3704 = verf.f32.pop %v3192
        %v3705 = verf.f32.pop %v3193
        %v3706 = verf.f32.pop %v3194
        %v3707 = verf.f32.pop %v3195
        %v3708 = verf.f32.pop %v3196
        %v3709 = verf.f32.pop %v3197
        %v3710 = verf.f32.pop %v3198
        %v3711 = verf.f32.pop %v3199
        %v3712 = verf.f32.pop %v3200
        %v3713 = verf.f32.pop %v3201
        %v3714 = verf.f32.pop %v3202
        %v3715 = verf.f32.pop %v3203
        %v3716 = verf.f32.pop %v3204
        %v3717 = verf.f32.pop %v3205
        %v3718 = verf.f32.pop %v3206
        %v3719 = verf.f32.pop %v3207
        %v3720 = verf.f32.pop %v3208
        %v3721 = verf.f32.pop %v3209
        %v3722 = verf.f32.pop %v3210
        %v3723 = verf.f32.pop %v3211
        %v3724 = verf.f32.pop %v3212
        %v3725 = verf.f32.pop %v3213
        %v3726 = verf.f32.pop %v3214
        %v3727 = verf.f32.pop %v3215
        %v3728 = verf.f32.pop %v3216
        %v3729 = verf.f32.pop %v3217
        %v3730 = verf.f32.pop %v3218
        %v3731 = verf.f32.pop %v3219
        %v3732 = verf.f32.pop %v3220
        %v3733 = verf.f32.pop %v3221
        %v3734 = verf.f32.pop %v3222
        %v3735 = verf.f32.pop %v3223
        %v3736 = verf.f32.pop %v3224
        %v3737 = verf.f32.pop %v3225
        %v3738 = verf.f32.pop %v3226
        %v3739 = verf.f32.pop %v3227
        %v3740 = verf.f32.pop %v3228
        %v3741 = verf.f32.pop %v3229
        %v3742 = verf.f32.pop %v3230
        %v3743 = verf.f32.pop %v3231
        %v3744 = verf.f32.pop %v3232
        %v3745 = verf.f32.pop %v3233
        %v3746 = verf.f32.pop %v3234
        %v3747 = verf.f32.pop %v3235
        %v3748 = verf.f32.pop %v3236
        %v3749 = verf.f32.pop %v3237
        %v3750 = verf.f32.pop %v3238
        %v3751 = verf.f32.pop %v3239
        %v3752 = verf.f32.pop %v3240
        %v3753 = verf.f32.pop %v3241
        %v3754 = verf.f32.pop %v3242
        %v3755 = verf.f32.pop %v3243
        %v3756 = verf.f32.pop %v3244
        %v3757 = verf.f32.pop %v3245
        %v3758 = verf.f32.pop %v3246
        %v3759 = verf.f32.pop %v3247
        %v3760 = verf.f32.pop %v3248
        %v3761 = verf.f32.pop %v3249
        %v3762 = verf.f32.pop %v3250
        %v3763 = verf.f32.pop %v3251
        %v3764 = verf.f32.pop %v3252
        %v3765 = verf.f32.pop %v3253
        %v3766 = verf.f32.pop %v3254
        %v3767 = verf.f32.pop %v3255
        %v3768 = verf.f32.pop %v3256
        %v3769 = verf.f32.pop %v3257
        %v3770 = verf.f32.pop %v3258
        %v3771 = verf.f32.pop %v3259
        %v3772 = verf.f32.pop %v3260
        %v3773 = verf.f32.pop %v3261
        %v3774 = verf.f32.pop %v3262
        %v3775 = verf.f32.pop %v3263
        %v3776 = verf.f32.pop %v3264
        %v3777 = verf.f32.pop %v3265
        %v3778 = verf.f32.pop %v3266
        %v3779 = verf.f32.pop %v3267
        %v3780 = verf.f32.pop %v3268
        %v3781 = verf.f32.pop %v3269
        %v3782 = verf.f32.pop %v3270
        %v3783 = verf.f32.pop %v3271
        %v3784 = verf.f32.pop %v3272
        %v3785 = verf.f32.pop %v3273
        %v3786 = verf.f32.pop %v3274
        %v3787 = verf.f32.pop %v3275
        %v3788 = verf.f32.pop %v3276
        %v3789 = verf.f32.pop %v3277
        %v3790 = verf.f32.pop %v3278
        %v3791 = verf.f32.pop %v3279
        %v3792 = verf.f32.pop %v3280
        %v3793 = verf.f32.pop %v3281
        %v3794 = verf.f32.pop %v3282
        %v3795 = verf.f32.pop %v3283
        %v3796 = verf.f32.pop %v3284
        %v3797 = verf.f32.pop %v3285
        %v3798 = verf.f32.pop %v3286
        %v3799 = verf.f32.pop %v3287
        %v3800 = verf.f32.pop %v3288
        %v3801 = verf.f32.pop %v3289
        %v3802 = verf.f32.pop %v3290
        %v3803 = verf.f32.pop %v3291
        %v3804 = verf.f32.pop %v3292
        %v3805 = verf.f32.pop %v3293
        %v3806 = verf.f32.pop %v3294
        %v3807 = verf.f32.pop %v3295
        %v3808 = verf.f32.pop %v3296
        %v3809 = verf.f32.pop %v3297
        %v3810 = verf.f32.pop %v3298
        %v3811 = verf.f32.pop %v3299
        %v3812 = verf.f32.pop %v3300
        %v3813 = verf.f32.pop %v3301
        %v3814 = verf.f32.pop %v3302
        %v3815 = verf.f32.pop %v3303
        %v3816 = verf.f32.pop %v3304
        %v3817 = verf.f32.pop %v3305
        %v3818 = verf.f32.pop %v3306
        %v3819 = verf.f32.pop %v3307
        %v3820 = verf.f32.pop %v3308
        %v3821 = verf.f32.pop %v3309
        %v3822 = verf.f32.pop %v3310
        %v3823 = verf.f32.pop %v3311
        %v3824 = verf.f32.pop %v3312
        %v3825 = verf.f32.pop %v3313
        %v3826 = verf.f32.pop %v3314
        %v3827 = verf.f32.pop %v3315
        %v3828 = verf.f32.pop %v3316
        %v3829 = verf.f32.pop %v3317
        %v3830 = verf.f32.pop %v3318
        %v3831 = verf.f32.pop %v3319
        %v3832 = verf.f32.pop %v3320
        %v3833 = verf.f32.pop %v3321
        %v3834 = verf.f32.pop %v3322
        %v3835 = verf.f32.pop %v3323
        %v3836 = verf.f32.pop %v3324
        %v3837 = verf.f32.pop %v3325
        %v3838 = verf.f32.pop %v3326
        %v3839 = verf.f32.pop %v3327
        %v3840 = verf.f32.pop %v3328
        %v3841 = verf.f32.pop %v3329
        %v3842 = verf.f32.pop %v3330
        %v3843 = verf.f32.pop %v3331
        %v3844 = verf.f32.pop %v3332
        %v3845 = verf.f32.pop %v3333
        %v3846 = verf.f32.pop %v3334
        %v3847 = verf.f32.pop %v3335
        %v3848 = verf.f32.pop %v3336
        %v3849 = verf.f32.pop %v3337
        %v3850 = verf.f32.pop %v3338
        %v3851 = verf.f32.pop %v3339
        %v3852 = verf.f32.pop %v3340
        %v3853 = vadd.f32 %v3341, 1.0
        %v3854 = vadd.f32 %v3342, 1.0
        %v3855 = vadd.f32 %v3343, 1.0
        %v3856 = vadd.f32 %v3344, 1.0
        %v3857 = vadd.f32 %v3345, 1.0
        %v3858 = vadd.f32 %v3346, 1.0
        %v3859 = vadd.f32 %v3347, 1.0
        %v3860 = vadd.f32 %v3348, 1.0
        %v3861 = vadd.f32 %v3349, 1.0
        %v3862 = vadd.f32 %v3350, 1.0
        %v3863 = vadd.f32 %v3351, 1.0
        %v3864 = vadd.f32 %v3352, 1.0
        %v3865 = vadd.f32 %v3353, 1.0
        %v3866 = vadd.f32 %v3354, 1.0
        %v3867 = vadd.f32 %v3355, 1.0
        %v3868 = vadd.f32 %v3356, 1.0
        %v3869 = vadd.f32 %v3357, 1.0
        %v3870 = vadd.f32 %v3358, 1.0
        %v3871 = vadd.f32 %v3359, 1.0
        %v3872 = vadd.f32 %v3360, 1.0
        %v3873 = vadd.f32 %v3361, 1.0
        %v3874 = vadd.f32 %v3362, 1.0
        %v3875 = vadd.f32 %v3363, 1.0
        %v3876 = vadd.f32 %v3364, 1.0
        %v3877 = vadd.f32 %v3365, 1.0
        %v3878 = vadd.f32 %v3366, 1.0
        %v3879 = vadd.f32 %v3367, 1.0
        %v3880 = vadd.f32 %v3368, 1.0
        %v3881 = vadd.f32 %v3369, 1.0
        %v3882 = vadd.f32 %v3370, 1.0
        %v3883 = vadd.f32 %v3371, 1.0
        %v3884 = vadd.f32 %v3372, 1.0
        %v3885 = vadd.f32 %v3373, 1.0
        %v3886 = vadd.f32 %v3374, 1.0
        %v3887 = vadd.f32 %v3375, 1.0
        %v3888 = vadd.f32 %v3376, 1.0
        %v3889 = vadd.f32 %v3377, 1.0
        %v3890 = vadd.f32 %v3378, 1.0
        %v3891 = vadd.f32 %v3379, 1.0
        %v3892 = vadd.f32 %v3380, 1.0
        %v3893 = vadd.f32 %v3381, 1.0
        %v3894 = vadd.f32 %v3382, 1.0
        %v3895 = vadd.f32 %v3383, 1.0
        %v3896 = vadd.f32 %v3384, 1.0
        %v3897 = vadd.f32 %v3385, 1.0
        %v3898 = vadd.f32 %v3386, 1.0
        %v3899 = vadd.f32 %v3387, 1.0
        %v3900 = vadd.f32 %v3388, 1.0
        %v3901 = vadd.f32 %v3389, 1.0
        %v3902 = vadd.f32 %v3390, 1.0
        %v3903 = vadd.f32 %v3391, 1.0
        %v3904 = vadd.f32 %v3392, 1.0
        %v3905 = vadd.f32 %v3393, 1.0
        %v3906 = vadd.f32 %v3394, 1.0
        %v3907 = vadd.f32 %v3395, 1.0
        %v3908 = vadd.f32 %v3396, 1.0
        %v3909 = vadd.f32 %v3397, 1.0
        %v3910 = vadd.f32 %v3398, 1.0
        %v3911 = vadd.f32 %v3399, 1.0
        %v3912 = vadd.f32 %v3400, 1.0
        %v3913 = vadd.f32 %v3401, 1.0
        %v3914 = vadd.f32 %v3402, 1.0
        %v3915 = vadd.f32 %v3403, 1.0
        %v3916 = vadd.f32 %v3404, 1.0
        %v3917 = vadd.f32 %v3405, 1.0
        %v3918 = vadd.f32 %v3406, 1.0
        %v3919 = vadd.f32 %v3407, 1.0
        %v3920 = vadd.f32 %v3408, 1.0
        %v3921 = vadd.f32 %v3409, 1.0
        %v3922 = vadd.f32 %v3410, 1.0
        %v3923 = vadd.f32 %v3411, 1.0
        %v3924 = vadd.f32 %v3412, 1.0
        %v3925 = vadd.f32 %v3413, 1.0
        %v3926 = vadd.f32 %v3414, 1.0
        %v3927 = vadd.f32 %v3415, 1.0
        %v3928 = vadd.f32 %v3416, 1.0
        %v3929 = vadd.f32 %v3417, 1.0
        %v3930 = vadd.f32 %v3418, 1.0
        %v3931 = vadd.f32 %v3419, 1.0
        %v3932 = vadd.f32 %v3420, 1.0
        %v3933 = vadd.f32 %v3421, 1.0
        %v3934 = vadd.f32 %v3422, 1.0
        %v3935 = vadd.f32 %v3423, 1.0
        %v3936 = vadd.f32 %v3424, 1.0
        %v3937 = vadd.f32 %v3425, 1.0
        %v3938 = vadd.f32 %v3426, 1.0
        %v3939 = vadd.f32 %v3427, 1.0
        %v3940 = vadd.f32 %v3428, 1.0
        %v3941 = vadd.f32 %v3429, 1.0
        %v3942 = vadd.f32 %v3430, 1.0
        %v3943 = vadd.f32 %v3431, 1.0
        %v3944 = vadd.f32 %v3432, 1.0
        %v3945 = vadd.f32 %v3433, 1.0
        %v3946 = vadd.f32 %v3434, 1.0
        %v3947 = vadd.f32 %v3435, 1.0
        %v3948 = vadd.f32 %v3436, 1.0
        %v3949 = vadd.f32 %v3437, 1.0
        %v3950 = vadd.f32 %v3438, 1.0
        %v3951 = vadd.f32 %v3439, 1.0
        %v3952 = vadd.f32 %v3440, 1.0
        %v3953 = vadd.f32 %v3441, 1.0
        %v3954 = vadd.f32 %v3442, 1.0
        %v3955 = vadd.f32 %v3443, 1.0
        %v3956 = vadd.f32 %v3444, 1.0
        %v3957 = vadd.f32 %v3445, 1.0
        %v3958 = vadd.f32 %v3446, 1.0
        %v3959 = vadd.f32 %v3447, 1.0
        %v3960 = vadd.f32 %v3448, 1.0
        %v3961 = vadd.f32 %v3449, 1.0
        %v3962 = vadd.f32 %v3450, 1.0
        %v3963 = vadd.f32 %v3451, 1.0
        %v3964 = vadd.f32 %v3452, 1.0
        %v3965 = vadd.f32 %v3453, 1.0
        %v3966 = vadd.f32 %v3454, 1.0
        %v3967 = vadd.f32 %v3455, 1.0
        %v3968 = vadd.f32 %v3456, 1.0
        %v3969 = vadd.f32 %v3457, 1.0
        %v3970 = vadd.f32 %v3458, 1.0
        %v3971 = vadd.f32 %v3459, 1.0
        %v3972 = vadd.f32 %v3460, 1.0
        %v3973 = vadd.f32 %v3461, 1.0
        %v3974 = vadd.f32 %v3462, 1.0
        %v3975 = vadd.f32 %v3463, 1.0
        %v3976 = vadd.f32 %v3464, 1.0
        %v3977 = vadd.f32 %v3465, 1.0
        %v3978 = vadd.f32 %v3466, 1.0
        %v3979 = vadd.f32 %v3467, 1.0
        %v3980 = vadd.f32 %v3468, 1.0
        %v3981 = vadd.f32 %v3469, 1.0
        %v3982 = vadd.f32 %v3470, 1.0
        %v3983 = vadd.f32 %v3471, 1.0
        %v3984 = vadd.f32 %v3472, 1.0
        %v3985 = vadd.f32 %v3473, 1.0
        %v3986 = vadd.f32 %v3474, 1.0
        %v3987 = vadd.f32 %v3475, 1.0
        %v3988 = vadd.f32 %v3476, 1.0
        %v3989 = vadd.f32 %v3477, 1.0
        %v3990 = vadd.f32 %v3478, 1.0
        %v3991 = vadd.f32 %v3479, 1.0
        %v3992 = vadd.f32 %v3480, 1.0
        %v3993 = vadd.f32 %v3481, 1.0
        %v3994 = vadd.f32 %v3482, 1.0
        %v3995 = vadd.f32 %v3483, 1.0
        %v3996 = vadd.f32 %v3484, 1.0
        %v3997 = vadd.f32 %v3485, 1.0
        %v3998 = vadd.f32 %v3486, 1.0
        %v3999 = vadd.f32 %v3487, 1.0
        %v4000 = vadd.f32 %v3488, 1.0
        %v4001 = vadd.f32 %v3489, 1.0
        %v4002 = vadd.f32 %v3490, 1.0
        %v4003 = vadd.f32 %v3491, 1.0
        %v4004 = vadd.f32 %v3492, 1.0
        %v4005 = vadd.f32 %v3493, 1.0
        %v4006 = vadd.f32 %v3494, 1.0
        %v4007 = vadd.f32 %v3495, 1.0
        %v4008 = vadd.f32 %v3496, 1.0
        %v4009 = vadd.f32 %v3497, 1.0
        %v4010 = vadd.f32 %v3498, 1.0
        %v4011 = vadd.f32 %v3499, 1.0
        %v4012 = vadd.f32 %v3500, 1.0
        %v4013 = vadd.f32 %v3501, 1.0
        %v4014 = vadd.f32 %v3502, 1.0
        %v4015 = vadd.f32 %v3503, 1.0
        %v4016 = vadd.f32 %v3504, 1.0
        %v4017 = vadd.f32 %v3505, 1.0
        %v4018 = vadd.f32 %v3506, 1.0
        %v4019 = vadd.f32 %v3507, 1.0
        %v4020 = vadd.f32 %v3508, 1.0
        %v4021 = vadd.f32 %v3509, 1.0
        %v4022 = vadd.f32 %v3510, 1.0
        %v4023 = vadd.f32 %v3511, 1.0
        %v4024 = vadd.f32 %v3512, 1.0
        %v4025 = vadd.f32 %v3513, 1.0
        %v4026 = vadd.f32 %v3514, 1.0
        %v4027 = vadd.f32 %v3515, 1.0
        %v4028 = vadd.f32 %v3516, 1.0
        %v4029 = vadd.f32 %v3517, 1.0
        %v4030 = vadd.f32 %v3518, 1.0
        %v4031 = vadd.f32 %v3519, 1.0
        %v4032 = vadd.f32 %v3520, 1.0
        %v4033 = vadd.f32 %v3521, 1.0
        %v4034 = vadd.f32 %v3522, 1.0
        %v4035 = vadd.f32 %v3523, 1.0
        %v4036 = vadd.f32 %v3524, 1.0
        %v4037 = vadd.f32 %v3525, 1.0
        %v4038 = vadd.f32 %v3526, 1.0
        %v4039 = vadd.f32 %v3527, 1.0
        %v4040 = vadd.f32 %v3528, 1.0
        %v4041 = vadd.f32 %v3529, 1.0
        %v4042 = vadd.f32 %v3530, 1.0
        %v4043 = vadd.f32 %v3531, 1.0
        %v4044 = vadd.f32 %v3532, 1.0
        %v4045 = vadd.f32 %v3533, 1.0
        %v4046 = vadd.f32 %v3534, 1.0
        %v4047 = vadd.f32 %v3535, 1.0
        %v4048 = vadd.f32 %v3536, 1.0
        %v4049 = vadd.f32 %v3537, 1.0
        %v4050 = vadd.f32 %v3538, 1.0
        %v4051 = vadd.f32 %v3539, 1.0
        %v4052 = vadd.f32 %v3540, 1.0
        %v4053 = vadd.f32 %v3541, 1.0
        %v4054 = vadd.f32 %v3542, 1.0
        %v4055 = vadd.f32 %v3543, 1.0
        %v4056 = vadd.f32 %v3544, 1.0
        %v4057 = vadd.f32 %v3545, 1.0
        %v4058 = vadd.f32 %v3546, 1.0
        %v4059 = vadd.f32 %v3547, 1.0
        %v4060 = vadd.f32 %v3548, 1.0
        %v4061 = vadd.f32 %v3549, 1.0
        %v4062 = vadd.f32 %v3550, 1.0
        %v4063 = vadd.f32 %v3551, 1.0
        %v4064 = vadd.f32 %v3552, 1.0
        %v4065 = vadd.f32 %v3553, 1.0
        %v4066 = vadd.f32 %v3554, 1.0
        %v4067 = vadd.f32 %v3555, 1.0
        %v4068 = vadd.f32 %v3556, 1.0
        %v4069 = vadd.f32 %v3557, 1.0
        %v4070 = vadd.f32 %v3558, 1.0
        %v4071 = vadd.f32 %v3559, 1.0
        %v4072 = vadd.f32 %v3560, 1.0
        %v4073 = vadd.f32 %v3561, 1.0
        %v4074 = vadd.f32 %v3562, 1.0
        %v4075 = vadd.f32 %v3563, 1.0
        %v4076 = vadd.f32 %v3564, 1.0
        %v4077 = vadd.f32 %v3565, 1.0
        %v4078 = vadd.f32 %v3566, 1.0
        %v4079 = vadd.f32 %v3567, 1.0
        %v4080 = vadd.f32 %v3568, 1.0
        %v4081 = vadd.f32 %v3569, 1.0
        %v4082 = vadd.f32 %v3570, 1.0
        %v4083 = vadd.f32 %v3571, 1.0
        %v4084 = vadd.f32 %v3572, 1.0
        %v4085 = vadd.f32 %v3573, 1.0
        %v4086 = vadd.f32 %v3574, 1.0
        %v4087 = vadd.f32 %v3575, 1.0
        %v4088 = vadd.f32 %v3576, 1.0
        %v4089 = vadd.f32 %v3577, 1.0
        %v4090 = vadd.f32 %v3578, 1.0
        %v4091 = vadd.f32 %v3579, 1.0
        %v4092 = vadd.f32 %v3580, 1.0
        %v4093 = vadd.f32 %v3581, 1.0
        %v4094 = vadd.f32 %v3582, 1.0
        %v4095 = vadd.f32 %v3583, 1.0
        %v4096 = vadd.f32 %v3584, 1.0
        %v4097 = vadd.f32 %v3585, 1.0
        %v4098 = vadd.f32 %v3586, 1.0
        %v4099 = vadd.f32 %v3587, 1.0
        %v4100 = vadd.f32 %v3588, 1.0
        %v4101 = vadd.f32 %v3589, 1.0
        %v4102 = vadd.f32 %v3590, 1.0
        %v4103 = vadd.f32 %v3591, 1.0
        %v4104 = vadd.f32 %v3592, 1.0
        %v4105 = vadd.f32 %v3593, 1.0
        %v4106 = vadd.f32 %v3594, 1.0
        %v4107 = vadd.f32 %v3595, 1.0
        %v4108 = vadd.f32 %v3596, 1.0
        %v4109 = vadd.f32 %v3597, 1.0
        %v4110 = vadd.f32 %v3598, 1.0
        %v4111 = vadd.f32 %v3599, 1.0
        %v4112 = vadd.f32 %v3600, 1.0
        %v4113 = vadd.f32 %v3601, 1.0
        %v4114 = vadd.f32 %v3602, 1.0
        %v4115 = vadd.f32 %v3603, 1.0
        %v4116 = vadd.f32 %v3604, 1.0
        %v4117 = vadd.f32 %v3605, 1.0
        %v4118 = vadd.f32 %v3606, 1.0
        %v4119 = vadd.f32 %v3607, 1.0
        %v4120 = vadd.f32 %v3608, 1.0
        %v4121 = vadd.f32 %v3609, 1.0
        %v4122 = vadd.f32 %v3610, 1.0
        %v4123 = vadd.f32 %v3611, 1.0
        %v4124 = vadd.f32 %v3612, 1.0
        %v4125 = vadd.f32 %v3613, 1.0
        %v4126 = vadd.f32 %v3614, 1.0
        %v4127 = vadd.f32 %v3615, 1.0
        %v4128 = vadd.f32 %v3616, 1.0
        %v4129 = vadd.f32 %v3617, 1.0
        %v4130 = vadd.f32 %v3618, 1.0
        %v4131 = vadd.f32 %v3619, 1.0
        %v4132 = vadd.f32 %v3620, 1.0
        %v4133 = vadd.f32 %v3621, 1.0
        %v4134 = vadd.f32 %v3622, 1.0
        %v4135 = vadd.f32 %v3623, 1.0
        %v4136 = vadd.f32 %v3624, 1.0
        %v4137 = vadd.f32 %v3625, 1.0
        %v4138 = vadd.f32 %v3626, 1.0
        %v4139 = vadd.f32 %v3627, 1.0
        %v4140 = vadd.f32 %v3628, 1.0
        %v4141 = vadd.f32 %v3629, 1.0
        %v4142 = vadd.f32 %v3630, 1.0
        %v4143 = vadd.f32 %v3631, 1.0
        %v4144 = vadd.f32 %v3632, 1.0
        %v4145 = vadd.f32 %v3633, 1.0
        %v4146 = vadd.f32 %v3634, 1.0
        %v4147 = vadd.f32 %v3635, 1.0
        %v4148 = vadd.f32 %v3636, 1.0
        %v4149 = vadd.f32 %v3637, 1.0
        %v4150 = vadd.f32 %v3638, 1.0
        %v4151 = vadd.f32 %v3639, 1.0
        %v4152 = vadd.f32 %v3640, 1.0
        %v4153 = vadd.f32 %v3641, 1.0
        %v4154 = vadd.f32 %v3642, 1.0
        %v4155 = vadd.f32 %v3643, 1.0
        %v4156 = vadd.f32 %v3644, 1.0
        %v4157 = vadd.f32 %v3645, 1.0
        %v4158 = vadd.f32 %v3646, 1.0
        %v4159 = vadd.f32 %v3647, 1.0
        %v4160 = vadd.f32 %v3648, 1.0
        %v4161 = vadd.f32 %v3649, 1.0
        %v4162 = vadd.f32 %v3650, 1.0
        %v4163 = vadd.f32 %v3651, 1.0
        %v4164 = vadd.f32 %v3652, 1.0
        %v4165 = vadd.f32 %v3653, 1.0
        %v4166 = vadd.f32 %v3654, 1.0
        %v4167 = vadd.f32 %v3655, 1.0
        %v4168 = vadd.f32 %v3656, 1.0
        %v4169 = vadd.f32 %v3657, 1.0
        %v4170 = vadd.f32 %v3658, 1.0
        %v4171 = vadd.f32 %v3659, 1.0
        %v4172 = vadd.f32 %v3660, 1.0
        %v4173 = vadd.f32 %v3661, 1.0
        %v4174 = vadd.f32 %v3662, 1.0
        %v4175 = vadd.f32 %v3663, 1.0
        %v4176 = vadd.f32 %v3664, 1.0
        %v4177 = vadd.f32 %v3665, 1.0
        %v4178 = vadd.f32 %v3666, 1.0
        %v4179 = vadd.f32 %v3667, 1.0
        %v4180 = vadd.f32 %v3668, 1.0
        %v4181 = vadd.f32 %v3669, 1.0
        %v4182 = vadd.f32 %v3670, 1.0
        %v4183 = vadd.f32 %v3671, 1.0
        %v4184 = vadd.f32 %v3672, 1.0
        %v4185 = vadd.f32 %v3673, 1.0
        %v4186 = vadd.f32 %v3674, 1.0
        %v4187 = vadd.f32 %v3675, 1.0
        %v4188 = vadd.f32 %v3676, 1.0
        %v4189 = vadd.f32 %v3677, 1.0
        %v4190 = vadd.f32 %v3678, 1.0
        %v4191 = vadd.f32 %v3679, 1.0
        %v4192 = vadd.f32 %v3680, 1.0
        %v4193 = vadd.f32 %v3681, 1.0
        %v4194 = vadd.f32 %v3682, 1.0
        %v4195 = vadd.f32 %v3683, 1.0
        %v4196 = vadd.f32 %v3684, 1.0
        %v4197 = vadd.f32 %v3685, 1.0
        %v4198 = vadd.f32 %v3686, 1.0
        %v4199 = vadd.f32 %v3687, 1.0
        %v4200 = vadd.f32 %v3688, 1.0
        %v4201 = vadd.f32 %v3689, 1.0
        %v4202 = vadd.f32 %v3690, 1.0
        %v4203 = vadd.f32 %v3691, 1.0
        %v4204 = vadd.f32 %v3692, 1.0
        %v4205 = vadd.f32 %v3693, 1.0
        %v4206 = vadd.f32 %v3694, 1.0
        %v4207 = vadd.f32 %v3695, 1.0
        %v4208 = vadd.f32 %v3696, 1.0
        %v4209 = vadd.f32 %v3697, 1.0
        %v4210 = vadd.f32 %v3698, 1.0
        %v4211 = vadd.f32 %v3699, 1.0
        %v4212 = vadd.f32 %v3700, 1.0
        %v4213 = vadd.f32 %v3701, 1.0
        %v4214 = vadd.f32 %v3702, 1.0
        %v4215 = vadd.f32 %v3703, 1.0
        %v4216 = vadd.f32 %v3704, 1.0
        %v4217 = vadd.f32 %v3705, 1.0
        %v4218 = vadd.f32 %v3706, 1.0
        %v4219 = vadd.f32 %v3707, 1.0
        %v4220 = vadd.f32 %v3708, 1.0
        %v4221 = vadd.f32 %v3709, 1.0
        %v4222 = vadd.f32 %v3710, 1.0
        %v4223 = vadd.f32 %v3711, 1.0
        %v4224 = vadd.f32 %v3712, 1.0
        %v4225 = vadd.f32 %v3713, 1.0
        %v4226 = vadd.f32 %v3714, 1.0
        %v4227 = vadd.f32 %v3715, 1.0
        %v4228 = vadd.f32 %v3716, 1.0
        %v4229 = vadd.f32 %v3717, 1.0
        %v4230 = vadd.f32 %v3718, 1.0
        %v4231 = vadd.f32 %v3719, 1.0
        %v4232 = vadd.f32 %v3720, 1.0
        %v4233 = vadd.f32 %v3721, 1.0
        %v4234 = vadd.f32 %v3722, 1.0
        %v4235 = vadd.f32 %v3723, 1.0
        %v4236 = vadd.f32 %v3724, 1.0
        %v4237 = vadd.f32 %v3725, 1.0
        %v4238 = vadd.f32 %v3726, 1.0
        %v4239 = vadd.f32 %v3727, 1.0
        %v4240 = vadd.f32 %v3728, 1.0
        %v4241 = vadd.f32 %v3729, 1.0
        %v4242 = vadd.f32 %v3730, 1.0
        %v4243 = vadd.f32 %v3731, 1.0
        %v4244 = vadd.f32 %v3732, 1.0
        %v4245 = vadd.f32 %v3733, 1.0
        %v4246 = vadd.f32 %v3734, 1.0
        %v4247 = vadd.f32 %v3735, 1.0
        %v4248 = vadd.f32 %v3736, 1.0
        %v4249 = vadd.f32 %v3737, 1.0
        %v4250 = vadd.f32 %v3738, 1.0
        %v4251 = vadd.f32 %v3739, 1.0
        %v4252 = vadd.f32 %v3740, 1.0
        %v4253 = vadd.f32 %v3741, 1.0
        %v4254 = vadd.f32 %v3742, 1.0
        %v4255 = vadd.f32 %v3743, 1.0
        %v4256 = vadd.f32 %v3744, 1.0
        %v4257 = vadd.f32 %v3745, 1.0
        %v4258 = vadd.f32 %v3746, 1.0
        %v4259 = vadd.f32 %v3747, 1.0
        %v4260 = vadd.f32 %v3748, 1.0
        %v4261 = vadd.f32 %v3749, 1.0
        %v4262 = vadd.f32 %v3750, 1.0
        %v4263 = vadd.f32 %v3751, 1.0
        %v4264 = vadd.f32 %v3752, 1.0
        %v4265 = vadd.f32 %v3753, 1.0
        %v4266 = vadd.f32 %v3754, 1.0
        %v4267 = vadd.f32 %v3755, 1.0
        %v4268 = vadd.f32 %v3756, 1.0
        %v4269 = vadd.f32 %v3757, 1.0
        %v4270 = vadd.f32 %v3758, 1.0
        %v4271 = vadd.f32 %v3759, 1.0
        %v4272 = vadd.f32 %v3760, 1.0
        %v4273 = vadd.f32 %v3761, 1.0
        %v4274 = vadd.f32 %v3762, 1.0
        %v4275 = vadd.f32 %v3763, 1.0
        %v4276 = vadd.f32 %v3764, 1.0
        %v4277 = vadd.f32 %v3765, 1.0
        %v4278 = vadd.f32 %v3766, 1.0
        %v4279 = vadd.f32 %v3767, 1.0
        %v4280 = vadd.f32 %v3768, 1.0
        %v4281 = vadd.f32 %v3769, 1.0
        %v4282 = vadd.f32 %v3770, 1.0
        %v4283 = vadd.f32 %v3771, 1.0
        %v4284 = vadd.f32 %v3772, 1.0
        %v4285 = vadd.f32 %v3773, 1.0
        %v4286 = vadd.f32 %v3774, 1.0
        %v4287 = vadd.f32 %v3775, 1.0
        %v4288 = vadd.f32 %v3776, 1.0
        %v4289 = vadd.f32 %v3777, 1.0
        %v4290 = vadd.f32 %v3778, 1.0
        %v4291 = vadd.f32 %v3779, 1.0
        %v4292 = vadd.f32 %v3780, 1.0
        %v4293 = vadd.f32 %v3781, 1.0
        %v4294 = vadd.f32 %v3782, 1.0
        %v4295 = vadd.f32 %v3783, 1.0
        %v4296 = vadd.f32 %v3784, 1.0
        %v4297 = vadd.f32 %v3785, 1.0
        %v4298 = vadd.f32 %v3786, 1.0
        %v4299 = vadd.f32 %v3787, 1.0
        %v4300 = vadd.f32 %v3788, 1.0
        %v4301 = vadd.f32 %v3789, 1.0
        %v4302 = vadd.f32 %v3790, 1.0
        %v4303 = vadd.f32 %v3791, 1.0
        %v4304 = vadd.f32 %v3792, 1.0
        %v4305 = vadd.f32 %v3793, 1.0
        %v4306 = vadd.f32 %v3794, 1.0
        %v4307 = vadd.f32 %v3795, 1.0
        %v4308 = vadd.f32 %v3796, 1.0
        %v4309 = vadd.f32 %v3797, 1.0
        %v4310 = vadd.f32 %v3798, 1.0
        %v4311 = vadd.f32 %v3799, 1.0
        %v4312 = vadd.f32 %v3800, 1.0
        %v4313 = vadd.f32 %v3801, 1.0
        %v4314 = vadd.f32 %v3802, 1.0
        %v4315 = vadd.f32 %v3803, 1.0
        %v4316 = vadd.f32 %v3804, 1.0
        %v4317 = vadd.f32 %v3805, 1.0
        %v4318 = vadd.f32 %v3806, 1.0
        %v4319 = vadd.f32 %v3807, 1.0
        %v4320 = vadd.f32 %v3808, 1.0
        %v4321 = vadd.f32 %v3809, 1.0
        %v4322 = vadd.f32 %v3810, 1.0
        %v4323 = vadd.f32 %v3811, 1.0
        %v4324 = vadd.f32 %v3812, 1.0
        %v4325 = vadd.f32 %v3813, 1.0
        %v4326 = vadd.f32 %v3814, 1.0
        %v4327 = vadd.f32 %v3815, 1.0
        %v4328 = vadd.f32 %v3816, 1.0
        %v4329 = vadd.f32 %v3817, 1.0
        %v4330 = vadd.f32 %v3818, 1.0
        %v4331 = vadd.f32 %v3819, 1.0
        %v4332 = vadd.f32 %v3820, 1.0
        %v4333 = vadd.f32 %v3821, 1.0
        %v4334 = vadd.f32 %v3822, 1.0
        %v4335 = vadd.f32 %v3823, 1.0
        %v4336 = vadd.f32 %v3824, 1.0
        %v4337 = vadd.f32 %v3825, 1.0
        %v4338 = vadd.f32 %v3826, 1.0
        %v4339 = vadd.f32 %v3827, 1.0
        %v4340 = vadd.f32 %v3828, 1.0
        %v4341 = vadd.f32 %v3829, 1.0
        %v4342 = vadd.f32 %v3830, 1.0
        %v4343 = vadd.f32 %v3831, 1.0
        %v4344 = vadd.f32 %v3832, 1.0
        %v4345 = vadd.f32 %v3833, 1.0
        %v4346 = vadd.f32 %v3834, 1.0
        %v4347 = vadd.f32 %v3835, 1.0
        %v4348 = vadd.f32 %v3836, 1.0
        %v4349 = vadd.f32 %v3837, 1.0
        %v4350 = vadd.f32 %v3838, 1.0
        %v4351 = vadd.f32 %v3839, 1.0
        %v4352 = vadd.f32 %v3840, 1.0
        %v4353 = vadd.f32 %v3841, 1.0
        %v4354 = vadd.f32 %v3842, 1.0
        %v4355 = vadd.f32 %v3843, 1.0
        %v4356 = vadd.f32 %v3844, 1.0
        %v4357 = vadd.f32 %v3845, 1.0
        %v4358 = vadd.f32 %v3846, 1.0
        %v4359 = vadd.f32 %v3847, 1.0
        %v4360 = vadd.f32 %v3848, 1.0
        %v4361 = vadd.f32 %v3849, 1.0
        %v4362 = vadd.f32 %v3850, 1.0
        %v4363 = vadd.f32 %v3851, 1.0
        %v4364 = vadd.f32 %v3852, 1.0
        %v4365 = vmul.f32 %v2317, %v3853
        %v4366 = vmul.f32 %v2318, %v3854
        %v4367 = vmul.f32 %v2319, %v3855
        %v4368 = vmul.f32 %v2320, %v3856
        %v4369 = vmul.f32 %v2321, %v3857
        %v4370 = vmul.f32 %v2322, %v3858
        %v4371 = vmul.f32 %v2323, %v3859
        %v4372 = vmul.f32 %v2324, %v3860
        %v4373 = vmul.f32 %v2325, %v3861
        %v4374 = vmul.f32 %v2326, %v3862
        %v4375 = vmul.f32 %v2327, %v3863
        %v4376 = vmul.f32 %v2328, %v3864
        %v4377 = vmul.f32 %v2329, %v3865
        %v4378 = vmul.f32 %v2330, %v3866
        %v4379 = vmul.f32 %v2331, %v3867
        %v4380 = vmul.f32 %v2332, %v3868
        %v4381 = vmul.f32 %v2333, %v3869
        %v4382 = vmul.f32 %v2334, %v3870
        %v4383 = vmul.f32 %v2335, %v3871
        %v4384 = vmul.f32 %v2336, %v3872
        %v4385 = vmul.f32 %v2337, %v3873
        %v4386 = vmul.f32 %v2338, %v3874
        %v4387 = vmul.f32 %v2339, %v3875
        %v4388 = vmul.f32 %v2340, %v3876
        %v4389 = vmul.f32 %v2341, %v3877
        %v4390 = vmul.f32 %v2342, %v3878
        %v4391 = vmul.f32 %v2343, %v3879
        %v4392 = vmul.f32 %v2344, %v3880
        %v4393 = vmul.f32 %v2345, %v3881
        %v4394 = vmul.f32 %v2346, %v3882
        %v4395 = vmul.f32 %v2347, %v3883
        %v4396 = vmul.f32 %v2348, %v3884
        %v4397 = vmul.f32 %v2349, %v3885
        %v4398 = vmul.f32 %v2350, %v3886
        %v4399 = vmul.f32 %v2351, %v3887
        %v4400 = vmul.f32 %v2352, %v3888
        %v4401 = vmul.f32 %v2353, %v3889
        %v4402 = vmul.f32 %v2354, %v3890
        %v4403 = vmul.f32 %v2355, %v3891
        %v4404 = vmul.f32 %v2356, %v3892
        %v4405 = vmul.f32 %v2357, %v3893
        %v4406 = vmul.f32 %v2358, %v3894
        %v4407 = vmul.f32 %v2359, %v3895
        %v4408 = vmul.f32 %v2360, %v3896
        %v4409 = vmul.f32 %v2361, %v3897
        %v4410 = vmul.f32 %v2362, %v3898
        %v4411 = vmul.f32 %v2363, %v3899
        %v4412 = vmul.f32 %v2364, %v3900
        %v4413 = vmul.f32 %v2365, %v3901
        %v4414 = vmul.f32 %v2366, %v3902
        %v4415 = vmul.f32 %v2367, %v3903
        %v4416 = vmul.f32 %v2368, %v3904
        %v4417 = vmul.f32 %v2369, %v3905
        %v4418 = vmul.f32 %v2370, %v3906
        %v4419 = vmul.f32 %v2371, %v3907
        %v4420 = vmul.f32 %v2372, %v3908
        %v4421 = vmul.f32 %v2373, %v3909
        %v4422 = vmul.f32 %v2374, %v3910
        %v4423 = vmul.f32 %v2375, %v3911
        %v4424 = vmul.f32 %v2376, %v3912
        %v4425 = vmul.f32 %v2377, %v3913
        %v4426 = vmul.f32 %v2378, %v3914
        %v4427 = vmul.f32 %v2379, %v3915
        %v4428 = vmul.f32 %v2380, %v3916
        %v4429 = vmul.f32 %v2381, %v3917
        %v4430 = vmul.f32 %v2382, %v3918
        %v4431 = vmul.f32 %v2383, %v3919
        %v4432 = vmul.f32 %v2384, %v3920
        %v4433 = vmul.f32 %v2385, %v3921
        %v4434 = vmul.f32 %v2386, %v3922
        %v4435 = vmul.f32 %v2387, %v3923
        %v4436 = vmul.f32 %v2388, %v3924
        %v4437 = vmul.f32 %v2389, %v3925
        %v4438 = vmul.f32 %v2390, %v3926
        %v4439 = vmul.f32 %v2391, %v3927
        %v4440 = vmul.f32 %v2392, %v3928
        %v4441 = vmul.f32 %v2393, %v3929
        %v4442 = vmul.f32 %v2394, %v3930
        %v4443 = vmul.f32 %v2395, %v3931
        %v4444 = vmul.f32 %v2396, %v3932
        %v4445 = vmul.f32 %v2397, %v3933
        %v4446 = vmul.f32 %v2398, %v3934
        %v4447 = vmul.f32 %v2399, %v3935
        %v4448 = vmul.f32 %v2400, %v3936
        %v4449 = vmul.f32 %v2401, %v3937
        %v4450 = vmul.f32 %v2402, %v3938
        %v4451 = vmul.f32 %v2403, %v3939
        %v4452 = vmul.f32 %v2404, %v3940
        %v4453 = vmul.f32 %v2405, %v3941
        %v4454 = vmul.f32 %v2406, %v3942
        %v4455 = vmul.f32 %v2407, %v3943
        %v4456 = vmul.f32 %v2408, %v3944
        %v4457 = vmul.f32 %v2409, %v3945
        %v4458 = vmul.f32 %v2410, %v3946
        %v4459 = vmul.f32 %v2411, %v3947
        %v4460 = vmul.f32 %v2412, %v3948
        %v4461 = vmul.f32 %v2413, %v3949
        %v4462 = vmul.f32 %v2414, %v3950
        %v4463 = vmul.f32 %v2415, %v3951
        %v4464 = vmul.f32 %v2416, %v3952
        %v4465 = vmul.f32 %v2417, %v3953
        %v4466 = vmul.f32 %v2418, %v3954
        %v4467 = vmul.f32 %v2419, %v3955
        %v4468 = vmul.f32 %v2420, %v3956
        %v4469 = vmul.f32 %v2421, %v3957
        %v4470 = vmul.f32 %v2422, %v3958
        %v4471 = vmul.f32 %v2423, %v3959
        %v4472 = vmul.f32 %v2424, %v3960
        %v4473 = vmul.f32 %v2425, %v3961
        %v4474 = vmul.f32 %v2426, %v3962
        %v4475 = vmul.f32 %v2427, %v3963
        %v4476 = vmul.f32 %v2428, %v3964
        %v4477 = vmul.f32 %v2429, %v3965
        %v4478 = vmul.f32 %v2430, %v3966
        %v4479 = vmul.f32 %v2431, %v3967
        %v4480 = vmul.f32 %v2432, %v3968
        %v4481 = vmul.f32 %v2433, %v3969
        %v4482 = vmul.f32 %v2434, %v3970
        %v4483 = vmul.f32 %v2435, %v3971
        %v4484 = vmul.f32 %v2436, %v3972
        %v4485 = vmul.f32 %v2437, %v3973
        %v4486 = vmul.f32 %v2438, %v3974
        %v4487 = vmul.f32 %v2439, %v3975
        %v4488 = vmul.f32 %v2440, %v3976
        %v4489 = vmul.f32 %v2441, %v3977
        %v4490 = vmul.f32 %v2442, %v3978
        %v4491 = vmul.f32 %v2443, %v3979
        %v4492 = vmul.f32 %v2444, %v3980
        %v4493 = vmul.f32 %v2445, %v3981
        %v4494 = vmul.f32 %v2446, %v3982
        %v4495 = vmul.f32 %v2447, %v3983
        %v4496 = vmul.f32 %v2448, %v3984
        %v4497 = vmul.f32 %v2449, %v3985
        %v4498 = vmul.f32 %v2450, %v3986
        %v4499 = vmul.f32 %v2451, %v3987
        %v4500 = vmul.f32 %v2452, %v3988
        %v4501 = vmul.f32 %v2453, %v3989
        %v4502 = vmul.f32 %v2454, %v3990
        %v4503 = vmul.f32 %v2455, %v3991
        %v4504 = vmul.f32 %v2456, %v3992
        %v4505 = vmul.f32 %v2457, %v3993
        %v4506 = vmul.f32 %v2458, %v3994
        %v4507 = vmul.f32 %v2459, %v3995
        %v4508 = vmul.f32 %v2460, %v3996
        %v4509 = vmul.f32 %v2461, %v3997
        %v4510 = vmul.f32 %v2462, %v3998
        %v4511 = vmul.f32 %v2463, %v3999
        %v4512 = vmul.f32 %v2464, %v4000
        %v4513 = vmul.f32 %v2465, %v4001
        %v4514 = vmul.f32 %v2466, %v4002
        %v4515 = vmul.f32 %v2467, %v4003
        %v4516 = vmul.f32 %v2468, %v4004
        %v4517 = vmul.f32 %v2469, %v4005
        %v4518 = vmul.f32 %v2470, %v4006
        %v4519 = vmul.f32 %v2471, %v4007
        %v4520 = vmul.f32 %v2472, %v4008
        %v4521 = vmul.f32 %v2473, %v4009
        %v4522 = vmul.f32 %v2474, %v4010
        %v4523 = vmul.f32 %v2475, %v4011
        %v4524 = vmul.f32 %v2476, %v4012
        %v4525 = vmul.f32 %v2477, %v4013
        %v4526 = vmul.f32 %v2478, %v4014
        %v4527 = vmul.f32 %v2479, %v4015
        %v4528 = vmul.f32 %v2480, %v4016
        %v4529 = vmul.f32 %v2481, %v4017
        %v4530 = vmul.f32 %v2482, %v4018
        %v4531 = vmul.f32 %v2483, %v4019
        %v4532 = vmul.f32 %v2484, %v4020
        %v4533 = vmul.f32 %v2485, %v4021
        %v4534 = vmul.f32 %v2486, %v4022
        %v4535 = vmul.f32 %v2487, %v4023
        %v4536 = vmul.f32 %v2488, %v4024
        %v4537 = vmul.f32 %v2489, %v4025
        %v4538 = vmul.f32 %v2490, %v4026
        %v4539 = vmul.f32 %v2491, %v4027
        %v4540 = vmul.f32 %v2492, %v4028
        %v4541 = vmul.f32 %v2493, %v4029
        %v4542 = vmul.f32 %v2494, %v4030
        %v4543 = vmul.f32 %v2495, %v4031
        %v4544 = vmul.f32 %v2496, %v4032
        %v4545 = vmul.f32 %v2497, %v4033
        %v4546 = vmul.f32 %v2498, %v4034
        %v4547 = vmul.f32 %v2499, %v4035
        %v4548 = vmul.f32 %v2500, %v4036
        %v4549 = vmul.f32 %v2501, %v4037
        %v4550 = vmul.f32 %v2502, %v4038
        %v4551 = vmul.f32 %v2503, %v4039
        %v4552 = vmul.f32 %v2504, %v4040
        %v4553 = vmul.f32 %v2505, %v4041
        %v4554 = vmul.f32 %v2506, %v4042
        %v4555 = vmul.f32 %v2507, %v4043
        %v4556 = vmul.f32 %v2508, %v4044
        %v4557 = vmul.f32 %v2509, %v4045
        %v4558 = vmul.f32 %v2510, %v4046
        %v4559 = vmul.f32 %v2511, %v4047
        %v4560 = vmul.f32 %v2512, %v4048
        %v4561 = vmul.f32 %v2513, %v4049
        %v4562 = vmul.f32 %v2514, %v4050
        %v4563 = vmul.f32 %v2515, %v4051
        %v4564 = vmul.f32 %v2516, %v4052
        %v4565 = vmul.f32 %v2517, %v4053
        %v4566 = vmul.f32 %v2518, %v4054
        %v4567 = vmul.f32 %v2519, %v4055
        %v4568 = vmul.f32 %v2520, %v4056
        %v4569 = vmul.f32 %v2521, %v4057
        %v4570 = vmul.f32 %v2522, %v4058
        %v4571 = vmul.f32 %v2523, %v4059
        %v4572 = vmul.f32 %v2524, %v4060
        %v4573 = vmul.f32 %v2525, %v4061
        %v4574 = vmul.f32 %v2526, %v4062
        %v4575 = vmul.f32 %v2527, %v4063
        %v4576 = vmul.f32 %v2528, %v4064
        %v4577 = vmul.f32 %v2529, %v4065
        %v4578 = vmul.f32 %v2530, %v4066
        %v4579 = vmul.f32 %v2531, %v4067
        %v4580 = vmul.f32 %v2532, %v4068
        %v4581 = vmul.f32 %v2533, %v4069
        %v4582 = vmul.f32 %v2534, %v4070
        %v4583 = vmul.f32 %v2535, %v4071
        %v4584 = vmul.f32 %v2536, %v4072
        %v4585 = vmul.f32 %v2537, %v4073
        %v4586 = vmul.f32 %v2538, %v4074
        %v4587 = vmul.f32 %v2539, %v4075
        %v4588 = vmul.f32 %v2540, %v4076
        %v4589 = vmul.f32 %v2541, %v4077
        %v4590 = vmul.f32 %v2542, %v4078
        %v4591 = vmul.f32 %v2543, %v4079
        %v4592 = vmul.f32 %v2544, %v4080
        %v4593 = vmul.f32 %v2545, %v4081
        %v4594 = vmul.f32 %v2546, %v4082
        %v4595 = vmul.f32 %v2547, %v4083
        %v4596 = vmul.f32 %v2548, %v4084
        %v4597 = vmul.f32 %v2549, %v4085
        %v4598 = vmul.f32 %v2550, %v4086
        %v4599 = vmul.f32 %v2551, %v4087
        %v4600 = vmul.f32 %v2552, %v4088
        %v4601 = vmul.f32 %v2553, %v4089
        %v4602 = vmul.f32 %v2554, %v4090
        %v4603 = vmul.f32 %v2555, %v4091
        %v4604 = vmul.f32 %v2556, %v4092
        %v4605 = vmul.f32 %v2557, %v4093
        %v4606 = vmul.f32 %v2558, %v4094
        %v4607 = vmul.f32 %v2559, %v4095
        %v4608 = vmul.f32 %v2560, %v4096
        %v4609 = vmul.f32 %v2561, %v4097
        %v4610 = vmul.f32 %v2562, %v4098
        %v4611 = vmul.f32 %v2563, %v4099
        %v4612 = vmul.f32 %v2564, %v4100
        %v4613 = vmul.f32 %v2565, %v4101
        %v4614 = vmul.f32 %v2566, %v4102
        %v4615 = vmul.f32 %v2567, %v4103
        %v4616 = vmul.f32 %v2568, %v4104
        %v4617 = vmul.f32 %v2569, %v4105
        %v4618 = vmul.f32 %v2570, %v4106
        %v4619 = vmul.f32 %v2571, %v4107
        %v4620 = vmul.f32 %v2572, %v4108
        %v4621 = vmul.f32 %v2573, %v4109
        %v4622 = vmul.f32 %v2574, %v4110
        %v4623 = vmul.f32 %v2575, %v4111
        %v4624 = vmul.f32 %v2576, %v4112
        %v4625 = vmul.f32 %v2577, %v4113
        %v4626 = vmul.f32 %v2578, %v4114
        %v4627 = vmul.f32 %v2579, %v4115
        %v4628 = vmul.f32 %v2580, %v4116
        %v4629 = vmul.f32 %v2581, %v4117
        %v4630 = vmul.f32 %v2582, %v4118
        %v4631 = vmul.f32 %v2583, %v4119
        %v4632 = vmul.f32 %v2584, %v4120
        %v4633 = vmul.f32 %v2585, %v4121
        %v4634 = vmul.f32 %v2586, %v4122
        %v4635 = vmul.f32 %v2587, %v4123
        %v4636 = vmul.f32 %v2588, %v4124
        %v4637 = vmul.f32 %v2589, %v4125
        %v4638 = vmul.f32 %v2590, %v4126
        %v4639 = vmul.f32 %v2591, %v4127
        %v4640 = vmul.f32 %v2592, %v4128
        %v4641 = vmul.f32 %v2593, %v4129
        %v4642 = vmul.f32 %v2594, %v4130
        %v4643 = vmul.f32 %v2595, %v4131
        %v4644 = vmul.f32 %v2596, %v4132
        %v4645 = vmul.f32 %v2597, %v4133
        %v4646 = vmul.f32 %v2598, %v4134
        %v4647 = vmul.f32 %v2599, %v4135
        %v4648 = vmul.f32 %v2600, %v4136
        %v4649 = vmul.f32 %v2601, %v4137
        %v4650 = vmul.f32 %v2602, %v4138
        %v4651 = vmul.f32 %v2603, %v4139
        %v4652 = vmul.f32 %v2604, %v4140
        %v4653 = vmul.f32 %v2605, %v4141
        %v4654 = vmul.f32 %v2606, %v4142
        %v4655 = vmul.f32 %v2607, %v4143
        %v4656 = vmul.f32 %v2608, %v4144
        %v4657 = vmul.f32 %v2609, %v4145
        %v4658 = vmul.f32 %v2610, %v4146
        %v4659 = vmul.f32 %v2611, %v4147
        %v4660 = vmul.f32 %v2612, %v4148
        %v4661 = vmul.f32 %v2613, %v4149
        %v4662 = vmul.f32 %v2614, %v4150
        %v4663 = vmul.f32 %v2615, %v4151
        %v4664 = vmul.f32 %v2616, %v4152
        %v4665 = vmul.f32 %v2617, %v4153
        %v4666 = vmul.f32 %v2618, %v4154
        %v4667 = vmul.f32 %v2619, %v4155
        %v4668 = vmul.f32 %v2620, %v4156
        %v4669 = vmul.f32 %v2621, %v4157
        %v4670 = vmul.f32 %v2622, %v4158
        %v4671 = vmul.f32 %v2623, %v4159
        %v4672 = vmul.f32 %v2624, %v4160
        %v4673 = vmul.f32 %v2625, %v4161
        %v4674 = vmul.f32 %v2626, %v4162
        %v4675 = vmul.f32 %v2627, %v4163
        %v4676 = vmul.f32 %v2628, %v4164
        %v4677 = vmul.f32 %v2629, %v4165
        %v4678 = vmul.f32 %v2630, %v4166
        %v4679 = vmul.f32 %v2631, %v4167
        %v4680 = vmul.f32 %v2632, %v4168
        %v4681 = vmul.f32 %v2633, %v4169
        %v4682 = vmul.f32 %v2634, %v4170
        %v4683 = vmul.f32 %v2635, %v4171
        %v4684 = vmul.f32 %v2636, %v4172
        %v4685 = vmul.f32 %v2637, %v4173
        %v4686 = vmul.f32 %v2638, %v4174
        %v4687 = vmul.f32 %v2639, %v4175
        %v4688 = vmul.f32 %v2640, %v4176
        %v4689 = vmul.f32 %v2641, %v4177
        %v4690 = vmul.f32 %v2642, %v4178
        %v4691 = vmul.f32 %v2643, %v4179
        %v4692 = vmul.f32 %v2644, %v4180
        %v4693 = vmul.f32 %v2645, %v4181
        %v4694 = vmul.f32 %v2646, %v4182
        %v4695 = vmul.f32 %v2647, %v4183
        %v4696 = vmul.f32 %v2648, %v4184
        %v4697 = vmul.f32 %v2649, %v4185
        %v4698 = vmul.f32 %v2650, %v4186
        %v4699 = vmul.f32 %v2651, %v4187
        %v4700 = vmul.f32 %v2652, %v4188
        %v4701 = vmul.f32 %v2653, %v4189
        %v4702 = vmul.f32 %v2654, %v4190
        %v4703 = vmul.f32 %v2655, %v4191
        %v4704 = vmul.f32 %v2656, %v4192
        %v4705 = vmul.f32 %v2657, %v4193
        %v4706 = vmul.f32 %v2658, %v4194
        %v4707 = vmul.f32 %v2659, %v4195
        %v4708 = vmul.f32 %v2660, %v4196
        %v4709 = vmul.f32 %v2661, %v4197
        %v4710 = vmul.f32 %v2662, %v4198
        %v4711 = vmul.f32 %v2663, %v4199
        %v4712 = vmul.f32 %v2664, %v4200
        %v4713 = vmul.f32 %v2665, %v4201
        %v4714 = vmul.f32 %v2666, %v4202
        %v4715 = vmul.f32 %v2667, %v4203
        %v4716 = vmul.f32 %v2668, %v4204
        %v4717 = vmul.f32 %v2669, %v4205
        %v4718 = vmul.f32 %v2670, %v4206
        %v4719 = vmul.f32 %v2671, %v4207
        %v4720 = vmul.f32 %v2672, %v4208
        %v4721 = vmul.f32 %v2673, %v4209
        %v4722 = vmul.f32 %v2674, %v4210
        %v4723 = vmul.f32 %v2675, %v4211
        %v4724 = vmul.f32 %v2676, %v4212
        %v4725 = vmul.f32 %v2677, %v4213
        %v4726 = vmul.f32 %v2678, %v4214
        %v4727 = vmul.f32 %v2679, %v4215
        %v4728 = vmul.f32 %v2680, %v4216
        %v4729 = vmul.f32 %v2681, %v4217
        %v4730 = vmul.f32 %v2682, %v4218
        %v4731 = vmul.f32 %v2683, %v4219
        %v4732 = vmul.f32 %v2684, %v4220
        %v4733 = vmul.f32 %v2685, %v4221
        %v4734 = vmul.f32 %v2686, %v4222
        %v4735 = vmul.f32 %v2687, %v4223
        %v4736 = vmul.f32 %v2688, %v4224
        %v4737 = vmul.f32 %v2689, %v4225
        %v4738 = vmul.f32 %v2690, %v4226
        %v4739 = vmul.f32 %v2691, %v4227
        %v4740 = vmul.f32 %v2692, %v4228
        %v4741 = vmul.f32 %v2693, %v4229
        %v4742 = vmul.f32 %v2694, %v4230
        %v4743 = vmul.f32 %v2695, %v4231
        %v4744 = vmul.f32 %v2696, %v4232
        %v4745 = vmul.f32 %v2697, %v4233
        %v4746 = vmul.f32 %v2698, %v4234
        %v4747 = vmul.f32 %v2699, %v4235
        %v4748 = vmul.f32 %v2700, %v4236
        %v4749 = vmul.f32 %v2701, %v4237
        %v4750 = vmul.f32 %v2702, %v4238
        %v4751 = vmul.f32 %v2703, %v4239
        %v4752 = vmul.f32 %v2704, %v4240
        %v4753 = vmul.f32 %v2705, %v4241
        %v4754 = vmul.f32 %v2706, %v4242
        %v4755 = vmul.f32 %v2707, %v4243
        %v4756 = vmul.f32 %v2708, %v4244
        %v4757 = vmul.f32 %v2709, %v4245
        %v4758 = vmul.f32 %v2710, %v4246
        %v4759 = vmul.f32 %v2711, %v4247
        %v4760 = vmul.f32 %v2712, %v4248
        %v4761 = vmul.f32 %v2713, %v4249
        %v4762 = vmul.f32 %v2714, %v4250
        %v4763 = vmul.f32 %v2715, %v4251
        %v4764 = vmul.f32 %v2716, %v4252
        %v4765 = vmul.f32 %v2717, %v4253
        %v4766 = vmul.f32 %v2718, %v4254
        %v4767 = vmul.f32 %v2719, %v4255
        %v4768 = vmul.f32 %v2720, %v4256
        %v4769 = vmul.f32 %v2721, %v4257
        %v4770 = vmul.f32 %v2722, %v4258
        %v4771 = vmul.f32 %v2723, %v4259
        %v4772 = vmul.f32 %v2724, %v4260
        %v4773 = vmul.f32 %v2725, %v4261
        %v4774 = vmul.f32 %v2726, %v4262
        %v4775 = vmul.f32 %v2727, %v4263
        %v4776 = vmul.f32 %v2728, %v4264
        %v4777 = vmul.f32 %v2729, %v4265
        %v4778 = vmul.f32 %v2730, %v4266
        %v4779 = vmul.f32 %v2731, %v4267
        %v4780 = vmul.f32 %v2732, %v4268
        %v4781 = vmul.f32 %v2733, %v4269
        %v4782 = vmul.f32 %v2734, %v4270
        %v4783 = vmul.f32 %v2735, %v4271
        %v4784 = vmul.f32 %v2736, %v4272
        %v4785 = vmul.f32 %v2737, %v4273
        %v4786 = vmul.f32 %v2738, %v4274
        %v4787 = vmul.f32 %v2739, %v4275
        %v4788 = vmul.f32 %v2740, %v4276
        %v4789 = vmul.f32 %v2741, %v4277
        %v4790 = vmul.f32 %v2742, %v4278
        %v4791 = vmul.f32 %v2743, %v4279
        %v4792 = vmul.f32 %v2744, %v4280
        %v4793 = vmul.f32 %v2745, %v4281
        %v4794 = vmul.f32 %v2746, %v4282
        %v4795 = vmul.f32 %v2747, %v4283
        %v4796 = vmul.f32 %v2748, %v4284
        %v4797 = vmul.f32 %v2749, %v4285
        %v4798 = vmul.f32 %v2750, %v4286
        %v4799 = vmul.f32 %v2751, %v4287
        %v4800 = vmul.f32 %v2752, %v4288
        %v4801 = vmul.f32 %v2753, %v4289
        %v4802 = vmul.f32 %v2754, %v4290
        %v4803 = vmul.f32 %v2755, %v4291
        %v4804 = vmul.f32 %v2756, %v4292
        %v4805 = vmul.f32 %v2757, %v4293
        %v4806 = vmul.f32 %v2758, %v4294
        %v4807 = vmul.f32 %v2759, %v4295
        %v4808 = vmul.f32 %v2760, %v4296
        %v4809 = vmul.f32 %v2761, %v4297
        %v4810 = vmul.f32 %v2762, %v4298
        %v4811 = vmul.f32 %v2763, %v4299
        %v4812 = vmul.f32 %v2764, %v4300
        %v4813 = vmul.f32 %v2765, %v4301
        %v4814 = vmul.f32 %v2766, %v4302
        %v4815 = vmul.f32 %v2767, %v4303
        %v4816 = vmul.f32 %v2768, %v4304
        %v4817 = vmul.f32 %v2769, %v4305
        %v4818 = vmul.f32 %v2770, %v4306
        %v4819 = vmul.f32 %v2771, %v4307
        %v4820 = vmul.f32 %v2772, %v4308
        %v4821 = vmul.f32 %v2773, %v4309
        %v4822 = vmul.f32 %v2774, %v4310
        %v4823 = vmul.f32 %v2775, %v4311
        %v4824 = vmul.f32 %v2776, %v4312
        %v4825 = vmul.f32 %v2777, %v4313
        %v4826 = vmul.f32 %v2778, %v4314
        %v4827 = vmul.f32 %v2779, %v4315
        %v4828 = vmul.f32 %v2780, %v4316
        %v4829 = vmul.f32 %v2781, %v4317
        %v4830 = vmul.f32 %v2782, %v4318
        %v4831 = vmul.f32 %v2783, %v4319
        %v4832 = vmul.f32 %v2784, %v4320
        %v4833 = vmul.f32 %v2785, %v4321
        %v4834 = vmul.f32 %v2786, %v4322
        %v4835 = vmul.f32 %v2787, %v4323
        %v4836 = vmul.f32 %v2788, %v4324
        %v4837 = vmul.f32 %v2789, %v4325
        %v4838 = vmul.f32 %v2790, %v4326
        %v4839 = vmul.f32 %v2791, %v4327
        %v4840 = vmul.f32 %v2792, %v4328
        %v4841 = vmul.f32 %v2793, %v4329
        %v4842 = vmul.f32 %v2794, %v4330
        %v4843 = vmul.f32 %v2795, %v4331
        %v4844 = vmul.f32 %v2796, %v4332
        %v4845 = vmul.f32 %v2797, %v4333
        %v4846 = vmul.f32 %v2798, %v4334
        %v4847 = vmul.f32 %v2799, %v4335
        %v4848 = vmul.f32 %v2800, %v4336
        %v4849 = vmul.f32 %v2801, %v4337
        %v4850 = vmul.f32 %v2802, %v4338
        %v4851 = vmul.f32 %v2803, %v4339
        %v4852 = vmul.f32 %v2804, %v4340
        %v4853 = vmul.f32 %v2805, %v4341
        %v4854 = vmul.f32 %v2806, %v4342
        %v4855 = vmul.f32 %v2807, %v4343
        %v4856 = vmul.f32 %v2808, %v4344
        %v4857 = vmul.f32 %v2809, %v4345
        %v4858 = vmul.f32 %v2810, %v4346
        %v4859 = vmul.f32 %v2811, %v4347
        %v4860 = vmul.f32 %v2812, %v4348
        %v4861 = vmul.f32 %v2813, %v4349
        %v4862 = vmul.f32 %v2814, %v4350
        %v4863 = vmul.f32 %v2815, %v4351
        %v4864 = vmul.f32 %v2816, %v4352
        %v4865 = vmul.f32 %v2817, %v4353
        %v4866 = vmul.f32 %v2818, %v4354
        %v4867 = vmul.f32 %v2819, %v4355
        %v4868 = vmul.f32 %v2820, %v4356
        %v4869 = vmul.f32 %v2821, %v4357
        %v4870 = vmul.f32 %v2822, %v4358
        %v4871 = vmul.f32 %v2823, %v4359
        %v4872 = vmul.f32 %v2824, %v4360
        %v4873 = vmul.f32 %v2825, %v4361
        %v4874 = vmul.f32 %v2826, %v4362
        %v4875 = vmul.f32 %v2827, %v4363
        %v4876 = vmul.f32 %v2828, %v4364
        %v4877 = vld [vmem:[#allocation8] sm:$0xff]
        %v4878 = vld [vmem:[#allocation8 + $0x8] sm:$0xff]
        %v4879 = vld [vmem:[#allocation8 + $0x10] sm:$0xff]
        %v4880 = vld [vmem:[#allocation8 + $0x18] sm:$0xff]
        %v4881 = vld [vmem:[#allocation8 + $0x20] sm:$0xff]
        %v4882 = vld [vmem:[#allocation8 + $0x28] sm:$0xff]
        %v4883 = vld [vmem:[#allocation8 + $0x30] sm:$0xff]
        %v4884 = vld [vmem:[#allocation8 + $0x38] sm:$0xff]
        %v4885 = vld [vmem:[#allocation8 + $0x40] sm:$0xff]
        %v4886 = vld [vmem:[#allocation8 + $0x48] sm:$0xff]
        %v4887 = vld [vmem:[#allocation8 + $0x50] sm:$0xff]
        %v4888 = vld [vmem:[#allocation8 + $0x58] sm:$0xff]
        %v4889 = vld [vmem:[#allocation8 + $0x60] sm:$0xff]
        %v4890 = vld [vmem:[#allocation8 + $0x68] sm:$0xff]
        %v4891 = vld [vmem:[#allocation8 + $0x70] sm:$0xff]
        %v4892 = vld [vmem:[#allocation8 + $0x78] sm:$0xff]
        %v4893 = vld [vmem:[#allocation8 + $0x80] sm:$0xff]
        %v4894 = vld [vmem:[#allocation8 + $0x88] sm:$0xff]
        %v4895 = vld [vmem:[#allocation8 + $0x90] sm:$0xff]
        %v4896 = vld [vmem:[#allocation8 + $0x98] sm:$0xff]
        %v4897 = vld [vmem:[#allocation8 + $0xa0] sm:$0xff]
        %v4898 = vld [vmem:[#allocation8 + $0xa8] sm:$0xff]
        %v4899 = vld [vmem:[#allocation8 + $0xb0] sm:$0xff]
        %v4900 = vld [vmem:[#allocation8 + $0xb8] sm:$0xff]
        %v4901 = vld [vmem:[#allocation8 + $0xc0] sm:$0xff]
        %v4902 = vld [vmem:[#allocation8 + $0xc8] sm:$0xff]
        %v4903 = vld [vmem:[#allocation8 + $0xd0] sm:$0xff]
        %v4904 = vld [vmem:[#allocation8 + $0xd8] sm:$0xff]
        %v4905 = vld [vmem:[#allocation8 + $0xe0] sm:$0xff]
        %v4906 = vld [vmem:[#allocation8 + $0xe8] sm:$0xff]
        %v4907 = vld [vmem:[#allocation8 + $0xf0] sm:$0xff]
        %v4908 = vld [vmem:[#allocation8 + $0xf8] sm:$0xff]
        %v4909 = vld [vmem:[#allocation8 + $0x100] sm:$0xff]
        %v4910 = vld [vmem:[#allocation8 + $0x108] sm:$0xff]
        %v4911 = vld [vmem:[#allocation8 + $0x110] sm:$0xff]
        %v4912 = vld [vmem:[#allocation8 + $0x118] sm:$0xff]
        %v4913 = vld [vmem:[#allocation8 + $0x120] sm:$0xff]
        %v4914 = vld [vmem:[#allocation8 + $0x128] sm:$0xff]
        %v4915 = vld [vmem:[#allocation8 + $0x130] sm:$0xff]
        %v4916 = vld [vmem:[#allocation8 + $0x138] sm:$0xff]
        %v4917 = vld [vmem:[#allocation8 + $0x140] sm:$0xff]
        %v4918 = vld [vmem:[#allocation8 + $0x148] sm:$0xff]
        %v4919 = vld [vmem:[#allocation8 + $0x150] sm:$0xff]
        %v4920 = vld [vmem:[#allocation8 + $0x158] sm:$0xff]
        %v4921 = vld [vmem:[#allocation8 + $0x160] sm:$0xff]
        %v4922 = vld [vmem:[#allocation8 + $0x168] sm:$0xff]
        %v4923 = vld [vmem:[#allocation8 + $0x170] sm:$0xff]
        %v4924 = vld [vmem:[#allocation8 + $0x178] sm:$0xff]
        %v4925 = vld [vmem:[#allocation8 + $0x180] sm:$0xff]
        %v4926 = vld [vmem:[#allocation8 + $0x188] sm:$0xff]
        %v4927 = vld [vmem:[#allocation8 + $0x190] sm:$0xff]
        %v4928 = vld [vmem:[#allocation8 + $0x198] sm:$0xff]
        %v4929 = vld [vmem:[#allocation8 + $0x1a0] sm:$0xff]
        %v4930 = vld [vmem:[#allocation8 + $0x1a8] sm:$0xff]
        %v4931 = vld [vmem:[#allocation8 + $0x1b0] sm:$0xff]
        %v4932 = vld [vmem:[#allocation8 + $0x1b8] sm:$0xff]
        %v4933 = vld [vmem:[#allocation8 + $0x1c0] sm:$0xff]
        %v4934 = vld [vmem:[#allocation8 + $0x1c8] sm:$0xff]
        %v4935 = vld [vmem:[#allocation8 + $0x1d0] sm:$0xff]
        %v4936 = vld [vmem:[#allocation8 + $0x1d8] sm:$0xff]
        %v4937 = vld [vmem:[#allocation8 + $0x1e0] sm:$0xff]
        %v4938 = vld [vmem:[#allocation8 + $0x1e8] sm:$0xff]
        %v4939 = vld [vmem:[#allocation8 + $0x1f0] sm:$0xff]
        %v4940 = vld [vmem:[#allocation8 + $0x1f8] sm:$0xff]
        %v4941 = vld [vmem:[#allocation8 + $0x200] sm:$0xff]
        %v4942 = vld [vmem:[#allocation8 + $0x208] sm:$0xff]
        %v4943 = vld [vmem:[#allocation8 + $0x210] sm:$0xff]
        %v4944 = vld [vmem:[#allocation8 + $0x218] sm:$0xff]
        %v4945 = vld [vmem:[#allocation8 + $0x220] sm:$0xff]
        %v4946 = vld [vmem:[#allocation8 + $0x228] sm:$0xff]
        %v4947 = vld [vmem:[#allocation8 + $0x230] sm:$0xff]
        %v4948 = vld [vmem:[#allocation8 + $0x238] sm:$0xff]
        %v4949 = vld [vmem:[#allocation8 + $0x240] sm:$0xff]
        %v4950 = vld [vmem:[#allocation8 + $0x248] sm:$0xff]
        %v4951 = vld [vmem:[#allocation8 + $0x250] sm:$0xff]
        %v4952 = vld [vmem:[#allocation8 + $0x258] sm:$0xff]
        %v4953 = vld [vmem:[#allocation8 + $0x260] sm:$0xff]
        %v4954 = vld [vmem:[#allocation8 + $0x268] sm:$0xff]
        %v4955 = vld [vmem:[#allocation8 + $0x270] sm:$0xff]
        %v4956 = vld [vmem:[#allocation8 + $0x278] sm:$0xff]
        %v4957 = vld [vmem:[#allocation8 + $0x280] sm:$0xff]
        %v4958 = vld [vmem:[#allocation8 + $0x288] sm:$0xff]
        %v4959 = vld [vmem:[#allocation8 + $0x290] sm:$0xff]
        %v4960 = vld [vmem:[#allocation8 + $0x298] sm:$0xff]
        %v4961 = vld [vmem:[#allocation8 + $0x2a0] sm:$0xff]
        %v4962 = vld [vmem:[#allocation8 + $0x2a8] sm:$0xff]
        %v4963 = vld [vmem:[#allocation8 + $0x2b0] sm:$0xff]
        %v4964 = vld [vmem:[#allocation8 + $0x2b8] sm:$0xff]
        %v4965 = vld [vmem:[#allocation8 + $0x2c0] sm:$0xff]
        %v4966 = vld [vmem:[#allocation8 + $0x2c8] sm:$0xff]
        %v4967 = vld [vmem:[#allocation8 + $0x2d0] sm:$0xff]
        %v4968 = vld [vmem:[#allocation8 + $0x2d8] sm:$0xff]
        %v4969 = vld [vmem:[#allocation8 + $0x2e0] sm:$0xff]
        %v4970 = vld [vmem:[#allocation8 + $0x2e8] sm:$0xff]
        %v4971 = vld [vmem:[#allocation8 + $0x2f0] sm:$0xff]
        %v4972 = vld [vmem:[#allocation8 + $0x2f8] sm:$0xff]
        %v4973 = vld [vmem:[#allocation8 + $0x300] sm:$0xff]
        %v4974 = vld [vmem:[#allocation8 + $0x308] sm:$0xff]
        %v4975 = vld [vmem:[#allocation8 + $0x310] sm:$0xff]
        %v4976 = vld [vmem:[#allocation8 + $0x318] sm:$0xff]
        %v4977 = vld [vmem:[#allocation8 + $0x320] sm:$0xff]
        %v4978 = vld [vmem:[#allocation8 + $0x328] sm:$0xff]
        %v4979 = vld [vmem:[#allocation8 + $0x330] sm:$0xff]
        %v4980 = vld [vmem:[#allocation8 + $0x338] sm:$0xff]
        %v4981 = vld [vmem:[#allocation8 + $0x340] sm:$0xff]
        %v4982 = vld [vmem:[#allocation8 + $0x348] sm:$0xff]
        %v4983 = vld [vmem:[#allocation8 + $0x350] sm:$0xff]
        %v4984 = vld [vmem:[#allocation8 + $0x358] sm:$0xff]
        %v4985 = vld [vmem:[#allocation8 + $0x360] sm:$0xff]
        %v4986 = vld [vmem:[#allocation8 + $0x368] sm:$0xff]
        %v4987 = vld [vmem:[#allocation8 + $0x370] sm:$0xff]
        %v4988 = vld [vmem:[#allocation8 + $0x378] sm:$0xff]
        %v4989 = vld [vmem:[#allocation8 + $0x380] sm:$0xff]
        %v4990 = vld [vmem:[#allocation8 + $0x388] sm:$0xff]
        %v4991 = vld [vmem:[#allocation8 + $0x390] sm:$0xff]
        %v4992 = vld [vmem:[#allocation8 + $0x398] sm:$0xff]
        %v4993 = vld [vmem:[#allocation8 + $0x3a0] sm:$0xff]
        %v4994 = vld [vmem:[#allocation8 + $0x3a8] sm:$0xff]
        %v4995 = vld [vmem:[#allocation8 + $0x3b0] sm:$0xff]
        %v4996 = vld [vmem:[#allocation8 + $0x3b8] sm:$0xff]
        %v4997 = vld [vmem:[#allocation8 + $0x3c0] sm:$0xff]
        %v4998 = vld [vmem:[#allocation8 + $0x3c8] sm:$0xff]
        %v4999 = vld [vmem:[#allocation8 + $0x3d0] sm:$0xff]
        %v5000 = vld [vmem:[#allocation8 + $0x3d8] sm:$0xff]
        %v5001 = vld [vmem:[#allocation8 + $0x3e0] sm:$0xff]
        %v5002 = vld [vmem:[#allocation8 + $0x3e8] sm:$0xff]
        %v5003 = vld [vmem:[#allocation8 + $0x3f0] sm:$0xff]
        %v5004 = vld [vmem:[#allocation8 + $0x3f8] sm:$0xff]
        %v5005 = vld [vmem:[%s4] sm:$0x1]
        %v5007 = vlaneseq
        %v5008 = vshrl.u32 %v5007, 7
        %v5009 = vsub.s32 0, %v5008
        %v5010 = vrot.slane %v5005, %v5009
        %5012 = vmatprep.subr.mxu0 0.0
        %5013 = vmatpush1.msra.mxu0 %v4877
        %5014 = vmatprep.subr.mxu0 0.0
        %5015 = vmatpush1.msra.mxu0 %v4878
        %5016 = vmatprep.subr.mxu0 0.0
        %5017 = vmatpush1.msra.mxu0 %v4879
        %5018 = vmatprep.subr.mxu0 0.0
        %5019 = vmatpush1.msra.mxu0 %v4880
        %5020 = vmatprep.subr.mxu0 0.0
        %5021 = vmatpush1.msra.mxu0 %v4881
        %5022 = vmatprep.subr.mxu0 0.0
        %5023 = vmatpush1.msra.mxu0 %v4882
        %5024 = vmatprep.subr.mxu0 0.0
        %5025 = vmatpush1.msra.mxu0 %v4883
        %5026 = vmatprep.subr.mxu0 0.0
        %5027 = vmatpush1.msra.mxu0 %v4884
        %5028 = vmatprep.subr.mxu0 0.0
        %5029 = vmatpush1.msra.mxu0 %v4885
        %5030 = vmatprep.subr.mxu0 0.0
        %5031 = vmatpush1.msra.mxu0 %v4886
        %5032 = vmatprep.subr.mxu0 0.0
        %5033 = vmatpush1.msra.mxu0 %v4887
        %5034 = vmatprep.subr.mxu0 0.0
        %5035 = vmatpush1.msra.mxu0 %v4888
        %5036 = vmatprep.subr.mxu0 0.0
        %5037 = vmatpush1.msra.mxu0 %v4889
        %5038 = vmatprep.subr.mxu0 0.0
        %5039 = vmatpush1.msra.mxu0 %v4890
        %5040 = vmatprep.subr.mxu0 0.0
        %5041 = vmatpush1.msra.mxu0 %v4891
        %5042 = vmatprep.subr.mxu0 0.0
        %5043 = vmatpush1.msra.mxu0 %v4892
        %5044 = vmatprep.subr.mxu0 0.0
        %5045 = vmatpush1.msra.mxu0 %v4893
        %5046 = vmatprep.subr.mxu0 0.0
        %5047 = vmatpush1.msra.mxu0 %v4894
        %5048 = vmatprep.subr.mxu0 0.0
        %5049 = vmatpush1.msra.mxu0 %v4895
        %5050 = vmatprep.subr.mxu0 0.0
        %5051 = vmatpush1.msra.mxu0 %v4896
        %5052 = vmatprep.subr.mxu0 0.0
        %5053 = vmatpush1.msra.mxu0 %v4897
        %5054 = vmatprep.subr.mxu0 0.0
        %5055 = vmatpush1.msra.mxu0 %v4898
        %5056 = vmatprep.subr.mxu0 0.0
        %5057 = vmatpush1.msra.mxu0 %v4899
        %5058 = vmatprep.subr.mxu0 0.0
        %5059 = vmatpush1.msra.mxu0 %v4900
        %5060 = vmatprep.subr.mxu0 0.0
        %5061 = vmatpush1.msra.mxu0 %v4901
        %5062 = vmatprep.subr.mxu0 0.0
        %5063 = vmatpush1.msra.mxu0 %v4902
        %5064 = vmatprep.subr.mxu0 0.0
        %5065 = vmatpush1.msra.mxu0 %v4903
        %5066 = vmatprep.subr.mxu0 0.0
        %5067 = vmatpush1.msra.mxu0 %v4904
        %5068 = vmatprep.subr.mxu0 0.0
        %5069 = vmatpush1.msra.mxu0 %v4905
        %5070 = vmatprep.subr.mxu0 0.0
        %5071 = vmatpush1.msra.mxu0 %v4906
        %5072 = vmatprep.subr.mxu0 0.0
        %5073 = vmatpush1.msra.mxu0 %v4907
        %5074 = vmatprep.subr.mxu0 0.0
        %5075 = vmatpush1.msra.mxu0 %v4908
        %5076 = vmatprep.mubr.f32.mxu0 %v4366
        %5077 = vmatmul.mubr.f32.gmra.mrb[0].mxu0 %v4365
        %v5078 = vpop.f32.mrb[0].mxu0
        %v5079 = vadd.f32 %v5010, %v5078
        %v5080 = vpop.f32.mrb[0].mxu0
        %5081 = vmatprep.mubr.f32.mxu0 %v4374
        %5082 = vmatmul.mubr.f32.gmra.mrb[0].mxu0 %v4373
        %v5083 = vpop.f32.mrb[0].mxu0
        %v5084 = vadd.f32 %v5010, %v5083
        %v5085 = vpop.f32.mrb[0].mxu0
        %5086 = vmatprep.mubr.f32.mxu0 %v4382
        %5087 = vmatmul.mubr.f32.gmra.mrb[0].mxu0 %v4381
        %v5088 = vpop.f32.mrb[0].mxu0
        %v5089 = vadd.f32 %v5010, %v5088
        %v5090 = vpop.f32.mrb[0].mxu0
        %5091 = vmatprep.mubr.f32.mxu0 %v4390
        %5092 = vmatmul.mubr.f32.gmra.mrb[0].mxu0 %v4389
        %v5093 = vpop.f32.mrb[0].mxu0
        %v5094 = vadd.f32 %v5010, %v5093
        %v5095 = vpop.f32.mrb[0].mxu0
        %5096 = vmatprep.mubr.f32.mxu0 %v4398
        %5097 = vmatmul.mubr.f32.gmra.mrb[0].mxu0 %v4397
        %v5098 = vpop.f32.mrb[0].mxu0
        %v5099 = vadd.f32 %v5010, %v5098
        %v5100 = vpop.f32.mrb[0].mxu0
        %5101 = vmatprep.mubr.f32.mxu0 %v4406
        %5102 = vmatmul.mubr.f32.gmra.mrb[0].mxu0 %v4405
        %v5103 = vpop.f32.mrb[0].mxu0
        %v5104 = vadd.f32 %v5010, %v5103
        %v5105 = vpop.f32.mrb[0].mxu0
        %5106 = vmatprep.mubr.f32.mxu0 %v4414
        %5107 = vmatmul.mubr.f32.gmra.mrb[0].mxu0 %v4413
        %v5108 = vpop.f32.mrb[0].mxu0
        %v5109 = vadd.f32 %v5010, %v5108
        %v5110 = vpop.f32.mrb[0].mxu0
        %5111 = vmatprep.mubr.f32.mxu0 %v4422
        %5112 = vmatmul.mubr.f32.gmra.mrb[0].mxu0 %v4421
        %v5113 = vpop.f32.mrb[0].mxu0
        %v5114 = vadd.f32 %v5010, %v5113
        %v5115 = vpop.f32.mrb[0].mxu0
        %5116 = vmatprep.mubr.f32.mxu0 %v4430
        %5117 = vmatmul.mubr.f32.gmra.mrb[0].mxu0 %v4429
        %v5118 = vpop.f32.mrb[0].mxu0
        %v5119 = vadd.f32 %v5010, %v5118
        %v5120 = vpop.f32.mrb[0].mxu0
        %5121 = vmatprep.mubr.f32.mxu0 %v4438
        %5122 = vmatmul.mubr.f32.gmra.mrb[0].mxu0 %v4437
        %v5123 = vpop.f32.mrb[0].mxu0
        %v5124 = vadd.f32 %v5010, %v5123
        %v5125 = vpop.f32.mrb[0].mxu0
        %5126 = vmatprep.mubr.f32.mxu0 %v4446
        %5127 = vmatmul.mubr.f32.gmra.mrb[0].mxu0 %v4445
        %v5128 = vpop.f32.mrb[0].mxu0
        %v5129 = vadd.f32 %v5010, %v5128
        %v5130 = vpop.f32.mrb[0].mxu0
        %5131 = vmatprep.mubr.f32.mxu0 %v4454
        %5132 = vmatmul.mubr.f32.gmra.mrb[0].mxu0 %v4453
        %v5133 = vpop.f32.mrb[0].mxu0
        %v5134 = vadd.f32 %v5010, %v5133
        %v5135 = vpop.f32.mrb[0].mxu0
        %5136 = vmatprep.mubr.f32.mxu0 %v4462
        %5137 = vmatmul.mubr.f32.gmra.mrb[0].mxu0 %v4461
        %v5138 = vpop.f32.mrb[0].mxu0
        %v5139 = vadd.f32 %v5010, %v5138
        %v5140 = vpop.f32.mrb[0].mxu0
        %5141 = vmatprep.mubr.f32.mxu0 %v4470
        %5142 = vmatmul.mubr.f32.gmra.mrb[0].mxu0 %v4469
        %v5143 = vpop.f32.mrb[0].mxu0
        %v5144 = vadd.f32 %v5010, %v5143
        %v5145 = vpop.f32.mrb[0].mxu0
        %5146 = vmatprep.mubr.f32.mxu0 %v4478
        %5147 = vmatmul.mubr.f32.gmra.mrb[0].mxu0 %v4477
        %v5148 = vpop.f32.mrb[0].mxu0
        %v5149 = vadd.f32 %v5010, %v5148
        %v5150 = vpop.f32.mrb[0].mxu0
        %5151 = vmatprep.mubr.f32.mxu0 %v4486
        %5152 = vmatmul.mubr.f32.gmra.mrb[0].mxu0 %v4485
        %v5153 = vpop.f32.mrb[0].mxu0
        %v5154 = vadd.f32 %v5010, %v5153
        %v5155 = vpop.f32.mrb[0].mxu0
        %5156 = vmatprep.mubr.f32.mxu0 %v4494
        %5157 = vmatmul.mubr.f32.gmra.mrb[0].mxu0 %v4493
        %v5158 = vpop.f32.mrb[0].mxu0
        %v5159 = vadd.f32 %v5010, %v5158
        %v5160 = vpop.f32.mrb[0].mxu0
        %5161 = vmatprep.mubr.f32.mxu0 %v4502
        %5162 = vmatmul.mubr.f32.gmra.mrb[0].mxu0 %v4501
        %v5163 = vpop.f32.mrb[0].mxu0
        %v5164 = vadd.f32 %v5010, %v5163
        %v5165 = vpop.f32.mrb[0].mxu0
        %5166 = vmatprep.mubr.f32.mxu0 %v4510
        %5167 = vmatmul.mubr.f32.gmra.mrb[0].mxu0 %v4509
        %v5168 = vpop.f32.mrb[0].mxu0
        %v5169 = vadd.f32 %v5010, %v5168
        %v5170 = vpop.f32.mrb[0].mxu0
        %5171 = vmatprep.mubr.f32.mxu0 %v4518
        %5172 = vmatmul.mubr.f32.gmra.mrb[0].mxu0 %v4517
        %v5173 = vpop.f32.mrb[0].mxu0
        %v5174 = vadd.f32 %v5010, %v5173
        %v5175 = vpop.f32.mrb[0].mxu0
        %5176 = vmatprep.mubr.f32.mxu0 %v4526
        %5177 = vmatmul.mubr.f32.gmra.mrb[0].mxu0 %v4525
        %v5178 = vpop.f32.mrb[0].mxu0
        %v5179 = vadd.f32 %v5010, %v5178
        %v5180 = vpop.f32.mrb[0].mxu0
        %5181 = vmatprep.mubr.f32.mxu0 %v4534
        %5182 = vmatmul.mubr.f32.gmra.mrb[0].mxu0 %v4533
        %v5183 = vpop.f32.mrb[0].mxu0
        %v5184 = vadd.f32 %v5010, %v5183
        %v5185 = vpop.f32.mrb[0].mxu0
        %5186 = vmatprep.mubr.f32.mxu0 %v4542
        %5187 = vmatmul.mubr.f32.gmra.mrb[0].mxu0 %v4541
        %v5188 = vpop.f32.mrb[0].mxu0
        %v5189 = vadd.f32 %v5010, %v5188
        %v5190 = vpop.f32.mrb[0].mxu0
        %5191 = vmatprep.mubr.f32.mxu0 %v4550
        %5192 = vmatmul.mubr.f32.gmra.mrb[0].mxu0 %v4549
        %v5193 = vpop.f32.mrb[0].mxu0
        %v5194 = vadd.f32 %v5010, %v5193
        %v5195 = vpop.f32.mrb[0].mxu0
        %5196 = vmatprep.mubr.f32.mxu0 %v4558
        %5197 = vmatmul.mubr.f32.gmra.mrb[0].mxu0 %v4557
        %v5198 = vpop.f32.mrb[0].mxu0
        %v5199 = vadd.f32 %v5010, %v5198
        %v5200 = vpop.f32.mrb[0].mxu0
        %5201 = vmatprep.mubr.f32.mxu0 %v4566
        %5202 = vmatmul.mubr.f32.gmra.mrb[0].mxu0 %v4565
        %v5203 = vpop.f32.mrb[0].mxu0
        %v5204 = vadd.f32 %v5010, %v5203
        %v5205 = vpop.f32.mrb[0].mxu0
        %5206 = vmatprep.mubr.f32.mxu0 %v4574
        %5207 = vmatmul.mubr.f32.gmra.mrb[0].mxu0 %v4573
        %v5208 = vpop.f32.mrb[0].mxu0
        %v5209 = vadd.f32 %v5010, %v5208
        %v5210 = vpop.f32.mrb[0].mxu0
        %5211 = vmatprep.mubr.f32.mxu0 %v4582
        %5212 = vmatmul.mubr.f32.gmra.mrb[0].mxu0 %v4581
        %v5213 = vpop.f32.mrb[0].mxu0
        %v5214 = vadd.f32 %v5010, %v5213
        %v5215 = vpop.f32.mrb[0].mxu0
        %5216 = vmatprep.mubr.f32.mxu0 %v4590
        %5217 = vmatmul.mubr.f32.gmra.mrb[0].mxu0 %v4589
        %v5218 = vpop.f32.mrb[0].mxu0
        %v5219 = vadd.f32 %v5010, %v5218
        %v5220 = vpop.f32.mrb[0].mxu0
        %5221 = vmatprep.mubr.f32.mxu0 %v4598
        %5222 = vmatmul.mubr.f32.gmra.mrb[0].mxu0 %v4597
        %v5223 = vpop.f32.mrb[0].mxu0
        %v5224 = vadd.f32 %v5010, %v5223
        %v5225 = vpop.f32.mrb[0].mxu0
        %5226 = vmatprep.mubr.f32.mxu0 %v4606
        %5227 = vmatmul.mubr.f32.gmra.mrb[0].mxu0 %v4605
        %v5228 = vpop.f32.mrb[0].mxu0
        %v5229 = vadd.f32 %v5010, %v5228
        %v5230 = vpop.f32.mrb[0].mxu0
        %5231 = vmatprep.mubr.f32.mxu0 %v4614
        %5232 = vmatmul.mubr.f32.gmra.mrb[0].mxu0 %v4613
        %v5233 = vpop.f32.mrb[0].mxu0
        %v5234 = vadd.f32 %v5010, %v5233
        %v5235 = vpop.f32.mrb[0].mxu0
        %5236 = vmatprep.mubr.f32.mxu0 %v4622
        %5237 = vmatmul.mubr.f32.gmra.mrb[0].mxu0 %v4621
        %v5238 = vpop.f32.mrb[0].mxu0
        %v5239 = vadd.f32 %v5010, %v5238
        %v5240 = vpop.f32.mrb[0].mxu0
        %5241 = vmatprep.mubr.f32.mxu0 %v4630
        %5242 = vmatmul.mubr.f32.gmra.mrb[0].mxu0 %v4629
        %v5243 = vpop.f32.mrb[0].mxu0
        %v5244 = vadd.f32 %v5010, %v5243
        %v5245 = vpop.f32.mrb[0].mxu0
        %5246 = vmatprep.mubr.f32.mxu0 %v4638
        %5247 = vmatmul.mubr.f32.gmra.mrb[0].mxu0 %v4637
        %v5248 = vpop.f32.mrb[0].mxu0
        %v5249 = vadd.f32 %v5010, %v5248
        %v5250 = vpop.f32.mrb[0].mxu0
        %5251 = vmatprep.mubr.f32.mxu0 %v4646
        %5252 = vmatmul.mubr.f32.gmra.mrb[0].mxu0 %v4645
        %v5253 = vpop.f32.mrb[0].mxu0
        %v5254 = vadd.f32 %v5010, %v5253
        %v5255 = vpop.f32.mrb[0].mxu0
        %5256 = vmatprep.mubr.f32.mxu0 %v4654
        %5257 = vmatmul.mubr.f32.gmra.mrb[0].mxu0 %v4653
        %v5258 = vpop.f32.mrb[0].mxu0
        %v5259 = vadd.f32 %v5010, %v5258
        %v5260 = vpop.f32.mrb[0].mxu0
        %5261 = vmatprep.mubr.f32.mxu0 %v4662
        %5262 = vmatmul.mubr.f32.gmra.mrb[0].mxu0 %v4661
        %v5263 = vpop.f32.mrb[0].mxu0
        %v5264 = vadd.f32 %v5010, %v5263
        %v5265 = vpop.f32.mrb[0].mxu0
        %5266 = vmatprep.mubr.f32.mxu0 %v4670
        %5267 = vmatmul.mubr.f32.gmra.mrb[0].mxu0 %v4669
        %v5268 = vpop.f32.mrb[0].mxu0
        %v5269 = vadd.f32 %v5010, %v5268
        %v5270 = vpop.f32.mrb[0].mxu0
        %5271 = vmatprep.mubr.f32.mxu0 %v4678
        %5272 = vmatmul.mubr.f32.gmra.mrb[0].mxu0 %v4677
        %v5273 = vpop.f32.mrb[0].mxu0
        %v5274 = vadd.f32 %v5010, %v5273
        %v5275 = vpop.f32.mrb[0].mxu0
        %5276 = vmatprep.mubr.f32.mxu0 %v4686
        %5277 = vmatmul.mubr.f32.gmra.mrb[0].mxu0 %v4685
        %v5278 = vpop.f32.mrb[0].mxu0
        %v5279 = vadd.f32 %v5010, %v5278
        %v5280 = vpop.f32.mrb[0].mxu0
        %5281 = vmatprep.mubr.f32.mxu0 %v4694
        %5282 = vmatmul.mubr.f32.gmra.mrb[0].mxu0 %v4693
        %v5283 = vpop.f32.mrb[0].mxu0
        %v5284 = vadd.f32 %v5010, %v5283
        %v5285 = vpop.f32.mrb[0].mxu0
        %5286 = vmatprep.mubr.f32.mxu0 %v4702
        %5287 = vmatmul.mubr.f32.gmra.mrb[0].mxu0 %v4701
        %v5288 = vpop.f32.mrb[0].mxu0
        %v5289 = vadd.f32 %v5010, %v5288
        %v5290 = vpop.f32.mrb[0].mxu0
        %5291 = vmatprep.mubr.f32.mxu0 %v4710
        %5292 = vmatmul.mubr.f32.gmra.mrb[0].mxu0 %v4709
        %v5293 = vpop.f32.mrb[0].mxu0
        %v5294 = vadd.f32 %v5010, %v5293
        %v5295 = vpop.f32.mrb[0].mxu0
        %5296 = vmatprep.mubr.f32.mxu0 %v4718
        %5297 = vmatmul.mubr.f32.gmra.mrb[0].mxu0 %v4717
        %v5298 = vpop.f32.mrb[0].mxu0
        %v5299 = vadd.f32 %v5010, %v5298
        %v5300 = vpop.f32.mrb[0].mxu0
        %5301 = vmatprep.mubr.f32.mxu0 %v4726
        %5302 = vmatmul.mubr.f32.gmra.mrb[0].mxu0 %v4725
        %v5303 = vpop.f32.mrb[0].mxu0
        %v5304 = vadd.f32 %v5010, %v5303
        %v5305 = vpop.f32.mrb[0].mxu0
        %5306 = vmatprep.mubr.f32.mxu0 %v4734
        %5307 = vmatmul.mubr.f32.gmra.mrb[0].mxu0 %v4733
        %v5308 = vpop.f32.mrb[0].mxu0
        %v5309 = vadd.f32 %v5010, %v5308
        %v5310 = vpop.f32.mrb[0].mxu0
        %5311 = vmatprep.mubr.f32.mxu0 %v4742
        %5312 = vmatmul.mubr.f32.gmra.mrb[0].mxu0 %v4741
        %v5313 = vpop.f32.mrb[0].mxu0
        %v5314 = vadd.f32 %v5010, %v5313
        %v5315 = vpop.f32.mrb[0].mxu0
        %5316 = vmatprep.mubr.f32.mxu0 %v4750
        %5317 = vmatmul.mubr.f32.gmra.mrb[0].mxu0 %v4749
        %v5318 = vpop.f32.mrb[0].mxu0
        %v5319 = vadd.f32 %v5010, %v5318
        %v5320 = vpop.f32.mrb[0].mxu0
        %5321 = vmatprep.mubr.f32.mxu0 %v4758
        %5322 = vmatmul.mubr.f32.gmra.mrb[0].mxu0 %v4757
        %v5323 = vpop.f32.mrb[0].mxu0
        %v5324 = vadd.f32 %v5010, %v5323
        %v5325 = vpop.f32.mrb[0].mxu0
        %5326 = vmatprep.mubr.f32.mxu0 %v4766
        %5327 = vmatmul.mubr.f32.gmra.mrb[0].mxu0 %v4765
        %v5328 = vpop.f32.mrb[0].mxu0
        %v5329 = vadd.f32 %v5010, %v5328
        %v5330 = vpop.f32.mrb[0].mxu0
        %5331 = vmatprep.mubr.f32.mxu0 %v4774
        %5332 = vmatmul.mubr.f32.gmra.mrb[0].mxu0 %v4773
        %v5333 = vpop.f32.mrb[0].mxu0
        %v5334 = vadd.f32 %v5010, %v5333
        %v5335 = vpop.f32.mrb[0].mxu0
        %5336 = vmatprep.mubr.f32.mxu0 %v4782
        %5337 = vmatmul.mubr.f32.gmra.mrb[0].mxu0 %v4781
        %v5338 = vpop.f32.mrb[0].mxu0
        %v5339 = vadd.f32 %v5010, %v5338
        %v5340 = vpop.f32.mrb[0].mxu0
        %5341 = vmatprep.mubr.f32.mxu0 %v4790
        %5342 = vmatmul.mubr.f32.gmra.mrb[0].mxu0 %v4789
        %v5343 = vpop.f32.mrb[0].mxu0
        %v5344 = vadd.f32 %v5010, %v5343
        %v5345 = vpop.f32.mrb[0].mxu0
        %5346 = vmatprep.mubr.f32.mxu0 %v4798
        %5347 = vmatmul.mubr.f32.gmra.mrb[0].mxu0 %v4797
        %v5348 = vpop.f32.mrb[0].mxu0
        %v5349 = vadd.f32 %v5010, %v5348
        %v5350 = vpop.f32.mrb[0].mxu0
        %5351 = vmatprep.mubr.f32.mxu0 %v4806
        %5352 = vmatmul.mubr.f32.gmra.mrb[0].mxu0 %v4805
        %v5353 = vpop.f32.mrb[0].mxu0
        %v5354 = vadd.f32 %v5010, %v5353
        %v5355 = vpop.f32.mrb[0].mxu0
        %5356 = vmatprep.mubr.f32.mxu0 %v4814
        %5357 = vmatmul.mubr.f32.gmra.mrb[0].mxu0 %v4813
        %v5358 = vpop.f32.mrb[0].mxu0
        %v5359 = vadd.f32 %v5010, %v5358
        %v5360 = vpop.f32.mrb[0].mxu0
        %5361 = vmatprep.mubr.f32.mxu0 %v4822
        %5362 = vmatmul.mubr.f32.gmra.mrb[0].mxu0 %v4821
        %v5363 = vpop.f32.mrb[0].mxu0
        %v5364 = vadd.f32 %v5010, %v5363
        %v5365 = vpop.f32.mrb[0].mxu0
        %5366 = vmatprep.mubr.f32.mxu0 %v4830
        %5367 = vmatmul.mubr.f32.gmra.mrb[0].mxu0 %v4829
        %v5368 = vpop.f32.mrb[0].mxu0
        %v5369 = vadd.f32 %v5010, %v5368
        %v5370 = vpop.f32.mrb[0].mxu0
        %5371 = vmatprep.mubr.f32.mxu0 %v4838
        %5372 = vmatmul.mubr.f32.gmra.mrb[0].mxu0 %v4837
        %v5373 = vpop.f32.mrb[0].mxu0
        %v5374 = vadd.f32 %v5010, %v5373
        %v5375 = vpop.f32.mrb[0].mxu0
        %5376 = vmatprep.mubr.f32.mxu0 %v4846
        %5377 = vmatmul.mubr.f32.gmra.mrb[0].mxu0 %v4845
        %v5378 = vpop.f32.mrb[0].mxu0
        %v5379 = vadd.f32 %v5010, %v5378
        %v5380 = vpop.f32.mrb[0].mxu0
        %5381 = vmatprep.mubr.f32.mxu0 %v4854
        %5382 = vmatmul.mubr.f32.gmra.mrb[0].mxu0 %v4853
        %v5383 = vpop.f32.mrb[0].mxu0
        %v5384 = vadd.f32 %v5010, %v5383
        %v5385 = vpop.f32.mrb[0].mxu0
        %5386 = vmatprep.mubr.f32.mxu0 %v4862
        %5387 = vmatmul.mubr.f32.gmra.mrb[0].mxu0 %v4861
        %v5388 = vpop.f32.mrb[0].mxu0
        %v5389 = vadd.f32 %v5010, %v5388
        %v5390 = vpop.f32.mrb[0].mxu0
        %5391 = vmatprep.mubr.f32.mxu0 %v4870
        %5392 = vmatmul.mubr.f32.gmra.mrb[0].mxu0 %v4869
        %v5393 = vpop.f32.mrb[0].mxu0
        %v5394 = vadd.f32 %v5010, %v5393
        %v5395 = vpop.f32.mrb[0].mxu0
        %5396 = vdwg.mxu0
        %5397 = vmatprep.subr.mxu0 0.0
        %5398 = vmatpush1.msra.mxu0 %v4909
        %5399 = vmatprep.subr.mxu0 0.0
        %5400 = vmatpush1.msra.mxu0 %v4910
        %5401 = vmatprep.subr.mxu0 0.0
        %5402 = vmatpush1.msra.mxu0 %v4911
        %5403 = vmatprep.subr.mxu0 0.0
        %5404 = vmatpush1.msra.mxu0 %v4912
        %5405 = vmatprep.subr.mxu0 0.0
        %5406 = vmatpush1.msra.mxu0 %v4913
        %5407 = vmatprep.subr.mxu0 0.0
        %5408 = vmatpush1.msra.mxu0 %v4914
        %5409 = vmatprep.subr.mxu0 0.0
        %5410 = vmatpush1.msra.mxu0 %v4915
        %5411 = vmatprep.subr.mxu0 0.0
        %5412 = vmatpush1.msra.mxu0 %v4916
        %5413 = vmatprep.subr.mxu0 0.0
        %5414 = vmatpush1.msra.mxu0 %v4917
        %5415 = vmatprep.subr.mxu0 0.0
        %5416 = vmatpush1.msra.mxu0 %v4918
        %5417 = vmatprep.subr.mxu0 0.0
        %5418 = vmatpush1.msra.mxu0 %v4919
        %5419 = vmatprep.subr.mxu0 0.0
        %5420 = vmatpush1.msra.mxu0 %v4920
        %5421 = vmatprep.subr.mxu0 0.0
        %5422 = vmatpush1.msra.mxu0 %v4921
        %5423 = vmatprep.subr.mxu0 0.0
        %5424 = vmatpush1.msra.mxu0 %v4922
        %5425 = vmatprep.subr.mxu0 0.0
        %5426 = vmatpush1.msra.mxu0 %v4923
        %5427 = vmatprep.subr.mxu0 0.0
        %5428 = vmatpush1.msra.mxu0 %v4924
        %5429 = vmatprep.subr.mxu0 0.0
        %5430 = vmatpush1.msra.mxu0 %v4925
        %5431 = vmatprep.subr.mxu0 0.0
        %5432 = vmatpush1.msra.mxu0 %v4926
        %5433 = vmatprep.subr.mxu0 0.0
        %5434 = vmatpush1.msra.mxu0 %v4927
        %5435 = vmatprep.subr.mxu0 0.0
        %5436 = vmatpush1.msra.mxu0 %v4928
        %5437 = vmatprep.subr.mxu0 0.0
        %5438 = vmatpush1.msra.mxu0 %v4929
        %5439 = vmatprep.subr.mxu0 0.0
        %5440 = vmatpush1.msra.mxu0 %v4930
        %5441 = vmatprep.subr.mxu0 0.0
        %5442 = vmatpush1.msra.mxu0 %v4931
        %5443 = vmatprep.subr.mxu0 0.0
        %5444 = vmatpush1.msra.mxu0 %v4932
        %5445 = vmatprep.subr.mxu0 0.0
        %5446 = vmatpush1.msra.mxu0 %v4933
        %5447 = vmatprep.subr.mxu0 0.0
        %5448 = vmatpush1.msra.mxu0 %v4934
        %5449 = vmatprep.subr.mxu0 0.0
        %5450 = vmatpush1.msra.mxu0 %v4935
        %5451 = vmatprep.subr.mxu0 0.0
        %5452 = vmatpush1.msra.mxu0 %v4936
        %5453 = vmatprep.subr.mxu0 0.0
        %5454 = vmatpush1.msra.mxu0 %v4937
        %5455 = vmatprep.subr.mxu0 0.0
        %5456 = vmatpush1.msra.mxu0 %v4938
        %5457 = vmatprep.subr.mxu0 0.0
        %5458 = vmatpush1.msra.mxu0 %v4939
        %5459 = vmatprep.subr.mxu0 0.0
        %5460 = vmatpush1.msra.mxu0 %v4940
        %5461 = vmatprep.mubr.f32.mxu0 %v4368
        %5462 = vmatmul.mubr.f32.gmra.mrb[0].mxu0 %v4367
        %v5463 = vpop.f32.mrb[0].mxu0
        %v5464 = vadd.f32 %v5079, %v5463
        %v5465 = vpop.f32.mrb[0].mxu0
        %5466 = vmatprep.mubr.f32.mxu0 %v4376
        %5467 = vmatmul.mubr.f32.gmra.mrb[0].mxu0 %v4375
        %v5468 = vpop.f32.mrb[0].mxu0
        %v5469 = vadd.f32 %v5084, %v5468
        %v5470 = vpop.f32.mrb[0].mxu0
        %5471 = vmatprep.mubr.f32.mxu0 %v4384
        %5472 = vmatmul.mubr.f32.gmra.mrb[0].mxu0 %v4383
        %v5473 = vpop.f32.mrb[0].mxu0
        %v5474 = vadd.f32 %v5089, %v5473
        %v5475 = vpop.f32.mrb[0].mxu0
        %5476 = vmatprep.mubr.f32.mxu0 %v4392
        %5477 = vmatmul.mubr.f32.gmra.mrb[0].mxu0 %v4391
        %v5478 = vpop.f32.mrb[0].mxu0
        %v5479 = vadd.f32 %v5094, %v5478
        %v5480 = vpop.f32.mrb[0].mxu0
        %5481 = vmatprep.mubr.f32.mxu0 %v4400
        %5482 = vmatmul.mubr.f32.gmra.mrb[0].mxu0 %v4399
        %v5483 = vpop.f32.mrb[0].mxu0
        %v5484 = vadd.f32 %v5099, %v5483
        %v5485 = vpop.f32.mrb[0].mxu0
        %5486 = vmatprep.mubr.f32.mxu0 %v4408
        %5487 = vmatmul.mubr.f32.gmra.mrb[0].mxu0 %v4407
        %v5488 = vpop.f32.mrb[0].mxu0
        %v5489 = vadd.f32 %v5104, %v5488
        %v5490 = vpop.f32.mrb[0].mxu0
        %5491 = vmatprep.mubr.f32.mxu0 %v4416
        %5492 = vmatmul.mubr.f32.gmra.mrb[0].mxu0 %v4415
        %v5493 = vpop.f32.mrb[0].mxu0
        %v5494 = vadd.f32 %v5109, %v5493
        %v5495 = vpop.f32.mrb[0].mxu0
        %5496 = vmatprep.mubr.f32.mxu0 %v4424
        %5497 = vmatmul.mubr.f32.gmra.mrb[0].mxu0 %v4423
        %v5498 = vpop.f32.mrb[0].mxu0
        %v5499 = vadd.f32 %v5114, %v5498
        %v5500 = vpop.f32.mrb[0].mxu0
        %5501 = vmatprep.mubr.f32.mxu0 %v4432
        %5502 = vmatmul.mubr.f32.gmra.mrb[0].mxu0 %v4431
        %v5503 = vpop.f32.mrb[0].mxu0
        %v5504 = vadd.f32 %v5119, %v5503
        %v5505 = vpop.f32.mrb[0].mxu0
        %5506 = vmatprep.mubr.f32.mxu0 %v4440
        %5507 = vmatmul.mubr.f32.gmra.mrb[0].mxu0 %v4439
        %v5508 = vpop.f32.mrb[0].mxu0
        %v5509 = vadd.f32 %v5124, %v5508
        %v5510 = vpop.f32.mrb[0].mxu0
        %5511 = vmatprep.mubr.f32.mxu0 %v4448
        %5512 = vmatmul.mubr.f32.gmra.mrb[0].mxu0 %v4447
        %v5513 = vpop.f32.mrb[0].mxu0
        %v5514 = vadd.f32 %v5129, %v5513
        %v5515 = vpop.f32.mrb[0].mxu0
        %5516 = vmatprep.mubr.f32.mxu0 %v4456
        %5517 = vmatmul.mubr.f32.gmra.mrb[0].mxu0 %v4455
        %v5518 = vpop.f32.mrb[0].mxu0
        %v5519 = vadd.f32 %v5134, %v5518
        %v5520 = vpop.f32.mrb[0].mxu0
        %5521 = vmatprep.mubr.f32.mxu0 %v4464
        %5522 = vmatmul.mubr.f32.gmra.mrb[0].mxu0 %v4463
        %v5523 = vpop.f32.mrb[0].mxu0
        %v5524 = vadd.f32 %v5139, %v5523
        %v5525 = vpop.f32.mrb[0].mxu0
        %5526 = vmatprep.mubr.f32.mxu0 %v4472
        %5527 = vmatmul.mubr.f32.gmra.mrb[0].mxu0 %v4471
        %v5528 = vpop.f32.mrb[0].mxu0
        %v5529 = vadd.f32 %v5144, %v5528
        %v5530 = vpop.f32.mrb[0].mxu0
        %5531 = vmatprep.mubr.f32.mxu0 %v4480
        %5532 = vmatmul.mubr.f32.gmra.mrb[0].mxu0 %v4479
        %v5533 = vpop.f32.mrb[0].mxu0
        %v5534 = vadd.f32 %v5149, %v5533
        %v5535 = vpop.f32.mrb[0].mxu0
        %5536 = vmatprep.mubr.f32.mxu0 %v4488
        %5537 = vmatmul.mubr.f32.gmra.mrb[0].mxu0 %v4487
        %v5538 = vpop.f32.mrb[0].mxu0
        %v5539 = vadd.f32 %v5154, %v5538
        %v5540 = vpop.f32.mrb[0].mxu0
        %5541 = vmatprep.mubr.f32.mxu0 %v4496
        %5542 = vmatmul.mubr.f32.gmra.mrb[0].mxu0 %v4495
        %v5543 = vpop.f32.mrb[0].mxu0
        %v5544 = vadd.f32 %v5159, %v5543
        %v5545 = vpop.f32.mrb[0].mxu0
        %5546 = vmatprep.mubr.f32.mxu0 %v4504
        %5547 = vmatmul.mubr.f32.gmra.mrb[0].mxu0 %v4503
        %v5548 = vpop.f32.mrb[0].mxu0
        %v5549 = vadd.f32 %v5164, %v5548
        %v5550 = vpop.f32.mrb[0].mxu0
        %5551 = vmatprep.mubr.f32.mxu0 %v4512
        %5552 = vmatmul.mubr.f32.gmra.mrb[0].mxu0 %v4511
        %v5553 = vpop.f32.mrb[0].mxu0
        %v5554 = vadd.f32 %v5169, %v5553
        %v5555 = vpop.f32.mrb[0].mxu0
        %5556 = vmatprep.mubr.f32.mxu0 %v4520
        %5557 = vmatmul.mubr.f32.gmra.mrb[0].mxu0 %v4519
        %v5558 = vpop.f32.mrb[0].mxu0
        %v5559 = vadd.f32 %v5174, %v5558
        %v5560 = vpop.f32.mrb[0].mxu0
        %5561 = vmatprep.mubr.f32.mxu0 %v4528
        %5562 = vmatmul.mubr.f32.gmra.mrb[0].mxu0 %v4527
        %v5563 = vpop.f32.mrb[0].mxu0
        %v5564 = vadd.f32 %v5179, %v5563
        %v5565 = vpop.f32.mrb[0].mxu0
        %5566 = vmatprep.mubr.f32.mxu0 %v4536
        %5567 = vmatmul.mubr.f32.gmra.mrb[0].mxu0 %v4535
        %v5568 = vpop.f32.mrb[0].mxu0
        %v5569 = vadd.f32 %v5184, %v5568
        %v5570 = vpop.f32.mrb[0].mxu0
        %5571 = vmatprep.mubr.f32.mxu0 %v4544
        %5572 = vmatmul.mubr.f32.gmra.mrb[0].mxu0 %v4543
        %v5573 = vpop.f32.mrb[0].mxu0
        %v5574 = vadd.f32 %v5189, %v5573
        %v5575 = vpop.f32.mrb[0].mxu0
        %5576 = vmatprep.mubr.f32.mxu0 %v4552
        %5577 = vmatmul.mubr.f32.gmra.mrb[0].mxu0 %v4551
        %v5578 = vpop.f32.mrb[0].mxu0
        %v5579 = vadd.f32 %v5194, %v5578
        %v5580 = vpop.f32.mrb[0].mxu0
        %5581 = vmatprep.mubr.f32.mxu0 %v4560
        %5582 = vmatmul.mubr.f32.gmra.mrb[0].mxu0 %v4559
        %v5583 = vpop.f32.mrb[0].mxu0
        %v5584 = vadd.f32 %v5199, %v5583
        %v5585 = vpop.f32.mrb[0].mxu0
        %5586 = vmatprep.mubr.f32.mxu0 %v4568
        %5587 = vmatmul.mubr.f32.gmra.mrb[0].mxu0 %v4567
        %v5588 = vpop.f32.mrb[0].mxu0
        %v5589 = vadd.f32 %v5204, %v5588
        %v5590 = vpop.f32.mrb[0].mxu0
        %5591 = vmatprep.mubr.f32.mxu0 %v4576
        %5592 = vmatmul.mubr.f32.gmra.mrb[0].mxu0 %v4575
        %v5593 = vpop.f32.mrb[0].mxu0
        %v5594 = vadd.f32 %v5209, %v5593
        %v5595 = vpop.f32.mrb[0].mxu0
        %5596 = vmatprep.mubr.f32.mxu0 %v4584
        %5597 = vmatmul.mubr.f32.gmra.mrb[0].mxu0 %v4583
        %v5598 = vpop.f32.mrb[0].mxu0
        %v5599 = vadd.f32 %v5214, %v5598
        %v5600 = vpop.f32.mrb[0].mxu0
        %5601 = vmatprep.mubr.f32.mxu0 %v4592
        %5602 = vmatmul.mubr.f32.gmra.mrb[0].mxu0 %v4591
        %v5603 = vpop.f32.mrb[0].mxu0
        %v5604 = vadd.f32 %v5219, %v5603
        %v5605 = vpop.f32.mrb[0].mxu0
        %5606 = vmatprep.mubr.f32.mxu0 %v4600
        %5607 = vmatmul.mubr.f32.gmra.mrb[0].mxu0 %v4599
        %v5608 = vpop.f32.mrb[0].mxu0
        %v5609 = vadd.f32 %v5224, %v5608
        %v5610 = vpop.f32.mrb[0].mxu0
        %5611 = vmatprep.mubr.f32.mxu0 %v4608
        %5612 = vmatmul.mubr.f32.gmra.mrb[0].mxu0 %v4607
        %v5613 = vpop.f32.mrb[0].mxu0
        %v5614 = vadd.f32 %v5229, %v5613
        %v5615 = vpop.f32.mrb[0].mxu0
        %5616 = vmatprep.mubr.f32.mxu0 %v4616
        %5617 = vmatmul.mubr.f32.gmra.mrb[0].mxu0 %v4615
        %v5618 = vpop.f32.mrb[0].mxu0
        %v5619 = vadd.f32 %v5234, %v5618
        %v5620 = vpop.f32.mrb[0].mxu0
        %5621 = vmatprep.mubr.f32.mxu0 %v4624
        %5622 = vmatmul.mubr.f32.gmra.mrb[0].mxu0 %v4623
        %v5623 = vpop.f32.mrb[0].mxu0
        %v5624 = vadd.f32 %v5239, %v5623
        %v5625 = vpop.f32.mrb[0].mxu0
        %5626 = vmatprep.mubr.f32.mxu0 %v4632
        %5627 = vmatmul.mubr.f32.gmra.mrb[0].mxu0 %v4631
        %v5628 = vpop.f32.mrb[0].mxu0
        %v5629 = vadd.f32 %v5244, %v5628
        %v5630 = vpop.f32.mrb[0].mxu0
        %5631 = vmatprep.mubr.f32.mxu0 %v4640
        %5632 = vmatmul.mubr.f32.gmra.mrb[0].mxu0 %v4639
        %v5633 = vpop.f32.mrb[0].mxu0
        %v5634 = vadd.f32 %v5249, %v5633
        %v5635 = vpop.f32.mrb[0].mxu0
        %5636 = vmatprep.mubr.f32.mxu0 %v4648
        %5637 = vmatmul.mubr.f32.gmra.mrb[0].mxu0 %v4647
        %v5638 = vpop.f32.mrb[0].mxu0
        %v5639 = vadd.f32 %v5254, %v5638
        %v5640 = vpop.f32.mrb[0].mxu0
        %5641 = vmatprep.mubr.f32.mxu0 %v4656
        %5642 = vmatmul.mubr.f32.gmra.mrb[0].mxu0 %v4655
        %v5643 = vpop.f32.mrb[0].mxu0
        %v5644 = vadd.f32 %v5259, %v5643
        %v5645 = vpop.f32.mrb[0].mxu0
        %5646 = vmatprep.mubr.f32.mxu0 %v4664
        %5647 = vmatmul.mubr.f32.gmra.mrb[0].mxu0 %v4663
        %v5648 = vpop.f32.mrb[0].mxu0
        %v5649 = vadd.f32 %v5264, %v5648
        %v5650 = vpop.f32.mrb[0].mxu0
        %5651 = vmatprep.mubr.f32.mxu0 %v4672
        %5652 = vmatmul.mubr.f32.gmra.mrb[0].mxu0 %v4671
        %v5653 = vpop.f32.mrb[0].mxu0
        %v5654 = vadd.f32 %v5269, %v5653
        %v5655 = vpop.f32.mrb[0].mxu0
        %5656 = vmatprep.mubr.f32.mxu0 %v4680
        %5657 = vmatmul.mubr.f32.gmra.mrb[0].mxu0 %v4679
        %v5658 = vpop.f32.mrb[0].mxu0
        %v5659 = vadd.f32 %v5274, %v5658
        %v5660 = vpop.f32.mrb[0].mxu0
        %5661 = vmatprep.mubr.f32.mxu0 %v4688
        %5662 = vmatmul.mubr.f32.gmra.mrb[0].mxu0 %v4687
        %v5663 = vpop.f32.mrb[0].mxu0
        %v5664 = vadd.f32 %v5279, %v5663
        %v5665 = vpop.f32.mrb[0].mxu0
        %5666 = vmatprep.mubr.f32.mxu0 %v4696
        %5667 = vmatmul.mubr.f32.gmra.mrb[0].mxu0 %v4695
        %v5668 = vpop.f32.mrb[0].mxu0
        %v5669 = vadd.f32 %v5284, %v5668
        %v5670 = vpop.f32.mrb[0].mxu0
        %5671 = vmatprep.mubr.f32.mxu0 %v4704
        %5672 = vmatmul.mubr.f32.gmra.mrb[0].mxu0 %v4703
        %v5673 = vpop.f32.mrb[0].mxu0
        %v5674 = vadd.f32 %v5289, %v5673
        %v5675 = vpop.f32.mrb[0].mxu0
        %5676 = vmatprep.mubr.f32.mxu0 %v4712
        %5677 = vmatmul.mubr.f32.gmra.mrb[0].mxu0 %v4711
        %v5678 = vpop.f32.mrb[0].mxu0
        %v5679 = vadd.f32 %v5294, %v5678
        %v5680 = vpop.f32.mrb[0].mxu0
        %5681 = vmatprep.mubr.f32.mxu0 %v4720
        %5682 = vmatmul.mubr.f32.gmra.mrb[0].mxu0 %v4719
        %v5683 = vpop.f32.mrb[0].mxu0
        %v5684 = vadd.f32 %v5299, %v5683
        %v5685 = vpop.f32.mrb[0].mxu0
        %5686 = vmatprep.mubr.f32.mxu0 %v4728
        %5687 = vmatmul.mubr.f32.gmra.mrb[0].mxu0 %v4727
        %v5688 = vpop.f32.mrb[0].mxu0
        %v5689 = vadd.f32 %v5304, %v5688
        %v5690 = vpop.f32.mrb[0].mxu0
        %5691 = vmatprep.mubr.f32.mxu0 %v4736
        %5692 = vmatmul.mubr.f32.gmra.mrb[0].mxu0 %v4735
        %v5693 = vpop.f32.mrb[0].mxu0
        %v5694 = vadd.f32 %v5309, %v5693
        %v5695 = vpop.f32.mrb[0].mxu0
        %5696 = vmatprep.mubr.f32.mxu0 %v4744
        %5697 = vmatmul.mubr.f32.gmra.mrb[0].mxu0 %v4743
        %v5698 = vpop.f32.mrb[0].mxu0
        %v5699 = vadd.f32 %v5314, %v5698
        %v5700 = vpop.f32.mrb[0].mxu0
        %5701 = vmatprep.mubr.f32.mxu0 %v4752
        %5702 = vmatmul.mubr.f32.gmra.mrb[0].mxu0 %v4751
        %v5703 = vpop.f32.mrb[0].mxu0
        %v5704 = vadd.f32 %v5319, %v5703
        %v5705 = vpop.f32.mrb[0].mxu0
        %5706 = vmatprep.mubr.f32.mxu0 %v4760
        %5707 = vmatmul.mubr.f32.gmra.mrb[0].mxu0 %v4759
        %v5708 = vpop.f32.mrb[0].mxu0
        %v5709 = vadd.f32 %v5324, %v5708
        %v5710 = vpop.f32.mrb[0].mxu0
        %5711 = vmatprep.mubr.f32.mxu0 %v4768
        %5712 = vmatmul.mubr.f32.gmra.mrb[0].mxu0 %v4767
        %v5713 = vpop.f32.mrb[0].mxu0
        %v5714 = vadd.f32 %v5329, %v5713
        %v5715 = vpop.f32.mrb[0].mxu0
        %5716 = vmatprep.mubr.f32.mxu0 %v4776
        %5717 = vmatmul.mubr.f32.gmra.mrb[0].mxu0 %v4775
        %v5718 = vpop.f32.mrb[0].mxu0
        %v5719 = vadd.f32 %v5334, %v5718
        %v5720 = vpop.f32.mrb[0].mxu0
        %5721 = vmatprep.mubr.f32.mxu0 %v4784
        %5722 = vmatmul.mubr.f32.gmra.mrb[0].mxu0 %v4783
        %v5723 = vpop.f32.mrb[0].mxu0
        %v5724 = vadd.f32 %v5339, %v5723
        %v5725 = vpop.f32.mrb[0].mxu0
        %5726 = vmatprep.mubr.f32.mxu0 %v4792
        %5727 = vmatmul.mubr.f32.gmra.mrb[0].mxu0 %v4791
        %v5728 = vpop.f32.mrb[0].mxu0
        %v5729 = vadd.f32 %v5344, %v5728
        %v5730 = vpop.f32.mrb[0].mxu0
        %5731 = vmatprep.mubr.f32.mxu0 %v4800
        %5732 = vmatmul.mubr.f32.gmra.mrb[0].mxu0 %v4799
        %v5733 = vpop.f32.mrb[0].mxu0
        %v5734 = vadd.f32 %v5349, %v5733
        %v5735 = vpop.f32.mrb[0].mxu0
        %5736 = vmatprep.mubr.f32.mxu0 %v4808
        %5737 = vmatmul.mubr.f32.gmra.mrb[0].mxu0 %v4807
        %v5738 = vpop.f32.mrb[0].mxu0
        %v5739 = vadd.f32 %v5354, %v5738
        %v5740 = vpop.f32.mrb[0].mxu0
        %5741 = vmatprep.mubr.f32.mxu0 %v4816
        %5742 = vmatmul.mubr.f32.gmra.mrb[0].mxu0 %v4815
        %v5743 = vpop.f32.mrb[0].mxu0
        %v5744 = vadd.f32 %v5359, %v5743
        %v5745 = vpop.f32.mrb[0].mxu0
        %5746 = vmatprep.mubr.f32.mxu0 %v4824
        %5747 = vmatmul.mubr.f32.gmra.mrb[0].mxu0 %v4823
        %v5748 = vpop.f32.mrb[0].mxu0
        %v5749 = vadd.f32 %v5364, %v5748
        %v5750 = vpop.f32.mrb[0].mxu0
        %5751 = vmatprep.mubr.f32.mxu0 %v4832
        %5752 = vmatmul.mubr.f32.gmra.mrb[0].mxu0 %v4831
        %v5753 = vpop.f32.mrb[0].mxu0
        %v5754 = vadd.f32 %v5369, %v5753
        %v5755 = vpop.f32.mrb[0].mxu0
        %5756 = vmatprep.mubr.f32.mxu0 %v4840
        %5757 = vmatmul.mubr.f32.gmra.mrb[0].mxu0 %v4839
        %v5758 = vpop.f32.mrb[0].mxu0
        %v5759 = vadd.f32 %v5374, %v5758
        %v5760 = vpop.f32.mrb[0].mxu0
        %5761 = vmatprep.mubr.f32.mxu0 %v4848
        %5762 = vmatmul.mubr.f32.gmra.mrb[0].mxu0 %v4847
        %v5763 = vpop.f32.mrb[0].mxu0
        %v5764 = vadd.f32 %v5379, %v5763
        %v5765 = vpop.f32.mrb[0].mxu0
        %5766 = vmatprep.mubr.f32.mxu0 %v4856
        %5767 = vmatmul.mubr.f32.gmra.mrb[0].mxu0 %v4855
        %v5768 = vpop.f32.mrb[0].mxu0
        %v5769 = vadd.f32 %v5384, %v5768
        %v5770 = vpop.f32.mrb[0].mxu0
        %5771 = vmatprep.mubr.f32.mxu0 %v4864
        %5772 = vmatmul.mubr.f32.gmra.mrb[0].mxu0 %v4863
        %v5773 = vpop.f32.mrb[0].mxu0
        %v5774 = vadd.f32 %v5389, %v5773
        %v5775 = vpop.f32.mrb[0].mxu0
        %5776 = vmatprep.mubr.f32.mxu0 %v4872
        %5777 = vmatmul.mubr.f32.gmra.mrb[0].mxu0 %v4871
        %v5778 = vpop.f32.mrb[0].mxu0
        %v5779 = vadd.f32 %v5394, %v5778
        %v5780 = vpop.f32.mrb[0].mxu0
        %5781 = vdwg.mxu0
        %5782 = vmatprep.subr.mxu0 0.0
        %5783 = vmatpush1.msra.mxu0 %v4941
        %5784 = vmatprep.subr.mxu0 0.0
        %5785 = vmatpush1.msra.mxu0 %v4942
        %5786 = vmatprep.subr.mxu0 0.0
        %5787 = vmatpush1.msra.mxu0 %v4943
        %5788 = vmatprep.subr.mxu0 0.0
        %5789 = vmatpush1.msra.mxu0 %v4944
        %5790 = vmatprep.subr.mxu0 0.0
        %5791 = vmatpush1.msra.mxu0 %v4945
        %5792 = vmatprep.subr.mxu0 0.0
        %5793 = vmatpush1.msra.mxu0 %v4946
        %5794 = vmatprep.subr.mxu0 0.0
        %5795 = vmatpush1.msra.mxu0 %v4947
        %5796 = vmatprep.subr.mxu0 0.0
        %5797 = vmatpush1.msra.mxu0 %v4948
        %5798 = vmatprep.subr.mxu0 0.0
        %5799 = vmatpush1.msra.mxu0 %v4949
        %5800 = vmatprep.subr.mxu0 0.0
        %5801 = vmatpush1.msra.mxu0 %v4950
        %5802 = vmatprep.subr.mxu0 0.0
        %5803 = vmatpush1.msra.mxu0 %v4951
        %5804 = vmatprep.subr.mxu0 0.0
        %5805 = vmatpush1.msra.mxu0 %v4952
        %5806 = vmatprep.subr.mxu0 0.0
        %5807 = vmatpush1.msra.mxu0 %v4953
        %5808 = vmatprep.subr.mxu0 0.0
        %5809 = vmatpush1.msra.mxu0 %v4954
        %5810 = vmatprep.subr.mxu0 0.0
        %5811 = vmatpush1.msra.mxu0 %v4955
        %5812 = vmatprep.subr.mxu0 0.0
        %5813 = vmatpush1.msra.mxu0 %v4956
        %5814 = vmatprep.subr.mxu0 0.0
        %5815 = vmatpush1.msra.mxu0 %v4957
        %5816 = vmatprep.subr.mxu0 0.0
        %5817 = vmatpush1.msra.mxu0 %v4958
        %5818 = vmatprep.subr.mxu0 0.0
        %5819 = vmatpush1.msra.mxu0 %v4959
        %5820 = vmatprep.subr.mxu0 0.0
        %5821 = vmatpush1.msra.mxu0 %v4960
        %5822 = vmatprep.subr.mxu0 0.0
        %5823 = vmatpush1.msra.mxu0 %v4961
        %5824 = vmatprep.subr.mxu0 0.0
        %5825 = vmatpush1.msra.mxu0 %v4962
        %5826 = vmatprep.subr.mxu0 0.0
        %5827 = vmatpush1.msra.mxu0 %v4963
        %5828 = vmatprep.subr.mxu0 0.0
        %5829 = vmatpush1.msra.mxu0 %v4964
        %5830 = vmatprep.subr.mxu0 0.0
        %5831 = vmatpush1.msra.mxu0 %v4965
        %5832 = vmatprep.subr.mxu0 0.0
        %5833 = vmatpush1.msra.mxu0 %v4966
        %5834 = vmatprep.subr.mxu0 0.0
        %5835 = vmatpush1.msra.mxu0 %v4967
        %5836 = vmatprep.subr.mxu0 0.0
        %5837 = vmatpush1.msra.mxu0 %v4968
        %5838 = vmatprep.subr.mxu0 0.0
        %5839 = vmatpush1.msra.mxu0 %v4969
        %5840 = vmatprep.subr.mxu0 0.0
        %5841 = vmatpush1.msra.mxu0 %v4970
        %5842 = vmatprep.subr.mxu0 0.0
        %5843 = vmatpush1.msra.mxu0 %v4971
        %5844 = vmatprep.subr.mxu0 0.0
        %5845 = vmatpush1.msra.mxu0 %v4972
        %5846 = vmatprep.mubr.f32.mxu0 %v4370
        %5847 = vmatmul.mubr.f32.gmra.mrb[0].mxu0 %v4369
        %v5848 = vpop.f32.mrb[0].mxu0
        %v5849 = vadd.f32 %v5464, %v5848
        %v5850 = vpop.f32.mrb[0].mxu0
        %5851 = vmatprep.mubr.f32.mxu0 %v4378
        %5852 = vmatmul.mubr.f32.gmra.mrb[0].mxu0 %v4377
        %v5853 = vpop.f32.mrb[0].mxu0
        %v5854 = vadd.f32 %v5469, %v5853
        %v5855 = vpop.f32.mrb[0].mxu0
        %5856 = vmatprep.mubr.f32.mxu0 %v4386
        %5857 = vmatmul.mubr.f32.gmra.mrb[0].mxu0 %v4385
        %v5858 = vpop.f32.mrb[0].mxu0
        %v5859 = vadd.f32 %v5474, %v5858
        %v5860 = vpop.f32.mrb[0].mxu0
        %5861 = vmatprep.mubr.f32.mxu0 %v4394
        %5862 = vmatmul.mubr.f32.gmra.mrb[0].mxu0 %v4393
        %v5863 = vpop.f32.mrb[0].mxu0
        %v5864 = vadd.f32 %v5479, %v5863
        %v5865 = vpop.f32.mrb[0].mxu0
        %5866 = vmatprep.mubr.f32.mxu0 %v4402
        %5867 = vmatmul.mubr.f32.gmra.mrb[0].mxu0 %v4401
        %v5868 = vpop.f32.mrb[0].mxu0
        %v5869 = vadd.f32 %v5484, %v5868
        %v5870 = vpop.f32.mrb[0].mxu0
        %5871 = vmatprep.mubr.f32.mxu0 %v4410
        %5872 = vmatmul.mubr.f32.gmra.mrb[0].mxu0 %v4409
        %v5873 = vpop.f32.mrb[0].mxu0
        %v5874 = vadd.f32 %v5489, %v5873
        %v5875 = vpop.f32.mrb[0].mxu0
        %5876 = vmatprep.mubr.f32.mxu0 %v4418
        %5877 = vmatmul.mubr.f32.gmra.mrb[0].mxu0 %v4417
        %v5878 = vpop.f32.mrb[0].mxu0
        %v5879 = vadd.f32 %v5494, %v5878
        %v5880 = vpop.f32.mrb[0].mxu0
        %5881 = vmatprep.mubr.f32.mxu0 %v4426
        %5882 = vmatmul.mubr.f32.gmra.mrb[0].mxu0 %v4425
        %v5883 = vpop.f32.mrb[0].mxu0
        %v5884 = vadd.f32 %v5499, %v5883
        %v5885 = vpop.f32.mrb[0].mxu0
        %5886 = vmatprep.mubr.f32.mxu0 %v4434
        %5887 = vmatmul.mubr.f32.gmra.mrb[0].mxu0 %v4433
        %v5888 = vpop.f32.mrb[0].mxu0
        %v5889 = vadd.f32 %v5504, %v5888
        %v5890 = vpop.f32.mrb[0].mxu0
        %5891 = vmatprep.mubr.f32.mxu0 %v4442
        %5892 = vmatmul.mubr.f32.gmra.mrb[0].mxu0 %v4441
        %v5893 = vpop.f32.mrb[0].mxu0
        %v5894 = vadd.f32 %v5509, %v5893
        %v5895 = vpop.f32.mrb[0].mxu0
        %5896 = vmatprep.mubr.f32.mxu0 %v4450
        %5897 = vmatmul.mubr.f32.gmra.mrb[0].mxu0 %v4449
        %v5898 = vpop.f32.mrb[0].mxu0
        %v5899 = vadd.f32 %v5514, %v5898
        %v5900 = vpop.f32.mrb[0].mxu0
        %5901 = vmatprep.mubr.f32.mxu0 %v4458
        %5902 = vmatmul.mubr.f32.gmra.mrb[0].mxu0 %v4457
        %v5903 = vpop.f32.mrb[0].mxu0
        %v5904 = vadd.f32 %v5519, %v5903
        %v5905 = vpop.f32.mrb[0].mxu0
        %5906 = vmatprep.mubr.f32.mxu0 %v4466
        %5907 = vmatmul.mubr.f32.gmra.mrb[0].mxu0 %v4465
        %v5908 = vpop.f32.mrb[0].mxu0
        %v5909 = vadd.f32 %v5524, %v5908
        %v5910 = vpop.f32.mrb[0].mxu0
        %5911 = vmatprep.mubr.f32.mxu0 %v4474
        %5912 = vmatmul.mubr.f32.gmra.mrb[0].mxu0 %v4473
        %v5913 = vpop.f32.mrb[0].mxu0
        %v5914 = vadd.f32 %v5529, %v5913
        %v5915 = vpop.f32.mrb[0].mxu0
        %5916 = vmatprep.mubr.f32.mxu0 %v4482
        %5917 = vmatmul.mubr.f32.gmra.mrb[0].mxu0 %v4481
        %v5918 = vpop.f32.mrb[0].mxu0
        %v5919 = vadd.f32 %v5534, %v5918
        %v5920 = vpop.f32.mrb[0].mxu0
        %5921 = vmatprep.mubr.f32.mxu0 %v4490
        %5922 = vmatmul.mubr.f32.gmra.mrb[0].mxu0 %v4489
        %v5923 = vpop.f32.mrb[0].mxu0
        %v5924 = vadd.f32 %v5539, %v5923
        %v5925 = vpop.f32.mrb[0].mxu0
        %5926 = vmatprep.mubr.f32.mxu0 %v4498
        %5927 = vmatmul.mubr.f32.gmra.mrb[0].mxu0 %v4497
        %v5928 = vpop.f32.mrb[0].mxu0
        %v5929 = vadd.f32 %v5544, %v5928
        %v5930 = vpop.f32.mrb[0].mxu0
        %5931 = vmatprep.mubr.f32.mxu0 %v4506
        %5932 = vmatmul.mubr.f32.gmra.mrb[0].mxu0 %v4505
        %v5933 = vpop.f32.mrb[0].mxu0
        %v5934 = vadd.f32 %v5549, %v5933
        %v5935 = vpop.f32.mrb[0].mxu0
        %5936 = vmatprep.mubr.f32.mxu0 %v4514
        %5937 = vmatmul.mubr.f32.gmra.mrb[0].mxu0 %v4513
        %v5938 = vpop.f32.mrb[0].mxu0
        %v5939 = vadd.f32 %v5554, %v5938
        %v5940 = vpop.f32.mrb[0].mxu0
        %5941 = vmatprep.mubr.f32.mxu0 %v4522
        %5942 = vmatmul.mubr.f32.gmra.mrb[0].mxu0 %v4521
        %v5943 = vpop.f32.mrb[0].mxu0
        %v5944 = vadd.f32 %v5559, %v5943
        %v5945 = vpop.f32.mrb[0].mxu0
        %5946 = vmatprep.mubr.f32.mxu0 %v4530
        %5947 = vmatmul.mubr.f32.gmra.mrb[0].mxu0 %v4529
        %v5948 = vpop.f32.mrb[0].mxu0
        %v5949 = vadd.f32 %v5564, %v5948
        %v5950 = vpop.f32.mrb[0].mxu0
        %5951 = vmatprep.mubr.f32.mxu0 %v4538
        %5952 = vmatmul.mubr.f32.gmra.mrb[0].mxu0 %v4537
        %v5953 = vpop.f32.mrb[0].mxu0
        %v5954 = vadd.f32 %v5569, %v5953
        %v5955 = vpop.f32.mrb[0].mxu0
        %5956 = vmatprep.mubr.f32.mxu0 %v4546
        %5957 = vmatmul.mubr.f32.gmra.mrb[0].mxu0 %v4545
        %v5958 = vpop.f32.mrb[0].mxu0
        %v5959 = vadd.f32 %v5574, %v5958
        %v5960 = vpop.f32.mrb[0].mxu0
        %5961 = vmatprep.mubr.f32.mxu0 %v4554
        %5962 = vmatmul.mubr.f32.gmra.mrb[0].mxu0 %v4553
        %v5963 = vpop.f32.mrb[0].mxu0
        %v5964 = vadd.f32 %v5579, %v5963
        %v5965 = vpop.f32.mrb[0].mxu0
        %5966 = vmatprep.mubr.f32.mxu0 %v4562
        %5967 = vmatmul.mubr.f32.gmra.mrb[0].mxu0 %v4561
        %v5968 = vpop.f32.mrb[0].mxu0
        %v5969 = vadd.f32 %v5584, %v5968
        %v5970 = vpop.f32.mrb[0].mxu0
        %5971 = vmatprep.mubr.f32.mxu0 %v4570
        %5972 = vmatmul.mubr.f32.gmra.mrb[0].mxu0 %v4569
        %v5973 = vpop.f32.mrb[0].mxu0
        %v5974 = vadd.f32 %v5589, %v5973
        %v5975 = vpop.f32.mrb[0].mxu0
        %5976 = vmatprep.mubr.f32.mxu0 %v4578
        %5977 = vmatmul.mubr.f32.gmra.mrb[0].mxu0 %v4577
        %v5978 = vpop.f32.mrb[0].mxu0
        %v5979 = vadd.f32 %v5594, %v5978
        %v5980 = vpop.f32.mrb[0].mxu0
        %5981 = vmatprep.mubr.f32.mxu0 %v4586
        %5982 = vmatmul.mubr.f32.gmra.mrb[0].mxu0 %v4585
        %v5983 = vpop.f32.mrb[0].mxu0
        %v5984 = vadd.f32 %v5599, %v5983
        %v5985 = vpop.f32.mrb[0].mxu0
        %5986 = vmatprep.mubr.f32.mxu0 %v4594
        %5987 = vmatmul.mubr.f32.gmra.mrb[0].mxu0 %v4593
        %v5988 = vpop.f32.mrb[0].mxu0
        %v5989 = vadd.f32 %v5604, %v5988
        %v5990 = vpop.f32.mrb[0].mxu0
        %5991 = vmatprep.mubr.f32.mxu0 %v4602
        %5992 = vmatmul.mubr.f32.gmra.mrb[0].mxu0 %v4601
        %v5993 = vpop.f32.mrb[0].mxu0
        %v5994 = vadd.f32 %v5609, %v5993
        %v5995 = vpop.f32.mrb[0].mxu0
        %5996 = vmatprep.mubr.f32.mxu0 %v4610
        %5997 = vmatmul.mubr.f32.gmra.mrb[0].mxu0 %v4609
        %v5998 = vpop.f32.mrb[0].mxu0
        %v5999 = vadd.f32 %v5614, %v5998
        %v6000 = vpop.f32.mrb[0].mxu0
        %6001 = vmatprep.mubr.f32.mxu0 %v4618
        %6002 = vmatmul.mubr.f32.gmra.mrb[0].mxu0 %v4617
        %v6003 = vpop.f32.mrb[0].mxu0
        %v6004 = vadd.f32 %v5619, %v6003
        %v6005 = vpop.f32.mrb[0].mxu0
        %6006 = vmatprep.mubr.f32.mxu0 %v4626
        %6007 = vmatmul.mubr.f32.gmra.mrb[0].mxu0 %v4625
        %v6008 = vpop.f32.mrb[0].mxu0
        %v6009 = vadd.f32 %v5624, %v6008
        %v6010 = vpop.f32.mrb[0].mxu0
        %6011 = vmatprep.mubr.f32.mxu0 %v4634
        %6012 = vmatmul.mubr.f32.gmra.mrb[0].mxu0 %v4633
        %v6013 = vpop.f32.mrb[0].mxu0
        %v6014 = vadd.f32 %v5629, %v6013
        %v6015 = vpop.f32.mrb[0].mxu0
        %6016 = vmatprep.mubr.f32.mxu0 %v4642
        %6017 = vmatmul.mubr.f32.gmra.mrb[0].mxu0 %v4641
        %v6018 = vpop.f32.mrb[0].mxu0
        %v6019 = vadd.f32 %v5634, %v6018
        %v6020 = vpop.f32.mrb[0].mxu0
        %6021 = vmatprep.mubr.f32.mxu0 %v4650
        %6022 = vmatmul.mubr.f32.gmra.mrb[0].mxu0 %v4649
        %v6023 = vpop.f32.mrb[0].mxu0
        %v6024 = vadd.f32 %v5639, %v6023
        %v6025 = vpop.f32.mrb[0].mxu0
        %6026 = vmatprep.mubr.f32.mxu0 %v4658
        %6027 = vmatmul.mubr.f32.gmra.mrb[0].mxu0 %v4657
        %v6028 = vpop.f32.mrb[0].mxu0
        %v6029 = vadd.f32 %v5644, %v6028
        %v6030 = vpop.f32.mrb[0].mxu0
        %6031 = vmatprep.mubr.f32.mxu0 %v4666
        %6032 = vmatmul.mubr.f32.gmra.mrb[0].mxu0 %v4665
        %v6033 = vpop.f32.mrb[0].mxu0
        %v6034 = vadd.f32 %v5649, %v6033
        %v6035 = vpop.f32.mrb[0].mxu0
        %6036 = vmatprep.mubr.f32.mxu0 %v4674
        %6037 = vmatmul.mubr.f32.gmra.mrb[0].mxu0 %v4673
        %v6038 = vpop.f32.mrb[0].mxu0
        %v6039 = vadd.f32 %v5654, %v6038
        %v6040 = vpop.f32.mrb[0].mxu0
        %6041 = vmatprep.mubr.f32.mxu0 %v4682
        %6042 = vmatmul.mubr.f32.gmra.mrb[0].mxu0 %v4681
        %v6043 = vpop.f32.mrb[0].mxu0
        %v6044 = vadd.f32 %v5659, %v6043
        %v6045 = vpop.f32.mrb[0].mxu0
        %6046 = vmatprep.mubr.f32.mxu0 %v4690
        %6047 = vmatmul.mubr.f32.gmra.mrb[0].mxu0 %v4689
        %v6048 = vpop.f32.mrb[0].mxu0
        %v6049 = vadd.f32 %v5664, %v6048
        %v6050 = vpop.f32.mrb[0].mxu0
        %6051 = vmatprep.mubr.f32.mxu0 %v4698
        %6052 = vmatmul.mubr.f32.gmra.mrb[0].mxu0 %v4697
        %v6053 = vpop.f32.mrb[0].mxu0
        %v6054 = vadd.f32 %v5669, %v6053
        %v6055 = vpop.f32.mrb[0].mxu0
        %6056 = vmatprep.mubr.f32.mxu0 %v4706
        %6057 = vmatmul.mubr.f32.gmra.mrb[0].mxu0 %v4705
        %v6058 = vpop.f32.mrb[0].mxu0
        %v6059 = vadd.f32 %v5674, %v6058
        %v6060 = vpop.f32.mrb[0].mxu0
        %6061 = vmatprep.mubr.f32.mxu0 %v4714
        %6062 = vmatmul.mubr.f32.gmra.mrb[0].mxu0 %v4713
        %v6063 = vpop.f32.mrb[0].mxu0
        %v6064 = vadd.f32 %v5679, %v6063
        %v6065 = vpop.f32.mrb[0].mxu0
        %6066 = vmatprep.mubr.f32.mxu0 %v4722
        %6067 = vmatmul.mubr.f32.gmra.mrb[0].mxu0 %v4721
        %v6068 = vpop.f32.mrb[0].mxu0
        %v6069 = vadd.f32 %v5684, %v6068
        %v6070 = vpop.f32.mrb[0].mxu0
        %6071 = vmatprep.mubr.f32.mxu0 %v4730
        %6072 = vmatmul.mubr.f32.gmra.mrb[0].mxu0 %v4729
        %v6073 = vpop.f32.mrb[0].mxu0
        %v6074 = vadd.f32 %v5689, %v6073
        %v6075 = vpop.f32.mrb[0].mxu0
        %6076 = vmatprep.mubr.f32.mxu0 %v4738
        %6077 = vmatmul.mubr.f32.gmra.mrb[0].mxu0 %v4737
        %v6078 = vpop.f32.mrb[0].mxu0
        %v6079 = vadd.f32 %v5694, %v6078
        %v6080 = vpop.f32.mrb[0].mxu0
        %6081 = vmatprep.mubr.f32.mxu0 %v4746
        %6082 = vmatmul.mubr.f32.gmra.mrb[0].mxu0 %v4745
        %v6083 = vpop.f32.mrb[0].mxu0
        %v6084 = vadd.f32 %v5699, %v6083
        %v6085 = vpop.f32.mrb[0].mxu0
        %6086 = vmatprep.mubr.f32.mxu0 %v4754
        %6087 = vmatmul.mubr.f32.gmra.mrb[0].mxu0 %v4753
        %v6088 = vpop.f32.mrb[0].mxu0
        %v6089 = vadd.f32 %v5704, %v6088
        %v6090 = vpop.f32.mrb[0].mxu0
        %6091 = vmatprep.mubr.f32.mxu0 %v4762
        %6092 = vmatmul.mubr.f32.gmra.mrb[0].mxu0 %v4761
        %v6093 = vpop.f32.mrb[0].mxu0
        %v6094 = vadd.f32 %v5709, %v6093
        %v6095 = vpop.f32.mrb[0].mxu0
        %6096 = vmatprep.mubr.f32.mxu0 %v4770
        %6097 = vmatmul.mubr.f32.gmra.mrb[0].mxu0 %v4769
        %v6098 = vpop.f32.mrb[0].mxu0
        %v6099 = vadd.f32 %v5714, %v6098
        %v6100 = vpop.f32.mrb[0].mxu0
        %6101 = vmatprep.mubr.f32.mxu0 %v4778
        %6102 = vmatmul.mubr.f32.gmra.mrb[0].mxu0 %v4777
        %v6103 = vpop.f32.mrb[0].mxu0
        %v6104 = vadd.f32 %v5719, %v6103
        %v6105 = vpop.f32.mrb[0].mxu0
        %6106 = vmatprep.mubr.f32.mxu0 %v4786
        %6107 = vmatmul.mubr.f32.gmra.mrb[0].mxu0 %v4785
        %v6108 = vpop.f32.mrb[0].mxu0
        %v6109 = vadd.f32 %v5724, %v6108
        %v6110 = vpop.f32.mrb[0].mxu0
        %6111 = vmatprep.mubr.f32.mxu0 %v4794
        %6112 = vmatmul.mubr.f32.gmra.mrb[0].mxu0 %v4793
        %v6113 = vpop.f32.mrb[0].mxu0
        %v6114 = vadd.f32 %v5729, %v6113
        %v6115 = vpop.f32.mrb[0].mxu0
        %6116 = vmatprep.mubr.f32.mxu0 %v4802
        %6117 = vmatmul.mubr.f32.gmra.mrb[0].mxu0 %v4801
        %v6118 = vpop.f32.mrb[0].mxu0
        %v6119 = vadd.f32 %v5734, %v6118
        %v6120 = vpop.f32.mrb[0].mxu0
        %6121 = vmatprep.mubr.f32.mxu0 %v4810
        %6122 = vmatmul.mubr.f32.gmra.mrb[0].mxu0 %v4809
        %v6123 = vpop.f32.mrb[0].mxu0
        %v6124 = vadd.f32 %v5739, %v6123
        %v6125 = vpop.f32.mrb[0].mxu0
        %6126 = vmatprep.mubr.f32.mxu0 %v4818
        %6127 = vmatmul.mubr.f32.gmra.mrb[0].mxu0 %v4817
        %v6128 = vpop.f32.mrb[0].mxu0
        %v6129 = vadd.f32 %v5744, %v6128
        %v6130 = vpop.f32.mrb[0].mxu0
        %6131 = vmatprep.mubr.f32.mxu0 %v4826
        %6132 = vmatmul.mubr.f32.gmra.mrb[0].mxu0 %v4825
        %v6133 = vpop.f32.mrb[0].mxu0
        %v6134 = vadd.f32 %v5749, %v6133
        %v6135 = vpop.f32.mrb[0].mxu0
        %6136 = vmatprep.mubr.f32.mxu0 %v4834
        %6137 = vmatmul.mubr.f32.gmra.mrb[0].mxu0 %v4833
        %v6138 = vpop.f32.mrb[0].mxu0
        %v6139 = vadd.f32 %v5754, %v6138
        %v6140 = vpop.f32.mrb[0].mxu0
        %6141 = vmatprep.mubr.f32.mxu0 %v4842
        %6142 = vmatmul.mubr.f32.gmra.mrb[0].mxu0 %v4841
        %v6143 = vpop.f32.mrb[0].mxu0
        %v6144 = vadd.f32 %v5759, %v6143
        %v6145 = vpop.f32.mrb[0].mxu0
        %6146 = vmatprep.mubr.f32.mxu0 %v4850
        %6147 = vmatmul.mubr.f32.gmra.mrb[0].mxu0 %v4849
        %v6148 = vpop.f32.mrb[0].mxu0
        %v6149 = vadd.f32 %v5764, %v6148
        %v6150 = vpop.f32.mrb[0].mxu0
        %6151 = vmatprep.mubr.f32.mxu0 %v4858
        %6152 = vmatmul.mubr.f32.gmra.mrb[0].mxu0 %v4857
        %v6153 = vpop.f32.mrb[0].mxu0
        %v6154 = vadd.f32 %v5769, %v6153
        %v6155 = vpop.f32.mrb[0].mxu0
        %6156 = vmatprep.mubr.f32.mxu0 %v4866
        %6157 = vmatmul.mubr.f32.gmra.mrb[0].mxu0 %v4865
        %v6158 = vpop.f32.mrb[0].mxu0
        %v6159 = vadd.f32 %v5774, %v6158
        %v6160 = vpop.f32.mrb[0].mxu0
        %6161 = vmatprep.mubr.f32.mxu0 %v4874
        %6162 = vmatmul.mubr.f32.gmra.mrb[0].mxu0 %v4873
        %v6163 = vpop.f32.mrb[0].mxu0
        %v6164 = vadd.f32 %v5779, %v6163
        %v6165 = vpop.f32.mrb[0].mxu0
        %6166 = vdwg.mxu0
        %6167 = vmatprep.subr.mxu0 0.0
        %6168 = vmatpush1.msra.mxu0 %v4973
        %6169 = vmatprep.subr.mxu0 0.0
        %6170 = vmatpush1.msra.mxu0 %v4974
        %6171 = vmatprep.subr.mxu0 0.0
        %6172 = vmatpush1.msra.mxu0 %v4975
        %6173 = vmatprep.subr.mxu0 0.0
        %6174 = vmatpush1.msra.mxu0 %v4976
        %6175 = vmatprep.subr.mxu0 0.0
        %6176 = vmatpush1.msra.mxu0 %v4977
        %6177 = vmatprep.subr.mxu0 0.0
        %6178 = vmatpush1.msra.mxu0 %v4978
        %6179 = vmatprep.subr.mxu0 0.0
        %6180 = vmatpush1.msra.mxu0 %v4979
        %6181 = vmatprep.subr.mxu0 0.0
        %6182 = vmatpush1.msra.mxu0 %v4980
        %6183 = vmatprep.subr.mxu0 0.0
        %6184 = vmatpush1.msra.mxu0 %v4981
        %6185 = vmatprep.subr.mxu0 0.0
        %6186 = vmatpush1.msra.mxu0 %v4982
        %6187 = vmatprep.subr.mxu0 0.0
        %6188 = vmatpush1.msra.mxu0 %v4983
        %6189 = vmatprep.subr.mxu0 0.0
        %6190 = vmatpush1.msra.mxu0 %v4984
        %6191 = vmatprep.subr.mxu0 0.0
        %6192 = vmatpush1.msra.mxu0 %v4985
        %6193 = vmatprep.subr.mxu0 0.0
        %6194 = vmatpush1.msra.mxu0 %v4986
        %6195 = vmatprep.subr.mxu0 0.0
        %6196 = vmatpush1.msra.mxu0 %v4987
        %6197 = vmatprep.subr.mxu0 0.0
        %6198 = vmatpush1.msra.mxu0 %v4988
        %6199 = vmatprep.subr.mxu0 0.0
        %6200 = vmatpush1.msra.mxu0 %v4989
        %6201 = vmatprep.subr.mxu0 0.0
        %6202 = vmatpush1.msra.mxu0 %v4990
        %6203 = vmatprep.subr.mxu0 0.0
        %6204 = vmatpush1.msra.mxu0 %v4991
        %6205 = vmatprep.subr.mxu0 0.0
        %6206 = vmatpush1.msra.mxu0 %v4992
        %6207 = vmatprep.subr.mxu0 0.0
        %6208 = vmatpush1.msra.mxu0 %v4993
        %6209 = vmatprep.subr.mxu0 0.0
        %6210 = vmatpush1.msra.mxu0 %v4994
        %6211 = vmatprep.subr.mxu0 0.0
        %6212 = vmatpush1.msra.mxu0 %v4995
        %6213 = vmatprep.subr.mxu0 0.0
        %6214 = vmatpush1.msra.mxu0 %v4996
        %6215 = vmatprep.subr.mxu0 0.0
        %6216 = vmatpush1.msra.mxu0 %v4997
        %6217 = vmatprep.subr.mxu0 0.0
        %6218 = vmatpush1.msra.mxu0 %v4998
        %6219 = vmatprep.subr.mxu0 0.0
        %6220 = vmatpush1.msra.mxu0 %v4999
        %6221 = vmatprep.subr.mxu0 0.0
        %6222 = vmatpush1.msra.mxu0 %v5000
        %6223 = vmatprep.subr.mxu0 0.0
        %6224 = vmatpush1.msra.mxu0 %v5001
        %6225 = vmatprep.subr.mxu0 0.0
        %6226 = vmatpush1.msra.mxu0 %v5002
        %6227 = vmatprep.subr.mxu0 0.0
        %6228 = vmatpush1.msra.mxu0 %v5003
        %6229 = vmatprep.subr.mxu0 0.0
        %6230 = vmatpush1.msra.mxu0 %v5004
        %6231 = vmatprep.mubr.f32.mxu0 %v4372
        %6232 = vmatmul.mubr.f32.gmra.mrb[0].mxu0 %v4371
        %v6233 = vpop.f32.mrb[0].mxu0
        %v6234 = vadd.f32 %v5849, %v6233
        %v6235 = vpop.f32.mrb[0].mxu0
        %6236 = vmatprep.mubr.f32.mxu0 %v4380
        %6237 = vmatmul.mubr.f32.gmra.mrb[0].mxu0 %v4379
        %v6238 = vpop.f32.mrb[0].mxu0
        %v6239 = vadd.f32 %v5854, %v6238
        %v6240 = vpop.f32.mrb[0].mxu0
        %6241 = vmatprep.mubr.f32.mxu0 %v4388
        %6242 = vmatmul.mubr.f32.gmra.mrb[0].mxu0 %v4387
        %v6243 = vpop.f32.mrb[0].mxu0
        %v6244 = vadd.f32 %v5859, %v6243
        %v6245 = vpop.f32.mrb[0].mxu0
        %6246 = vmatprep.mubr.f32.mxu0 %v4396
        %6247 = vmatmul.mubr.f32.gmra.mrb[0].mxu0 %v4395
        %v6248 = vpop.f32.mrb[0].mxu0
        %v6249 = vadd.f32 %v5864, %v6248
        %v6250 = vpop.f32.mrb[0].mxu0
        %6251 = vmatprep.mubr.f32.mxu0 %v4404
        %6252 = vmatmul.mubr.f32.gmra.mrb[0].mxu0 %v4403
        %v6253 = vpop.f32.mrb[0].mxu0
        %v6254 = vadd.f32 %v5869, %v6253
        %v6255 = vpop.f32.mrb[0].mxu0
        %6256 = vmatprep.mubr.f32.mxu0 %v4412
        %6257 = vmatmul.mubr.f32.gmra.mrb[0].mxu0 %v4411
        %v6258 = vpop.f32.mrb[0].mxu0
        %v6259 = vadd.f32 %v5874, %v6258
        %v6260 = vpop.f32.mrb[0].mxu0
        %6261 = vmatprep.mubr.f32.mxu0 %v4420
        %6262 = vmatmul.mubr.f32.gmra.mrb[0].mxu0 %v4419
        %v6263 = vpop.f32.mrb[0].mxu0
        %v6264 = vadd.f32 %v5879, %v6263
        %v6265 = vpop.f32.mrb[0].mxu0
        %6266 = vmatprep.mubr.f32.mxu0 %v4428
        %6267 = vmatmul.mubr.f32.gmra.mrb[0].mxu0 %v4427
        %v6268 = vpop.f32.mrb[0].mxu0
        %v6269 = vadd.f32 %v5884, %v6268
        %v6270 = vpop.f32.mrb[0].mxu0
        %6271 = vmatprep.mubr.f32.mxu0 %v4436
        %6272 = vmatmul.mubr.f32.gmra.mrb[0].mxu0 %v4435
        %v6273 = vpop.f32.mrb[0].mxu0
        %v6274 = vadd.f32 %v5889, %v6273
        %v6275 = vpop.f32.mrb[0].mxu0
        %6276 = vmatprep.mubr.f32.mxu0 %v4444
        %6277 = vmatmul.mubr.f32.gmra.mrb[0].mxu0 %v4443
        %v6278 = vpop.f32.mrb[0].mxu0
        %v6279 = vadd.f32 %v5894, %v6278
        %v6280 = vpop.f32.mrb[0].mxu0
        %6281 = vmatprep.mubr.f32.mxu0 %v4452
        %6282 = vmatmul.mubr.f32.gmra.mrb[0].mxu0 %v4451
        %v6283 = vpop.f32.mrb[0].mxu0
        %v6284 = vadd.f32 %v5899, %v6283
        %v6285 = vpop.f32.mrb[0].mxu0
        %6286 = vmatprep.mubr.f32.mxu0 %v4460
        %6287 = vmatmul.mubr.f32.gmra.mrb[0].mxu0 %v4459
        %v6288 = vpop.f32.mrb[0].mxu0
        %v6289 = vadd.f32 %v5904, %v6288
        %v6290 = vpop.f32.mrb[0].mxu0
        %6291 = vmatprep.mubr.f32.mxu0 %v4468
        %6292 = vmatmul.mubr.f32.gmra.mrb[0].mxu0 %v4467
        %v6293 = vpop.f32.mrb[0].mxu0
        %v6294 = vadd.f32 %v5909, %v6293
        %v6295 = vpop.f32.mrb[0].mxu0
        %6296 = vmatprep.mubr.f32.mxu0 %v4476
        %6297 = vmatmul.mubr.f32.gmra.mrb[0].mxu0 %v4475
        %v6298 = vpop.f32.mrb[0].mxu0
        %v6299 = vadd.f32 %v5914, %v6298
        %v6300 = vpop.f32.mrb[0].mxu0
        %6301 = vmatprep.mubr.f32.mxu0 %v4484
        %6302 = vmatmul.mubr.f32.gmra.mrb[0].mxu0 %v4483
        %v6303 = vpop.f32.mrb[0].mxu0
        %v6304 = vadd.f32 %v5919, %v6303
        %v6305 = vpop.f32.mrb[0].mxu0
        %6306 = vmatprep.mubr.f32.mxu0 %v4492
        %6307 = vmatmul.mubr.f32.gmra.mrb[0].mxu0 %v4491
        %v6308 = vpop.f32.mrb[0].mxu0
        %v6309 = vadd.f32 %v5924, %v6308
        %v6310 = vpop.f32.mrb[0].mxu0
        %6311 = vmatprep.mubr.f32.mxu0 %v4500
        %6312 = vmatmul.mubr.f32.gmra.mrb[0].mxu0 %v4499
        %v6313 = vpop.f32.mrb[0].mxu0
        %v6314 = vadd.f32 %v5929, %v6313
        %v6315 = vpop.f32.mrb[0].mxu0
        %6316 = vmatprep.mubr.f32.mxu0 %v4508
        %6317 = vmatmul.mubr.f32.gmra.mrb[0].mxu0 %v4507
        %v6318 = vpop.f32.mrb[0].mxu0
        %v6319 = vadd.f32 %v5934, %v6318
        %v6320 = vpop.f32.mrb[0].mxu0
        %6321 = vmatprep.mubr.f32.mxu0 %v4516
        %6322 = vmatmul.mubr.f32.gmra.mrb[0].mxu0 %v4515
        %v6323 = vpop.f32.mrb[0].mxu0
        %v6324 = vadd.f32 %v5939, %v6323
        %v6325 = vpop.f32.mrb[0].mxu0
        %6326 = vmatprep.mubr.f32.mxu0 %v4524
        %6327 = vmatmul.mubr.f32.gmra.mrb[0].mxu0 %v4523
        %v6328 = vpop.f32.mrb[0].mxu0
        %v6329 = vadd.f32 %v5944, %v6328
        %v6330 = vpop.f32.mrb[0].mxu0
        %6331 = vmatprep.mubr.f32.mxu0 %v4532
        %6332 = vmatmul.mubr.f32.gmra.mrb[0].mxu0 %v4531
        %v6333 = vpop.f32.mrb[0].mxu0
        %v6334 = vadd.f32 %v5949, %v6333
        %v6335 = vpop.f32.mrb[0].mxu0
        %6336 = vmatprep.mubr.f32.mxu0 %v4540
        %6337 = vmatmul.mubr.f32.gmra.mrb[0].mxu0 %v4539
        %v6338 = vpop.f32.mrb[0].mxu0
        %v6339 = vadd.f32 %v5954, %v6338
        %v6340 = vpop.f32.mrb[0].mxu0
        %6341 = vmatprep.mubr.f32.mxu0 %v4548
        %6342 = vmatmul.mubr.f32.gmra.mrb[0].mxu0 %v4547
        %v6343 = vpop.f32.mrb[0].mxu0
        %v6344 = vadd.f32 %v5959, %v6343
        %v6345 = vpop.f32.mrb[0].mxu0
        %6346 = vmatprep.mubr.f32.mxu0 %v4556
        %6347 = vmatmul.mubr.f32.gmra.mrb[0].mxu0 %v4555
        %v6348 = vpop.f32.mrb[0].mxu0
        %v6349 = vadd.f32 %v5964, %v6348
        %v6350 = vpop.f32.mrb[0].mxu0
        %6351 = vmatprep.mubr.f32.mxu0 %v4564
        %6352 = vmatmul.mubr.f32.gmra.mrb[0].mxu0 %v4563
        %v6353 = vpop.f32.mrb[0].mxu0
        %v6354 = vadd.f32 %v5969, %v6353
        %v6355 = vpop.f32.mrb[0].mxu0
        %6356 = vmatprep.mubr.f32.mxu0 %v4572
        %6357 = vmatmul.mubr.f32.gmra.mrb[0].mxu0 %v4571
        %v6358 = vpop.f32.mrb[0].mxu0
        %v6359 = vadd.f32 %v5974, %v6358
        %v6360 = vpop.f32.mrb[0].mxu0
        %6361 = vmatprep.mubr.f32.mxu0 %v4580
        %6362 = vmatmul.mubr.f32.gmra.mrb[0].mxu0 %v4579
        %v6363 = vpop.f32.mrb[0].mxu0
        %v6364 = vadd.f32 %v5979, %v6363
        %v6365 = vpop.f32.mrb[0].mxu0
        %6366 = vmatprep.mubr.f32.mxu0 %v4588
        %6367 = vmatmul.mubr.f32.gmra.mrb[0].mxu0 %v4587
        %v6368 = vpop.f32.mrb[0].mxu0
        %v6369 = vadd.f32 %v5984, %v6368
        %v6370 = vpop.f32.mrb[0].mxu0
        %6371 = vmatprep.mubr.f32.mxu0 %v4596
        %6372 = vmatmul.mubr.f32.gmra.mrb[0].mxu0 %v4595
        %v6373 = vpop.f32.mrb[0].mxu0
        %v6374 = vadd.f32 %v5989, %v6373
        %v6375 = vpop.f32.mrb[0].mxu0
        %6376 = vmatprep.mubr.f32.mxu0 %v4604
        %6377 = vmatmul.mubr.f32.gmra.mrb[0].mxu0 %v4603
        %v6378 = vpop.f32.mrb[0].mxu0
        %v6379 = vadd.f32 %v5994, %v6378
        %v6380 = vpop.f32.mrb[0].mxu0
        %6381 = vmatprep.mubr.f32.mxu0 %v4612
        %6382 = vmatmul.mubr.f32.gmra.mrb[0].mxu0 %v4611
        %v6383 = vpop.f32.mrb[0].mxu0
        %v6384 = vadd.f32 %v5999, %v6383
        %v6385 = vpop.f32.mrb[0].mxu0
        %6386 = vmatprep.mubr.f32.mxu0 %v4620
        %6387 = vmatmul.mubr.f32.gmra.mrb[0].mxu0 %v4619
        %v6388 = vpop.f32.mrb[0].mxu0
        %v6389 = vadd.f32 %v6004, %v6388
        %v6390 = vpop.f32.mrb[0].mxu0
        %6391 = vmatprep.mubr.f32.mxu0 %v4628
        %6392 = vmatmul.mubr.f32.gmra.mrb[0].mxu0 %v4627
        %v6393 = vpop.f32.mrb[0].mxu0
        %v6394 = vadd.f32 %v6009, %v6393
        %v6395 = vpop.f32.mrb[0].mxu0
        %6396 = vmatprep.mubr.f32.mxu0 %v4636
        %6397 = vmatmul.mubr.f32.gmra.mrb[0].mxu0 %v4635
        %v6398 = vpop.f32.mrb[0].mxu0
        %v6399 = vadd.f32 %v6014, %v6398
        %v6400 = vpop.f32.mrb[0].mxu0
        %6401 = vmatprep.mubr.f32.mxu0 %v4644
        %6402 = vmatmul.mubr.f32.gmra.mrb[0].mxu0 %v4643
        %v6403 = vpop.f32.mrb[0].mxu0
        %v6404 = vadd.f32 %v6019, %v6403
        %v6405 = vpop.f32.mrb[0].mxu0
        %6406 = vmatprep.mubr.f32.mxu0 %v4652
        %6407 = vmatmul.mubr.f32.gmra.mrb[0].mxu0 %v4651
        %v6408 = vpop.f32.mrb[0].mxu0
        %v6409 = vadd.f32 %v6024, %v6408
        %v6410 = vpop.f32.mrb[0].mxu0
        %6411 = vmatprep.mubr.f32.mxu0 %v4660
        %6412 = vmatmul.mubr.f32.gmra.mrb[0].mxu0 %v4659
        %v6413 = vpop.f32.mrb[0].mxu0
        %v6414 = vadd.f32 %v6029, %v6413
        %v6415 = vpop.f32.mrb[0].mxu0
        %6416 = vmatprep.mubr.f32.mxu0 %v4668
        %6417 = vmatmul.mubr.f32.gmra.mrb[0].mxu0 %v4667
        %v6418 = vpop.f32.mrb[0].mxu0
        %v6419 = vadd.f32 %v6034, %v6418
        %v6420 = vpop.f32.mrb[0].mxu0
        %6421 = vmatprep.mubr.f32.mxu0 %v4676
        %6422 = vmatmul.mubr.f32.gmra.mrb[0].mxu0 %v4675
        %v6423 = vpop.f32.mrb[0].mxu0
        %v6424 = vadd.f32 %v6039, %v6423
        %v6425 = vpop.f32.mrb[0].mxu0
        %6426 = vmatprep.mubr.f32.mxu0 %v4684
        %6427 = vmatmul.mubr.f32.gmra.mrb[0].mxu0 %v4683
        %v6428 = vpop.f32.mrb[0].mxu0
        %v6429 = vadd.f32 %v6044, %v6428
        %v6430 = vpop.f32.mrb[0].mxu0
        %6431 = vmatprep.mubr.f32.mxu0 %v4692
        %6432 = vmatmul.mubr.f32.gmra.mrb[0].mxu0 %v4691
        %v6433 = vpop.f32.mrb[0].mxu0
        %v6434 = vadd.f32 %v6049, %v6433
        %v6435 = vpop.f32.mrb[0].mxu0
        %6436 = vmatprep.mubr.f32.mxu0 %v4700
        %6437 = vmatmul.mubr.f32.gmra.mrb[0].mxu0 %v4699
        %v6438 = vpop.f32.mrb[0].mxu0
        %v6439 = vadd.f32 %v6054, %v6438
        %v6440 = vpop.f32.mrb[0].mxu0
        %6441 = vmatprep.mubr.f32.mxu0 %v4708
        %6442 = vmatmul.mubr.f32.gmra.mrb[0].mxu0 %v4707
        %v6443 = vpop.f32.mrb[0].mxu0
        %v6444 = vadd.f32 %v6059, %v6443
        %v6445 = vpop.f32.mrb[0].mxu0
        %6446 = vmatprep.mubr.f32.mxu0 %v4716
        %6447 = vmatmul.mubr.f32.gmra.mrb[0].mxu0 %v4715
        %v6448 = vpop.f32.mrb[0].mxu0
        %v6449 = vadd.f32 %v6064, %v6448
        %v6450 = vpop.f32.mrb[0].mxu0
        %6451 = vmatprep.mubr.f32.mxu0 %v4724
        %6452 = vmatmul.mubr.f32.gmra.mrb[0].mxu0 %v4723
        %v6453 = vpop.f32.mrb[0].mxu0
        %v6454 = vadd.f32 %v6069, %v6453
        %v6455 = vpop.f32.mrb[0].mxu0
        %6456 = vmatprep.mubr.f32.mxu0 %v4732
        %6457 = vmatmul.mubr.f32.gmra.mrb[0].mxu0 %v4731
        %v6458 = vpop.f32.mrb[0].mxu0
        %v6459 = vadd.f32 %v6074, %v6458
        %v6460 = vpop.f32.mrb[0].mxu0
        %6461 = vmatprep.mubr.f32.mxu0 %v4740
        %6462 = vmatmul.mubr.f32.gmra.mrb[0].mxu0 %v4739
        %v6463 = vpop.f32.mrb[0].mxu0
        %v6464 = vadd.f32 %v6079, %v6463
        %v6465 = vpop.f32.mrb[0].mxu0
        %6466 = vmatprep.mubr.f32.mxu0 %v4748
        %6467 = vmatmul.mubr.f32.gmra.mrb[0].mxu0 %v4747
        %v6468 = vpop.f32.mrb[0].mxu0
        %v6469 = vadd.f32 %v6084, %v6468
        %v6470 = vpop.f32.mrb[0].mxu0
        %6471 = vmatprep.mubr.f32.mxu0 %v4756
        %6472 = vmatmul.mubr.f32.gmra.mrb[0].mxu0 %v4755
        %v6473 = vpop.f32.mrb[0].mxu0
        %v6474 = vadd.f32 %v6089, %v6473
        %v6475 = vpop.f32.mrb[0].mxu0
        %6476 = vmatprep.mubr.f32.mxu0 %v4764
        %6477 = vmatmul.mubr.f32.gmra.mrb[0].mxu0 %v4763
        %v6478 = vpop.f32.mrb[0].mxu0
        %v6479 = vadd.f32 %v6094, %v6478
        %v6480 = vpop.f32.mrb[0].mxu0
        %6481 = vmatprep.mubr.f32.mxu0 %v4772
        %6482 = vmatmul.mubr.f32.gmra.mrb[0].mxu0 %v4771
        %v6483 = vpop.f32.mrb[0].mxu0
        %v6484 = vadd.f32 %v6099, %v6483
        %v6485 = vpop.f32.mrb[0].mxu0
        %6486 = vmatprep.mubr.f32.mxu0 %v4780
        %6487 = vmatmul.mubr.f32.gmra.mrb[0].mxu0 %v4779
        %v6488 = vpop.f32.mrb[0].mxu0
        %v6489 = vadd.f32 %v6104, %v6488
        %v6490 = vpop.f32.mrb[0].mxu0
        %6491 = vmatprep.mubr.f32.mxu0 %v4788
        %6492 = vmatmul.mubr.f32.gmra.mrb[0].mxu0 %v4787
        %v6493 = vpop.f32.mrb[0].mxu0
        %v6494 = vadd.f32 %v6109, %v6493
        %v6495 = vpop.f32.mrb[0].mxu0
        %6496 = vmatprep.mubr.f32.mxu0 %v4796
        %6497 = vmatmul.mubr.f32.gmra.mrb[0].mxu0 %v4795
        %v6498 = vpop.f32.mrb[0].mxu0
        %v6499 = vadd.f32 %v6114, %v6498
        %v6500 = vpop.f32.mrb[0].mxu0
        %6501 = vmatprep.mubr.f32.mxu0 %v4804
        %6502 = vmatmul.mubr.f32.gmra.mrb[0].mxu0 %v4803
        %v6503 = vpop.f32.mrb[0].mxu0
        %v6504 = vadd.f32 %v6119, %v6503
        %v6505 = vpop.f32.mrb[0].mxu0
        %6506 = vmatprep.mubr.f32.mxu0 %v4812
        %6507 = vmatmul.mubr.f32.gmra.mrb[0].mxu0 %v4811
        %v6508 = vpop.f32.mrb[0].mxu0
        %v6509 = vadd.f32 %v6124, %v6508
        %v6510 = vpop.f32.mrb[0].mxu0
        %6511 = vmatprep.mubr.f32.mxu0 %v4820
        %6512 = vmatmul.mubr.f32.gmra.mrb[0].mxu0 %v4819
        %v6513 = vpop.f32.mrb[0].mxu0
        %v6514 = vadd.f32 %v6129, %v6513
        %v6515 = vpop.f32.mrb[0].mxu0
        %6516 = vmatprep.mubr.f32.mxu0 %v4828
        %6517 = vmatmul.mubr.f32.gmra.mrb[0].mxu0 %v4827
        %v6518 = vpop.f32.mrb[0].mxu0
        %v6519 = vadd.f32 %v6134, %v6518
        %v6520 = vpop.f32.mrb[0].mxu0
        %6521 = vmatprep.mubr.f32.mxu0 %v4836
        %6522 = vmatmul.mubr.f32.gmra.mrb[0].mxu0 %v4835
        %v6523 = vpop.f32.mrb[0].mxu0
        %v6524 = vadd.f32 %v6139, %v6523
        %v6525 = vpop.f32.mrb[0].mxu0
        %6526 = vmatprep.mubr.f32.mxu0 %v4844
        %6527 = vmatmul.mubr.f32.gmra.mrb[0].mxu0 %v4843
        %v6528 = vpop.f32.mrb[0].mxu0
        %v6529 = vadd.f32 %v6144, %v6528
        %v6530 = vpop.f32.mrb[0].mxu0
        %6531 = vmatprep.mubr.f32.mxu0 %v4852
        %6532 = vmatmul.mubr.f32.gmra.mrb[0].mxu0 %v4851
        %v6533 = vpop.f32.mrb[0].mxu0
        %v6534 = vadd.f32 %v6149, %v6533
        %v6535 = vpop.f32.mrb[0].mxu0
        %6536 = vmatprep.mubr.f32.mxu0 %v4860
        %6537 = vmatmul.mubr.f32.gmra.mrb[0].mxu0 %v4859
        %v6538 = vpop.f32.mrb[0].mxu0
        %v6539 = vadd.f32 %v6154, %v6538
        %v6540 = vpop.f32.mrb[0].mxu0
        %6541 = vmatprep.mubr.f32.mxu0 %v4868
        %6542 = vmatmul.mubr.f32.gmra.mrb[0].mxu0 %v4867
        %v6543 = vpop.f32.mrb[0].mxu0
        %v6544 = vadd.f32 %v6159, %v6543
        %v6545 = vpop.f32.mrb[0].mxu0
        %6546 = vmatprep.mubr.f32.mxu0 %v4876
        %6547 = vmatmul.mubr.f32.gmra.mrb[0].mxu0 %v4875
        %v6548 = vpop.f32.mrb[0].mxu0
        %v6549 = vadd.f32 %v6164, %v6548
        %v6550 = vpop.f32.mrb[0].mxu0
        %6551 = vdwg.mxu0
        %6552 = vst [vmem:[%s284] sm:$0xff] %v6234
        %6553 = vst [vmem:[%s284 + $0x8] sm:$0xff] %v6239
        %6554 = vst [vmem:[%s284 + $0x10] sm:$0xff] %v6244
        %6555 = vst [vmem:[%s284 + $0x18] sm:$0xff] %v6249
        %6556 = vst [vmem:[%s284 + $0x20] sm:$0xff] %v6254
        %6557 = vst [vmem:[%s284 + $0x28] sm:$0xff] %v6259
        %6558 = vst [vmem:[%s284 + $0x30] sm:$0xff] %v6264
        %6559 = vst [vmem:[%s284 + $0x38] sm:$0xff] %v6269
        %6560 = vst [vmem:[%s284 + $0x40] sm:$0xff] %v6274
        %6561 = vst [vmem:[%s284 + $0x48] sm:$0xff] %v6279
        %6562 = vst [vmem:[%s284 + $0x50] sm:$0xff] %v6284
        %6563 = vst [vmem:[%s284 + $0x58] sm:$0xff] %v6289
        %6564 = vst [vmem:[%s284 + $0x60] sm:$0xff] %v6294
        %6565 = vst [vmem:[%s284 + $0x68] sm:$0xff] %v6299
        %6566 = vst [vmem:[%s284 + $0x70] sm:$0xff] %v6304
        %6567 = vst [vmem:[%s284 + $0x78] sm:$0xff] %v6309
        %6568 = vst [vmem:[%s284 + $0x80] sm:$0xff] %v6314
        %6569 = vst [vmem:[%s284 + $0x88] sm:$0xff] %v6319
        %6570 = vst [vmem:[%s284 + $0x90] sm:$0xff] %v6324
        %6571 = vst [vmem:[%s284 + $0x98] sm:$0xff] %v6329
        %6572 = vst [vmem:[%s284 + $0xa0] sm:$0xff] %v6334
        %6573 = vst [vmem:[%s284 + $0xa8] sm:$0xff] %v6339
        %6574 = vst [vmem:[%s284 + $0xb0] sm:$0xff] %v6344
        %6575 = vst [vmem:[%s284 + $0xb8] sm:$0xff] %v6349
        %6576 = vst [vmem:[%s284 + $0xc0] sm:$0xff] %v6354
        %6577 = vst [vmem:[%s284 + $0xc8] sm:$0xff] %v6359
        %6578 = vst [vmem:[%s284 + $0xd0] sm:$0xff] %v6364
        %6579 = vst [vmem:[%s284 + $0xd8] sm:$0xff] %v6369
        %6580 = vst [vmem:[%s284 + $0xe0] sm:$0xff] %v6374
        %6581 = vst [vmem:[%s284 + $0xe8] sm:$0xff] %v6379
        %6582 = vst [vmem:[%s284 + $0xf0] sm:$0xff] %v6384
        %6583 = vst [vmem:[%s284 + $0xf8] sm:$0xff] %v6389
        %6584 = vst [vmem:[%s284 + $0x100] sm:$0xff] %v6394
        %6585 = vst [vmem:[%s284 + $0x108] sm:$0xff] %v6399
        %6586 = vst [vmem:[%s284 + $0x110] sm:$0xff] %v6404
        %6587 = vst [vmem:[%s284 + $0x118] sm:$0xff] %v6409
        %6588 = vst [vmem:[%s284 + $0x120] sm:$0xff] %v6414
        %6589 = vst [vmem:[%s284 + $0x128] sm:$0xff] %v6419
        %6590 = vst [vmem:[%s284 + $0x130] sm:$0xff] %v6424
        %6591 = vst [vmem:[%s284 + $0x138] sm:$0xff] %v6429
        %6592 = vst [vmem:[%s284 + $0x140] sm:$0xff] %v6434
        %6593 = vst [vmem:[%s284 + $0x148] sm:$0xff] %v6439
        %6594 = vst [vmem:[%s284 + $0x150] sm:$0xff] %v6444
        %6595 = vst [vmem:[%s284 + $0x158] sm:$0xff] %v6449
        %6596 = vst [vmem:[%s284 + $0x160] sm:$0xff] %v6454
        %6597 = vst [vmem:[%s284 + $0x168] sm:$0xff] %v6459
        %6598 = vst [vmem:[%s284 + $0x170] sm:$0xff] %v6464
        %6599 = vst [vmem:[%s284 + $0x178] sm:$0xff] %v6469
        %6600 = vst [vmem:[%s284 + $0x180] sm:$0xff] %v6474
        %6601 = vst [vmem:[%s284 + $0x188] sm:$0xff] %v6479
        %6602 = vst [vmem:[%s284 + $0x190] sm:$0xff] %v6484
        %6603 = vst [vmem:[%s284 + $0x198] sm:$0xff] %v6489
        %6604 = vst [vmem:[%s284 + $0x1a0] sm:$0xff] %v6494
        %6605 = vst [vmem:[%s284 + $0x1a8] sm:$0xff] %v6499
        %6606 = vst [vmem:[%s284 + $0x1b0] sm:$0xff] %v6504
        %6607 = vst [vmem:[%s284 + $0x1b8] sm:$0xff] %v6509
        %6608 = vst [vmem:[%s284 + $0x1c0] sm:$0xff] %v6514
        %6609 = vst [vmem:[%s284 + $0x1c8] sm:$0xff] %v6519
        %6610 = vst [vmem:[%s284 + $0x1d0] sm:$0xff] %v6524
        %6611 = vst [vmem:[%s284 + $0x1d8] sm:$0xff] %v6529
        %6612 = vst [vmem:[%s284 + $0x1e0] sm:$0xff] %v6534
        %6613 = vst [vmem:[%s284 + $0x1e8] sm:$0xff] %v6539
        %6614 = vst [vmem:[%s284 + $0x1f0] sm:$0xff] %v6544
        %6615 = vst [vmem:[%s284 + $0x1f8] sm:$0xff] %v6549
        %s6616 = sand.u32 %s142, 1
        %s6617 = scalar_lea.sflag [#allocation4], %s6616
        %s6618 = sand.u32 %s142, 1
        %s6619 = smul.addr %s6618, 512
        %s6620 = scalar_lea.vmem [#allocation10], %s6619
        // Predicated region
        $region57: #{tpu_custom_call.1} parent=39 // pred_check
          %p6621 = pneg %p152
        $region58: #{tpu_custom_call.1} parent=39 // pred_check_branch
          %6623 = sbr.rel (%p6621) target = $region60
        $region59: #{tpu_custom_call.1} parent=39 // pred_region
          %s6624 = smul.u32 64, %s24
          %s6626 = ssub.s32 8192, 8192
          %6627 = vsyncadd %s6617, %s6626
          %s6628 = smul.addr %s6624, 128
          %s6629 = scalar_lea.hbm %s5, %s6628
          %s6630 = sshll.u32 %s6620, 4
          %s6631 = int_to_ptr.vmem [resolvable:$true] %s6630
          %6636 = dma.vmem_to_hbm [thread:$0]  %s6631, 8192, %s6629, %s6617, 128, 128, 8
        $region60: #{tpu_custom_call.1} parent=39 // pred_fallthru
          _
      $region40: #{tpu_custom_call.1} parent=5 // pred_fallthru
        _
      %p6637 = scmp.le.s32.totalorder 2, %s19
      // Predicated region
      $region61: #{tpu_custom_call.1} parent=5 // pred_check
        %p6638 = pneg %p6637
      $region62: #{tpu_custom_call.1} parent=5 // pred_check_branch
        %6640 = sbr.rel (%p6638) target = $region64
      $region63: #{tpu_custom_call.1} parent=5 // pred_region
        %s6641 = ssub.s32 %s19, 2
        // Predicated region
        $region65: #{tpu_custom_call.1} parent=63 // pred_check
          %p6642 = pneg %p158
        $region66: #{tpu_custom_call.1} parent=63 // pred_check_branch
          %6644 = sbr.rel (%p6642) target = $region68
        $region67: #{tpu_custom_call.1} parent=63 // pred_region
          %s6645 = sand.u32 %s143, 1
          %s6646 = scalar_lea.sflag [#allocation4], %s6645
          %s6647 = sand.u32 %s143, 1
          %s6648 = smul.addr %s6647, 512
          %s6649 = scalar_lea.vmem [#allocation10], %s6648
          %6650 = dma.done %s6646, 8192
        $region68: #{tpu_custom_call.1} parent=63 // pred_fallthru
          _
      $region64: #{tpu_custom_call.1} parent=5 // pred_fallthru
        _
    $region6: #{tpu_custom_call.1} parent=1 // loop_footer
      %s23 = sadd.s32 1, %s19
    $region7: #{tpu_custom_call.1} parent=1 // loop_footer_branch
      %18 = sbr.rel target = $region3
    $region8: #{tpu_custom_call.1} parent=1 // loop_exit
      _
    %6651 = vsyncpa [#allocation3], 1
    %s6652 = scalar_lea.sflag [#allocation3], 1
    %6653 = vsyncpa %s6652, 1
    %6654 = vsyncpa [#allocation6], 1
    %6655 = vsyncpa [#allocation9], 1
    %6656 = vsyncpa [#allocation4], 1
    %s6657 = scalar_lea.sflag [#allocation4], 1
    %6658 = vsyncpa %s6657, 1

</llo_original>
